<compile_context>
chip_gen: v7x
topology: tpu7x:2x2x1
jax: 0.10.0
libtpu: 0.0.40
codegen_flags: <defaults>
</compile_context>

<pallas_src>
import jax
import jax.numpy as jnp
from jax.experimental import pallas as pl
from jax.experimental.pallas import tpu as pltpu

# Logical (PyTorch) dims.
D_IN, D_H, D_Z = 784, 400, 20
# Lane-padded dims (multiples of 128, MXU friendly).
D_INP = 896          # 784 -> 7*128   (input / recon lanes)
D_HP = 512           # 400 -> 512     (hidden)
D_ZP = 128           # 20  -> 128     (latent, one lane tile)
D_LAT = 2 * D_ZP     # fused [mu | logvar] output width


def _vae_kernel(x_ref, eps_ref,
                w1_ref, b1_ref,
                w2x_ref, b2x_ref,
                w3_ref, b3_ref,
                w4_ref, b4_ref,
                recon_ref, mulv_ref):
    bf16, f32 = jnp.bfloat16, jnp.float32

    # ---- encode: h1 = relu(x @ W1 + b1) ----
    x = x_ref[...].astype(bf16)                                           # (TB, 896)
    h1 = jnp.dot(x, w1_ref[...], preferred_element_type=f32) + b1_ref[...]
    h1 = jnp.maximum(h1, 0.0)                                             # (TB, 512) f32

    # ---- fused fc21/fc22: one matmul; mu in lanes [0:128), logvar in [128:256) ----
    mulv = jnp.dot(h1.astype(bf16), w2x_ref[...], preferred_element_type=f32)
    mulv = mulv + b2x_ref[...]                                            # (TB, 256) f32
    mulv_ref[...] = mulv                                                  # lane-dense store

    # ---- reparameterize (padded lanes of mulv/eps are exactly zero) ----
    mu_pad = mulv[:, :D_ZP]                                               # (TB, 128)
    logvar_pad = mulv[:, D_ZP:]                                           # (TB, 128)
    std_pad = jnp.exp(0.5 * logvar_pad)
    z_pad = mu_pad + eps_ref[...] * std_pad                               # zeros beyond lane 20

    # ---- decode: h3 = relu(z @ W3 + b3); recon = sigmoid(h3 @ W4 + b4) ----
    h3 = jnp.dot(z_pad.astype(bf16), w3_ref[...], preferred_element_type=f32) + b3_ref[...]
    h3 = jnp.maximum(h3, 0.0)                                             # (TB, 512) f32
    logits = jnp.dot(h3.astype(bf16), w4_ref[...], preferred_element_type=f32) + b4_ref[...]
    recon_ref[...] = jax.nn.sigmoid(logits)                               # (TB, 896)


def _round_up(n, m):
    return ((n + m - 1) // m) * m


def vae_forward(x, eps, params, *, tb=256):
    """x: (B,1,28,28) or (B,784); eps: (B,20) N(0,1) draw; params: pack_params() output.
    Returns (recon (B,784), mu (B,20), logvar (B,20))."""
    x2d = x.reshape(-1, D_IN).astype(jnp.float32)
    eps = eps.astype(jnp.float32)
    B = x2d.shape[0]

    tb_eff = min(tb, _round_up(B, 8))          # small batches -> single full-array tile
    Bp = _round_up(B, tb_eff)
    steps = Bp // tb_eff

    x_pad = jnp.pad(x2d, ((0, Bp - B), (0, D_INP - D_IN)))
    eps_pad = jnp.pad(eps, ((0, Bp - B), (0, D_ZP - D_Z)))

    def batch_spec(d):
        return pl.BlockSpec((tb_eff, d), lambda i: (i, 0))

    def resident(shape):                        # same block every step -> stays in VMEM
        return pl.BlockSpec(shape, lambda i: (0, 0))

    in_specs = [
        batch_spec(D_INP),                      # x tile
        batch_spec(D_ZP),                       # eps tile
        resident((D_INP, D_HP)),                # w1 (bf16)
        resident((1, D_HP)),                    # b1
        resident((D_HP, D_LAT)),                # w2x = fused [fc21 | fc22] (bf16)
        resident((1, D_LAT)),                   # b2x
        resident((D_ZP, D_HP)),                 # w3 (bf16)
        resident((1, D_HP)),                    # b3
        resident((D_HP, D_INP)),                # w4 (bf16)
        resident((1, D_INP)),                   # b4
    ]
    out_specs = (batch_spec(D_INP), batch_spec(D_LAT))
    out_shape = (
        jax.ShapeDtypeStruct((Bp, D_INP), jnp.float32),   # recon (lane-padded)
        jax.ShapeDtypeStruct((Bp, D_LAT), jnp.float32),   # [mu | logvar] (lane-padded)
    )

    matmul_flops = 2 * Bp * (D_INP * D_HP + D_HP * D_LAT + D_ZP * D_HP + D_HP * D_INP)
    weight_bytes = (2 * (D_INP * D_HP + D_HP * D_LAT + D_ZP * D_HP + D_HP * D_INP)
                    + 4 * (D_HP + D_LAT + D_HP + D_INP))
    io_bytes = Bp * (D_INP + D_ZP + D_INP + D_LAT) * 4
    cost = pl.CostEstimate(
        flops=matmul_flops,
        transcendentals=Bp * (D_ZP + D_INP),
        bytes_accessed=weight_bytes + io_bytes,
    )

    recon_pad, mulv = pl.pallas_call(
        _vae_kernel,
        out_shape=out_shape,
        grid=(steps,),
        in_specs=in_specs,
        out_specs=out_specs,
        compiler_params=pltpu.CompilerParams(dimension_semantics=("parallel",)),
        cost_estimate=cost,
    )(x_pad, eps_pad,
      params["w1"], params["b1"],
      params["w2x"], params["b2x"],
      params["w3"], params["b3"],
      params["w4"], params["b4"])

    recon = recon_pad[:B, :D_IN]
    mu = mulv[:B, :D_Z]
    logvar = mulv[:B, D_ZP:D_ZP + D_Z]
    return recon, mu, logvar


def init_params(key):
    """nn.Linear default init U(-1/sqrt(fan_in), +1/sqrt(fan_in)); W stored (in, out)."""
    def linear(k, fan_in, fan_out):
        kw, kb = jax.random.split(k)
        bound = 1.0 / jnp.sqrt(jnp.float32(fan_in))
        w = jax.random.uniform(kw, (fan_in, fan_out), jnp.float32, -bound, bound)
        b = jax.random.uniform(kb, (1, fan_out), jnp.float32, -bound, bound)
        return w, b

    k1, k21, k22, k3, k4 = jax.random.split(key, 5)
    w1, b1 = linear(k1, D_IN, D_H)
    w21, b21 = linear(k21, D_H, D_Z)
    w22, b22 = linear(k22, D_H, D_Z)
    w3, b3 = linear(k3, D_Z, D_H)
    w4, b4 = linear(k4, D_H, D_IN)
    return dict(w1=w1, b1=b1, w21=w21, b21=b21, w22=w22, b22=b22,
                w3=w3, b3=b3, w4=w4, b4=b4)


def pack_params(raw):
    """One-time prep: zero-pad to lane-aligned shapes, fuse fc21/fc22, cast weights to bf16."""
    def pad2(a, rows, cols):
        return jnp.pad(a, ((0, rows - a.shape[0]), (0, cols - a.shape[1])))

    w2x = jnp.zeros((D_HP, D_LAT), jnp.float32)
    w2x = w2x.at[:D_H, :D_Z].set(raw["w21"])
    w2x = w2x.at[:D_H, D_ZP:D_ZP + D_Z].set(raw["w22"])
    b2x = jnp.zeros((1, D_LAT), jnp.float32)
    b2x = b2x.at[:, :D_Z].set(raw["b21"])
    b2x = b2x.at[:, D_ZP:D_ZP + D_Z].set(raw["b22"])

    return dict(
        w1=pad2(raw["w1"], D_INP, D_HP).astype(jnp.bfloat16),
        b1=pad2(raw["b1"], 1, D_HP),
        w2x=w2x.astype(jnp.bfloat16),
        b2x=b2x,
        w3=pad2(raw["w3"], D_ZP, D_HP).astype(jnp.bfloat16),
        b3=pad2(raw["b3"], 1, D_HP),
        w4=pad2(raw["w4"], D_HP, D_INP).astype(jnp.bfloat16),
        b4=pad2(raw["b4"], 1, D_INP),
    )


def ref_forward(x, eps, raw):
    """Plain-JAX reference mirroring the kernel's precision (bf16 matmul inputs,
    f32 accumulation, f32 elementwise)."""
    f32 = jnp.float32
    c = lambda a: a.astype(jnp.bfloat16)
    x2d = x.reshape(-1, D_IN).astype(f32)
    h1 = jnp.maximum(jnp.dot(c(x2d), c(raw["w1"]), preferred_element_type=f32) + raw["b1"], 0.0)
    mu = jnp.dot(c(h1), c(raw["w21"]), preferred_element_type=f32) + raw["b21"]
    logvar = jnp.dot(c(h1), c(raw["w22"]), preferred_element_type=f32) + raw["b22"]
    z = mu + eps * jnp.exp(0.5 * logvar)
    h3 = jnp.maximum(jnp.dot(c(z), c(raw["w3"]), preferred_element_type=f32) + raw["b3"], 0.0)
    recon = jax.nn.sigmoid(jnp.dot(c(h3), c(raw["w4"]), preferred_element_type=f32) + raw["b4"])
    return recon, mu, logvar


if __name__ == "__main__":
    key = jax.random.PRNGKey(0)
    k_params, k_x, k_eps = jax.random.split(key, 3)

    B = 384                      # exercises 2 grid steps (TB=256) + batch padding path
    raw = init_params(k_params)
    packed = pack_params(raw)

    x = jax.random.uniform(k_x, (B, 1, 28, 28), jnp.float32)     # MNIST-like input
    eps = jax.random.normal(k_eps, (B, D_Z), jnp.float32)        # torch.randn_like(std)

    fwd = jax.jit(vae_forward)
    recon, mu, logvar = fwd(x, eps, packed)
    jax.block_until_ready((recon, mu, logvar))

    recon_r, mu_r, lv_r = ref_forward(x, eps, raw)

    assert recon.shape == (B, D_IN) and mu.shape == (B, D_Z) and logvar.shape == (B, D_Z)
    assert jnp.allclose(recon, recon_r, atol=5e-3), float(jnp.max(jnp.abs(recon - recon_r)))
    assert jnp.allclose(mu, mu_r, atol=5e-3), float(jnp.max(jnp.abs(mu - mu_r)))
    assert jnp.allclose(logvar, lv_r, atol=5e-3), float(jnp.max(jnp.abs(logvar - lv_r)))

    print("KERNEL_OK")
</pallas_src>

<mosaic_0001>
module attributes {stable_mosaic.version = 11 : i64} {
  func.func @_vae_kernel(%arg0: i32, %arg1: memref<256x896xf32, #tpu.memory_space<vmem>>, %arg2: memref<256x128xf32, #tpu.memory_space<vmem>>, %arg3: memref<896x512xbf16, #tpu.memory_space<vmem>>, %arg4: memref<1x512xf32, #tpu.memory_space<vmem>>, %arg5: memref<512x256xbf16, #tpu.memory_space<vmem>>, %arg6: memref<1x256xf32, #tpu.memory_space<vmem>>, %arg7: memref<128x512xbf16, #tpu.memory_space<vmem>>, %arg8: memref<1x512xf32, #tpu.memory_space<vmem>>, %arg9: memref<512x896xbf16, #tpu.memory_space<vmem>>, %arg10: memref<1x896xf32, #tpu.memory_space<vmem>>, %arg11: memref<256x896xf32, #tpu.memory_space<vmem>>, %arg12: memref<256x256xf32, #tpu.memory_space<vmem>>) attributes {dimension_semantics = [#tpu.dimension_semantics<parallel>], iteration_bounds = array<i64: 2>, scalar_prefetch = 0 : i64, scratch_operands = 0 : i64, tpu.core_type = #tpu.core_type<tc>, window_params = [{transform_indices = @transform_0, window_bounds = array<i64: 256, 896>}, {transform_indices = @transform_1, window_bounds = array<i64: 256, 128>}, {pipeline_mode = #tpu.pipeline_mode<synchronous>, transform_indices = @transform_2, window_bounds = array<i64: 896, 512>}, {pipeline_mode = #tpu.pipeline_mode<synchronous>, transform_indices = @transform_3, window_bounds = array<i64: 1, 512>}, {pipeline_mode = #tpu.pipeline_mode<synchronous>, transform_indices = @transform_4, window_bounds = array<i64: 512, 256>}, {pipeline_mode = #tpu.pipeline_mode<synchronous>, transform_indices = @transform_5, window_bounds = array<i64: 1, 256>}, {pipeline_mode = #tpu.pipeline_mode<synchronous>, transform_indices = @transform_6, window_bounds = array<i64: 128, 512>}, {pipeline_mode = #tpu.pipeline_mode<synchronous>, transform_indices = @transform_7, window_bounds = array<i64: 1, 512>}, {pipeline_mode = #tpu.pipeline_mode<synchronous>, transform_indices = @transform_8, window_bounds = array<i64: 512, 896>}, {pipeline_mode = #tpu.pipeline_mode<synchronous>, transform_indices = @transform_9, window_bounds = array<i64: 1, 896>}, {transform_indices = @transform_10, window_bounds = array<i64: 256, 896>}, {transform_indices = @transform_11, window_bounds = array<i64: 256, 256>}]} {
    %c0 = arith.constant 0 : index
    %c0_0 = arith.constant 0 : index
    %0 = vector.load %arg1[%c0, %c0_0] : memref<256x896xf32, #tpu.memory_space<vmem>>, vector<256x896xf32>
    %1 = arith.truncf %0 : vector<256x896xf32> to vector<256x896xbf16>
    %c0_1 = arith.constant 0 : index
    %c0_2 = arith.constant 0 : index
    %2 = vector.load %arg3[%c0_1, %c0_2] : memref<896x512xbf16, #tpu.memory_space<vmem>>, vector<896x512xbf16>
    %cst = arith.constant dense<0.000000e+00> : vector<256x512xf32>
    %3 = tpu.matmul %1, %2, %cst {dimension_numbers = #tpu.dot_dimension_numbers<[1], [0], [0], [1], [0, 0, 1, 1], [], []>} : vector<256x896xbf16>, vector<896x512xbf16>, vector<256x512xf32> -> vector<256x512xf32>
    %c0_3 = arith.constant 0 : index
    %c0_4 = arith.constant 0 : index
    %4 = vector.load %arg4[%c0_3, %c0_4] : memref<1x512xf32, #tpu.memory_space<vmem>>, vector<1x512xf32>
    %5 = vector.broadcast %4 : vector<1x512xf32> to vector<256x512xf32>
    %6 = arith.addf %3, %5 : vector<256x512xf32>
    %cst_5 = arith.constant 0.000000e+00 : f32
    %7 = vector.broadcast %cst_5 : f32 to vector<256x512xf32>
    %8 = arith.maximumf %6, %7 : vector<256x512xf32>
    %9 = arith.truncf %8 : vector<256x512xf32> to vector<256x512xbf16>
    %c0_6 = arith.constant 0 : index
    %c0_7 = arith.constant 0 : index
    %10 = vector.load %arg5[%c0_6, %c0_7] : memref<512x256xbf16, #tpu.memory_space<vmem>>, vector<512x256xbf16>
    %cst_8 = arith.constant dense<0.000000e+00> : vector<256x256xf32>
    %11 = tpu.matmul %9, %10, %cst_8 {dimension_numbers = #tpu.dot_dimension_numbers<[1], [0], [0], [1], [0, 0, 1, 1], [], []>} : vector<256x512xbf16>, vector<512x256xbf16>, vector<256x256xf32> -> vector<256x256xf32>
    %c0_9 = arith.constant 0 : index
    %c0_10 = arith.constant 0 : index
    %12 = vector.load %arg6[%c0_9, %c0_10] : memref<1x256xf32, #tpu.memory_space<vmem>>, vector<1x256xf32>
    %13 = vector.broadcast %12 : vector<1x256xf32> to vector<256x256xf32>
    %14 = arith.addf %11, %13 : vector<256x256xf32>
    %c0_11 = arith.constant 0 : index
    %c0_12 = arith.constant 0 : index
    %15 = vector.load %arg12[%c0_11, %c0_12] : memref<256x256xf32, #tpu.memory_space<vmem>>, vector<256x256xf32>
    tpu.vector_store %arg12[%c0_11, %c0_12], %14 {strides = array<i32>} : memref<256x256xf32, #tpu.memory_space<vmem>>, vector<256x256xf32>,
    %16 = vector.extract_strided_slice %14 {offsets = [0, 0], sizes = [256, 128], strides = [1, 1]} : vector<256x256xf32> to vector<256x128xf32>
    %17 = vector.extract_strided_slice %14 {offsets = [0, 128], sizes = [256, 128], strides = [1, 1]} : vector<256x256xf32> to vector<256x128xf32>
    %cst_13 = arith.constant 5.000000e-01 : f32
    %18 = vector.broadcast %cst_13 : f32 to vector<256x128xf32>
    %19 = arith.mulf %18, %17 : vector<256x128xf32>
    %20 = math.exp %19 : vector<256x128xf32>
    %c0_14 = arith.constant 0 : index
    %c0_15 = arith.constant 0 : index
    %21 = vector.load %arg2[%c0_14, %c0_15] : memref<256x128xf32, #tpu.memory_space<vmem>>, vector<256x128xf32>
    %22 = arith.mulf %21, %20 : vector<256x128xf32>
    %23 = arith.addf %16, %22 : vector<256x128xf32>
    %24 = arith.truncf %23 : vector<256x128xf32> to vector<256x128xbf16>
    %c0_16 = arith.constant 0 : index
    %c0_17 = arith.constant 0 : index
    %25 = vector.load %arg7[%c0_16, %c0_17] : memref<128x512xbf16, #tpu.memory_space<vmem>>, vector<128x512xbf16>
    %cst_18 = arith.constant dense<0.000000e+00> : vector<256x512xf32>
    %26 = tpu.matmul %24, %25, %cst_18 {dimension_numbers = #tpu.dot_dimension_numbers<[1], [0], [0], [1], [0, 0, 1, 1], [], []>} : vector<256x128xbf16>, vector<128x512xbf16>, vector<256x512xf32> -> vector<256x512xf32>
    %c0_19 = arith.constant 0 : index
    %c0_20 = arith.constant 0 : index
    %27 = vector.load %arg8[%c0_19, %c0_20] : memref<1x512xf32, #tpu.memory_space<vmem>>, vector<1x512xf32>
    %28 = vector.broadcast %27 : vector<1x512xf32> to vector<256x512xf32>
    %29 = arith.addf %26, %28 : vector<256x512xf32>
    %cst_21 = arith.constant 0.000000e+00 : f32
    %30 = vector.broadcast %cst_21 : f32 to vector<256x512xf32>
    %31 = arith.maximumf %29, %30 : vector<256x512xf32>
    %32 = arith.truncf %31 : vector<256x512xf32> to vector<256x512xbf16>
    %c0_22 = arith.constant 0 : index
    %c0_23 = arith.constant 0 : index
    %33 = vector.load %arg9[%c0_22, %c0_23] : memref<512x896xbf16, #tpu.memory_space<vmem>>, vector<512x896xbf16>
    %cst_24 = arith.constant dense<0.000000e+00> : vector<256x896xf32>
    %34 = tpu.matmul %32, %33, %cst_24 {dimension_numbers = #tpu.dot_dimension_numbers<[1], [0], [0], [1], [0, 0, 1, 1], [], []>} : vector<256x512xbf16>, vector<512x896xbf16>, vector<256x896xf32> -> vector<256x896xf32>
    %c0_25 = arith.constant 0 : index
    %c0_26 = arith.constant 0 : index
    %35 = vector.load %arg10[%c0_25, %c0_26] : memref<1x896xf32, #tpu.memory_space<vmem>>, vector<1x896xf32>
    %36 = vector.broadcast %35 : vector<1x896xf32> to vector<256x896xf32>
    %37 = arith.addf %34, %36 : vector<256x896xf32>
    %38 = arith.negf %37 : vector<256x896xf32>
    %39 = math.exp %38 : vector<256x896xf32>
    %cst_27 = arith.constant 1.000000e+00 : f32
    %40 = vector.broadcast %cst_27 : f32 to vector<256x896xf32>
    %41 = arith.addf %40, %39 : vector<256x896xf32>
    %42 = arith.divf %40, %41 : vector<256x896xf32>
    %c0_28 = arith.constant 0 : index
    %c0_29 = arith.constant 0 : index
    %43 = vector.load %arg11[%c0_28, %c0_29] : memref<256x896xf32, #tpu.memory_space<vmem>>, vector<256x896xf32>
    tpu.vector_store %arg11[%c0_28, %c0_29], %42 {strides = array<i32>} : memref<256x896xf32, #tpu.memory_space<vmem>>, vector<256x896xf32>,
    return
  }
  func.func @transform_0(%arg0: i32) -> (i32, i32) {
    %c0_i32 = arith.constant 0 : i32
    %c0_i32_0 = arith.constant 0 : i32
    return %arg0, %c0_i32 : i32, i32
  }
  func.func @transform_1(%arg0: i32) -> (i32, i32) {
    %c0_i32 = arith.constant 0 : i32
    %c0_i32_0 = arith.constant 0 : i32
    return %arg0, %c0_i32 : i32, i32
  }
  func.func @transform_2(%arg0: i32) -> (i32, i32) {
    %c0_i32 = arith.constant 0 : i32
    %c0_i32_0 = arith.constant 0 : i32
    %c0_i32_1 = arith.constant 0 : i32
    return %c0_i32, %c0_i32_0 : i32, i32
  }
  func.func @transform_3(%arg0: i32) -> (i32, i32) {
    %c0_i32 = arith.constant 0 : i32
    %c0_i32_0 = arith.constant 0 : i32
    %c0_i32_1 = arith.constant 0 : i32
    return %c0_i32, %c0_i32_0 : i32, i32
  }
  func.func @transform_4(%arg0: i32) -> (i32, i32) {
    %c0_i32 = arith.constant 0 : i32
    %c0_i32_0 = arith.constant 0 : i32
    %c0_i32_1 = arith.constant 0 : i32
    return %c0_i32, %c0_i32_0 : i32, i32
  }
  func.func @transform_5(%arg0: i32) -> (i32, i32) {
    %c0_i32 = arith.constant 0 : i32
    %c0_i32_0 = arith.constant 0 : i32
    %c0_i32_1 = arith.constant 0 : i32
    return %c0_i32, %c0_i32_0 : i32, i32
  }
  func.func @transform_6(%arg0: i32) -> (i32, i32) {
    %c0_i32 = arith.constant 0 : i32
    %c0_i32_0 = arith.constant 0 : i32
    %c0_i32_1 = arith.constant 0 : i32
    return %c0_i32, %c0_i32_0 : i32, i32
  }
  func.func @transform_7(%arg0: i32) -> (i32, i32) {
    %c0_i32 = arith.constant 0 : i32
    %c0_i32_0 = arith.constant 0 : i32
    %c0_i32_1 = arith.constant 0 : i32
    return %c0_i32, %c0_i32_0 : i32, i32
  }
  func.func @transform_8(%arg0: i32) -> (i32, i32) {
    %c0_i32 = arith.constant 0 : i32
    %c0_i32_0 = arith.constant 0 : i32
    %c0_i32_1 = arith.constant 0 : i32
    return %c0_i32, %c0_i32_0 : i32, i32
  }
  func.func @transform_9(%arg0: i32) -> (i32, i32) {
    %c0_i32 = arith.constant 0 : i32
    %c0_i32_0 = arith.constant 0 : i32
    %c0_i32_1 = arith.constant 0 : i32
    return %c0_i32, %c0_i32_0 : i32, i32
  }
  func.func @transform_10(%arg0: i32) -> (i32, i32) {
    %c0_i32 = arith.constant 0 : i32
    %c0_i32_0 = arith.constant 0 : i32
    return %arg0, %c0_i32 : i32, i32
  }
  func.func @transform_11(%arg0: i32) -> (i32, i32) {
    %c0_i32 = arith.constant 0 : i32
    %c0_i32_0 = arith.constant 0 : i32
    return %arg0, %c0_i32 : i32, i32
  }
}

</mosaic_0001>

<llo_original>
// kernel: vae_forward.1
$region0: #{vae_forward.1}
  #allocation0 [shape = 'u32[]', space=smem, size = 0x4, offset = 0x4, fixed_abs, tag = 'smem constant byte address 0x4 - core index']
  #allocation1 [shape = 'u32[144,128]{1,0:T(1,128)}', space=vmem, size = 0x12000, scoped, tag = 'internal scratch']
  %s0 = inlined_call_operand.vmem [shape: f32[512,896], index: 0, kind: input, shape index: {}]
  %s1 = inlined_call_operand.vmem [shape: f32[512,128], index: 1, kind: input, shape index: {}]
  %s2 = inlined_call_operand.vmem [shape: bf16[896,512], index: 2, kind: input, shape index: {}]
  %s3 = inlined_call_operand.vmem [shape: f32[1,512], index: 3, kind: input, shape index: {}]
  %s4 = inlined_call_operand.vmem [shape: bf16[512,256], index: 4, kind: input, shape index: {}]
  %s5 = inlined_call_operand.vmem [shape: f32[1,256], index: 5, kind: input, shape index: {}]
  %s6 = inlined_call_operand.vmem [shape: bf16[128,512], index: 6, kind: input, shape index: {}]
  %s7 = inlined_call_operand.vmem [shape: f32[1,512], index: 7, kind: input, shape index: {}]
  %s8 = inlined_call_operand.vmem [shape: bf16[512,896], index: 8, kind: input, shape index: {}]
  %s9 = inlined_call_operand.vmem [shape: f32[1,896], index: 9, kind: input, shape index: {}]
  %s10 = inlined_call_operand.vmem [shape: f32[512,896], index: 10, kind: output, shape index: {0}]
  %s11 = inlined_call_operand.vmem [shape: f32[512,256], index: 11, kind: output, shape index: {1}]
  %12 = xla_tuple %s10, %s11
  %s13 = sld [smem:[#allocation0]]
  $region81: #{vae_forward.1} parent=0
    _
  %s15 = ssub.s32 1, %s13
  %s16 = scalar_select 0, %s15, %s13
  loop: start=0, step=1, limit=4
  $region2: #{vae_forward.1} parent=0 // loop_pre_header
    _
  $region3: #{vae_forward.1} parent=0 // loop_header
    %s18 = sphi 0, %s22
    %p19 = scmp.ge.s32.totalorder %s18, 4
    %s28 = sphi 0, %s30
    %s31 = sphi 0, %s28
    %s32 = sphi 0, %s31
    %s48 = sphi 0, %s32
    %s54 = sphi 0, %s56
    %s57 = sphi 0, %s54
    %s58 = sphi 0, %s57
    %s74 = sphi 0, %s58
    %s78 = sphi 0, %s78
    %s80 = sphi 0, %s78
    %s81 = sphi 0, %s80
    %s95 = sphi 0, %s81
    %s99 = sphi 0, %s99
    %s101 = sphi 0, %s99
    %s102 = sphi 0, %s101
    %s116 = sphi 0, %s102
    %s120 = sphi 0, %s120
    %s122 = sphi 0, %s120
    %s123 = sphi 0, %s122
    %s137 = sphi 0, %s123
    %s141 = sphi 0, %s141
    %s143 = sphi 0, %s141
    %s144 = sphi 0, %s143
    %s158 = sphi 0, %s144
    %s162 = sphi 0, %s162
    %s164 = sphi 0, %s162
    %s165 = sphi 0, %s164
    %s179 = sphi 0, %s165
    %s183 = sphi 0, %s183
    %s185 = sphi 0, %s183
    %s186 = sphi 0, %s185
    %s200 = sphi 0, %s186
    %s204 = sphi 0, %s204
    %s206 = sphi 0, %s204
    %s207 = sphi 0, %s206
    %s221 = sphi 0, %s207
    %s225 = sphi 0, %s225
    %s227 = sphi 0, %s225
    %s228 = sphi 0, %s227
    %s242 = sphi 0, %s228
    %s248 = sphi 0, %s250
    %s251 = sphi 0, %s248
    %s252 = sphi 0, %s251
    %s268 = sphi 0, %s252
    %s274 = sphi 0, %s276
    %s277 = sphi 0, %s274
    %s278 = sphi 0, %s277
    %s294 = sphi 0, %s278
  $region4: #{vae_forward.1} parent=0 // loop_header_branch
    %21 = sbr.rel (%p19) target = $region8
  $region5: #{vae_forward.1} parent=0 // loop_body
    %s23 = ssub.s32 %s18, 1
    %s24 = ssub.s32 %s18, 2
    %s25 = sadd.s32 %s18, 1
    %s26 = ssub.s32 %s18, %s25
    %p27 = scmp.eq.s32.totalorder %s26, 0
    %s29 = sadd.s32 %s28, 1
    %s30 = scalar_select %p27, %s28, %s29
    %p33 = pneg %p27
    %p34 = scmp.eq.s32.totalorder %s18, 1
    %p35 = por %p33, %p34
    %p36 = scmp.ne.s32.totalorder %s28, %s31
    %p37 = scmp.eq.s32.totalorder %s18, 0
    %p38 = por %p36, %p37
    %p39 = scmp.ne.s32.totalorder %s28, %s31
    %p40 = scmp.eq.s32.totalorder %s23, 1
    %p41 = por %p39, %p40
    %p42 = scmp.ne.s32.totalorder %s31, %s32
    %p43 = scmp.eq.s32.totalorder %s23, 0
    %p44 = por %p42, %p43
    %p45 = scmp.ne.s32.totalorder %s31, %s32
    %p46 = scmp.eq.s32.totalorder %s24, 1
    %p47 = por %p45, %p46
    %p49 = scmp.ne.s32.totalorder %s32, %s48
    %p50 = scmp.eq.s32.totalorder %s24, 0
    %p51 = por %p49, %p50
    %s52 = ssub.s32 %s18, %s25
    %p53 = scmp.eq.s32.totalorder %s52, 0
    %s55 = sadd.s32 %s54, 1
    %s56 = scalar_select %p53, %s54, %s55
    %p59 = pneg %p53
    %p60 = scmp.eq.s32.totalorder %s18, 1
    %p61 = por %p59, %p60
    %p62 = scmp.ne.s32.totalorder %s54, %s57
    %p63 = scmp.eq.s32.totalorder %s18, 0
    %p64 = por %p62, %p63
    %p65 = scmp.ne.s32.totalorder %s54, %s57
    %p66 = scmp.eq.s32.totalorder %s23, 1
    %p67 = por %p65, %p66
    %p68 = scmp.ne.s32.totalorder %s57, %s58
    %p69 = scmp.eq.s32.totalorder %s23, 0
    %p70 = por %p68, %p69
    %p71 = scmp.ne.s32.totalorder %s57, %s58
    %p72 = scmp.eq.s32.totalorder %s24, 1
    %p73 = por %p71, %p72
    %p75 = scmp.ne.s32.totalorder %s58, %s74
    %p76 = scmp.eq.s32.totalorder %s24, 0
    %p77 = por %p75, %p76
    %s79 = sadd.s32 %s78, 1
    %p82 = scmp.eq.s32.totalorder %s18, 1
    %p83 = scmp.ne.s32.totalorder %s78, %s80
    %p84 = scmp.eq.s32.totalorder %s18, 0
    %p85 = por %p83, %p84
    %p86 = scmp.ne.s32.totalorder %s78, %s80
    %p87 = scmp.eq.s32.totalorder %s23, 1
    %p88 = por %p86, %p87
    %p89 = scmp.ne.s32.totalorder %s80, %s81
    %p90 = scmp.eq.s32.totalorder %s23, 0
    %p91 = por %p89, %p90
    %p92 = scmp.ne.s32.totalorder %s80, %s81
    %p93 = scmp.eq.s32.totalorder %s24, 1
    %p94 = por %p92, %p93
    %p96 = scmp.ne.s32.totalorder %s81, %s95
    %p97 = scmp.eq.s32.totalorder %s24, 0
    %p98 = por %p96, %p97
    %s100 = sadd.s32 %s99, 1
    %p103 = scmp.eq.s32.totalorder %s18, 1
    %p104 = scmp.ne.s32.totalorder %s99, %s101
    %p105 = scmp.eq.s32.totalorder %s18, 0
    %p106 = por %p104, %p105
    %p107 = scmp.ne.s32.totalorder %s99, %s101
    %p108 = scmp.eq.s32.totalorder %s23, 1
    %p109 = por %p107, %p108
    %p110 = scmp.ne.s32.totalorder %s101, %s102
    %p111 = scmp.eq.s32.totalorder %s23, 0
    %p112 = por %p110, %p111
    %p113 = scmp.ne.s32.totalorder %s101, %s102
    %p114 = scmp.eq.s32.totalorder %s24, 1
    %p115 = por %p113, %p114
    %p117 = scmp.ne.s32.totalorder %s102, %s116
    %p118 = scmp.eq.s32.totalorder %s24, 0
    %p119 = por %p117, %p118
    %s121 = sadd.s32 %s120, 1
    %p124 = scmp.eq.s32.totalorder %s18, 1
    %p125 = scmp.ne.s32.totalorder %s120, %s122
    %p126 = scmp.eq.s32.totalorder %s18, 0
    %p127 = por %p125, %p126
    %p128 = scmp.ne.s32.totalorder %s120, %s122
    %p129 = scmp.eq.s32.totalorder %s23, 1
    %p130 = por %p128, %p129
    %p131 = scmp.ne.s32.totalorder %s122, %s123
    %p132 = scmp.eq.s32.totalorder %s23, 0
    %p133 = por %p131, %p132
    %p134 = scmp.ne.s32.totalorder %s122, %s123
    %p135 = scmp.eq.s32.totalorder %s24, 1
    %p136 = por %p134, %p135
    %p138 = scmp.ne.s32.totalorder %s123, %s137
    %p139 = scmp.eq.s32.totalorder %s24, 0
    %p140 = por %p138, %p139
    %s142 = sadd.s32 %s141, 1
    %p145 = scmp.eq.s32.totalorder %s18, 1
    %p146 = scmp.ne.s32.totalorder %s141, %s143
    %p147 = scmp.eq.s32.totalorder %s18, 0
    %p148 = por %p146, %p147
    %p149 = scmp.ne.s32.totalorder %s141, %s143
    %p150 = scmp.eq.s32.totalorder %s23, 1
    %p151 = por %p149, %p150
    %p152 = scmp.ne.s32.totalorder %s143, %s144
    %p153 = scmp.eq.s32.totalorder %s23, 0
    %p154 = por %p152, %p153
    %p155 = scmp.ne.s32.totalorder %s143, %s144
    %p156 = scmp.eq.s32.totalorder %s24, 1
    %p157 = por %p155, %p156
    %p159 = scmp.ne.s32.totalorder %s144, %s158
    %p160 = scmp.eq.s32.totalorder %s24, 0
    %p161 = por %p159, %p160
    %s163 = sadd.s32 %s162, 1
    %p166 = scmp.eq.s32.totalorder %s18, 1
    %p167 = scmp.ne.s32.totalorder %s162, %s164
    %p168 = scmp.eq.s32.totalorder %s18, 0
    %p169 = por %p167, %p168
    %p170 = scmp.ne.s32.totalorder %s162, %s164
    %p171 = scmp.eq.s32.totalorder %s23, 1
    %p172 = por %p170, %p171
    %p173 = scmp.ne.s32.totalorder %s164, %s165
    %p174 = scmp.eq.s32.totalorder %s23, 0
    %p175 = por %p173, %p174
    %p176 = scmp.ne.s32.totalorder %s164, %s165
    %p177 = scmp.eq.s32.totalorder %s24, 1
    %p178 = por %p176, %p177
    %p180 = scmp.ne.s32.totalorder %s165, %s179
    %p181 = scmp.eq.s32.totalorder %s24, 0
    %p182 = por %p180, %p181
    %s184 = sadd.s32 %s183, 1
    %p187 = scmp.eq.s32.totalorder %s18, 1
    %p188 = scmp.ne.s32.totalorder %s183, %s185
    %p189 = scmp.eq.s32.totalorder %s18, 0
    %p190 = por %p188, %p189
    %p191 = scmp.ne.s32.totalorder %s183, %s185
    %p192 = scmp.eq.s32.totalorder %s23, 1
    %p193 = por %p191, %p192
    %p194 = scmp.ne.s32.totalorder %s185, %s186
    %p195 = scmp.eq.s32.totalorder %s23, 0
    %p196 = por %p194, %p195
    %p197 = scmp.ne.s32.totalorder %s185, %s186
    %p198 = scmp.eq.s32.totalorder %s24, 1
    %p199 = por %p197, %p198
    %p201 = scmp.ne.s32.totalorder %s186, %s200
    %p202 = scmp.eq.s32.totalorder %s24, 0
    %p203 = por %p201, %p202
    %s205 = sadd.s32 %s204, 1
    %p208 = scmp.eq.s32.totalorder %s18, 1
    %p209 = scmp.ne.s32.totalorder %s204, %s206
    %p210 = scmp.eq.s32.totalorder %s18, 0
    %p211 = por %p209, %p210
    %p212 = scmp.ne.s32.totalorder %s204, %s206
    %p213 = scmp.eq.s32.totalorder %s23, 1
    %p214 = por %p212, %p213
    %p215 = scmp.ne.s32.totalorder %s206, %s207
    %p216 = scmp.eq.s32.totalorder %s23, 0
    %p217 = por %p215, %p216
    %p218 = scmp.ne.s32.totalorder %s206, %s207
    %p219 = scmp.eq.s32.totalorder %s24, 1
    %p220 = por %p218, %p219
    %p222 = scmp.ne.s32.totalorder %s207, %s221
    %p223 = scmp.eq.s32.totalorder %s24, 0
    %p224 = por %p222, %p223
    %s226 = sadd.s32 %s225, 1
    %p229 = scmp.eq.s32.totalorder %s18, 1
    %p230 = scmp.ne.s32.totalorder %s225, %s227
    %p231 = scmp.eq.s32.totalorder %s18, 0
    %p232 = por %p230, %p231
    %p233 = scmp.ne.s32.totalorder %s225, %s227
    %p234 = scmp.eq.s32.totalorder %s23, 1
    %p235 = por %p233, %p234
    %p236 = scmp.ne.s32.totalorder %s227, %s228
    %p237 = scmp.eq.s32.totalorder %s23, 0
    %p238 = por %p236, %p237
    %p239 = scmp.ne.s32.totalorder %s227, %s228
    %p240 = scmp.eq.s32.totalorder %s24, 1
    %p241 = por %p239, %p240
    %p243 = scmp.ne.s32.totalorder %s228, %s242
    %p244 = scmp.eq.s32.totalorder %s24, 0
    %p245 = por %p243, %p244
    %s246 = ssub.s32 %s18, %s25
    %p247 = scmp.eq.s32.totalorder %s246, 0
    %s249 = sadd.s32 %s248, 1
    %s250 = scalar_select %p247, %s248, %s249
    %p253 = pneg %p247
    %p254 = scmp.eq.s32.totalorder %s18, 1
    %p255 = por %p253, %p254
    %p256 = scmp.ne.s32.totalorder %s248, %s251
    %p257 = scmp.eq.s32.totalorder %s18, 0
    %p258 = por %p256, %p257
    %p259 = scmp.ne.s32.totalorder %s248, %s251
    %p260 = scmp.eq.s32.totalorder %s23, 1
    %p261 = por %p259, %p260
    %p262 = scmp.ne.s32.totalorder %s251, %s252
    %p263 = scmp.eq.s32.totalorder %s23, 0
    %p264 = por %p262, %p263
    %p265 = scmp.ne.s32.totalorder %s251, %s252
    %p266 = scmp.eq.s32.totalorder %s24, 1
    %p267 = por %p265, %p266
    %p269 = scmp.ne.s32.totalorder %s252, %s268
    %p270 = scmp.eq.s32.totalorder %s24, 0
    %p271 = por %p269, %p270
    %s272 = ssub.s32 %s18, %s25
    %p273 = scmp.eq.s32.totalorder %s272, 0
    %s275 = sadd.s32 %s274, 1
    %s276 = scalar_select %p273, %s274, %s275
    %p279 = pneg %p273
    %p280 = scmp.eq.s32.totalorder %s18, 1
    %p281 = por %p279, %p280
    %p282 = scmp.ne.s32.totalorder %s274, %s277
    %p283 = scmp.eq.s32.totalorder %s18, 0
    %p284 = por %p282, %p283
    %p285 = scmp.ne.s32.totalorder %s274, %s277
    %p286 = scmp.eq.s32.totalorder %s23, 1
    %p287 = por %p285, %p286
    %p288 = scmp.ne.s32.totalorder %s277, %s278
    %p289 = scmp.eq.s32.totalorder %s23, 0
    %p290 = por %p288, %p289
    %p291 = scmp.ne.s32.totalorder %s277, %s278
    %p292 = scmp.eq.s32.totalorder %s24, 1
    %p293 = por %p291, %p292
    %p295 = scmp.ne.s32.totalorder %s278, %s294
    %p296 = scmp.eq.s32.totalorder %s24, 0
    %p297 = por %p295, %p296
    %p298 = scmp.le.s32.totalorder 1, %s18
    %p299 = scmp.lt.s32.totalorder %s18, 3
    %p300 = pnand %p298, %p299
    %p301 = pneg %p300
    // Predicated region
    $region9: #{vae_forward.1} parent=5 // pred_check
      _
    $region10: #{vae_forward.1} parent=5 // pred_check_branch
      %303 = sbr.rel (%p300) target = $region12
    $region11: #{vae_forward.1} parent=5 // pred_region
      %s304 = ssub.s32 %s18, 1
      // Predicated region
      $region13: #{vae_forward.1} parent=11 // pred_check
        %p305 = pneg %p91
      $region14: #{vae_forward.1} parent=11 // pred_check_branch
        %307 = sbr.rel (%p305) target = $region16
      $region15: #{vae_forward.1} parent=11 // pred_region
        _
      $region16: #{vae_forward.1} parent=11 // pred_fallthru
        _
      // Predicated region
      $region17: #{vae_forward.1} parent=11 // pred_check
        %p308 = pneg %p112
      $region18: #{vae_forward.1} parent=11 // pred_check_branch
        %310 = sbr.rel (%p308) target = $region20
      $region19: #{vae_forward.1} parent=11 // pred_region
        _
      $region20: #{vae_forward.1} parent=11 // pred_fallthru
        _
      // Predicated region
      $region21: #{vae_forward.1} parent=11 // pred_check
        %p311 = pneg %p133
      $region22: #{vae_forward.1} parent=11 // pred_check_branch
        %313 = sbr.rel (%p311) target = $region24
      $region23: #{vae_forward.1} parent=11 // pred_region
        _
      $region24: #{vae_forward.1} parent=11 // pred_fallthru
        _
      // Predicated region
      $region25: #{vae_forward.1} parent=11 // pred_check
        %p314 = pneg %p154
      $region26: #{vae_forward.1} parent=11 // pred_check_branch
        %316 = sbr.rel (%p314) target = $region28
      $region27: #{vae_forward.1} parent=11 // pred_region
        _
      $region28: #{vae_forward.1} parent=11 // pred_fallthru
        _
      // Predicated region
      $region29: #{vae_forward.1} parent=11 // pred_check
        %p317 = pneg %p175
      $region30: #{vae_forward.1} parent=11 // pred_check_branch
        %319 = sbr.rel (%p317) target = $region32
      $region31: #{vae_forward.1} parent=11 // pred_region
        _
      $region32: #{vae_forward.1} parent=11 // pred_fallthru
        _
      // Predicated region
      $region33: #{vae_forward.1} parent=11 // pred_check
        %p320 = pneg %p196
      $region34: #{vae_forward.1} parent=11 // pred_check_branch
        %322 = sbr.rel (%p320) target = $region36
      $region35: #{vae_forward.1} parent=11 // pred_region
        _
      $region36: #{vae_forward.1} parent=11 // pred_fallthru
        _
      // Predicated region
      $region37: #{vae_forward.1} parent=11 // pred_check
        %p323 = pneg %p217
      $region38: #{vae_forward.1} parent=11 // pred_check_branch
        %325 = sbr.rel (%p323) target = $region40
      $region39: #{vae_forward.1} parent=11 // pred_region
        _
      $region40: #{vae_forward.1} parent=11 // pred_fallthru
        _
      // Predicated region
      $region41: #{vae_forward.1} parent=11 // pred_check
        %p326 = pneg %p238
      $region42: #{vae_forward.1} parent=11 // pred_check_branch
        %328 = sbr.rel (%p326) target = $region44
      $region43: #{vae_forward.1} parent=11 // pred_region
        _
      $region44: #{vae_forward.1} parent=11 // pred_fallthru
        _
    $region12: #{vae_forward.1} parent=5 // pred_fallthru
      _
    %p329 = scmp.lt.s32.totalorder %s18, 2
    // Predicated region
    $region45: #{vae_forward.1} parent=5 // pred_check
      %p330 = pneg %p329
    $region46: #{vae_forward.1} parent=5 // pred_check_branch
      %332 = sbr.rel (%p330) target = $region48
    $region47: #{vae_forward.1} parent=5 // pred_region
      // Predicated region
      $region49: #{vae_forward.1} parent=47 // pred_check
        %p333 = pneg %p38
      $region50: #{vae_forward.1} parent=47 // pred_check_branch
        %335 = sbr.rel (%p333) target = $region52
      $region51: #{vae_forward.1} parent=47 // pred_region
        %s336 = smul.u32 32, %s18
        %p337 = scmp.lt.s32.totalorder %s336, 63
        %s338 = scalar_select %p337, %s336, 63
        %s339 = smul.addr %s338, 7
        %s340 = smul.addr %s339, 8
        %s341 = scalar_lea.vmem %s0, %s340
        %s342 = smul.u32 32, %s18
      $region52: #{vae_forward.1} parent=47 // pred_fallthru
        _
      // Predicated region
      $region53: #{vae_forward.1} parent=47 // pred_check
        %p343 = pneg %p64
      $region54: #{vae_forward.1} parent=47 // pred_check_branch
        %345 = sbr.rel (%p343) target = $region56
      $region55: #{vae_forward.1} parent=47 // pred_region
        %s346 = smul.u32 32, %s18
        %p347 = scmp.lt.s32.totalorder %s346, 63
        %s348 = scalar_select %p347, %s346, 63
        %s349 = smul.addr %s348, 8
        %s350 = scalar_lea.vmem %s1, %s349
        %s351 = smul.u32 32, %s18
      $region56: #{vae_forward.1} parent=47 // pred_fallthru
        _
    $region48: #{vae_forward.1} parent=5 // pred_fallthru
      _
    %p352 = scmp.le.s32.totalorder 1, %s18
    %p353 = scmp.lt.s32.totalorder %s18, 3
    %p354 = pnand %p352, %p353
    %p355 = pneg %p354
    // Predicated region
    $region57: #{vae_forward.1} parent=5 // pred_check
      _
    $region58: #{vae_forward.1} parent=5 // pred_check_branch
      %357 = sbr.rel (%p354) target = $region60
    $region59: #{vae_forward.1} parent=5 // pred_region
      %s358 = ssub.s32 %s18, 1
      %s359 = smul.u32 32, %s23
      %p360 = scmp.lt.s32.totalorder %s359, 63
      %s361 = scalar_select %p360, %s359, 63
      %s362 = smul.addr %s361, 7
      %s363 = smul.addr %s362, 8
      %s364 = scalar_lea.vmem %s0, %s363
      %p365 = pneg %p44
      %p366 = pneg %p41
      %s367 = smul.u32 32, %s23
      %p368 = scmp.lt.s32.totalorder %s367, 63
      %s369 = scalar_select %p368, %s367, 63
      %s370 = smul.addr %s369, 8
      %s371 = scalar_lea.vmem %s1, %s370
      %p372 = pneg %p70
      %p373 = pneg %p67
      %p374 = pneg %p91
      %p375 = pneg %p88
      %p376 = pneg %p112
      %p377 = pneg %p109
      %p378 = pneg %p133
      %p379 = pneg %p130
      %p380 = pneg %p154
      %p381 = pneg %p151
      %p382 = pneg %p175
      %p383 = pneg %p172
      %p384 = pneg %p196
      %p385 = pneg %p193
      %p386 = pneg %p217
      %p387 = pneg %p214
      %p388 = pneg %p238
      %p389 = pneg %p235
      %p390 = pneg %p264
      %p391 = pneg %p261
      %s392 = smul.u32 32, %s23
      %p393 = scmp.lt.s32.totalorder %s392, 63
      %s394 = scalar_select %p393, %s392, 63
      %s395 = smul.addr %s394, 7
      %s396 = smul.addr %s395, 8
      %s397 = scalar_lea.vmem %s10, %s396
      %p398 = pneg %p290
      %p399 = pneg %p287
      %s400 = smul.u32 32, %s23
      %p401 = scmp.lt.s32.totalorder %s400, 63
      %s402 = scalar_select %p401, %s400, 63
      %s403 = smul.addr %s402, 2
      %s404 = smul.addr %s403, 8
      %s405 = scalar_lea.vmem %s11, %s404
      %s406 = smul.u32 32, %s23
      %p407 = scmp.lt.s32.totalorder %s406, 63
      %s408 = scalar_select %p407, %s406, 63
      %s409 = smul.addr %s408, 7
      %s410 = smul.addr %s409, 8
      %s411 = scalar_lea.vmem %s0, %s410
      %s412 = smul.u32 32, %s23
      %s413 = smul.u32 32, %s23
      %p414 = scmp.lt.s32.totalorder %s413, 63
      %s415 = scalar_select %p414, %s413, 63
      %s416 = smul.addr %s415, 8
      %s417 = scalar_lea.vmem %s1, %s416
      %s418 = smul.u32 32, %s23
      %s419 = smul.u32 32, %s23
      %p420 = scmp.lt.s32.totalorder %s419, 63
      %s421 = scalar_select %p420, %s419, 63
      %s422 = smul.addr %s421, 7
      %s423 = smul.addr %s422, 8
      %s424 = scalar_lea.vmem %s10, %s423
      %s425 = smul.u32 32, %s23
      %s426 = smul.u32 32, %s23
      %p427 = scmp.lt.s32.totalorder %s426, 63
      %s428 = scalar_select %p427, %s426, 63
      %s429 = smul.addr %s428, 2
      %s430 = smul.addr %s429, 8
      %s431 = scalar_lea.vmem %s11, %s430
      %s432 = smul.u32 32, %s23
      %v434 = vld [vmem:[%s411] sm:$0xff]
      %v435 = vld [vmem:[%s411 + $0x8] sm:$0xff]
      %v436 = vld [vmem:[%s411 + $0x10] sm:$0xff]
      %v437 = vld [vmem:[%s411 + $0x18] sm:$0xff]
      %v438 = vld [vmem:[%s411 + $0x20] sm:$0xff]
      %v439 = vld [vmem:[%s411 + $0x28] sm:$0xff]
      %v440 = vld [vmem:[%s411 + $0x30] sm:$0xff]
      %v441 = vld [vmem:[%s411 + $0x38] sm:$0xff]
      %v442 = vld [vmem:[%s411 + $0x40] sm:$0xff]
      %v443 = vld [vmem:[%s411 + $0x48] sm:$0xff]
      %v444 = vld [vmem:[%s411 + $0x50] sm:$0xff]
      %v445 = vld [vmem:[%s411 + $0x58] sm:$0xff]
      %v446 = vld [vmem:[%s411 + $0x60] sm:$0xff]
      %v447 = vld [vmem:[%s411 + $0x68] sm:$0xff]
      %v448 = vld [vmem:[%s411 + $0x70] sm:$0xff]
      %v449 = vld [vmem:[%s411 + $0x78] sm:$0xff]
      %v450 = vld [vmem:[%s411 + $0x80] sm:$0xff]
      %v451 = vld [vmem:[%s411 + $0x88] sm:$0xff]
      %v452 = vld [vmem:[%s411 + $0x90] sm:$0xff]
      %v453 = vld [vmem:[%s411 + $0x98] sm:$0xff]
      %v454 = vld [vmem:[%s411 + $0xa0] sm:$0xff]
      %v455 = vld [vmem:[%s411 + $0xa8] sm:$0xff]
      %v456 = vld [vmem:[%s411 + $0xb0] sm:$0xff]
      %v457 = vld [vmem:[%s411 + $0xb8] sm:$0xff]
      %v458 = vld [vmem:[%s411 + $0xc0] sm:$0xff]
      %v459 = vld [vmem:[%s411 + $0xc8] sm:$0xff]
      %v460 = vld [vmem:[%s411 + $0xd0] sm:$0xff]
      %v461 = vld [vmem:[%s411 + $0xd8] sm:$0xff]
      %v462 = vld [vmem:[%s411 + $0xe0] sm:$0xff]
      %v463 = vld [vmem:[%s411 + $0xe8] sm:$0xff]
      %v464 = vld [vmem:[%s411 + $0xf0] sm:$0xff]
      %v465 = vld [vmem:[%s411 + $0xf8] sm:$0xff]
      %v466 = vld [vmem:[%s411 + $0x100] sm:$0xff]
      %v467 = vld [vmem:[%s411 + $0x108] sm:$0xff]
      %v468 = vld [vmem:[%s411 + $0x110] sm:$0xff]
      %v469 = vld [vmem:[%s411 + $0x118] sm:$0xff]
      %v470 = vld [vmem:[%s411 + $0x120] sm:$0xff]
      %v471 = vld [vmem:[%s411 + $0x128] sm:$0xff]
      %v472 = vld [vmem:[%s411 + $0x130] sm:$0xff]
      %v473 = vld [vmem:[%s411 + $0x138] sm:$0xff]
      %v474 = vld [vmem:[%s411 + $0x140] sm:$0xff]
      %v475 = vld [vmem:[%s411 + $0x148] sm:$0xff]
      %v476 = vld [vmem:[%s411 + $0x150] sm:$0xff]
      %v477 = vld [vmem:[%s411 + $0x158] sm:$0xff]
      %v478 = vld [vmem:[%s411 + $0x160] sm:$0xff]
      %v479 = vld [vmem:[%s411 + $0x168] sm:$0xff]
      %v480 = vld [vmem:[%s411 + $0x170] sm:$0xff]
      %v481 = vld [vmem:[%s411 + $0x178] sm:$0xff]
      %v482 = vld [vmem:[%s411 + $0x180] sm:$0xff]
      %v483 = vld [vmem:[%s411 + $0x188] sm:$0xff]
      %v484 = vld [vmem:[%s411 + $0x190] sm:$0xff]
      %v485 = vld [vmem:[%s411 + $0x198] sm:$0xff]
      %v486 = vld [vmem:[%s411 + $0x1a0] sm:$0xff]
      %v487 = vld [vmem:[%s411 + $0x1a8] sm:$0xff]
      %v488 = vld [vmem:[%s411 + $0x1b0] sm:$0xff]
      %v489 = vld [vmem:[%s411 + $0x1b8] sm:$0xff]
      %v490 = vld [vmem:[%s411 + $0x1c0] sm:$0xff]
      %v491 = vld [vmem:[%s411 + $0x1c8] sm:$0xff]
      %v492 = vld [vmem:[%s411 + $0x1d0] sm:$0xff]
      %v493 = vld [vmem:[%s411 + $0x1d8] sm:$0xff]
      %v494 = vld [vmem:[%s411 + $0x1e0] sm:$0xff]
      %v495 = vld [vmem:[%s411 + $0x1e8] sm:$0xff]
      %v496 = vld [vmem:[%s411 + $0x1f0] sm:$0xff]
      %v497 = vld [vmem:[%s411 + $0x1f8] sm:$0xff]
      %v498 = vld [vmem:[%s411 + $0x200] sm:$0xff]
      %v499 = vld [vmem:[%s411 + $0x208] sm:$0xff]
      %v500 = vld [vmem:[%s411 + $0x210] sm:$0xff]
      %v501 = vld [vmem:[%s411 + $0x218] sm:$0xff]
      %v502 = vld [vmem:[%s411 + $0x220] sm:$0xff]
      %v503 = vld [vmem:[%s411 + $0x228] sm:$0xff]
      %v504 = vld [vmem:[%s411 + $0x230] sm:$0xff]
      %v505 = vld [vmem:[%s411 + $0x238] sm:$0xff]
      %v506 = vld [vmem:[%s411 + $0x240] sm:$0xff]
      %v507 = vld [vmem:[%s411 + $0x248] sm:$0xff]
      %v508 = vld [vmem:[%s411 + $0x250] sm:$0xff]
      %v509 = vld [vmem:[%s411 + $0x258] sm:$0xff]
      %v510 = vld [vmem:[%s411 + $0x260] sm:$0xff]
      %v511 = vld [vmem:[%s411 + $0x268] sm:$0xff]
      %v512 = vld [vmem:[%s411 + $0x270] sm:$0xff]
      %v513 = vld [vmem:[%s411 + $0x278] sm:$0xff]
      %v514 = vld [vmem:[%s411 + $0x280] sm:$0xff]
      %v515 = vld [vmem:[%s411 + $0x288] sm:$0xff]
      %v516 = vld [vmem:[%s411 + $0x290] sm:$0xff]
      %v517 = vld [vmem:[%s411 + $0x298] sm:$0xff]
      %v518 = vld [vmem:[%s411 + $0x2a0] sm:$0xff]
      %v519 = vld [vmem:[%s411 + $0x2a8] sm:$0xff]
      %v520 = vld [vmem:[%s411 + $0x2b0] sm:$0xff]
      %v521 = vld [vmem:[%s411 + $0x2b8] sm:$0xff]
      %v522 = vld [vmem:[%s411 + $0x2c0] sm:$0xff]
      %v523 = vld [vmem:[%s411 + $0x2c8] sm:$0xff]
      %v524 = vld [vmem:[%s411 + $0x2d0] sm:$0xff]
      %v525 = vld [vmem:[%s411 + $0x2d8] sm:$0xff]
      %v526 = vld [vmem:[%s411 + $0x2e0] sm:$0xff]
      %v527 = vld [vmem:[%s411 + $0x2e8] sm:$0xff]
      %v528 = vld [vmem:[%s411 + $0x2f0] sm:$0xff]
      %v529 = vld [vmem:[%s411 + $0x2f8] sm:$0xff]
      %v530 = vld [vmem:[%s411 + $0x300] sm:$0xff]
      %v531 = vld [vmem:[%s411 + $0x308] sm:$0xff]
      %v532 = vld [vmem:[%s411 + $0x310] sm:$0xff]
      %v533 = vld [vmem:[%s411 + $0x318] sm:$0xff]
      %v534 = vld [vmem:[%s411 + $0x320] sm:$0xff]
      %v535 = vld [vmem:[%s411 + $0x328] sm:$0xff]
      %v536 = vld [vmem:[%s411 + $0x330] sm:$0xff]
      %v537 = vld [vmem:[%s411 + $0x338] sm:$0xff]
      %v538 = vld [vmem:[%s411 + $0x340] sm:$0xff]
      %v539 = vld [vmem:[%s411 + $0x348] sm:$0xff]
      %v540 = vld [vmem:[%s411 + $0x350] sm:$0xff]
      %v541 = vld [vmem:[%s411 + $0x358] sm:$0xff]
      %v542 = vld [vmem:[%s411 + $0x360] sm:$0xff]
      %v543 = vld [vmem:[%s411 + $0x368] sm:$0xff]
      %v544 = vld [vmem:[%s411 + $0x370] sm:$0xff]
      %v545 = vld [vmem:[%s411 + $0x378] sm:$0xff]
      %v546 = vld [vmem:[%s411 + $0x380] sm:$0xff]
      %v547 = vld [vmem:[%s411 + $0x388] sm:$0xff]
      %v548 = vld [vmem:[%s411 + $0x390] sm:$0xff]
      %v549 = vld [vmem:[%s411 + $0x398] sm:$0xff]
      %v550 = vld [vmem:[%s411 + $0x3a0] sm:$0xff]
      %v551 = vld [vmem:[%s411 + $0x3a8] sm:$0xff]
      %v552 = vld [vmem:[%s411 + $0x3b0] sm:$0xff]
      %v553 = vld [vmem:[%s411 + $0x3b8] sm:$0xff]
      %v554 = vld [vmem:[%s411 + $0x3c0] sm:$0xff]
      %v555 = vld [vmem:[%s411 + $0x3c8] sm:$0xff]
      %v556 = vld [vmem:[%s411 + $0x3d0] sm:$0xff]
      %v557 = vld [vmem:[%s411 + $0x3d8] sm:$0xff]
      %v558 = vld [vmem:[%s411 + $0x3e0] sm:$0xff]
      %v559 = vld [vmem:[%s411 + $0x3e8] sm:$0xff]
      %v560 = vld [vmem:[%s411 + $0x3f0] sm:$0xff]
      %v561 = vld [vmem:[%s411 + $0x3f8] sm:$0xff]
      %v562 = vld [vmem:[%s411 + $0x400] sm:$0xff]
      %v563 = vld [vmem:[%s411 + $0x408] sm:$0xff]
      %v564 = vld [vmem:[%s411 + $0x410] sm:$0xff]
      %v565 = vld [vmem:[%s411 + $0x418] sm:$0xff]
      %v566 = vld [vmem:[%s411 + $0x420] sm:$0xff]
      %v567 = vld [vmem:[%s411 + $0x428] sm:$0xff]
      %v568 = vld [vmem:[%s411 + $0x430] sm:$0xff]
      %v569 = vld [vmem:[%s411 + $0x438] sm:$0xff]
      %v570 = vld [vmem:[%s411 + $0x440] sm:$0xff]
      %v571 = vld [vmem:[%s411 + $0x448] sm:$0xff]
      %v572 = vld [vmem:[%s411 + $0x450] sm:$0xff]
      %v573 = vld [vmem:[%s411 + $0x458] sm:$0xff]
      %v574 = vld [vmem:[%s411 + $0x460] sm:$0xff]
      %v575 = vld [vmem:[%s411 + $0x468] sm:$0xff]
      %v576 = vld [vmem:[%s411 + $0x470] sm:$0xff]
      %v577 = vld [vmem:[%s411 + $0x478] sm:$0xff]
      %v578 = vld [vmem:[%s411 + $0x480] sm:$0xff]
      %v579 = vld [vmem:[%s411 + $0x488] sm:$0xff]
      %v580 = vld [vmem:[%s411 + $0x490] sm:$0xff]
      %v581 = vld [vmem:[%s411 + $0x498] sm:$0xff]
      %v582 = vld [vmem:[%s411 + $0x4a0] sm:$0xff]
      %v583 = vld [vmem:[%s411 + $0x4a8] sm:$0xff]
      %v584 = vld [vmem:[%s411 + $0x4b0] sm:$0xff]
      %v585 = vld [vmem:[%s411 + $0x4b8] sm:$0xff]
      %v586 = vld [vmem:[%s411 + $0x4c0] sm:$0xff]
      %v587 = vld [vmem:[%s411 + $0x4c8] sm:$0xff]
      %v588 = vld [vmem:[%s411 + $0x4d0] sm:$0xff]
      %v589 = vld [vmem:[%s411 + $0x4d8] sm:$0xff]
      %v590 = vld [vmem:[%s411 + $0x4e0] sm:$0xff]
      %v591 = vld [vmem:[%s411 + $0x4e8] sm:$0xff]
      %v592 = vld [vmem:[%s411 + $0x4f0] sm:$0xff]
      %v593 = vld [vmem:[%s411 + $0x4f8] sm:$0xff]
      %v594 = vld [vmem:[%s411 + $0x500] sm:$0xff]
      %v595 = vld [vmem:[%s411 + $0x508] sm:$0xff]
      %v596 = vld [vmem:[%s411 + $0x510] sm:$0xff]
      %v597 = vld [vmem:[%s411 + $0x518] sm:$0xff]
      %v598 = vld [vmem:[%s411 + $0x520] sm:$0xff]
      %v599 = vld [vmem:[%s411 + $0x528] sm:$0xff]
      %v600 = vld [vmem:[%s411 + $0x530] sm:$0xff]
      %v601 = vld [vmem:[%s411 + $0x538] sm:$0xff]
      %v602 = vld [vmem:[%s411 + $0x540] sm:$0xff]
      %v603 = vld [vmem:[%s411 + $0x548] sm:$0xff]
      %v604 = vld [vmem:[%s411 + $0x550] sm:$0xff]
      %v605 = vld [vmem:[%s411 + $0x558] sm:$0xff]
      %v606 = vld [vmem:[%s411 + $0x560] sm:$0xff]
      %v607 = vld [vmem:[%s411 + $0x568] sm:$0xff]
      %v608 = vld [vmem:[%s411 + $0x570] sm:$0xff]
      %v609 = vld [vmem:[%s411 + $0x578] sm:$0xff]
      %v610 = vld [vmem:[%s411 + $0x580] sm:$0xff]
      %v611 = vld [vmem:[%s411 + $0x588] sm:$0xff]
      %v612 = vld [vmem:[%s411 + $0x590] sm:$0xff]
      %v613 = vld [vmem:[%s411 + $0x598] sm:$0xff]
      %v614 = vld [vmem:[%s411 + $0x5a0] sm:$0xff]
      %v615 = vld [vmem:[%s411 + $0x5a8] sm:$0xff]
      %v616 = vld [vmem:[%s411 + $0x5b0] sm:$0xff]
      %v617 = vld [vmem:[%s411 + $0x5b8] sm:$0xff]
      %v618 = vld [vmem:[%s411 + $0x5c0] sm:$0xff]
      %v619 = vld [vmem:[%s411 + $0x5c8] sm:$0xff]
      %v620 = vld [vmem:[%s411 + $0x5d0] sm:$0xff]
      %v621 = vld [vmem:[%s411 + $0x5d8] sm:$0xff]
      %v622 = vld [vmem:[%s411 + $0x5e0] sm:$0xff]
      %v623 = vld [vmem:[%s411 + $0x5e8] sm:$0xff]
      %v624 = vld [vmem:[%s411 + $0x5f0] sm:$0xff]
      %v625 = vld [vmem:[%s411 + $0x5f8] sm:$0xff]
      %v626 = vld [vmem:[%s411 + $0x600] sm:$0xff]
      %v627 = vld [vmem:[%s411 + $0x608] sm:$0xff]
      %v628 = vld [vmem:[%s411 + $0x610] sm:$0xff]
      %v629 = vld [vmem:[%s411 + $0x618] sm:$0xff]
      %v630 = vld [vmem:[%s411 + $0x620] sm:$0xff]
      %v631 = vld [vmem:[%s411 + $0x628] sm:$0xff]
      %v632 = vld [vmem:[%s411 + $0x630] sm:$0xff]
      %v633 = vld [vmem:[%s411 + $0x638] sm:$0xff]
      %v634 = vld [vmem:[%s411 + $0x640] sm:$0xff]
      %v635 = vld [vmem:[%s411 + $0x648] sm:$0xff]
      %v636 = vld [vmem:[%s411 + $0x650] sm:$0xff]
      %v637 = vld [vmem:[%s411 + $0x658] sm:$0xff]
      %v638 = vld [vmem:[%s411 + $0x660] sm:$0xff]
      %v639 = vld [vmem:[%s411 + $0x668] sm:$0xff]
      %v640 = vld [vmem:[%s411 + $0x670] sm:$0xff]
      %v641 = vld [vmem:[%s411 + $0x678] sm:$0xff]
      %v642 = vld [vmem:[%s411 + $0x680] sm:$0xff]
      %v643 = vld [vmem:[%s411 + $0x688] sm:$0xff]
      %v644 = vld [vmem:[%s411 + $0x690] sm:$0xff]
      %v645 = vld [vmem:[%s411 + $0x698] sm:$0xff]
      %v646 = vld [vmem:[%s411 + $0x6a0] sm:$0xff]
      %v647 = vld [vmem:[%s411 + $0x6a8] sm:$0xff]
      %v648 = vld [vmem:[%s411 + $0x6b0] sm:$0xff]
      %v649 = vld [vmem:[%s411 + $0x6b8] sm:$0xff]
      %v650 = vld [vmem:[%s411 + $0x6c0] sm:$0xff]
      %v651 = vld [vmem:[%s411 + $0x6c8] sm:$0xff]
      %v652 = vld [vmem:[%s411 + $0x6d0] sm:$0xff]
      %v653 = vld [vmem:[%s411 + $0x6d8] sm:$0xff]
      %v654 = vld [vmem:[%s411 + $0x6e0] sm:$0xff]
      %v655 = vld [vmem:[%s411 + $0x6e8] sm:$0xff]
      %v656 = vld [vmem:[%s411 + $0x6f0] sm:$0xff]
      %v657 = vld [vmem:[%s411 + $0x6f8] sm:$0xff]
      %v658 = vpack.c.bf16 %v441, %v434
      %v659 = vpack.c.bf16 %v442, %v435
      %v660 = vpack.c.bf16 %v443, %v436
      %v661 = vpack.c.bf16 %v444, %v437
      %v662 = vpack.c.bf16 %v445, %v438
      %v663 = vpack.c.bf16 %v446, %v439
      %v664 = vpack.c.bf16 %v447, %v440
      %v665 = vpack.c.bf16 %v455, %v448
      %v666 = vpack.c.bf16 %v456, %v449
      %v667 = vpack.c.bf16 %v457, %v450
      %v668 = vpack.c.bf16 %v458, %v451
      %v669 = vpack.c.bf16 %v459, %v452
      %v670 = vpack.c.bf16 %v460, %v453
      %v671 = vpack.c.bf16 %v461, %v454
      %v672 = vpack.c.bf16 %v469, %v462
      %v673 = vpack.c.bf16 %v470, %v463
      %v674 = vpack.c.bf16 %v471, %v464
      %v675 = vpack.c.bf16 %v472, %v465
      %v676 = vpack.c.bf16 %v473, %v466
      %v677 = vpack.c.bf16 %v474, %v467
      %v678 = vpack.c.bf16 %v475, %v468
      %v679 = vpack.c.bf16 %v483, %v476
      %v680 = vpack.c.bf16 %v484, %v477
      %v681 = vpack.c.bf16 %v485, %v478
      %v682 = vpack.c.bf16 %v486, %v479
      %v683 = vpack.c.bf16 %v487, %v480
      %v684 = vpack.c.bf16 %v488, %v481
      %v685 = vpack.c.bf16 %v489, %v482
      %v686 = vpack.c.bf16 %v497, %v490
      %v687 = vpack.c.bf16 %v498, %v491
      %v688 = vpack.c.bf16 %v499, %v492
      %v689 = vpack.c.bf16 %v500, %v493
      %v690 = vpack.c.bf16 %v501, %v494
      %v691 = vpack.c.bf16 %v502, %v495
      %v692 = vpack.c.bf16 %v503, %v496
      %v693 = vpack.c.bf16 %v511, %v504
      %v694 = vpack.c.bf16 %v512, %v505
      %v695 = vpack.c.bf16 %v513, %v506
      %v696 = vpack.c.bf16 %v514, %v507
      %v697 = vpack.c.bf16 %v515, %v508
      %v698 = vpack.c.bf16 %v516, %v509
      %v699 = vpack.c.bf16 %v517, %v510
      %v700 = vpack.c.bf16 %v525, %v518
      %v701 = vpack.c.bf16 %v526, %v519
      %v702 = vpack.c.bf16 %v527, %v520
      %v703 = vpack.c.bf16 %v528, %v521
      %v704 = vpack.c.bf16 %v529, %v522
      %v705 = vpack.c.bf16 %v530, %v523
      %v706 = vpack.c.bf16 %v531, %v524
      %v707 = vpack.c.bf16 %v539, %v532
      %v708 = vpack.c.bf16 %v540, %v533
      %v709 = vpack.c.bf16 %v541, %v534
      %v710 = vpack.c.bf16 %v542, %v535
      %v711 = vpack.c.bf16 %v543, %v536
      %v712 = vpack.c.bf16 %v544, %v537
      %v713 = vpack.c.bf16 %v545, %v538
      %v714 = vpack.c.bf16 %v553, %v546
      %v715 = vpack.c.bf16 %v554, %v547
      %v716 = vpack.c.bf16 %v555, %v548
      %v717 = vpack.c.bf16 %v556, %v549
      %v718 = vpack.c.bf16 %v557, %v550
      %v719 = vpack.c.bf16 %v558, %v551
      %v720 = vpack.c.bf16 %v559, %v552
      %v721 = vpack.c.bf16 %v567, %v560
      %v722 = vpack.c.bf16 %v568, %v561
      %v723 = vpack.c.bf16 %v569, %v562
      %v724 = vpack.c.bf16 %v570, %v563
      %v725 = vpack.c.bf16 %v571, %v564
      %v726 = vpack.c.bf16 %v572, %v565
      %v727 = vpack.c.bf16 %v573, %v566
      %v728 = vpack.c.bf16 %v581, %v574
      %v729 = vpack.c.bf16 %v582, %v575
      %v730 = vpack.c.bf16 %v583, %v576
      %v731 = vpack.c.bf16 %v584, %v577
      %v732 = vpack.c.bf16 %v585, %v578
      %v733 = vpack.c.bf16 %v586, %v579
      %v734 = vpack.c.bf16 %v587, %v580
      %v735 = vpack.c.bf16 %v595, %v588
      %v736 = vpack.c.bf16 %v596, %v589
      %v737 = vpack.c.bf16 %v597, %v590
      %v738 = vpack.c.bf16 %v598, %v591
      %v739 = vpack.c.bf16 %v599, %v592
      %v740 = vpack.c.bf16 %v600, %v593
      %v741 = vpack.c.bf16 %v601, %v594
      %v742 = vpack.c.bf16 %v609, %v602
      %v743 = vpack.c.bf16 %v610, %v603
      %v744 = vpack.c.bf16 %v611, %v604
      %v745 = vpack.c.bf16 %v612, %v605
      %v746 = vpack.c.bf16 %v613, %v606
      %v747 = vpack.c.bf16 %v614, %v607
      %v748 = vpack.c.bf16 %v615, %v608
      %v749 = vpack.c.bf16 %v623, %v616
      %v750 = vpack.c.bf16 %v624, %v617
      %v751 = vpack.c.bf16 %v625, %v618
      %v752 = vpack.c.bf16 %v626, %v619
      %v753 = vpack.c.bf16 %v627, %v620
      %v754 = vpack.c.bf16 %v628, %v621
      %v755 = vpack.c.bf16 %v629, %v622
      %v756 = vpack.c.bf16 %v637, %v630
      %v757 = vpack.c.bf16 %v638, %v631
      %v758 = vpack.c.bf16 %v639, %v632
      %v759 = vpack.c.bf16 %v640, %v633
      %v760 = vpack.c.bf16 %v641, %v634
      %v761 = vpack.c.bf16 %v642, %v635
      %v762 = vpack.c.bf16 %v643, %v636
      %v763 = vpack.c.bf16 %v651, %v644
      %v764 = vpack.c.bf16 %v652, %v645
      %v765 = vpack.c.bf16 %v653, %v646
      %v766 = vpack.c.bf16 %v654, %v647
      %v767 = vpack.c.bf16 %v655, %v648
      %v768 = vpack.c.bf16 %v656, %v649
      %v769 = vpack.c.bf16 %v657, %v650
      %v770 = vld [vmem:[%s2] sm:$0xff]
      %v771 = vld [vmem:[%s2 + $0x8] sm:$0xff]
      %v772 = vld [vmem:[%s2 + $0x10] sm:$0xff]
      %v773 = vld [vmem:[%s2 + $0x18] sm:$0xff]
      %v774 = vld [vmem:[%s2 + $0x20] sm:$0xff]
      %v775 = vld [vmem:[%s2 + $0x28] sm:$0xff]
      %v776 = vld [vmem:[%s2 + $0x30] sm:$0xff]
      %v777 = vld [vmem:[%s2 + $0x38] sm:$0xff]
      %v778 = vld [vmem:[%s2 + $0x40] sm:$0xff]
      %v779 = vld [vmem:[%s2 + $0x48] sm:$0xff]
      %v780 = vld [vmem:[%s2 + $0x50] sm:$0xff]
      %v781 = vld [vmem:[%s2 + $0x58] sm:$0xff]
      %v782 = vld [vmem:[%s2 + $0x60] sm:$0xff]
      %v783 = vld [vmem:[%s2 + $0x68] sm:$0xff]
      %v784 = vld [vmem:[%s2 + $0x70] sm:$0xff]
      %v785 = vld [vmem:[%s2 + $0x78] sm:$0xff]
      %v786 = vld [vmem:[%s2 + $0x80] sm:$0xff]
      %v787 = vld [vmem:[%s2 + $0x88] sm:$0xff]
      %v788 = vld [vmem:[%s2 + $0x90] sm:$0xff]
      %v789 = vld [vmem:[%s2 + $0x98] sm:$0xff]
      %v790 = vld [vmem:[%s2 + $0xa0] sm:$0xff]
      %v791 = vld [vmem:[%s2 + $0xa8] sm:$0xff]
      %v792 = vld [vmem:[%s2 + $0xb0] sm:$0xff]
      %v793 = vld [vmem:[%s2 + $0xb8] sm:$0xff]
      %v794 = vld [vmem:[%s2 + $0xc0] sm:$0xff]
      %v795 = vld [vmem:[%s2 + $0xc8] sm:$0xff]
      %v796 = vld [vmem:[%s2 + $0xd0] sm:$0xff]
      %v797 = vld [vmem:[%s2 + $0xd8] sm:$0xff]
      %v798 = vld [vmem:[%s2 + $0xe0] sm:$0xff]
      %v799 = vld [vmem:[%s2 + $0xe8] sm:$0xff]
      %v800 = vld [vmem:[%s2 + $0xf0] sm:$0xff]
      %v801 = vld [vmem:[%s2 + $0xf8] sm:$0xff]
      %v802 = vld [vmem:[%s2 + $0x100] sm:$0xff]
      %v803 = vld [vmem:[%s2 + $0x108] sm:$0xff]
      %v804 = vld [vmem:[%s2 + $0x110] sm:$0xff]
      %v805 = vld [vmem:[%s2 + $0x118] sm:$0xff]
      %v806 = vld [vmem:[%s2 + $0x120] sm:$0xff]
      %v807 = vld [vmem:[%s2 + $0x128] sm:$0xff]
      %v808 = vld [vmem:[%s2 + $0x130] sm:$0xff]
      %v809 = vld [vmem:[%s2 + $0x138] sm:$0xff]
      %v810 = vld [vmem:[%s2 + $0x140] sm:$0xff]
      %v811 = vld [vmem:[%s2 + $0x148] sm:$0xff]
      %v812 = vld [vmem:[%s2 + $0x150] sm:$0xff]
      %v813 = vld [vmem:[%s2 + $0x158] sm:$0xff]
      %v814 = vld [vmem:[%s2 + $0x160] sm:$0xff]
      %v815 = vld [vmem:[%s2 + $0x168] sm:$0xff]
      %v816 = vld [vmem:[%s2 + $0x170] sm:$0xff]
      %v817 = vld [vmem:[%s2 + $0x178] sm:$0xff]
      %v818 = vld [vmem:[%s2 + $0x180] sm:$0xff]
      %v819 = vld [vmem:[%s2 + $0x188] sm:$0xff]
      %v820 = vld [vmem:[%s2 + $0x190] sm:$0xff]
      %v821 = vld [vmem:[%s2 + $0x198] sm:$0xff]
      %v822 = vld [vmem:[%s2 + $0x1a0] sm:$0xff]
      %v823 = vld [vmem:[%s2 + $0x1a8] sm:$0xff]
      %v824 = vld [vmem:[%s2 + $0x1b0] sm:$0xff]
      %v825 = vld [vmem:[%s2 + $0x1b8] sm:$0xff]
      %v826 = vld [vmem:[%s2 + $0x1c0] sm:$0xff]
      %v827 = vld [vmem:[%s2 + $0x1c8] sm:$0xff]
      %v828 = vld [vmem:[%s2 + $0x1d0] sm:$0xff]
      %v829 = vld [vmem:[%s2 + $0x1d8] sm:$0xff]
      %v830 = vld [vmem:[%s2 + $0x1e0] sm:$0xff]
      %v831 = vld [vmem:[%s2 + $0x1e8] sm:$0xff]
      %v832 = vld [vmem:[%s2 + $0x1f0] sm:$0xff]
      %v833 = vld [vmem:[%s2 + $0x1f8] sm:$0xff]
      %v834 = vld [vmem:[%s2 + $0x200] sm:$0xff]
      %v835 = vld [vmem:[%s2 + $0x208] sm:$0xff]
      %v836 = vld [vmem:[%s2 + $0x210] sm:$0xff]
      %v837 = vld [vmem:[%s2 + $0x218] sm:$0xff]
      %v838 = vld [vmem:[%s2 + $0x220] sm:$0xff]
      %v839 = vld [vmem:[%s2 + $0x228] sm:$0xff]
      %v840 = vld [vmem:[%s2 + $0x230] sm:$0xff]
      %v841 = vld [vmem:[%s2 + $0x238] sm:$0xff]
      %v842 = vld [vmem:[%s2 + $0x240] sm:$0xff]
      %v843 = vld [vmem:[%s2 + $0x248] sm:$0xff]
      %v844 = vld [vmem:[%s2 + $0x250] sm:$0xff]
      %v845 = vld [vmem:[%s2 + $0x258] sm:$0xff]
      %v846 = vld [vmem:[%s2 + $0x260] sm:$0xff]
      %v847 = vld [vmem:[%s2 + $0x268] sm:$0xff]
      %v848 = vld [vmem:[%s2 + $0x270] sm:$0xff]
      %v849 = vld [vmem:[%s2 + $0x278] sm:$0xff]
      %v850 = vld [vmem:[%s2 + $0x280] sm:$0xff]
      %v851 = vld [vmem:[%s2 + $0x288] sm:$0xff]
      %v852 = vld [vmem:[%s2 + $0x290] sm:$0xff]
      %v853 = vld [vmem:[%s2 + $0x298] sm:$0xff]
      %v854 = vld [vmem:[%s2 + $0x2a0] sm:$0xff]
      %v855 = vld [vmem:[%s2 + $0x2a8] sm:$0xff]
      %v856 = vld [vmem:[%s2 + $0x2b0] sm:$0xff]
      %v857 = vld [vmem:[%s2 + $0x2b8] sm:$0xff]
      %v858 = vld [vmem:[%s2 + $0x2c0] sm:$0xff]
      %v859 = vld [vmem:[%s2 + $0x2c8] sm:$0xff]
      %v860 = vld [vmem:[%s2 + $0x2d0] sm:$0xff]
      %v861 = vld [vmem:[%s2 + $0x2d8] sm:$0xff]
      %v862 = vld [vmem:[%s2 + $0x2e0] sm:$0xff]
      %v863 = vld [vmem:[%s2 + $0x2e8] sm:$0xff]
      %v864 = vld [vmem:[%s2 + $0x2f0] sm:$0xff]
      %v865 = vld [vmem:[%s2 + $0x2f8] sm:$0xff]
      %v866 = vld [vmem:[%s2 + $0x300] sm:$0xff]
      %v867 = vld [vmem:[%s2 + $0x308] sm:$0xff]
      %v868 = vld [vmem:[%s2 + $0x310] sm:$0xff]
      %v869 = vld [vmem:[%s2 + $0x318] sm:$0xff]
      %v870 = vld [vmem:[%s2 + $0x320] sm:$0xff]
      %v871 = vld [vmem:[%s2 + $0x328] sm:$0xff]
      %v872 = vld [vmem:[%s2 + $0x330] sm:$0xff]
      %v873 = vld [vmem:[%s2 + $0x338] sm:$0xff]
      %v874 = vld [vmem:[%s2 + $0x340] sm:$0xff]
      %v875 = vld [vmem:[%s2 + $0x348] sm:$0xff]
      %v876 = vld [vmem:[%s2 + $0x350] sm:$0xff]
      %v877 = vld [vmem:[%s2 + $0x358] sm:$0xff]
      %v878 = vld [vmem:[%s2 + $0x360] sm:$0xff]
      %v879 = vld [vmem:[%s2 + $0x368] sm:$0xff]
      %v880 = vld [vmem:[%s2 + $0x370] sm:$0xff]
      %v881 = vld [vmem:[%s2 + $0x378] sm:$0xff]
      %v882 = vld [vmem:[%s2 + $0x380] sm:$0xff]
      %v883 = vld [vmem:[%s2 + $0x388] sm:$0xff]
      %v884 = vld [vmem:[%s2 + $0x390] sm:$0xff]
      %v885 = vld [vmem:[%s2 + $0x398] sm:$0xff]
      %v886 = vld [vmem:[%s2 + $0x3a0] sm:$0xff]
      %v887 = vld [vmem:[%s2 + $0x3a8] sm:$0xff]
      %v888 = vld [vmem:[%s2 + $0x3b0] sm:$0xff]
      %v889 = vld [vmem:[%s2 + $0x3b8] sm:$0xff]
      %v890 = vld [vmem:[%s2 + $0x3c0] sm:$0xff]
      %v891 = vld [vmem:[%s2 + $0x3c8] sm:$0xff]
      %v892 = vld [vmem:[%s2 + $0x3d0] sm:$0xff]
      %v893 = vld [vmem:[%s2 + $0x3d8] sm:$0xff]
      %v894 = vld [vmem:[%s2 + $0x3e0] sm:$0xff]
      %v895 = vld [vmem:[%s2 + $0x3e8] sm:$0xff]
      %v896 = vld [vmem:[%s2 + $0x3f0] sm:$0xff]
      %v897 = vld [vmem:[%s2 + $0x3f8] sm:$0xff]
      %v898 = vld [vmem:[%s2 + $0x400] sm:$0xff]
      %v899 = vld [vmem:[%s2 + $0x408] sm:$0xff]
      %v900 = vld [vmem:[%s2 + $0x410] sm:$0xff]
      %v901 = vld [vmem:[%s2 + $0x418] sm:$0xff]
      %v902 = vld [vmem:[%s2 + $0x420] sm:$0xff]
      %v903 = vld [vmem:[%s2 + $0x428] sm:$0xff]
      %v904 = vld [vmem:[%s2 + $0x430] sm:$0xff]
      %v905 = vld [vmem:[%s2 + $0x438] sm:$0xff]
      %v906 = vld [vmem:[%s2 + $0x440] sm:$0xff]
      %v907 = vld [vmem:[%s2 + $0x448] sm:$0xff]
      %v908 = vld [vmem:[%s2 + $0x450] sm:$0xff]
      %v909 = vld [vmem:[%s2 + $0x458] sm:$0xff]
      %v910 = vld [vmem:[%s2 + $0x460] sm:$0xff]
      %v911 = vld [vmem:[%s2 + $0x468] sm:$0xff]
      %v912 = vld [vmem:[%s2 + $0x470] sm:$0xff]
      %v913 = vld [vmem:[%s2 + $0x478] sm:$0xff]
      %v914 = vld [vmem:[%s2 + $0x480] sm:$0xff]
      %v915 = vld [vmem:[%s2 + $0x488] sm:$0xff]
      %v916 = vld [vmem:[%s2 + $0x490] sm:$0xff]
      %v917 = vld [vmem:[%s2 + $0x498] sm:$0xff]
      %v918 = vld [vmem:[%s2 + $0x4a0] sm:$0xff]
      %v919 = vld [vmem:[%s2 + $0x4a8] sm:$0xff]
      %v920 = vld [vmem:[%s2 + $0x4b0] sm:$0xff]
      %v921 = vld [vmem:[%s2 + $0x4b8] sm:$0xff]
      %v922 = vld [vmem:[%s2 + $0x4c0] sm:$0xff]
      %v923 = vld [vmem:[%s2 + $0x4c8] sm:$0xff]
      %v924 = vld [vmem:[%s2 + $0x4d0] sm:$0xff]
      %v925 = vld [vmem:[%s2 + $0x4d8] sm:$0xff]
      %v926 = vld [vmem:[%s2 + $0x4e0] sm:$0xff]
      %v927 = vld [vmem:[%s2 + $0x4e8] sm:$0xff]
      %v928 = vld [vmem:[%s2 + $0x4f0] sm:$0xff]
      %v929 = vld [vmem:[%s2 + $0x4f8] sm:$0xff]
      %v930 = vld [vmem:[%s2 + $0x500] sm:$0xff]
      %v931 = vld [vmem:[%s2 + $0x508] sm:$0xff]
      %v932 = vld [vmem:[%s2 + $0x510] sm:$0xff]
      %v933 = vld [vmem:[%s2 + $0x518] sm:$0xff]
      %v934 = vld [vmem:[%s2 + $0x520] sm:$0xff]
      %v935 = vld [vmem:[%s2 + $0x528] sm:$0xff]
      %v936 = vld [vmem:[%s2 + $0x530] sm:$0xff]
      %v937 = vld [vmem:[%s2 + $0x538] sm:$0xff]
      %v938 = vld [vmem:[%s2 + $0x540] sm:$0xff]
      %v939 = vld [vmem:[%s2 + $0x548] sm:$0xff]
      %v940 = vld [vmem:[%s2 + $0x550] sm:$0xff]
      %v941 = vld [vmem:[%s2 + $0x558] sm:$0xff]
      %v942 = vld [vmem:[%s2 + $0x560] sm:$0xff]
      %v943 = vld [vmem:[%s2 + $0x568] sm:$0xff]
      %v944 = vld [vmem:[%s2 + $0x570] sm:$0xff]
      %v945 = vld [vmem:[%s2 + $0x578] sm:$0xff]
      %v946 = vld [vmem:[%s2 + $0x580] sm:$0xff]
      %v947 = vld [vmem:[%s2 + $0x588] sm:$0xff]
      %v948 = vld [vmem:[%s2 + $0x590] sm:$0xff]
      %v949 = vld [vmem:[%s2 + $0x598] sm:$0xff]
      %v950 = vld [vmem:[%s2 + $0x5a0] sm:$0xff]
      %v951 = vld [vmem:[%s2 + $0x5a8] sm:$0xff]
      %v952 = vld [vmem:[%s2 + $0x5b0] sm:$0xff]
      %v953 = vld [vmem:[%s2 + $0x5b8] sm:$0xff]
      %v954 = vld [vmem:[%s2 + $0x5c0] sm:$0xff]
      %v955 = vld [vmem:[%s2 + $0x5c8] sm:$0xff]
      %v956 = vld [vmem:[%s2 + $0x5d0] sm:$0xff]
      %v957 = vld [vmem:[%s2 + $0x5d8] sm:$0xff]
      %v958 = vld [vmem:[%s2 + $0x5e0] sm:$0xff]
      %v959 = vld [vmem:[%s2 + $0x5e8] sm:$0xff]
      %v960 = vld [vmem:[%s2 + $0x5f0] sm:$0xff]
      %v961 = vld [vmem:[%s2 + $0x5f8] sm:$0xff]
      %v962 = vld [vmem:[%s2 + $0x600] sm:$0xff]
      %v963 = vld [vmem:[%s2 + $0x608] sm:$0xff]
      %v964 = vld [vmem:[%s2 + $0x610] sm:$0xff]
      %v965 = vld [vmem:[%s2 + $0x618] sm:$0xff]
      %v966 = vld [vmem:[%s2 + $0x620] sm:$0xff]
      %v967 = vld [vmem:[%s2 + $0x628] sm:$0xff]
      %v968 = vld [vmem:[%s2 + $0x630] sm:$0xff]
      %v969 = vld [vmem:[%s2 + $0x638] sm:$0xff]
      %v970 = vld [vmem:[%s2 + $0x640] sm:$0xff]
      %v971 = vld [vmem:[%s2 + $0x648] sm:$0xff]
      %v972 = vld [vmem:[%s2 + $0x650] sm:$0xff]
      %v973 = vld [vmem:[%s2 + $0x658] sm:$0xff]
      %v974 = vld [vmem:[%s2 + $0x660] sm:$0xff]
      %v975 = vld [vmem:[%s2 + $0x668] sm:$0xff]
      %v976 = vld [vmem:[%s2 + $0x670] sm:$0xff]
      %v977 = vld [vmem:[%s2 + $0x678] sm:$0xff]
      %v978 = vld [vmem:[%s2 + $0x680] sm:$0xff]
      %v979 = vld [vmem:[%s2 + $0x688] sm:$0xff]
      %v980 = vld [vmem:[%s2 + $0x690] sm:$0xff]
      %v981 = vld [vmem:[%s2 + $0x698] sm:$0xff]
      %v982 = vld [vmem:[%s2 + $0x6a0] sm:$0xff]
      %v983 = vld [vmem:[%s2 + $0x6a8] sm:$0xff]
      %v984 = vld [vmem:[%s2 + $0x6b0] sm:$0xff]
      %v985 = vld [vmem:[%s2 + $0x6b8] sm:$0xff]
      %v986 = vld [vmem:[%s2 + $0x6c0] sm:$0xff]
      %v987 = vld [vmem:[%s2 + $0x6c8] sm:$0xff]
      %v988 = vld [vmem:[%s2 + $0x6d0] sm:$0xff]
      %v989 = vld [vmem:[%s2 + $0x6d8] sm:$0xff]
      %v990 = vld [vmem:[%s2 + $0x6e0] sm:$0xff]
      %v991 = vld [vmem:[%s2 + $0x6e8] sm:$0xff]
      %v992 = vld [vmem:[%s2 + $0x6f0] sm:$0xff]
      %v993 = vld [vmem:[%s2 + $0x6f8] sm:$0xff]
      %v994 = vld [vmem:[%s3] sm:$0xf]
      %v996 = vlaneseq
      %v997 = vshrl.u32 %v996, 7
      %v998 = vsub.s32 0, %v997
      %v999 = vrot.slane %v994, %v998
      %v1000 = vlaneseq
      %v1001 = vshrl.u32 %v1000, 7
      %v1002 = vsub.s32 1, %v1001
      %v1003 = vrot.slane %v994, %v1002
      %v1004 = vlaneseq
      %v1005 = vshrl.u32 %v1004, 7
      %v1006 = vsub.s32 2, %v1005
      %v1007 = vrot.slane %v994, %v1006
      %v1008 = vlaneseq
      %v1009 = vshrl.u32 %v1008, 7
      %v1010 = vsub.s32 3, %v1009
      %v1011 = vrot.slane %v994, %v1010
      %v1240 = vunpack.c.l.b16 %v770
      %v1241 = vunpack.c.h.b16 %v770
      %v1242 = vunpack.c.l.b16 %v771
      %v1243 = vunpack.c.h.b16 %v771
      %v1244 = vunpack.c.l.b16 %v772
      %v1245 = vunpack.c.h.b16 %v772
      %v1246 = vunpack.c.l.b16 %v773
      %v1247 = vunpack.c.h.b16 %v773
      %v1248 = vunpack.c.l.b16 %v774
      %v1249 = vunpack.c.h.b16 %v774
      %v1250 = vunpack.c.l.b16 %v775
      %v1251 = vunpack.c.h.b16 %v775
      %v1252 = vunpack.c.l.b16 %v776
      %v1253 = vunpack.c.h.b16 %v776
      %v1254 = vunpack.c.l.b16 %v777
      %v1255 = vunpack.c.h.b16 %v777
      %v1256 = vunpack.c.l.b16 %v778
      %v1257 = vunpack.c.h.b16 %v778
      %v1258 = vunpack.c.l.b16 %v779
      %v1259 = vunpack.c.h.b16 %v779
      %v1260 = vunpack.c.l.b16 %v780
      %v1261 = vunpack.c.h.b16 %v780
      %v1262 = vunpack.c.l.b16 %v781
      %v1263 = vunpack.c.h.b16 %v781
      %v1264 = vunpack.c.l.b16 %v782
      %v1265 = vunpack.c.h.b16 %v782
      %v1266 = vunpack.c.l.b16 %v783
      %v1267 = vunpack.c.h.b16 %v783
      %v1268 = vunpack.c.l.b16 %v784
      %v1269 = vunpack.c.h.b16 %v784
      %v1270 = vunpack.c.l.b16 %v785
      %v1271 = vunpack.c.h.b16 %v785
      %v1272 = vunpack.c.l.b16 %v786
      %v1273 = vunpack.c.h.b16 %v786
      %v1274 = vunpack.c.l.b16 %v787
      %v1275 = vunpack.c.h.b16 %v787
      %v1276 = vunpack.c.l.b16 %v788
      %v1277 = vunpack.c.h.b16 %v788
      %v1278 = vunpack.c.l.b16 %v789
      %v1279 = vunpack.c.h.b16 %v789
      %v1280 = vunpack.c.l.b16 %v790
      %v1281 = vunpack.c.h.b16 %v790
      %v1282 = vunpack.c.l.b16 %v791
      %v1283 = vunpack.c.h.b16 %v791
      %v1284 = vunpack.c.l.b16 %v792
      %v1285 = vunpack.c.h.b16 %v792
      %v1286 = vunpack.c.l.b16 %v793
      %v1287 = vunpack.c.h.b16 %v793
      %v1288 = vunpack.c.l.b16 %v794
      %v1289 = vunpack.c.h.b16 %v794
      %v1290 = vunpack.c.l.b16 %v795
      %v1291 = vunpack.c.h.b16 %v795
      %v1292 = vunpack.c.l.b16 %v796
      %v1293 = vunpack.c.h.b16 %v796
      %v1294 = vunpack.c.l.b16 %v797
      %v1295 = vunpack.c.h.b16 %v797
      %v1296 = vunpack.c.l.b16 %v798
      %v1297 = vunpack.c.h.b16 %v798
      %v1298 = vunpack.c.l.b16 %v799
      %v1299 = vunpack.c.h.b16 %v799
      %v1300 = vunpack.c.l.b16 %v800
      %v1301 = vunpack.c.h.b16 %v800
      %v1302 = vunpack.c.l.b16 %v801
      %v1303 = vunpack.c.h.b16 %v801
      %v1304 = vunpack.c.l.b16 %v802
      %v1305 = vunpack.c.h.b16 %v802
      %v1306 = vunpack.c.l.b16 %v803
      %v1307 = vunpack.c.h.b16 %v803
      %v1308 = vunpack.c.l.b16 %v804
      %v1309 = vunpack.c.h.b16 %v804
      %v1310 = vunpack.c.l.b16 %v805
      %v1311 = vunpack.c.h.b16 %v805
      %v1312 = vunpack.c.l.b16 %v806
      %v1313 = vunpack.c.h.b16 %v806
      %v1314 = vunpack.c.l.b16 %v807
      %v1315 = vunpack.c.h.b16 %v807
      %v1316 = vunpack.c.l.b16 %v808
      %v1317 = vunpack.c.h.b16 %v808
      %v1318 = vunpack.c.l.b16 %v809
      %v1319 = vunpack.c.h.b16 %v809
      %v1320 = vunpack.c.l.b16 %v810
      %v1321 = vunpack.c.h.b16 %v810
      %v1322 = vunpack.c.l.b16 %v811
      %v1323 = vunpack.c.h.b16 %v811
      %v1324 = vunpack.c.l.b16 %v812
      %v1325 = vunpack.c.h.b16 %v812
      %v1326 = vunpack.c.l.b16 %v813
      %v1327 = vunpack.c.h.b16 %v813
      %v1328 = vunpack.c.l.b16 %v814
      %v1329 = vunpack.c.h.b16 %v814
      %v1330 = vunpack.c.l.b16 %v815
      %v1331 = vunpack.c.h.b16 %v815
      %v1332 = vunpack.c.l.b16 %v816
      %v1333 = vunpack.c.h.b16 %v816
      %v1334 = vunpack.c.l.b16 %v817
      %v1335 = vunpack.c.h.b16 %v817
      %v1336 = vunpack.c.l.b16 %v818
      %v1337 = vunpack.c.h.b16 %v818
      %v1338 = vunpack.c.l.b16 %v819
      %v1339 = vunpack.c.h.b16 %v819
      %v1340 = vunpack.c.l.b16 %v820
      %v1341 = vunpack.c.h.b16 %v820
      %v1342 = vunpack.c.l.b16 %v821
      %v1343 = vunpack.c.h.b16 %v821
      %v1344 = vunpack.c.l.b16 %v822
      %v1345 = vunpack.c.h.b16 %v822
      %v1346 = vunpack.c.l.b16 %v823
      %v1347 = vunpack.c.h.b16 %v823
      %v1348 = vunpack.c.l.b16 %v824
      %v1349 = vunpack.c.h.b16 %v824
      %v1350 = vunpack.c.l.b16 %v825
      %v1351 = vunpack.c.h.b16 %v825
      %v1352 = vunpack.c.l.b16 %v826
      %v1353 = vunpack.c.h.b16 %v826
      %v1354 = vunpack.c.l.b16 %v827
      %v1355 = vunpack.c.h.b16 %v827
      %v1356 = vunpack.c.l.b16 %v828
      %v1357 = vunpack.c.h.b16 %v828
      %v1358 = vunpack.c.l.b16 %v829
      %v1359 = vunpack.c.h.b16 %v829
      %v1360 = vunpack.c.l.b16 %v830
      %v1361 = vunpack.c.h.b16 %v830
      %v1362 = vunpack.c.l.b16 %v831
      %v1363 = vunpack.c.h.b16 %v831
      %v1364 = vunpack.c.l.b16 %v832
      %v1365 = vunpack.c.h.b16 %v832
      %v1366 = vunpack.c.l.b16 %v833
      %v1367 = vunpack.c.h.b16 %v833
      %v1368 = vunpack.c.l.b16 %v834
      %v1369 = vunpack.c.h.b16 %v834
      %v1370 = vunpack.c.l.b16 %v835
      %v1371 = vunpack.c.h.b16 %v835
      %v1372 = vunpack.c.l.b16 %v836
      %v1373 = vunpack.c.h.b16 %v836
      %v1374 = vunpack.c.l.b16 %v837
      %v1375 = vunpack.c.h.b16 %v837
      %v1376 = vunpack.c.l.b16 %v838
      %v1377 = vunpack.c.h.b16 %v838
      %v1378 = vunpack.c.l.b16 %v839
      %v1379 = vunpack.c.h.b16 %v839
      %v1380 = vunpack.c.l.b16 %v840
      %v1381 = vunpack.c.h.b16 %v840
      %v1382 = vunpack.c.l.b16 %v841
      %v1383 = vunpack.c.h.b16 %v841
      %v1384 = vunpack.c.l.b16 %v842
      %v1385 = vunpack.c.h.b16 %v842
      %v1386 = vunpack.c.l.b16 %v843
      %v1387 = vunpack.c.h.b16 %v843
      %v1388 = vunpack.c.l.b16 %v844
      %v1389 = vunpack.c.h.b16 %v844
      %v1390 = vunpack.c.l.b16 %v845
      %v1391 = vunpack.c.h.b16 %v845
      %v1392 = vunpack.c.l.b16 %v846
      %v1393 = vunpack.c.h.b16 %v846
      %v1394 = vunpack.c.l.b16 %v847
      %v1395 = vunpack.c.h.b16 %v847
      %v1396 = vunpack.c.l.b16 %v848
      %v1397 = vunpack.c.h.b16 %v848
      %v1398 = vunpack.c.l.b16 %v849
      %v1399 = vunpack.c.h.b16 %v849
      %v1400 = vunpack.c.l.b16 %v850
      %v1401 = vunpack.c.h.b16 %v850
      %v1402 = vunpack.c.l.b16 %v851
      %v1403 = vunpack.c.h.b16 %v851
      %v1404 = vunpack.c.l.b16 %v852
      %v1405 = vunpack.c.h.b16 %v852
      %v1406 = vunpack.c.l.b16 %v853
      %v1407 = vunpack.c.h.b16 %v853
      %v1408 = vunpack.c.l.b16 %v854
      %v1409 = vunpack.c.h.b16 %v854
      %v1410 = vunpack.c.l.b16 %v855
      %v1411 = vunpack.c.h.b16 %v855
      %v1412 = vunpack.c.l.b16 %v856
      %v1413 = vunpack.c.h.b16 %v856
      %v1414 = vunpack.c.l.b16 %v857
      %v1415 = vunpack.c.h.b16 %v857
      %v1416 = vunpack.c.l.b16 %v858
      %v1417 = vunpack.c.h.b16 %v858
      %v1418 = vunpack.c.l.b16 %v859
      %v1419 = vunpack.c.h.b16 %v859
      %v1420 = vunpack.c.l.b16 %v860
      %v1421 = vunpack.c.h.b16 %v860
      %v1422 = vunpack.c.l.b16 %v861
      %v1423 = vunpack.c.h.b16 %v861
      %v1424 = vunpack.c.l.b16 %v862
      %v1425 = vunpack.c.h.b16 %v862
      %v1426 = vunpack.c.l.b16 %v863
      %v1427 = vunpack.c.h.b16 %v863
      %v1428 = vunpack.c.l.b16 %v864
      %v1429 = vunpack.c.h.b16 %v864
      %v1430 = vunpack.c.l.b16 %v865
      %v1431 = vunpack.c.h.b16 %v865
      %v1432 = vunpack.c.l.b16 %v866
      %v1433 = vunpack.c.h.b16 %v866
      %v1434 = vunpack.c.l.b16 %v867
      %v1435 = vunpack.c.h.b16 %v867
      %v1436 = vunpack.c.l.b16 %v868
      %v1437 = vunpack.c.h.b16 %v868
      %v1438 = vunpack.c.l.b16 %v869
      %v1439 = vunpack.c.h.b16 %v869
      %v1440 = vunpack.c.l.b16 %v870
      %v1441 = vunpack.c.h.b16 %v870
      %v1442 = vunpack.c.l.b16 %v871
      %v1443 = vunpack.c.h.b16 %v871
      %v1444 = vunpack.c.l.b16 %v872
      %v1445 = vunpack.c.h.b16 %v872
      %v1446 = vunpack.c.l.b16 %v873
      %v1447 = vunpack.c.h.b16 %v873
      %v1448 = vunpack.c.l.b16 %v874
      %v1449 = vunpack.c.h.b16 %v874
      %v1450 = vunpack.c.l.b16 %v875
      %v1451 = vunpack.c.h.b16 %v875
      %v1452 = vunpack.c.l.b16 %v876
      %v1453 = vunpack.c.h.b16 %v876
      %v1454 = vunpack.c.l.b16 %v877
      %v1455 = vunpack.c.h.b16 %v877
      %v1456 = vunpack.c.l.b16 %v878
      %v1457 = vunpack.c.h.b16 %v878
      %v1458 = vunpack.c.l.b16 %v879
      %v1459 = vunpack.c.h.b16 %v879
      %v1460 = vunpack.c.l.b16 %v880
      %v1461 = vunpack.c.h.b16 %v880
      %v1462 = vunpack.c.l.b16 %v881
      %v1463 = vunpack.c.h.b16 %v881
      %v1464 = vunpack.c.l.b16 %v882
      %v1465 = vunpack.c.h.b16 %v882
      %v1466 = vunpack.c.l.b16 %v883
      %v1467 = vunpack.c.h.b16 %v883
      %v1468 = vunpack.c.l.b16 %v884
      %v1469 = vunpack.c.h.b16 %v884
      %v1470 = vunpack.c.l.b16 %v885
      %v1471 = vunpack.c.h.b16 %v885
      %v1472 = vunpack.c.l.b16 %v886
      %v1473 = vunpack.c.h.b16 %v886
      %v1474 = vunpack.c.l.b16 %v887
      %v1475 = vunpack.c.h.b16 %v887
      %v1476 = vunpack.c.l.b16 %v888
      %v1477 = vunpack.c.h.b16 %v888
      %v1478 = vunpack.c.l.b16 %v889
      %v1479 = vunpack.c.h.b16 %v889
      %v1480 = vunpack.c.l.b16 %v890
      %v1481 = vunpack.c.h.b16 %v890
      %v1482 = vunpack.c.l.b16 %v891
      %v1483 = vunpack.c.h.b16 %v891
      %v1484 = vunpack.c.l.b16 %v892
      %v1485 = vunpack.c.h.b16 %v892
      %v1486 = vunpack.c.l.b16 %v893
      %v1487 = vunpack.c.h.b16 %v893
      %v1488 = vunpack.c.l.b16 %v894
      %v1489 = vunpack.c.h.b16 %v894
      %v1490 = vunpack.c.l.b16 %v895
      %v1491 = vunpack.c.h.b16 %v895
      %v1492 = vunpack.c.l.b16 %v896
      %v1493 = vunpack.c.h.b16 %v896
      %v1494 = vunpack.c.l.b16 %v897
      %v1495 = vunpack.c.h.b16 %v897
      %v1496 = vunpack.c.l.b16 %v898
      %v1497 = vunpack.c.h.b16 %v898
      %v1498 = vunpack.c.l.b16 %v899
      %v1499 = vunpack.c.h.b16 %v899
      %v1500 = vunpack.c.l.b16 %v900
      %v1501 = vunpack.c.h.b16 %v900
      %v1502 = vunpack.c.l.b16 %v901
      %v1503 = vunpack.c.h.b16 %v901
      %v1504 = vunpack.c.l.b16 %v902
      %v1505 = vunpack.c.h.b16 %v902
      %v1506 = vunpack.c.l.b16 %v903
      %v1507 = vunpack.c.h.b16 %v903
      %v1508 = vunpack.c.l.b16 %v904
      %v1509 = vunpack.c.h.b16 %v904
      %v1510 = vunpack.c.l.b16 %v905
      %v1511 = vunpack.c.h.b16 %v905
      %v1512 = vunpack.c.l.b16 %v906
      %v1513 = vunpack.c.h.b16 %v906
      %v1514 = vunpack.c.l.b16 %v907
      %v1515 = vunpack.c.h.b16 %v907
      %v1516 = vunpack.c.l.b16 %v908
      %v1517 = vunpack.c.h.b16 %v908
      %v1518 = vunpack.c.l.b16 %v909
      %v1519 = vunpack.c.h.b16 %v909
      %v1520 = vunpack.c.l.b16 %v910
      %v1521 = vunpack.c.h.b16 %v910
      %v1522 = vunpack.c.l.b16 %v911
      %v1523 = vunpack.c.h.b16 %v911
      %v1524 = vunpack.c.l.b16 %v912
      %v1525 = vunpack.c.h.b16 %v912
      %v1526 = vunpack.c.l.b16 %v913
      %v1527 = vunpack.c.h.b16 %v913
      %v1528 = vunpack.c.l.b16 %v914
      %v1529 = vunpack.c.h.b16 %v914
      %v1530 = vunpack.c.l.b16 %v915
      %v1531 = vunpack.c.h.b16 %v915
      %v1532 = vunpack.c.l.b16 %v916
      %v1533 = vunpack.c.h.b16 %v916
      %v1534 = vunpack.c.l.b16 %v917
      %v1535 = vunpack.c.h.b16 %v917
      %v1536 = vunpack.c.l.b16 %v918
      %v1537 = vunpack.c.h.b16 %v918
      %v1538 = vunpack.c.l.b16 %v919
      %v1539 = vunpack.c.h.b16 %v919
      %v1540 = vunpack.c.l.b16 %v920
      %v1541 = vunpack.c.h.b16 %v920
      %v1542 = vunpack.c.l.b16 %v921
      %v1543 = vunpack.c.h.b16 %v921
      %v1544 = vunpack.c.l.b16 %v922
      %v1545 = vunpack.c.h.b16 %v922
      %v1546 = vunpack.c.l.b16 %v923
      %v1547 = vunpack.c.h.b16 %v923
      %v1548 = vunpack.c.l.b16 %v924
      %v1549 = vunpack.c.h.b16 %v924
      %v1550 = vunpack.c.l.b16 %v925
      %v1551 = vunpack.c.h.b16 %v925
      %v1552 = vunpack.c.l.b16 %v926
      %v1553 = vunpack.c.h.b16 %v926
      %v1554 = vunpack.c.l.b16 %v927
      %v1555 = vunpack.c.h.b16 %v927
      %v1556 = vunpack.c.l.b16 %v928
      %v1557 = vunpack.c.h.b16 %v928
      %v1558 = vunpack.c.l.b16 %v929
      %v1559 = vunpack.c.h.b16 %v929
      %v1560 = vunpack.c.l.b16 %v930
      %v1561 = vunpack.c.h.b16 %v930
      %v1562 = vunpack.c.l.b16 %v931
      %v1563 = vunpack.c.h.b16 %v931
      %v1564 = vunpack.c.l.b16 %v932
      %v1565 = vunpack.c.h.b16 %v932
      %v1566 = vunpack.c.l.b16 %v933
      %v1567 = vunpack.c.h.b16 %v933
      %v1568 = vunpack.c.l.b16 %v934
      %v1569 = vunpack.c.h.b16 %v934
      %v1570 = vunpack.c.l.b16 %v935
      %v1571 = vunpack.c.h.b16 %v935
      %v1572 = vunpack.c.l.b16 %v936
      %v1573 = vunpack.c.h.b16 %v936
      %v1574 = vunpack.c.l.b16 %v937
      %v1575 = vunpack.c.h.b16 %v937
      %v1576 = vunpack.c.l.b16 %v938
      %v1577 = vunpack.c.h.b16 %v938
      %v1578 = vunpack.c.l.b16 %v939
      %v1579 = vunpack.c.h.b16 %v939
      %v1580 = vunpack.c.l.b16 %v940
      %v1581 = vunpack.c.h.b16 %v940
      %v1582 = vunpack.c.l.b16 %v941
      %v1583 = vunpack.c.h.b16 %v941
      %v1584 = vunpack.c.l.b16 %v942
      %v1585 = vunpack.c.h.b16 %v942
      %v1586 = vunpack.c.l.b16 %v943
      %v1587 = vunpack.c.h.b16 %v943
      %v1588 = vunpack.c.l.b16 %v944
      %v1589 = vunpack.c.h.b16 %v944
      %v1590 = vunpack.c.l.b16 %v945
      %v1591 = vunpack.c.h.b16 %v945
      %v1592 = vunpack.c.l.b16 %v946
      %v1593 = vunpack.c.h.b16 %v946
      %v1594 = vunpack.c.l.b16 %v947
      %v1595 = vunpack.c.h.b16 %v947
      %v1596 = vunpack.c.l.b16 %v948
      %v1597 = vunpack.c.h.b16 %v948
      %v1598 = vunpack.c.l.b16 %v949
      %v1599 = vunpack.c.h.b16 %v949
      %v1600 = vunpack.c.l.b16 %v950
      %v1601 = vunpack.c.h.b16 %v950
      %v1602 = vunpack.c.l.b16 %v951
      %v1603 = vunpack.c.h.b16 %v951
      %v1604 = vunpack.c.l.b16 %v952
      %v1605 = vunpack.c.h.b16 %v952
      %v1606 = vunpack.c.l.b16 %v953
      %v1607 = vunpack.c.h.b16 %v953
      %v1608 = vunpack.c.l.b16 %v954
      %v1609 = vunpack.c.h.b16 %v954
      %v1610 = vunpack.c.l.b16 %v955
      %v1611 = vunpack.c.h.b16 %v955
      %v1612 = vunpack.c.l.b16 %v956
      %v1613 = vunpack.c.h.b16 %v956
      %v1614 = vunpack.c.l.b16 %v957
      %v1615 = vunpack.c.h.b16 %v957
      %v1616 = vunpack.c.l.b16 %v958
      %v1617 = vunpack.c.h.b16 %v958
      %v1618 = vunpack.c.l.b16 %v959
      %v1619 = vunpack.c.h.b16 %v959
      %v1620 = vunpack.c.l.b16 %v960
      %v1621 = vunpack.c.h.b16 %v960
      %v1622 = vunpack.c.l.b16 %v961
      %v1623 = vunpack.c.h.b16 %v961
      %v1624 = vunpack.c.l.b16 %v962
      %v1625 = vunpack.c.h.b16 %v962
      %v1626 = vunpack.c.l.b16 %v963
      %v1627 = vunpack.c.h.b16 %v963
      %v1628 = vunpack.c.l.b16 %v964
      %v1629 = vunpack.c.h.b16 %v964
      %v1630 = vunpack.c.l.b16 %v965
      %v1631 = vunpack.c.h.b16 %v965
      %v1632 = vunpack.c.l.b16 %v966
      %v1633 = vunpack.c.h.b16 %v966
      %v1634 = vunpack.c.l.b16 %v967
      %v1635 = vunpack.c.h.b16 %v967
      %v1636 = vunpack.c.l.b16 %v968
      %v1637 = vunpack.c.h.b16 %v968
      %v1638 = vunpack.c.l.b16 %v969
      %v1639 = vunpack.c.h.b16 %v969
      %v1640 = vunpack.c.l.b16 %v970
      %v1641 = vunpack.c.h.b16 %v970
      %v1642 = vunpack.c.l.b16 %v971
      %v1643 = vunpack.c.h.b16 %v971
      %v1644 = vunpack.c.l.b16 %v972
      %v1645 = vunpack.c.h.b16 %v972
      %v1646 = vunpack.c.l.b16 %v973
      %v1647 = vunpack.c.h.b16 %v973
      %v1648 = vunpack.c.l.b16 %v974
      %v1649 = vunpack.c.h.b16 %v974
      %v1650 = vunpack.c.l.b16 %v975
      %v1651 = vunpack.c.h.b16 %v975
      %v1652 = vunpack.c.l.b16 %v976
      %v1653 = vunpack.c.h.b16 %v976
      %v1654 = vunpack.c.l.b16 %v977
      %v1655 = vunpack.c.h.b16 %v977
      %v1656 = vunpack.c.l.b16 %v978
      %v1657 = vunpack.c.h.b16 %v978
      %v1658 = vunpack.c.l.b16 %v979
      %v1659 = vunpack.c.h.b16 %v979
      %v1660 = vunpack.c.l.b16 %v980
      %v1661 = vunpack.c.h.b16 %v980
      %v1662 = vunpack.c.l.b16 %v981
      %v1663 = vunpack.c.h.b16 %v981
      %v1664 = vunpack.c.l.b16 %v982
      %v1665 = vunpack.c.h.b16 %v982
      %v1666 = vunpack.c.l.b16 %v983
      %v1667 = vunpack.c.h.b16 %v983
      %v1668 = vunpack.c.l.b16 %v984
      %v1669 = vunpack.c.h.b16 %v984
      %v1670 = vunpack.c.l.b16 %v985
      %v1671 = vunpack.c.h.b16 %v985
      %v1672 = vunpack.c.l.b16 %v986
      %v1673 = vunpack.c.h.b16 %v986
      %v1674 = vunpack.c.l.b16 %v987
      %v1675 = vunpack.c.h.b16 %v987
      %v1676 = vunpack.c.l.b16 %v988
      %v1677 = vunpack.c.h.b16 %v988
      %v1678 = vunpack.c.l.b16 %v989
      %v1679 = vunpack.c.h.b16 %v989
      %v1680 = vunpack.c.l.b16 %v990
      %v1681 = vunpack.c.h.b16 %v990
      %v1682 = vunpack.c.l.b16 %v991
      %v1683 = vunpack.c.h.b16 %v991
      %v1684 = vunpack.c.l.b16 %v992
      %v1685 = vunpack.c.h.b16 %v992
      %v1686 = vunpack.c.l.b16 %v993
      %v1687 = vunpack.c.h.b16 %v993
      %v1688 = vpack.c.b16 %v1244, %v1240
      %v1689 = vpack.c.b16 %v1245, %v1241
      %v1690 = vpack.c.b16 %v1246, %v1242
      %v1691 = vpack.c.b16 %v1247, %v1243
      %v1692 = vpack.c.b16 %v1252, %v1248
      %v1693 = vpack.c.b16 %v1253, %v1249
      %v1694 = vpack.c.b16 %v1254, %v1250
      %v1695 = vpack.c.b16 %v1255, %v1251
      %v1696 = vpack.c.b16 %v1260, %v1256
      %v1697 = vpack.c.b16 %v1261, %v1257
      %v1698 = vpack.c.b16 %v1262, %v1258
      %v1699 = vpack.c.b16 %v1263, %v1259
      %v1700 = vpack.c.b16 %v1268, %v1264
      %v1701 = vpack.c.b16 %v1269, %v1265
      %v1702 = vpack.c.b16 %v1270, %v1266
      %v1703 = vpack.c.b16 %v1271, %v1267
      %v1704 = vpack.c.b16 %v1276, %v1272
      %v1705 = vpack.c.b16 %v1277, %v1273
      %v1706 = vpack.c.b16 %v1278, %v1274
      %v1707 = vpack.c.b16 %v1279, %v1275
      %v1708 = vpack.c.b16 %v1284, %v1280
      %v1709 = vpack.c.b16 %v1285, %v1281
      %v1710 = vpack.c.b16 %v1286, %v1282
      %v1711 = vpack.c.b16 %v1287, %v1283
      %v1712 = vpack.c.b16 %v1292, %v1288
      %v1713 = vpack.c.b16 %v1293, %v1289
      %v1714 = vpack.c.b16 %v1294, %v1290
      %v1715 = vpack.c.b16 %v1295, %v1291
      %v1716 = vpack.c.b16 %v1300, %v1296
      %v1717 = vpack.c.b16 %v1301, %v1297
      %v1718 = vpack.c.b16 %v1302, %v1298
      %v1719 = vpack.c.b16 %v1303, %v1299
      %v1720 = vpack.c.b16 %v1308, %v1304
      %v1721 = vpack.c.b16 %v1309, %v1305
      %v1722 = vpack.c.b16 %v1310, %v1306
      %v1723 = vpack.c.b16 %v1311, %v1307
      %v1724 = vpack.c.b16 %v1316, %v1312
      %v1725 = vpack.c.b16 %v1317, %v1313
      %v1726 = vpack.c.b16 %v1318, %v1314
      %v1727 = vpack.c.b16 %v1319, %v1315
      %v1728 = vpack.c.b16 %v1324, %v1320
      %v1729 = vpack.c.b16 %v1325, %v1321
      %v1730 = vpack.c.b16 %v1326, %v1322
      %v1731 = vpack.c.b16 %v1327, %v1323
      %v1732 = vpack.c.b16 %v1332, %v1328
      %v1733 = vpack.c.b16 %v1333, %v1329
      %v1734 = vpack.c.b16 %v1334, %v1330
      %v1735 = vpack.c.b16 %v1335, %v1331
      %v1736 = vpack.c.b16 %v1340, %v1336
      %v1737 = vpack.c.b16 %v1341, %v1337
      %v1738 = vpack.c.b16 %v1342, %v1338
      %v1739 = vpack.c.b16 %v1343, %v1339
      %v1740 = vpack.c.b16 %v1348, %v1344
      %v1741 = vpack.c.b16 %v1349, %v1345
      %v1742 = vpack.c.b16 %v1350, %v1346
      %v1743 = vpack.c.b16 %v1351, %v1347
      %v1744 = vpack.c.b16 %v1356, %v1352
      %v1745 = vpack.c.b16 %v1357, %v1353
      %v1746 = vpack.c.b16 %v1358, %v1354
      %v1747 = vpack.c.b16 %v1359, %v1355
      %v1748 = vpack.c.b16 %v1364, %v1360
      %v1749 = vpack.c.b16 %v1365, %v1361
      %v1750 = vpack.c.b16 %v1366, %v1362
      %v1751 = vpack.c.b16 %v1367, %v1363
      %v1752 = vpack.c.b16 %v1372, %v1368
      %v1753 = vpack.c.b16 %v1373, %v1369
      %v1754 = vpack.c.b16 %v1374, %v1370
      %v1755 = vpack.c.b16 %v1375, %v1371
      %v1756 = vpack.c.b16 %v1380, %v1376
      %v1757 = vpack.c.b16 %v1381, %v1377
      %v1758 = vpack.c.b16 %v1382, %v1378
      %v1759 = vpack.c.b16 %v1383, %v1379
      %v1760 = vpack.c.b16 %v1388, %v1384
      %v1761 = vpack.c.b16 %v1389, %v1385
      %v1762 = vpack.c.b16 %v1390, %v1386
      %v1763 = vpack.c.b16 %v1391, %v1387
      %v1764 = vpack.c.b16 %v1396, %v1392
      %v1765 = vpack.c.b16 %v1397, %v1393
      %v1766 = vpack.c.b16 %v1398, %v1394
      %v1767 = vpack.c.b16 %v1399, %v1395
      %v1768 = vpack.c.b16 %v1404, %v1400
      %v1769 = vpack.c.b16 %v1405, %v1401
      %v1770 = vpack.c.b16 %v1406, %v1402
      %v1771 = vpack.c.b16 %v1407, %v1403
      %v1772 = vpack.c.b16 %v1412, %v1408
      %v1773 = vpack.c.b16 %v1413, %v1409
      %v1774 = vpack.c.b16 %v1414, %v1410
      %v1775 = vpack.c.b16 %v1415, %v1411
      %v1776 = vpack.c.b16 %v1420, %v1416
      %v1777 = vpack.c.b16 %v1421, %v1417
      %v1778 = vpack.c.b16 %v1422, %v1418
      %v1779 = vpack.c.b16 %v1423, %v1419
      %v1780 = vpack.c.b16 %v1428, %v1424
      %v1781 = vpack.c.b16 %v1429, %v1425
      %v1782 = vpack.c.b16 %v1430, %v1426
      %v1783 = vpack.c.b16 %v1431, %v1427
      %v1784 = vpack.c.b16 %v1436, %v1432
      %v1785 = vpack.c.b16 %v1437, %v1433
      %v1786 = vpack.c.b16 %v1438, %v1434
      %v1787 = vpack.c.b16 %v1439, %v1435
      %v1788 = vpack.c.b16 %v1444, %v1440
      %v1789 = vpack.c.b16 %v1445, %v1441
      %v1790 = vpack.c.b16 %v1446, %v1442
      %v1791 = vpack.c.b16 %v1447, %v1443
      %v1792 = vpack.c.b16 %v1452, %v1448
      %v1793 = vpack.c.b16 %v1453, %v1449
      %v1794 = vpack.c.b16 %v1454, %v1450
      %v1795 = vpack.c.b16 %v1455, %v1451
      %v1796 = vpack.c.b16 %v1460, %v1456
      %v1797 = vpack.c.b16 %v1461, %v1457
      %v1798 = vpack.c.b16 %v1462, %v1458
      %v1799 = vpack.c.b16 %v1463, %v1459
      %v1800 = vpack.c.b16 %v1468, %v1464
      %v1801 = vpack.c.b16 %v1469, %v1465
      %v1802 = vpack.c.b16 %v1470, %v1466
      %v1803 = vpack.c.b16 %v1471, %v1467
      %v1804 = vpack.c.b16 %v1476, %v1472
      %v1805 = vpack.c.b16 %v1477, %v1473
      %v1806 = vpack.c.b16 %v1478, %v1474
      %v1807 = vpack.c.b16 %v1479, %v1475
      %v1808 = vpack.c.b16 %v1484, %v1480
      %v1809 = vpack.c.b16 %v1485, %v1481
      %v1810 = vpack.c.b16 %v1486, %v1482
      %v1811 = vpack.c.b16 %v1487, %v1483
      %v1812 = vpack.c.b16 %v1492, %v1488
      %v1813 = vpack.c.b16 %v1493, %v1489
      %v1814 = vpack.c.b16 %v1494, %v1490
      %v1815 = vpack.c.b16 %v1495, %v1491
      %v1816 = vpack.c.b16 %v1500, %v1496
      %v1817 = vpack.c.b16 %v1501, %v1497
      %v1818 = vpack.c.b16 %v1502, %v1498
      %v1819 = vpack.c.b16 %v1503, %v1499
      %v1820 = vpack.c.b16 %v1508, %v1504
      %v1821 = vpack.c.b16 %v1509, %v1505
      %v1822 = vpack.c.b16 %v1510, %v1506
      %v1823 = vpack.c.b16 %v1511, %v1507
      %v1824 = vpack.c.b16 %v1516, %v1512
      %v1825 = vpack.c.b16 %v1517, %v1513
      %v1826 = vpack.c.b16 %v1518, %v1514
      %v1827 = vpack.c.b16 %v1519, %v1515
      %v1828 = vpack.c.b16 %v1524, %v1520
      %v1829 = vpack.c.b16 %v1525, %v1521
      %v1830 = vpack.c.b16 %v1526, %v1522
      %v1831 = vpack.c.b16 %v1527, %v1523
      %v1832 = vpack.c.b16 %v1532, %v1528
      %v1833 = vpack.c.b16 %v1533, %v1529
      %v1834 = vpack.c.b16 %v1534, %v1530
      %v1835 = vpack.c.b16 %v1535, %v1531
      %v1836 = vpack.c.b16 %v1540, %v1536
      %v1837 = vpack.c.b16 %v1541, %v1537
      %v1838 = vpack.c.b16 %v1542, %v1538
      %v1839 = vpack.c.b16 %v1543, %v1539
      %v1840 = vpack.c.b16 %v1548, %v1544
      %v1841 = vpack.c.b16 %v1549, %v1545
      %v1842 = vpack.c.b16 %v1550, %v1546
      %v1843 = vpack.c.b16 %v1551, %v1547
      %v1844 = vpack.c.b16 %v1556, %v1552
      %v1845 = vpack.c.b16 %v1557, %v1553
      %v1846 = vpack.c.b16 %v1558, %v1554
      %v1847 = vpack.c.b16 %v1559, %v1555
      %v1848 = vpack.c.b16 %v1564, %v1560
      %v1849 = vpack.c.b16 %v1565, %v1561
      %v1850 = vpack.c.b16 %v1566, %v1562
      %v1851 = vpack.c.b16 %v1567, %v1563
      %v1852 = vpack.c.b16 %v1572, %v1568
      %v1853 = vpack.c.b16 %v1573, %v1569
      %v1854 = vpack.c.b16 %v1574, %v1570
      %v1855 = vpack.c.b16 %v1575, %v1571
      %v1856 = vpack.c.b16 %v1580, %v1576
      %v1857 = vpack.c.b16 %v1581, %v1577
      %v1858 = vpack.c.b16 %v1582, %v1578
      %v1859 = vpack.c.b16 %v1583, %v1579
      %v1860 = vpack.c.b16 %v1588, %v1584
      %v1861 = vpack.c.b16 %v1589, %v1585
      %v1862 = vpack.c.b16 %v1590, %v1586
      %v1863 = vpack.c.b16 %v1591, %v1587
      %v1864 = vpack.c.b16 %v1596, %v1592
      %v1865 = vpack.c.b16 %v1597, %v1593
      %v1866 = vpack.c.b16 %v1598, %v1594
      %v1867 = vpack.c.b16 %v1599, %v1595
      %v1868 = vpack.c.b16 %v1604, %v1600
      %v1869 = vpack.c.b16 %v1605, %v1601
      %v1870 = vpack.c.b16 %v1606, %v1602
      %v1871 = vpack.c.b16 %v1607, %v1603
      %v1872 = vpack.c.b16 %v1612, %v1608
      %v1873 = vpack.c.b16 %v1613, %v1609
      %v1874 = vpack.c.b16 %v1614, %v1610
      %v1875 = vpack.c.b16 %v1615, %v1611
      %v1876 = vpack.c.b16 %v1620, %v1616
      %v1877 = vpack.c.b16 %v1621, %v1617
      %v1878 = vpack.c.b16 %v1622, %v1618
      %v1879 = vpack.c.b16 %v1623, %v1619
      %v1880 = vpack.c.b16 %v1628, %v1624
      %v1881 = vpack.c.b16 %v1629, %v1625
      %v1882 = vpack.c.b16 %v1630, %v1626
      %v1883 = vpack.c.b16 %v1631, %v1627
      %v1884 = vpack.c.b16 %v1636, %v1632
      %v1885 = vpack.c.b16 %v1637, %v1633
      %v1886 = vpack.c.b16 %v1638, %v1634
      %v1887 = vpack.c.b16 %v1639, %v1635
      %v1888 = vpack.c.b16 %v1644, %v1640
      %v1889 = vpack.c.b16 %v1645, %v1641
      %v1890 = vpack.c.b16 %v1646, %v1642
      %v1891 = vpack.c.b16 %v1647, %v1643
      %v1892 = vpack.c.b16 %v1652, %v1648
      %v1893 = vpack.c.b16 %v1653, %v1649
      %v1894 = vpack.c.b16 %v1654, %v1650
      %v1895 = vpack.c.b16 %v1655, %v1651
      %v1896 = vpack.c.b16 %v1660, %v1656
      %v1897 = vpack.c.b16 %v1661, %v1657
      %v1898 = vpack.c.b16 %v1662, %v1658
      %v1899 = vpack.c.b16 %v1663, %v1659
      %v1900 = vpack.c.b16 %v1668, %v1664
      %v1901 = vpack.c.b16 %v1669, %v1665
      %v1902 = vpack.c.b16 %v1670, %v1666
      %v1903 = vpack.c.b16 %v1671, %v1667
      %v1904 = vpack.c.b16 %v1676, %v1672
      %v1905 = vpack.c.b16 %v1677, %v1673
      %v1906 = vpack.c.b16 %v1678, %v1674
      %v1907 = vpack.c.b16 %v1679, %v1675
      %v1908 = vpack.c.b16 %v1684, %v1680
      %v1909 = vpack.c.b16 %v1685, %v1681
      %v1910 = vpack.c.b16 %v1686, %v1682
      %v1911 = vpack.c.b16 %v1687, %v1683
      %2136 = vmatprep.subr.bf16.mxu0 %v1689
      %2137 = vmatpush1.bf16.msra.mxu0 %v1688
      %2138 = vmatprep.subr.bf16.mxu0 %v1693
      %2139 = vmatpush1.bf16.msra.mxu0 %v1692
      %2140 = vmatprep.subr.bf16.mxu0 %v1697
      %2141 = vmatpush1.bf16.msra.mxu0 %v1696
      %2142 = vmatprep.subr.bf16.mxu0 %v1701
      %2143 = vmatpush1.bf16.msra.mxu0 %v1700
      %2144 = vmatprep.subr.bf16.mxu0 %v1705
      %2145 = vmatpush1.bf16.msra.mxu0 %v1704
      %2146 = vmatprep.subr.bf16.mxu0 %v1709
      %2147 = vmatpush1.bf16.msra.mxu0 %v1708
      %2148 = vmatprep.subr.bf16.mxu0 %v1713
      %2149 = vmatpush1.bf16.msra.mxu0 %v1712
      %2150 = vmatprep.subr.bf16.mxu0 %v1717
      %2151 = vmatpush1.bf16.msra.mxu0 %v1716
      %2152 = vmatprep.subr.bf16.mxu0 %v1721
      %2153 = vmatpush1.bf16.msra.mxu0 %v1720
      %2154 = vmatprep.subr.bf16.mxu0 %v1725
      %2155 = vmatpush1.bf16.msra.mxu0 %v1724
      %2156 = vmatprep.subr.bf16.mxu0 %v1729
      %2157 = vmatpush1.bf16.msra.mxu0 %v1728
      %2158 = vmatprep.subr.bf16.mxu0 %v1733
      %2159 = vmatpush1.bf16.msra.mxu0 %v1732
      %2160 = vmatprep.subr.bf16.mxu0 %v1737
      %2161 = vmatpush1.bf16.msra.mxu0 %v1736
      %2162 = vmatprep.subr.bf16.mxu0 %v1741
      %2163 = vmatpush1.bf16.msra.mxu0 %v1740
      %2164 = vmatprep.subr.bf16.mxu0 %v1745
      %2165 = vmatpush1.bf16.msra.mxu0 %v1744
      %2166 = vmatprep.subr.bf16.mxu0 %v1749
      %2167 = vmatpush1.bf16.msra.mxu0 %v1748
      %2168 = vmatprep.mubr.bf16.mxu0 %v659
      %2169 = vmatmul.mubr.bf16.gmra.mrb[0].mxu0 %v658
      %v2170 = vpop.f32.mrb[0].mxu0
      %v2171 = vadd.f32 %v999, %v2170
      %v2172 = vpop.f32.mrb[0].mxu0
      %v2173 = vadd.f32 %v1003, %v2172
      %v2174 = vpop.f32.mrb[0].mxu0
      %v2175 = vadd.f32 %v999, %v2174
      %v2176 = vpop.f32.mrb[0].mxu0
      %v2177 = vadd.f32 %v1003, %v2176
      %2178 = vmatprep.mubr.bf16.mxu0 %v666
      %2179 = vmatmul.mubr.bf16.gmra.mrb[0].mxu0 %v665
      %v2180 = vpop.f32.mrb[0].mxu0
      %v2181 = vadd.f32 %v999, %v2180
      %v2182 = vpop.f32.mrb[0].mxu0
      %v2183 = vadd.f32 %v1003, %v2182
      %v2184 = vpop.f32.mrb[0].mxu0
      %v2185 = vadd.f32 %v999, %v2184
      %v2186 = vpop.f32.mrb[0].mxu0
      %v2187 = vadd.f32 %v1003, %v2186
      %2188 = vmatprep.mubr.bf16.mxu0 %v673
      %2189 = vmatmul.mubr.bf16.gmra.mrb[0].mxu0 %v672
      %v2190 = vpop.f32.mrb[0].mxu0
      %v2191 = vadd.f32 %v999, %v2190
      %v2192 = vpop.f32.mrb[0].mxu0
      %v2193 = vadd.f32 %v1003, %v2192
      %v2194 = vpop.f32.mrb[0].mxu0
      %v2195 = vadd.f32 %v999, %v2194
      %v2196 = vpop.f32.mrb[0].mxu0
      %v2197 = vadd.f32 %v1003, %v2196
      %2198 = vmatprep.mubr.bf16.mxu0 %v680
      %2199 = vmatmul.mubr.bf16.gmra.mrb[0].mxu0 %v679
      %v2200 = vpop.f32.mrb[0].mxu0
      %v2201 = vadd.f32 %v999, %v2200
      %v2202 = vpop.f32.mrb[0].mxu0
      %v2203 = vadd.f32 %v1003, %v2202
      %v2204 = vpop.f32.mrb[0].mxu0
      %v2205 = vadd.f32 %v999, %v2204
      %v2206 = vpop.f32.mrb[0].mxu0
      %v2207 = vadd.f32 %v1003, %v2206
      %2208 = vmatprep.mubr.bf16.mxu0 %v687
      %2209 = vmatmul.mubr.bf16.gmra.mrb[0].mxu0 %v686
      %v2210 = vpop.f32.mrb[0].mxu0
      %v2211 = vadd.f32 %v999, %v2210
      %v2212 = vpop.f32.mrb[0].mxu0
      %v2213 = vadd.f32 %v1003, %v2212
      %v2214 = vpop.f32.mrb[0].mxu0
      %v2215 = vadd.f32 %v999, %v2214
      %v2216 = vpop.f32.mrb[0].mxu0
      %v2217 = vadd.f32 %v1003, %v2216
      %2218 = vmatprep.mubr.bf16.mxu0 %v694
      %2219 = vmatmul.mubr.bf16.gmra.mrb[0].mxu0 %v693
      %v2220 = vpop.f32.mrb[0].mxu0
      %v2221 = vadd.f32 %v999, %v2220
      %v2222 = vpop.f32.mrb[0].mxu0
      %v2223 = vadd.f32 %v1003, %v2222
      %v2224 = vpop.f32.mrb[0].mxu0
      %v2225 = vadd.f32 %v999, %v2224
      %v2226 = vpop.f32.mrb[0].mxu0
      %v2227 = vadd.f32 %v1003, %v2226
      %2228 = vmatprep.mubr.bf16.mxu0 %v701
      %2229 = vmatmul.mubr.bf16.gmra.mrb[0].mxu0 %v700
      %v2230 = vpop.f32.mrb[0].mxu0
      %v2231 = vadd.f32 %v999, %v2230
      %v2232 = vpop.f32.mrb[0].mxu0
      %v2233 = vadd.f32 %v1003, %v2232
      %v2234 = vpop.f32.mrb[0].mxu0
      %v2235 = vadd.f32 %v999, %v2234
      %v2236 = vpop.f32.mrb[0].mxu0
      %v2237 = vadd.f32 %v1003, %v2236
      %2238 = vmatprep.mubr.bf16.mxu0 %v708
      %2239 = vmatmul.mubr.bf16.gmra.mrb[0].mxu0 %v707
      %v2240 = vpop.f32.mrb[0].mxu0
      %v2241 = vadd.f32 %v999, %v2240
      %v2242 = vpop.f32.mrb[0].mxu0
      %v2243 = vadd.f32 %v1003, %v2242
      %v2244 = vpop.f32.mrb[0].mxu0
      %v2245 = vadd.f32 %v999, %v2244
      %v2246 = vpop.f32.mrb[0].mxu0
      %v2247 = vadd.f32 %v1003, %v2246
      %2248 = vmatprep.mubr.bf16.mxu0 %v715
      %2249 = vmatmul.mubr.bf16.gmra.mrb[0].mxu0 %v714
      %v2250 = vpop.f32.mrb[0].mxu0
      %v2251 = vadd.f32 %v999, %v2250
      %v2252 = vpop.f32.mrb[0].mxu0
      %v2253 = vadd.f32 %v1003, %v2252
      %v2254 = vpop.f32.mrb[0].mxu0
      %v2255 = vadd.f32 %v999, %v2254
      %v2256 = vpop.f32.mrb[0].mxu0
      %v2257 = vadd.f32 %v1003, %v2256
      %2258 = vmatprep.mubr.bf16.mxu0 %v722
      %2259 = vmatmul.mubr.bf16.gmra.mrb[0].mxu0 %v721
      %v2260 = vpop.f32.mrb[0].mxu0
      %v2261 = vadd.f32 %v999, %v2260
      %v2262 = vpop.f32.mrb[0].mxu0
      %v2263 = vadd.f32 %v1003, %v2262
      %v2264 = vpop.f32.mrb[0].mxu0
      %v2265 = vadd.f32 %v999, %v2264
      %v2266 = vpop.f32.mrb[0].mxu0
      %v2267 = vadd.f32 %v1003, %v2266
      %2268 = vmatprep.mubr.bf16.mxu0 %v729
      %2269 = vmatmul.mubr.bf16.gmra.mrb[0].mxu0 %v728
      %v2270 = vpop.f32.mrb[0].mxu0
      %v2271 = vadd.f32 %v999, %v2270
      %v2272 = vpop.f32.mrb[0].mxu0
      %v2273 = vadd.f32 %v1003, %v2272
      %v2274 = vpop.f32.mrb[0].mxu0
      %v2275 = vadd.f32 %v999, %v2274
      %v2276 = vpop.f32.mrb[0].mxu0
      %v2277 = vadd.f32 %v1003, %v2276
      %2278 = vmatprep.mubr.bf16.mxu0 %v736
      %2279 = vmatmul.mubr.bf16.gmra.mrb[0].mxu0 %v735
      %v2280 = vpop.f32.mrb[0].mxu0
      %v2281 = vadd.f32 %v999, %v2280
      %v2282 = vpop.f32.mrb[0].mxu0
      %v2283 = vadd.f32 %v1003, %v2282
      %v2284 = vpop.f32.mrb[0].mxu0
      %v2285 = vadd.f32 %v999, %v2284
      %v2286 = vpop.f32.mrb[0].mxu0
      %v2287 = vadd.f32 %v1003, %v2286
      %2288 = vmatprep.mubr.bf16.mxu0 %v743
      %2289 = vmatmul.mubr.bf16.gmra.mrb[0].mxu0 %v742
      %v2290 = vpop.f32.mrb[0].mxu0
      %v2291 = vadd.f32 %v999, %v2290
      %v2292 = vpop.f32.mrb[0].mxu0
      %v2293 = vadd.f32 %v1003, %v2292
      %v2294 = vpop.f32.mrb[0].mxu0
      %v2295 = vadd.f32 %v999, %v2294
      %v2296 = vpop.f32.mrb[0].mxu0
      %v2297 = vadd.f32 %v1003, %v2296
      %2298 = vmatprep.mubr.bf16.mxu0 %v750
      %2299 = vmatmul.mubr.bf16.gmra.mrb[0].mxu0 %v749
      %v2300 = vpop.f32.mrb[0].mxu0
      %v2301 = vadd.f32 %v999, %v2300
      %v2302 = vpop.f32.mrb[0].mxu0
      %v2303 = vadd.f32 %v1003, %v2302
      %v2304 = vpop.f32.mrb[0].mxu0
      %v2305 = vadd.f32 %v999, %v2304
      %v2306 = vpop.f32.mrb[0].mxu0
      %v2307 = vadd.f32 %v1003, %v2306
      %2308 = vmatprep.mubr.bf16.mxu0 %v757
      %2309 = vmatmul.mubr.bf16.gmra.mrb[0].mxu0 %v756
      %v2310 = vpop.f32.mrb[0].mxu0
      %v2311 = vadd.f32 %v999, %v2310
      %v2312 = vpop.f32.mrb[0].mxu0
      %v2313 = vadd.f32 %v1003, %v2312
      %v2314 = vpop.f32.mrb[0].mxu0
      %v2315 = vadd.f32 %v999, %v2314
      %v2316 = vpop.f32.mrb[0].mxu0
      %v2317 = vadd.f32 %v1003, %v2316
      %2318 = vmatprep.mubr.bf16.mxu0 %v764
      %2319 = vmatmul.mubr.bf16.gmra.mrb[0].mxu0 %v763
      %v2320 = vpop.f32.mrb[0].mxu0
      %v2321 = vadd.f32 %v999, %v2320
      %v2322 = vpop.f32.mrb[0].mxu0
      %v2323 = vadd.f32 %v1003, %v2322
      %v2324 = vpop.f32.mrb[0].mxu0
      %v2325 = vadd.f32 %v999, %v2324
      %v2326 = vpop.f32.mrb[0].mxu0
      %v2327 = vadd.f32 %v1003, %v2326
      %2328 = vdwg.mxu0
      %2329 = vmatprep.subr.bf16.mxu0 %v1753
      %2330 = vmatpush1.bf16.msra.mxu0 %v1752
      %2331 = vmatprep.subr.bf16.mxu0 %v1757
      %2332 = vmatpush1.bf16.msra.mxu0 %v1756
      %2333 = vmatprep.subr.bf16.mxu0 %v1761
      %2334 = vmatpush1.bf16.msra.mxu0 %v1760
      %2335 = vmatprep.subr.bf16.mxu0 %v1765
      %2336 = vmatpush1.bf16.msra.mxu0 %v1764
      %2337 = vmatprep.subr.bf16.mxu0 %v1769
      %2338 = vmatpush1.bf16.msra.mxu0 %v1768
      %2339 = vmatprep.subr.bf16.mxu0 %v1773
      %2340 = vmatpush1.bf16.msra.mxu0 %v1772
      %2341 = vmatprep.subr.bf16.mxu0 %v1777
      %2342 = vmatpush1.bf16.msra.mxu0 %v1776
      %2343 = vmatprep.subr.bf16.mxu0 %v1781
      %2344 = vmatpush1.bf16.msra.mxu0 %v1780
      %2345 = vmatprep.subr.bf16.mxu0 %v1785
      %2346 = vmatpush1.bf16.msra.mxu0 %v1784
      %2347 = vmatprep.subr.bf16.mxu0 %v1789
      %2348 = vmatpush1.bf16.msra.mxu0 %v1788
      %2349 = vmatprep.subr.bf16.mxu0 %v1793
      %2350 = vmatpush1.bf16.msra.mxu0 %v1792
      %2351 = vmatprep.subr.bf16.mxu0 %v1797
      %2352 = vmatpush1.bf16.msra.mxu0 %v1796
      %2353 = vmatprep.subr.bf16.mxu0 %v1801
      %2354 = vmatpush1.bf16.msra.mxu0 %v1800
      %2355 = vmatprep.subr.bf16.mxu0 %v1805
      %2356 = vmatpush1.bf16.msra.mxu0 %v1804
      %2357 = vmatprep.subr.bf16.mxu0 %v1809
      %2358 = vmatpush1.bf16.msra.mxu0 %v1808
      %2359 = vmatprep.subr.bf16.mxu0 %v1813
      %2360 = vmatpush1.bf16.msra.mxu0 %v1812
      %2361 = vmatprep.mubr.bf16.mxu0 %v661
      %2362 = vmatmul.mubr.bf16.gmra.mrb[0].mxu0 %v660
      %v2363 = vpop.f32.mrb[0].mxu0
      %v2364 = vadd.f32 %v2171, %v2363
      %v2365 = vpop.f32.mrb[0].mxu0
      %v2366 = vadd.f32 %v2173, %v2365
      %v2367 = vpop.f32.mrb[0].mxu0
      %v2368 = vadd.f32 %v2175, %v2367
      %v2369 = vpop.f32.mrb[0].mxu0
      %v2370 = vadd.f32 %v2177, %v2369
      %2371 = vmatprep.mubr.bf16.mxu0 %v668
      %2372 = vmatmul.mubr.bf16.gmra.mrb[0].mxu0 %v667
      %v2373 = vpop.f32.mrb[0].mxu0
      %v2374 = vadd.f32 %v2181, %v2373
      %v2375 = vpop.f32.mrb[0].mxu0
      %v2376 = vadd.f32 %v2183, %v2375
      %v2377 = vpop.f32.mrb[0].mxu0
      %v2378 = vadd.f32 %v2185, %v2377
      %v2379 = vpop.f32.mrb[0].mxu0
      %v2380 = vadd.f32 %v2187, %v2379
      %2381 = vmatprep.mubr.bf16.mxu0 %v675
      %2382 = vmatmul.mubr.bf16.gmra.mrb[0].mxu0 %v674
      %v2383 = vpop.f32.mrb[0].mxu0
      %v2384 = vadd.f32 %v2191, %v2383
      %v2385 = vpop.f32.mrb[0].mxu0
      %v2386 = vadd.f32 %v2193, %v2385
      %v2387 = vpop.f32.mrb[0].mxu0
      %v2388 = vadd.f32 %v2195, %v2387
      %v2389 = vpop.f32.mrb[0].mxu0
      %v2390 = vadd.f32 %v2197, %v2389
      %2391 = vmatprep.mubr.bf16.mxu0 %v682
      %2392 = vmatmul.mubr.bf16.gmra.mrb[0].mxu0 %v681
      %v2393 = vpop.f32.mrb[0].mxu0
      %v2394 = vadd.f32 %v2201, %v2393
      %v2395 = vpop.f32.mrb[0].mxu0
      %v2396 = vadd.f32 %v2203, %v2395
      %v2397 = vpop.f32.mrb[0].mxu0
      %v2398 = vadd.f32 %v2205, %v2397
      %v2399 = vpop.f32.mrb[0].mxu0
      %v2400 = vadd.f32 %v2207, %v2399
      %2401 = vmatprep.mubr.bf16.mxu0 %v689
      %2402 = vmatmul.mubr.bf16.gmra.mrb[0].mxu0 %v688
      %v2403 = vpop.f32.mrb[0].mxu0
      %v2404 = vadd.f32 %v2211, %v2403
      %v2405 = vpop.f32.mrb[0].mxu0
      %v2406 = vadd.f32 %v2213, %v2405
      %v2407 = vpop.f32.mrb[0].mxu0
      %v2408 = vadd.f32 %v2215, %v2407
      %v2409 = vpop.f32.mrb[0].mxu0
      %v2410 = vadd.f32 %v2217, %v2409
      %2411 = vmatprep.mubr.bf16.mxu0 %v696
      %2412 = vmatmul.mubr.bf16.gmra.mrb[0].mxu0 %v695
      %v2413 = vpop.f32.mrb[0].mxu0
      %v2414 = vadd.f32 %v2221, %v2413
      %v2415 = vpop.f32.mrb[0].mxu0
      %v2416 = vadd.f32 %v2223, %v2415
      %v2417 = vpop.f32.mrb[0].mxu0
      %v2418 = vadd.f32 %v2225, %v2417
      %v2419 = vpop.f32.mrb[0].mxu0
      %v2420 = vadd.f32 %v2227, %v2419
      %2421 = vmatprep.mubr.bf16.mxu0 %v703
      %2422 = vmatmul.mubr.bf16.gmra.mrb[0].mxu0 %v702
      %v2423 = vpop.f32.mrb[0].mxu0
      %v2424 = vadd.f32 %v2231, %v2423
      %v2425 = vpop.f32.mrb[0].mxu0
      %v2426 = vadd.f32 %v2233, %v2425
      %v2427 = vpop.f32.mrb[0].mxu0
      %v2428 = vadd.f32 %v2235, %v2427
      %v2429 = vpop.f32.mrb[0].mxu0
      %v2430 = vadd.f32 %v2237, %v2429
      %2431 = vmatprep.mubr.bf16.mxu0 %v710
      %2432 = vmatmul.mubr.bf16.gmra.mrb[0].mxu0 %v709
      %v2433 = vpop.f32.mrb[0].mxu0
      %v2434 = vadd.f32 %v2241, %v2433
      %v2435 = vpop.f32.mrb[0].mxu0
      %v2436 = vadd.f32 %v2243, %v2435
      %v2437 = vpop.f32.mrb[0].mxu0
      %v2438 = vadd.f32 %v2245, %v2437
      %v2439 = vpop.f32.mrb[0].mxu0
      %v2440 = vadd.f32 %v2247, %v2439
      %2441 = vmatprep.mubr.bf16.mxu0 %v717
      %2442 = vmatmul.mubr.bf16.gmra.mrb[0].mxu0 %v716
      %v2443 = vpop.f32.mrb[0].mxu0
      %v2444 = vadd.f32 %v2251, %v2443
      %v2445 = vpop.f32.mrb[0].mxu0
      %v2446 = vadd.f32 %v2253, %v2445
      %v2447 = vpop.f32.mrb[0].mxu0
      %v2448 = vadd.f32 %v2255, %v2447
      %v2449 = vpop.f32.mrb[0].mxu0
      %v2450 = vadd.f32 %v2257, %v2449
      %2451 = vmatprep.mubr.bf16.mxu0 %v724
      %2452 = vmatmul.mubr.bf16.gmra.mrb[0].mxu0 %v723
      %v2453 = vpop.f32.mrb[0].mxu0
      %v2454 = vadd.f32 %v2261, %v2453
      %v2455 = vpop.f32.mrb[0].mxu0
      %v2456 = vadd.f32 %v2263, %v2455
      %v2457 = vpop.f32.mrb[0].mxu0
      %v2458 = vadd.f32 %v2265, %v2457
      %v2459 = vpop.f32.mrb[0].mxu0
      %v2460 = vadd.f32 %v2267, %v2459
      %2461 = vmatprep.mubr.bf16.mxu0 %v731
      %2462 = vmatmul.mubr.bf16.gmra.mrb[0].mxu0 %v730
      %v2463 = vpop.f32.mrb[0].mxu0
      %v2464 = vadd.f32 %v2271, %v2463
      %v2465 = vpop.f32.mrb[0].mxu0
      %v2466 = vadd.f32 %v2273, %v2465
      %v2467 = vpop.f32.mrb[0].mxu0
      %v2468 = vadd.f32 %v2275, %v2467
      %v2469 = vpop.f32.mrb[0].mxu0
      %v2470 = vadd.f32 %v2277, %v2469
      %2471 = vmatprep.mubr.bf16.mxu0 %v738
      %2472 = vmatmul.mubr.bf16.gmra.mrb[0].mxu0 %v737
      %v2473 = vpop.f32.mrb[0].mxu0
      %v2474 = vadd.f32 %v2281, %v2473
      %v2475 = vpop.f32.mrb[0].mxu0
      %v2476 = vadd.f32 %v2283, %v2475
      %v2477 = vpop.f32.mrb[0].mxu0
      %v2478 = vadd.f32 %v2285, %v2477
      %v2479 = vpop.f32.mrb[0].mxu0
      %v2480 = vadd.f32 %v2287, %v2479
      %2481 = vmatprep.mubr.bf16.mxu0 %v745
      %2482 = vmatmul.mubr.bf16.gmra.mrb[0].mxu0 %v744
      %v2483 = vpop.f32.mrb[0].mxu0
      %v2484 = vadd.f32 %v2291, %v2483
      %v2485 = vpop.f32.mrb[0].mxu0
      %v2486 = vadd.f32 %v2293, %v2485
      %v2487 = vpop.f32.mrb[0].mxu0
      %v2488 = vadd.f32 %v2295, %v2487
      %v2489 = vpop.f32.mrb[0].mxu0
      %v2490 = vadd.f32 %v2297, %v2489
      %2491 = vmatprep.mubr.bf16.mxu0 %v752
      %2492 = vmatmul.mubr.bf16.gmra.mrb[0].mxu0 %v751
      %v2493 = vpop.f32.mrb[0].mxu0
      %v2494 = vadd.f32 %v2301, %v2493
      %v2495 = vpop.f32.mrb[0].mxu0
      %v2496 = vadd.f32 %v2303, %v2495
      %v2497 = vpop.f32.mrb[0].mxu0
      %v2498 = vadd.f32 %v2305, %v2497
      %v2499 = vpop.f32.mrb[0].mxu0
      %v2500 = vadd.f32 %v2307, %v2499
      %2501 = vmatprep.mubr.bf16.mxu0 %v759
      %2502 = vmatmul.mubr.bf16.gmra.mrb[0].mxu0 %v758
      %v2503 = vpop.f32.mrb[0].mxu0
      %v2504 = vadd.f32 %v2311, %v2503
      %v2505 = vpop.f32.mrb[0].mxu0
      %v2506 = vadd.f32 %v2313, %v2505
      %v2507 = vpop.f32.mrb[0].mxu0
      %v2508 = vadd.f32 %v2315, %v2507
      %v2509 = vpop.f32.mrb[0].mxu0
      %v2510 = vadd.f32 %v2317, %v2509
      %2511 = vmatprep.mubr.bf16.mxu0 %v766
      %2512 = vmatmul.mubr.bf16.gmra.mrb[0].mxu0 %v765
      %v2513 = vpop.f32.mrb[0].mxu0
      %v2514 = vadd.f32 %v2321, %v2513
      %v2515 = vpop.f32.mrb[0].mxu0
      %v2516 = vadd.f32 %v2323, %v2515
      %v2517 = vpop.f32.mrb[0].mxu0
      %v2518 = vadd.f32 %v2325, %v2517
      %v2519 = vpop.f32.mrb[0].mxu0
      %v2520 = vadd.f32 %v2327, %v2519
      %2521 = vdwg.mxu0
      %2522 = vmatprep.subr.bf16.mxu0 %v1817
      %2523 = vmatpush1.bf16.msra.mxu0 %v1816
      %2524 = vmatprep.subr.bf16.mxu0 %v1821
      %2525 = vmatpush1.bf16.msra.mxu0 %v1820
      %2526 = vmatprep.subr.bf16.mxu0 %v1825
      %2527 = vmatpush1.bf16.msra.mxu0 %v1824
      %2528 = vmatprep.subr.bf16.mxu0 %v1829
      %2529 = vmatpush1.bf16.msra.mxu0 %v1828
      %2530 = vmatprep.subr.bf16.mxu0 %v1833
      %2531 = vmatpush1.bf16.msra.mxu0 %v1832
      %2532 = vmatprep.subr.bf16.mxu0 %v1837
      %2533 = vmatpush1.bf16.msra.mxu0 %v1836
      %2534 = vmatprep.subr.bf16.mxu0 %v1841
      %2535 = vmatpush1.bf16.msra.mxu0 %v1840
      %2536 = vmatprep.subr.bf16.mxu0 %v1845
      %2537 = vmatpush1.bf16.msra.mxu0 %v1844
      %2538 = vmatprep.subr.bf16.mxu0 %v1849
      %2539 = vmatpush1.bf16.msra.mxu0 %v1848
      %2540 = vmatprep.subr.bf16.mxu0 %v1853
      %2541 = vmatpush1.bf16.msra.mxu0 %v1852
      %2542 = vmatprep.subr.bf16.mxu0 %v1857
      %2543 = vmatpush1.bf16.msra.mxu0 %v1856
      %2544 = vmatprep.subr.bf16.mxu0 %v1861
      %2545 = vmatpush1.bf16.msra.mxu0 %v1860
      %2546 = vmatprep.subr.bf16.mxu0 %v1865
      %2547 = vmatpush1.bf16.msra.mxu0 %v1864
      %2548 = vmatprep.subr.bf16.mxu0 %v1869
      %2549 = vmatpush1.bf16.msra.mxu0 %v1868
      %2550 = vmatprep.subr.bf16.mxu0 %v1873
      %2551 = vmatpush1.bf16.msra.mxu0 %v1872
      %2552 = vmatprep.subr.bf16.mxu0 %v1877
      %2553 = vmatpush1.bf16.msra.mxu0 %v1876
      %2554 = vmatprep.mubr.bf16.mxu0 %v663
      %2555 = vmatmul.mubr.bf16.gmra.mrb[0].mxu0 %v662
      %v2556 = vpop.f32.mrb[0].mxu0
      %v2557 = vadd.f32 %v2364, %v2556
      %v2558 = vpop.f32.mrb[0].mxu0
      %v2559 = vadd.f32 %v2366, %v2558
      %v2560 = vpop.f32.mrb[0].mxu0
      %v2561 = vadd.f32 %v2368, %v2560
      %v2562 = vpop.f32.mrb[0].mxu0
      %v2563 = vadd.f32 %v2370, %v2562
      %2564 = vmatprep.mubr.bf16.mxu0 %v670
      %2565 = vmatmul.mubr.bf16.gmra.mrb[0].mxu0 %v669
      %v2566 = vpop.f32.mrb[0].mxu0
      %v2567 = vadd.f32 %v2374, %v2566
      %v2568 = vpop.f32.mrb[0].mxu0
      %v2569 = vadd.f32 %v2376, %v2568
      %v2570 = vpop.f32.mrb[0].mxu0
      %v2571 = vadd.f32 %v2378, %v2570
      %v2572 = vpop.f32.mrb[0].mxu0
      %v2573 = vadd.f32 %v2380, %v2572
      %2574 = vmatprep.mubr.bf16.mxu0 %v677
      %2575 = vmatmul.mubr.bf16.gmra.mrb[0].mxu0 %v676
      %v2576 = vpop.f32.mrb[0].mxu0
      %v2577 = vadd.f32 %v2384, %v2576
      %v2578 = vpop.f32.mrb[0].mxu0
      %v2579 = vadd.f32 %v2386, %v2578
      %v2580 = vpop.f32.mrb[0].mxu0
      %v2581 = vadd.f32 %v2388, %v2580
      %v2582 = vpop.f32.mrb[0].mxu0
      %v2583 = vadd.f32 %v2390, %v2582
      %2584 = vmatprep.mubr.bf16.mxu0 %v684
      %2585 = vmatmul.mubr.bf16.gmra.mrb[0].mxu0 %v683
      %v2586 = vpop.f32.mrb[0].mxu0
      %v2587 = vadd.f32 %v2394, %v2586
      %v2588 = vpop.f32.mrb[0].mxu0
      %v2589 = vadd.f32 %v2396, %v2588
      %v2590 = vpop.f32.mrb[0].mxu0
      %v2591 = vadd.f32 %v2398, %v2590
      %v2592 = vpop.f32.mrb[0].mxu0
      %v2593 = vadd.f32 %v2400, %v2592
      %2594 = vmatprep.mubr.bf16.mxu0 %v691
      %2595 = vmatmul.mubr.bf16.gmra.mrb[0].mxu0 %v690
      %v2596 = vpop.f32.mrb[0].mxu0
      %v2597 = vadd.f32 %v2404, %v2596
      %v2598 = vpop.f32.mrb[0].mxu0
      %v2599 = vadd.f32 %v2406, %v2598
      %v2600 = vpop.f32.mrb[0].mxu0
      %v2601 = vadd.f32 %v2408, %v2600
      %v2602 = vpop.f32.mrb[0].mxu0
      %v2603 = vadd.f32 %v2410, %v2602
      %2604 = vmatprep.mubr.bf16.mxu0 %v698
      %2605 = vmatmul.mubr.bf16.gmra.mrb[0].mxu0 %v697
      %v2606 = vpop.f32.mrb[0].mxu0
      %v2607 = vadd.f32 %v2414, %v2606
      %v2608 = vpop.f32.mrb[0].mxu0
      %v2609 = vadd.f32 %v2416, %v2608
      %v2610 = vpop.f32.mrb[0].mxu0
      %v2611 = vadd.f32 %v2418, %v2610
      %v2612 = vpop.f32.mrb[0].mxu0
      %v2613 = vadd.f32 %v2420, %v2612
      %2614 = vmatprep.mubr.bf16.mxu0 %v705
      %2615 = vmatmul.mubr.bf16.gmra.mrb[0].mxu0 %v704
      %v2616 = vpop.f32.mrb[0].mxu0
      %v2617 = vadd.f32 %v2424, %v2616
      %v2618 = vpop.f32.mrb[0].mxu0
      %v2619 = vadd.f32 %v2426, %v2618
      %v2620 = vpop.f32.mrb[0].mxu0
      %v2621 = vadd.f32 %v2428, %v2620
      %v2622 = vpop.f32.mrb[0].mxu0
      %v2623 = vadd.f32 %v2430, %v2622
      %2624 = vmatprep.mubr.bf16.mxu0 %v712
      %2625 = vmatmul.mubr.bf16.gmra.mrb[0].mxu0 %v711
      %v2626 = vpop.f32.mrb[0].mxu0
      %v2627 = vadd.f32 %v2434, %v2626
      %v2628 = vpop.f32.mrb[0].mxu0
      %v2629 = vadd.f32 %v2436, %v2628
      %v2630 = vpop.f32.mrb[0].mxu0
      %v2631 = vadd.f32 %v2438, %v2630
      %v2632 = vpop.f32.mrb[0].mxu0
      %v2633 = vadd.f32 %v2440, %v2632
      %2634 = vmatprep.mubr.bf16.mxu0 %v719
      %2635 = vmatmul.mubr.bf16.gmra.mrb[0].mxu0 %v718
      %v2636 = vpop.f32.mrb[0].mxu0
      %v2637 = vadd.f32 %v2444, %v2636
      %v2638 = vpop.f32.mrb[0].mxu0
      %v2639 = vadd.f32 %v2446, %v2638
      %v2640 = vpop.f32.mrb[0].mxu0
      %v2641 = vadd.f32 %v2448, %v2640
      %v2642 = vpop.f32.mrb[0].mxu0
      %v2643 = vadd.f32 %v2450, %v2642
      %2644 = vmatprep.mubr.bf16.mxu0 %v726
      %2645 = vmatmul.mubr.bf16.gmra.mrb[0].mxu0 %v725
      %v2646 = vpop.f32.mrb[0].mxu0
      %v2647 = vadd.f32 %v2454, %v2646
      %v2648 = vpop.f32.mrb[0].mxu0
      %v2649 = vadd.f32 %v2456, %v2648
      %v2650 = vpop.f32.mrb[0].mxu0
      %v2651 = vadd.f32 %v2458, %v2650
      %v2652 = vpop.f32.mrb[0].mxu0
      %v2653 = vadd.f32 %v2460, %v2652
      %2654 = vmatprep.mubr.bf16.mxu0 %v733
      %2655 = vmatmul.mubr.bf16.gmra.mrb[0].mxu0 %v732
      %v2656 = vpop.f32.mrb[0].mxu0
      %v2657 = vadd.f32 %v2464, %v2656
      %v2658 = vpop.f32.mrb[0].mxu0
      %v2659 = vadd.f32 %v2466, %v2658
      %v2660 = vpop.f32.mrb[0].mxu0
      %v2661 = vadd.f32 %v2468, %v2660
      %v2662 = vpop.f32.mrb[0].mxu0
      %v2663 = vadd.f32 %v2470, %v2662
      %2664 = vmatprep.mubr.bf16.mxu0 %v740
      %2665 = vmatmul.mubr.bf16.gmra.mrb[0].mxu0 %v739
      %v2666 = vpop.f32.mrb[0].mxu0
      %v2667 = vadd.f32 %v2474, %v2666
      %v2668 = vpop.f32.mrb[0].mxu0
      %v2669 = vadd.f32 %v2476, %v2668
      %v2670 = vpop.f32.mrb[0].mxu0
      %v2671 = vadd.f32 %v2478, %v2670
      %v2672 = vpop.f32.mrb[0].mxu0
      %v2673 = vadd.f32 %v2480, %v2672
      %2674 = vmatprep.mubr.bf16.mxu0 %v747
      %2675 = vmatmul.mubr.bf16.gmra.mrb[0].mxu0 %v746
      %v2676 = vpop.f32.mrb[0].mxu0
      %v2677 = vadd.f32 %v2484, %v2676
      %v2678 = vpop.f32.mrb[0].mxu0
      %v2679 = vadd.f32 %v2486, %v2678
      %v2680 = vpop.f32.mrb[0].mxu0
      %v2681 = vadd.f32 %v2488, %v2680
      %v2682 = vpop.f32.mrb[0].mxu0
      %v2683 = vadd.f32 %v2490, %v2682
      %2684 = vmatprep.mubr.bf16.mxu0 %v754
      %2685 = vmatmul.mubr.bf16.gmra.mrb[0].mxu0 %v753
      %v2686 = vpop.f32.mrb[0].mxu0
      %v2687 = vadd.f32 %v2494, %v2686
      %v2688 = vpop.f32.mrb[0].mxu0
      %v2689 = vadd.f32 %v2496, %v2688
      %v2690 = vpop.f32.mrb[0].mxu0
      %v2691 = vadd.f32 %v2498, %v2690
      %v2692 = vpop.f32.mrb[0].mxu0
      %v2693 = vadd.f32 %v2500, %v2692
      %2694 = vmatprep.mubr.bf16.mxu0 %v761
      %2695 = vmatmul.mubr.bf16.gmra.mrb[0].mxu0 %v760
      %v2696 = vpop.f32.mrb[0].mxu0
      %v2697 = vadd.f32 %v2504, %v2696
      %v2698 = vpop.f32.mrb[0].mxu0
      %v2699 = vadd.f32 %v2506, %v2698
      %v2700 = vpop.f32.mrb[0].mxu0
      %v2701 = vadd.f32 %v2508, %v2700
      %v2702 = vpop.f32.mrb[0].mxu0
      %v2703 = vadd.f32 %v2510, %v2702
      %2704 = vmatprep.mubr.bf16.mxu0 %v768
      %2705 = vmatmul.mubr.bf16.gmra.mrb[0].mxu0 %v767
      %v2706 = vpop.f32.mrb[0].mxu0
      %v2707 = vadd.f32 %v2514, %v2706
      %v2708 = vpop.f32.mrb[0].mxu0
      %v2709 = vadd.f32 %v2516, %v2708
      %v2710 = vpop.f32.mrb[0].mxu0
      %v2711 = vadd.f32 %v2518, %v2710
      %v2712 = vpop.f32.mrb[0].mxu0
      %v2713 = vadd.f32 %v2520, %v2712
      %2714 = vdwg.mxu0
      %2715 = vmatprep.subr.bf16.mxu0 %v1881
      %2716 = vmatpush1.bf16.msra.mxu0 %v1880
      %2717 = vmatprep.subr.bf16.mxu0 %v1885
      %2718 = vmatpush1.bf16.msra.mxu0 %v1884
      %2719 = vmatprep.subr.bf16.mxu0 %v1889
      %2720 = vmatpush1.bf16.msra.mxu0 %v1888
      %2721 = vmatprep.subr.bf16.mxu0 %v1893
      %2722 = vmatpush1.bf16.msra.mxu0 %v1892
      %2723 = vmatprep.subr.bf16.mxu0 %v1897
      %2724 = vmatpush1.bf16.msra.mxu0 %v1896
      %2725 = vmatprep.subr.bf16.mxu0 %v1901
      %2726 = vmatpush1.bf16.msra.mxu0 %v1900
      %2727 = vmatprep.subr.bf16.mxu0 %v1905
      %2728 = vmatpush1.bf16.msra.mxu0 %v1904
      %2729 = vmatprep.subr.bf16.mxu0 %v1909
      %2730 = vmatpush1.bf16.msra.mxu0 %v1908
      %2731 = vmatprep.subr.bf16.mxu0 0
      %2732 = vmatpush1.bf16.msra.mxu0 0
      %2733 = vmatprep.subr.bf16.mxu0 0
      %2734 = vmatpush1.bf16.msra.mxu0 0
      %2735 = vmatprep.subr.bf16.mxu0 0
      %2736 = vmatpush1.bf16.msra.mxu0 0
      %2737 = vmatprep.subr.bf16.mxu0 0
      %2738 = vmatpush1.bf16.msra.mxu0 0
      %2739 = vmatprep.subr.bf16.mxu0 0
      %2740 = vmatpush1.bf16.msra.mxu0 0
      %2741 = vmatprep.subr.bf16.mxu0 0
      %2742 = vmatpush1.bf16.msra.mxu0 0
      %2743 = vmatprep.subr.bf16.mxu0 0
      %2744 = vmatpush1.bf16.msra.mxu0 0
      %2745 = vmatprep.subr.bf16.mxu0 0
      %2746 = vmatpush1.bf16.msra.mxu0 0
      %2747 = vmatprep.mubr.bf16.mxu0 0
      %2748 = vmatmul.mubr.bf16.gmra.mrb[0].mxu0 %v664
      %v2749 = vpop.f32.mrb[0].mxu0
      %v2750 = vadd.f32 %v2557, %v2749
      %v2751 = vpop.f32.mrb[0].mxu0
      %v2752 = vadd.f32 %v2559, %v2751
      %v2753 = vpop.f32.mrb[0].mxu0
      %v2754 = vadd.f32 %v2561, %v2753
      %v2755 = vpop.f32.mrb[0].mxu0
      %v2756 = vadd.f32 %v2563, %v2755
      %2757 = vmatprep.mubr.bf16.mxu0 0
      %2758 = vmatmul.mubr.bf16.gmra.mrb[0].mxu0 %v671
      %v2759 = vpop.f32.mrb[0].mxu0
      %v2760 = vadd.f32 %v2567, %v2759
      %v2761 = vpop.f32.mrb[0].mxu0
      %v2762 = vadd.f32 %v2569, %v2761
      %v2763 = vpop.f32.mrb[0].mxu0
      %v2764 = vadd.f32 %v2571, %v2763
      %v2765 = vpop.f32.mrb[0].mxu0
      %v2766 = vadd.f32 %v2573, %v2765
      %2767 = vmatprep.mubr.bf16.mxu0 0
      %2768 = vmatmul.mubr.bf16.gmra.mrb[0].mxu0 %v678
      %v2769 = vpop.f32.mrb[0].mxu0
      %v2770 = vadd.f32 %v2577, %v2769
      %v2771 = vpop.f32.mrb[0].mxu0
      %v2772 = vadd.f32 %v2579, %v2771
      %v2773 = vpop.f32.mrb[0].mxu0
      %v2774 = vadd.f32 %v2581, %v2773
      %v2775 = vpop.f32.mrb[0].mxu0
      %v2776 = vadd.f32 %v2583, %v2775
      %2777 = vmatprep.mubr.bf16.mxu0 0
      %2778 = vmatmul.mubr.bf16.gmra.mrb[0].mxu0 %v685
      %v2779 = vpop.f32.mrb[0].mxu0
      %v2780 = vadd.f32 %v2587, %v2779
      %v2781 = vpop.f32.mrb[0].mxu0
      %v2782 = vadd.f32 %v2589, %v2781
      %v2783 = vpop.f32.mrb[0].mxu0
      %v2784 = vadd.f32 %v2591, %v2783
      %v2785 = vpop.f32.mrb[0].mxu0
      %v2786 = vadd.f32 %v2593, %v2785
      %2787 = vmatprep.mubr.bf16.mxu0 0
      %2788 = vmatmul.mubr.bf16.gmra.mrb[0].mxu0 %v692
      %v2789 = vpop.f32.mrb[0].mxu0
      %v2790 = vadd.f32 %v2597, %v2789
      %v2791 = vpop.f32.mrb[0].mxu0
      %v2792 = vadd.f32 %v2599, %v2791
      %v2793 = vpop.f32.mrb[0].mxu0
      %v2794 = vadd.f32 %v2601, %v2793
      %v2795 = vpop.f32.mrb[0].mxu0
      %v2796 = vadd.f32 %v2603, %v2795
      %2797 = vmatprep.mubr.bf16.mxu0 0
      %2798 = vmatmul.mubr.bf16.gmra.mrb[0].mxu0 %v699
      %v2799 = vpop.f32.mrb[0].mxu0
      %v2800 = vadd.f32 %v2607, %v2799
      %v2801 = vpop.f32.mrb[0].mxu0
      %v2802 = vadd.f32 %v2609, %v2801
      %v2803 = vpop.f32.mrb[0].mxu0
      %v2804 = vadd.f32 %v2611, %v2803
      %v2805 = vpop.f32.mrb[0].mxu0
      %v2806 = vadd.f32 %v2613, %v2805
      %2807 = vmatprep.mubr.bf16.mxu0 0
      %2808 = vmatmul.mubr.bf16.gmra.mrb[0].mxu0 %v706
      %v2809 = vpop.f32.mrb[0].mxu0
      %v2810 = vadd.f32 %v2617, %v2809
      %v2811 = vpop.f32.mrb[0].mxu0
      %v2812 = vadd.f32 %v2619, %v2811
      %v2813 = vpop.f32.mrb[0].mxu0
      %v2814 = vadd.f32 %v2621, %v2813
      %v2815 = vpop.f32.mrb[0].mxu0
      %v2816 = vadd.f32 %v2623, %v2815
      %2817 = vmatprep.mubr.bf16.mxu0 0
      %2818 = vmatmul.mubr.bf16.gmra.mrb[0].mxu0 %v713
      %v2819 = vpop.f32.mrb[0].mxu0
      %v2820 = vadd.f32 %v2627, %v2819
      %v2821 = vpop.f32.mrb[0].mxu0
      %v2822 = vadd.f32 %v2629, %v2821
      %v2823 = vpop.f32.mrb[0].mxu0
      %v2824 = vadd.f32 %v2631, %v2823
      %v2825 = vpop.f32.mrb[0].mxu0
      %v2826 = vadd.f32 %v2633, %v2825
      %2827 = vmatprep.mubr.bf16.mxu0 0
      %2828 = vmatmul.mubr.bf16.gmra.mrb[0].mxu0 %v720
      %v2829 = vpop.f32.mrb[0].mxu0
      %v2830 = vadd.f32 %v2637, %v2829
      %v2831 = vpop.f32.mrb[0].mxu0
      %v2832 = vadd.f32 %v2639, %v2831
      %v2833 = vpop.f32.mrb[0].mxu0
      %v2834 = vadd.f32 %v2641, %v2833
      %v2835 = vpop.f32.mrb[0].mxu0
      %v2836 = vadd.f32 %v2643, %v2835
      %2837 = vmatprep.mubr.bf16.mxu0 0
      %2838 = vmatmul.mubr.bf16.gmra.mrb[0].mxu0 %v727
      %v2839 = vpop.f32.mrb[0].mxu0
      %v2840 = vadd.f32 %v2647, %v2839
      %v2841 = vpop.f32.mrb[0].mxu0
      %v2842 = vadd.f32 %v2649, %v2841
      %v2843 = vpop.f32.mrb[0].mxu0
      %v2844 = vadd.f32 %v2651, %v2843
      %v2845 = vpop.f32.mrb[0].mxu0
      %v2846 = vadd.f32 %v2653, %v2845
      %2847 = vmatprep.mubr.bf16.mxu0 0
      %2848 = vmatmul.mubr.bf16.gmra.mrb[0].mxu0 %v734
      %v2849 = vpop.f32.mrb[0].mxu0
      %v2850 = vadd.f32 %v2657, %v2849
      %v2851 = vpop.f32.mrb[0].mxu0
      %v2852 = vadd.f32 %v2659, %v2851
      %v2853 = vpop.f32.mrb[0].mxu0
      %v2854 = vadd.f32 %v2661, %v2853
      %v2855 = vpop.f32.mrb[0].mxu0
      %v2856 = vadd.f32 %v2663, %v2855
      %2857 = vmatprep.mubr.bf16.mxu0 0
      %2858 = vmatmul.mubr.bf16.gmra.mrb[0].mxu0 %v741
      %v2859 = vpop.f32.mrb[0].mxu0
      %v2860 = vadd.f32 %v2667, %v2859
      %v2861 = vpop.f32.mrb[0].mxu0
      %v2862 = vadd.f32 %v2669, %v2861
      %v2863 = vpop.f32.mrb[0].mxu0
      %v2864 = vadd.f32 %v2671, %v2863
      %v2865 = vpop.f32.mrb[0].mxu0
      %v2866 = vadd.f32 %v2673, %v2865
      %2867 = vmatprep.mubr.bf16.mxu0 0
      %2868 = vmatmul.mubr.bf16.gmra.mrb[0].mxu0 %v748
      %v2869 = vpop.f32.mrb[0].mxu0
      %v2870 = vadd.f32 %v2677, %v2869
      %v2871 = vpop.f32.mrb[0].mxu0
      %v2872 = vadd.f32 %v2679, %v2871
      %v2873 = vpop.f32.mrb[0].mxu0
      %v2874 = vadd.f32 %v2681, %v2873
      %v2875 = vpop.f32.mrb[0].mxu0
      %v2876 = vadd.f32 %v2683, %v2875
      %2877 = vmatprep.mubr.bf16.mxu0 0
      %2878 = vmatmul.mubr.bf16.gmra.mrb[0].mxu0 %v755
      %v2879 = vpop.f32.mrb[0].mxu0
      %v2880 = vadd.f32 %v2687, %v2879
      %v2881 = vpop.f32.mrb[0].mxu0
      %v2882 = vadd.f32 %v2689, %v2881
      %v2883 = vpop.f32.mrb[0].mxu0
      %v2884 = vadd.f32 %v2691, %v2883
      %v2885 = vpop.f32.mrb[0].mxu0
      %v2886 = vadd.f32 %v2693, %v2885
      %2887 = vmatprep.mubr.bf16.mxu0 0
      %2888 = vmatmul.mubr.bf16.gmra.mrb[0].mxu0 %v762
      %v2889 = vpop.f32.mrb[0].mxu0
      %v2890 = vadd.f32 %v2697, %v2889
      %v2891 = vpop.f32.mrb[0].mxu0
      %v2892 = vadd.f32 %v2699, %v2891
      %v2893 = vpop.f32.mrb[0].mxu0
      %v2894 = vadd.f32 %v2701, %v2893
      %v2895 = vpop.f32.mrb[0].mxu0
      %v2896 = vadd.f32 %v2703, %v2895
      %2897 = vmatprep.mubr.bf16.mxu0 0
      %2898 = vmatmul.mubr.bf16.gmra.mrb[0].mxu0 %v769
      %v2899 = vpop.f32.mrb[0].mxu0
      %v2900 = vadd.f32 %v2707, %v2899
      %v2901 = vpop.f32.mrb[0].mxu0
      %v2902 = vadd.f32 %v2709, %v2901
      %v2903 = vpop.f32.mrb[0].mxu0
      %v2904 = vadd.f32 %v2711, %v2903
      %v2905 = vpop.f32.mrb[0].mxu0
      %v2906 = vadd.f32 %v2713, %v2905
      %2907 = vdwg.mxu0
      %2908 = vmatprep.subr.bf16.mxu0 %v1691
      %2909 = vmatpush1.bf16.msra.mxu0 %v1690
      %2910 = vmatprep.subr.bf16.mxu0 %v1695
      %2911 = vmatpush1.bf16.msra.mxu0 %v1694
      %2912 = vmatprep.subr.bf16.mxu0 %v1699
      %2913 = vmatpush1.bf16.msra.mxu0 %v1698
      %2914 = vmatprep.subr.bf16.mxu0 %v1703
      %2915 = vmatpush1.bf16.msra.mxu0 %v1702
      %2916 = vmatprep.subr.bf16.mxu0 %v1707
      %2917 = vmatpush1.bf16.msra.mxu0 %v1706
      %2918 = vmatprep.subr.bf16.mxu0 %v1711
      %2919 = vmatpush1.bf16.msra.mxu0 %v1710
      %2920 = vmatprep.subr.bf16.mxu0 %v1715
      %2921 = vmatpush1.bf16.msra.mxu0 %v1714
      %2922 = vmatprep.subr.bf16.mxu0 %v1719
      %2923 = vmatpush1.bf16.msra.mxu0 %v1718
      %2924 = vmatprep.subr.bf16.mxu0 %v1723
      %2925 = vmatpush1.bf16.msra.mxu0 %v1722
      %2926 = vmatprep.subr.bf16.mxu0 %v1727
      %2927 = vmatpush1.bf16.msra.mxu0 %v1726
      %2928 = vmatprep.subr.bf16.mxu0 %v1731
      %2929 = vmatpush1.bf16.msra.mxu0 %v1730
      %2930 = vmatprep.subr.bf16.mxu0 %v1735
      %2931 = vmatpush1.bf16.msra.mxu0 %v1734
      %2932 = vmatprep.subr.bf16.mxu0 %v1739
      %2933 = vmatpush1.bf16.msra.mxu0 %v1738
      %2934 = vmatprep.subr.bf16.mxu0 %v1743
      %2935 = vmatpush1.bf16.msra.mxu0 %v1742
      %2936 = vmatprep.subr.bf16.mxu0 %v1747
      %2937 = vmatpush1.bf16.msra.mxu0 %v1746
      %2938 = vmatprep.subr.bf16.mxu0 %v1751
      %2939 = vmatpush1.bf16.msra.mxu0 %v1750
      %2940 = vmatprep.mubr.bf16.mxu0 %v659
      %2941 = vmatmul.mubr.bf16.gmra.mrb[0].mxu0 %v658
      %v2942 = vpop.f32.mrb[0].mxu0
      %v2943 = vadd.f32 %v1007, %v2942
      %v2944 = vpop.f32.mrb[0].mxu0
      %v2945 = vadd.f32 %v1011, %v2944
      %v2946 = vpop.f32.mrb[0].mxu0
      %v2947 = vadd.f32 %v1007, %v2946
      %v2948 = vpop.f32.mrb[0].mxu0
      %v2949 = vadd.f32 %v1011, %v2948
      %2950 = vmatprep.mubr.bf16.mxu0 %v666
      %2951 = vmatmul.mubr.bf16.gmra.mrb[0].mxu0 %v665
      %v2952 = vpop.f32.mrb[0].mxu0
      %v2953 = vadd.f32 %v1007, %v2952
      %v2954 = vpop.f32.mrb[0].mxu0
      %v2955 = vadd.f32 %v1011, %v2954
      %v2956 = vpop.f32.mrb[0].mxu0
      %v2957 = vadd.f32 %v1007, %v2956
      %v2958 = vpop.f32.mrb[0].mxu0
      %v2959 = vadd.f32 %v1011, %v2958
      %2960 = vmatprep.mubr.bf16.mxu0 %v673
      %2961 = vmatmul.mubr.bf16.gmra.mrb[0].mxu0 %v672
      %v2962 = vpop.f32.mrb[0].mxu0
      %v2963 = vadd.f32 %v1007, %v2962
      %v2964 = vpop.f32.mrb[0].mxu0
      %v2965 = vadd.f32 %v1011, %v2964
      %v2966 = vpop.f32.mrb[0].mxu0
      %v2967 = vadd.f32 %v1007, %v2966
      %v2968 = vpop.f32.mrb[0].mxu0
      %v2969 = vadd.f32 %v1011, %v2968
      %2970 = vmatprep.mubr.bf16.mxu0 %v680
      %2971 = vmatmul.mubr.bf16.gmra.mrb[0].mxu0 %v679
      %v2972 = vpop.f32.mrb[0].mxu0
      %v2973 = vadd.f32 %v1007, %v2972
      %v2974 = vpop.f32.mrb[0].mxu0
      %v2975 = vadd.f32 %v1011, %v2974
      %v2976 = vpop.f32.mrb[0].mxu0
      %v2977 = vadd.f32 %v1007, %v2976
      %v2978 = vpop.f32.mrb[0].mxu0
      %v2979 = vadd.f32 %v1011, %v2978
      %2980 = vmatprep.mubr.bf16.mxu0 %v687
      %2981 = vmatmul.mubr.bf16.gmra.mrb[0].mxu0 %v686
      %v2982 = vpop.f32.mrb[0].mxu0
      %v2983 = vadd.f32 %v1007, %v2982
      %v2984 = vpop.f32.mrb[0].mxu0
      %v2985 = vadd.f32 %v1011, %v2984
      %v2986 = vpop.f32.mrb[0].mxu0
      %v2987 = vadd.f32 %v1007, %v2986
      %v2988 = vpop.f32.mrb[0].mxu0
      %v2989 = vadd.f32 %v1011, %v2988
      %2990 = vmatprep.mubr.bf16.mxu0 %v694
      %2991 = vmatmul.mubr.bf16.gmra.mrb[0].mxu0 %v693
      %v2992 = vpop.f32.mrb[0].mxu0
      %v2993 = vadd.f32 %v1007, %v2992
      %v2994 = vpop.f32.mrb[0].mxu0
      %v2995 = vadd.f32 %v1011, %v2994
      %v2996 = vpop.f32.mrb[0].mxu0
      %v2997 = vadd.f32 %v1007, %v2996
      %v2998 = vpop.f32.mrb[0].mxu0
      %v2999 = vadd.f32 %v1011, %v2998
      %3000 = vmatprep.mubr.bf16.mxu0 %v701
      %3001 = vmatmul.mubr.bf16.gmra.mrb[0].mxu0 %v700
      %v3002 = vpop.f32.mrb[0].mxu0
      %v3003 = vadd.f32 %v1007, %v3002
      %v3004 = vpop.f32.mrb[0].mxu0
      %v3005 = vadd.f32 %v1011, %v3004
      %v3006 = vpop.f32.mrb[0].mxu0
      %v3007 = vadd.f32 %v1007, %v3006
      %v3008 = vpop.f32.mrb[0].mxu0
      %v3009 = vadd.f32 %v1011, %v3008
      %3010 = vmatprep.mubr.bf16.mxu0 %v708
      %3011 = vmatmul.mubr.bf16.gmra.mrb[0].mxu0 %v707
      %v3012 = vpop.f32.mrb[0].mxu0
      %v3013 = vadd.f32 %v1007, %v3012
      %v3014 = vpop.f32.mrb[0].mxu0
      %v3015 = vadd.f32 %v1011, %v3014
      %v3016 = vpop.f32.mrb[0].mxu0
      %v3017 = vadd.f32 %v1007, %v3016
      %v3018 = vpop.f32.mrb[0].mxu0
      %v3019 = vadd.f32 %v1011, %v3018
      %3020 = vmatprep.mubr.bf16.mxu0 %v715
      %3021 = vmatmul.mubr.bf16.gmra.mrb[0].mxu0 %v714
      %v3022 = vpop.f32.mrb[0].mxu0
      %v3023 = vadd.f32 %v1007, %v3022
      %v3024 = vpop.f32.mrb[0].mxu0
      %v3025 = vadd.f32 %v1011, %v3024
      %v3026 = vpop.f32.mrb[0].mxu0
      %v3027 = vadd.f32 %v1007, %v3026
      %v3028 = vpop.f32.mrb[0].mxu0
      %v3029 = vadd.f32 %v1011, %v3028
      %3030 = vmatprep.mubr.bf16.mxu0 %v722
      %3031 = vmatmul.mubr.bf16.gmra.mrb[0].mxu0 %v721
      %v3032 = vpop.f32.mrb[0].mxu0
      %v3033 = vadd.f32 %v1007, %v3032
      %v3034 = vpop.f32.mrb[0].mxu0
      %v3035 = vadd.f32 %v1011, %v3034
      %v3036 = vpop.f32.mrb[0].mxu0
      %v3037 = vadd.f32 %v1007, %v3036
      %v3038 = vpop.f32.mrb[0].mxu0
      %v3039 = vadd.f32 %v1011, %v3038
      %3040 = vmatprep.mubr.bf16.mxu0 %v729
      %3041 = vmatmul.mubr.bf16.gmra.mrb[0].mxu0 %v728
      %v3042 = vpop.f32.mrb[0].mxu0
      %v3043 = vadd.f32 %v1007, %v3042
      %v3044 = vpop.f32.mrb[0].mxu0
      %v3045 = vadd.f32 %v1011, %v3044
      %v3046 = vpop.f32.mrb[0].mxu0
      %v3047 = vadd.f32 %v1007, %v3046
      %v3048 = vpop.f32.mrb[0].mxu0
      %v3049 = vadd.f32 %v1011, %v3048
      %3050 = vmatprep.mubr.bf16.mxu0 %v736
      %3051 = vmatmul.mubr.bf16.gmra.mrb[0].mxu0 %v735
      %v3052 = vpop.f32.mrb[0].mxu0
      %v3053 = vadd.f32 %v1007, %v3052
      %v3054 = vpop.f32.mrb[0].mxu0
      %v3055 = vadd.f32 %v1011, %v3054
      %v3056 = vpop.f32.mrb[0].mxu0
      %v3057 = vadd.f32 %v1007, %v3056
      %v3058 = vpop.f32.mrb[0].mxu0
      %v3059 = vadd.f32 %v1011, %v3058
      %3060 = vmatprep.mubr.bf16.mxu0 %v743
      %3061 = vmatmul.mubr.bf16.gmra.mrb[0].mxu0 %v742
      %v3062 = vpop.f32.mrb[0].mxu0
      %v3063 = vadd.f32 %v1007, %v3062
      %v3064 = vpop.f32.mrb[0].mxu0
      %v3065 = vadd.f32 %v1011, %v3064
      %v3066 = vpop.f32.mrb[0].mxu0
      %v3067 = vadd.f32 %v1007, %v3066
      %v3068 = vpop.f32.mrb[0].mxu0
      %v3069 = vadd.f32 %v1011, %v3068
      %3070 = vmatprep.mubr.bf16.mxu0 %v750
      %3071 = vmatmul.mubr.bf16.gmra.mrb[0].mxu0 %v749
      %v3072 = vpop.f32.mrb[0].mxu0
      %v3073 = vadd.f32 %v1007, %v3072
      %v3074 = vpop.f32.mrb[0].mxu0
      %v3075 = vadd.f32 %v1011, %v3074
      %v3076 = vpop.f32.mrb[0].mxu0
      %v3077 = vadd.f32 %v1007, %v3076
      %v3078 = vpop.f32.mrb[0].mxu0
      %v3079 = vadd.f32 %v1011, %v3078
      %3080 = vmatprep.mubr.bf16.mxu0 %v757
      %3081 = vmatmul.mubr.bf16.gmra.mrb[0].mxu0 %v756
      %v3082 = vpop.f32.mrb[0].mxu0
      %v3083 = vadd.f32 %v1007, %v3082
      %v3084 = vpop.f32.mrb[0].mxu0
      %v3085 = vadd.f32 %v1011, %v3084
      %v3086 = vpop.f32.mrb[0].mxu0
      %v3087 = vadd.f32 %v1007, %v3086
      %v3088 = vpop.f32.mrb[0].mxu0
      %v3089 = vadd.f32 %v1011, %v3088
      %3090 = vmatprep.mubr.bf16.mxu0 %v764
      %3091 = vmatmul.mubr.bf16.gmra.mrb[0].mxu0 %v763
      %v3092 = vpop.f32.mrb[0].mxu0
      %v3093 = vadd.f32 %v1007, %v3092
      %v3094 = vpop.f32.mrb[0].mxu0
      %v3095 = vadd.f32 %v1011, %v3094
      %v3096 = vpop.f32.mrb[0].mxu0
      %v3097 = vadd.f32 %v1007, %v3096
      %v3098 = vpop.f32.mrb[0].mxu0
      %v3099 = vadd.f32 %v1011, %v3098
      %3100 = vdwg.mxu0
      %3101 = vmatprep.subr.bf16.mxu0 %v1755
      %3102 = vmatpush1.bf16.msra.mxu0 %v1754
      %3103 = vmatprep.subr.bf16.mxu0 %v1759
      %3104 = vmatpush1.bf16.msra.mxu0 %v1758
      %3105 = vmatprep.subr.bf16.mxu0 %v1763
      %3106 = vmatpush1.bf16.msra.mxu0 %v1762
      %3107 = vmatprep.subr.bf16.mxu0 %v1767
      %3108 = vmatpush1.bf16.msra.mxu0 %v1766
      %3109 = vmatprep.subr.bf16.mxu0 %v1771
      %3110 = vmatpush1.bf16.msra.mxu0 %v1770
      %3111 = vmatprep.subr.bf16.mxu0 %v1775
      %3112 = vmatpush1.bf16.msra.mxu0 %v1774
      %3113 = vmatprep.subr.bf16.mxu0 %v1779
      %3114 = vmatpush1.bf16.msra.mxu0 %v1778
      %3115 = vmatprep.subr.bf16.mxu0 %v1783
      %3116 = vmatpush1.bf16.msra.mxu0 %v1782
      %3117 = vmatprep.subr.bf16.mxu0 %v1787
      %3118 = vmatpush1.bf16.msra.mxu0 %v1786
      %3119 = vmatprep.subr.bf16.mxu0 %v1791
      %3120 = vmatpush1.bf16.msra.mxu0 %v1790
      %3121 = vmatprep.subr.bf16.mxu0 %v1795
      %3122 = vmatpush1.bf16.msra.mxu0 %v1794
      %3123 = vmatprep.subr.bf16.mxu0 %v1799
      %3124 = vmatpush1.bf16.msra.mxu0 %v1798
      %3125 = vmatprep.subr.bf16.mxu0 %v1803
      %3126 = vmatpush1.bf16.msra.mxu0 %v1802
      %3127 = vmatprep.subr.bf16.mxu0 %v1807
      %3128 = vmatpush1.bf16.msra.mxu0 %v1806
      %3129 = vmatprep.subr.bf16.mxu0 %v1811
      %3130 = vmatpush1.bf16.msra.mxu0 %v1810
      %3131 = vmatprep.subr.bf16.mxu0 %v1815
      %3132 = vmatpush1.bf16.msra.mxu0 %v1814
      %3133 = vmatprep.mubr.bf16.mxu0 %v661
      %3134 = vmatmul.mubr.bf16.gmra.mrb[0].mxu0 %v660
      %v3135 = vpop.f32.mrb[0].mxu0
      %v3136 = vadd.f32 %v2943, %v3135
      %v3137 = vpop.f32.mrb[0].mxu0
      %v3138 = vadd.f32 %v2945, %v3137
      %v3139 = vpop.f32.mrb[0].mxu0
      %v3140 = vadd.f32 %v2947, %v3139
      %v3141 = vpop.f32.mrb[0].mxu0
      %v3142 = vadd.f32 %v2949, %v3141
      %3143 = vmatprep.mubr.bf16.mxu0 %v668
      %3144 = vmatmul.mubr.bf16.gmra.mrb[0].mxu0 %v667
      %v3145 = vpop.f32.mrb[0].mxu0
      %v3146 = vadd.f32 %v2953, %v3145
      %v3147 = vpop.f32.mrb[0].mxu0
      %v3148 = vadd.f32 %v2955, %v3147
      %v3149 = vpop.f32.mrb[0].mxu0
      %v3150 = vadd.f32 %v2957, %v3149
      %v3151 = vpop.f32.mrb[0].mxu0
      %v3152 = vadd.f32 %v2959, %v3151
      %3153 = vmatprep.mubr.bf16.mxu0 %v675
      %3154 = vmatmul.mubr.bf16.gmra.mrb[0].mxu0 %v674
      %v3155 = vpop.f32.mrb[0].mxu0
      %v3156 = vadd.f32 %v2963, %v3155
      %v3157 = vpop.f32.mrb[0].mxu0
      %v3158 = vadd.f32 %v2965, %v3157
      %v3159 = vpop.f32.mrb[0].mxu0
      %v3160 = vadd.f32 %v2967, %v3159
      %v3161 = vpop.f32.mrb[0].mxu0
      %v3162 = vadd.f32 %v2969, %v3161
      %3163 = vmatprep.mubr.bf16.mxu0 %v682
      %3164 = vmatmul.mubr.bf16.gmra.mrb[0].mxu0 %v681
      %v3165 = vpop.f32.mrb[0].mxu0
      %v3166 = vadd.f32 %v2973, %v3165
      %v3167 = vpop.f32.mrb[0].mxu0
      %v3168 = vadd.f32 %v2975, %v3167
      %v3169 = vpop.f32.mrb[0].mxu0
      %v3170 = vadd.f32 %v2977, %v3169
      %v3171 = vpop.f32.mrb[0].mxu0
      %v3172 = vadd.f32 %v2979, %v3171
      %3173 = vmatprep.mubr.bf16.mxu0 %v689
      %3174 = vmatmul.mubr.bf16.gmra.mrb[0].mxu0 %v688
      %v3175 = vpop.f32.mrb[0].mxu0
      %v3176 = vadd.f32 %v2983, %v3175
      %v3177 = vpop.f32.mrb[0].mxu0
      %v3178 = vadd.f32 %v2985, %v3177
      %v3179 = vpop.f32.mrb[0].mxu0
      %v3180 = vadd.f32 %v2987, %v3179
      %v3181 = vpop.f32.mrb[0].mxu0
      %v3182 = vadd.f32 %v2989, %v3181
      %3183 = vmatprep.mubr.bf16.mxu0 %v696
      %3184 = vmatmul.mubr.bf16.gmra.mrb[0].mxu0 %v695
      %v3185 = vpop.f32.mrb[0].mxu0
      %v3186 = vadd.f32 %v2993, %v3185
      %v3187 = vpop.f32.mrb[0].mxu0
      %v3188 = vadd.f32 %v2995, %v3187
      %v3189 = vpop.f32.mrb[0].mxu0
      %v3190 = vadd.f32 %v2997, %v3189
      %v3191 = vpop.f32.mrb[0].mxu0
      %v3192 = vadd.f32 %v2999, %v3191
      %3193 = vmatprep.mubr.bf16.mxu0 %v703
      %3194 = vmatmul.mubr.bf16.gmra.mrb[0].mxu0 %v702
      %v3195 = vpop.f32.mrb[0].mxu0
      %v3196 = vadd.f32 %v3003, %v3195
      %v3197 = vpop.f32.mrb[0].mxu0
      %v3198 = vadd.f32 %v3005, %v3197
      %v3199 = vpop.f32.mrb[0].mxu0
      %v3200 = vadd.f32 %v3007, %v3199
      %v3201 = vpop.f32.mrb[0].mxu0
      %v3202 = vadd.f32 %v3009, %v3201
      %3203 = vmatprep.mubr.bf16.mxu0 %v710
      %3204 = vmatmul.mubr.bf16.gmra.mrb[0].mxu0 %v709
      %v3205 = vpop.f32.mrb[0].mxu0
      %v3206 = vadd.f32 %v3013, %v3205
      %v3207 = vpop.f32.mrb[0].mxu0
      %v3208 = vadd.f32 %v3015, %v3207
      %v3209 = vpop.f32.mrb[0].mxu0
      %v3210 = vadd.f32 %v3017, %v3209
      %v3211 = vpop.f32.mrb[0].mxu0
      %v3212 = vadd.f32 %v3019, %v3211
      %3213 = vmatprep.mubr.bf16.mxu0 %v717
      %3214 = vmatmul.mubr.bf16.gmra.mrb[0].mxu0 %v716
      %v3215 = vpop.f32.mrb[0].mxu0
      %v3216 = vadd.f32 %v3023, %v3215
      %v3217 = vpop.f32.mrb[0].mxu0
      %v3218 = vadd.f32 %v3025, %v3217
      %v3219 = vpop.f32.mrb[0].mxu0
      %v3220 = vadd.f32 %v3027, %v3219
      %v3221 = vpop.f32.mrb[0].mxu0
      %v3222 = vadd.f32 %v3029, %v3221
      %3223 = vmatprep.mubr.bf16.mxu0 %v724
      %3224 = vmatmul.mubr.bf16.gmra.mrb[0].mxu0 %v723
      %v3225 = vpop.f32.mrb[0].mxu0
      %v3226 = vadd.f32 %v3033, %v3225
      %v3227 = vpop.f32.mrb[0].mxu0
      %v3228 = vadd.f32 %v3035, %v3227
      %v3229 = vpop.f32.mrb[0].mxu0
      %v3230 = vadd.f32 %v3037, %v3229
      %v3231 = vpop.f32.mrb[0].mxu0
      %v3232 = vadd.f32 %v3039, %v3231
      %3233 = vmatprep.mubr.bf16.mxu0 %v731
      %3234 = vmatmul.mubr.bf16.gmra.mrb[0].mxu0 %v730
      %v3235 = vpop.f32.mrb[0].mxu0
      %v3236 = vadd.f32 %v3043, %v3235
      %v3237 = vpop.f32.mrb[0].mxu0
      %v3238 = vadd.f32 %v3045, %v3237
      %v3239 = vpop.f32.mrb[0].mxu0
      %v3240 = vadd.f32 %v3047, %v3239
      %v3241 = vpop.f32.mrb[0].mxu0
      %v3242 = vadd.f32 %v3049, %v3241
      %3243 = vmatprep.mubr.bf16.mxu0 %v738
      %3244 = vmatmul.mubr.bf16.gmra.mrb[0].mxu0 %v737
      %v3245 = vpop.f32.mrb[0].mxu0
      %v3246 = vadd.f32 %v3053, %v3245
      %v3247 = vpop.f32.mrb[0].mxu0
      %v3248 = vadd.f32 %v3055, %v3247
      %v3249 = vpop.f32.mrb[0].mxu0
      %v3250 = vadd.f32 %v3057, %v3249
      %v3251 = vpop.f32.mrb[0].mxu0
      %v3252 = vadd.f32 %v3059, %v3251
      %3253 = vmatprep.mubr.bf16.mxu0 %v745
      %3254 = vmatmul.mubr.bf16.gmra.mrb[0].mxu0 %v744
      %v3255 = vpop.f32.mrb[0].mxu0
      %v3256 = vadd.f32 %v3063, %v3255
      %v3257 = vpop.f32.mrb[0].mxu0
      %v3258 = vadd.f32 %v3065, %v3257
      %v3259 = vpop.f32.mrb[0].mxu0
      %v3260 = vadd.f32 %v3067, %v3259
      %v3261 = vpop.f32.mrb[0].mxu0
      %v3262 = vadd.f32 %v3069, %v3261
      %3263 = vmatprep.mubr.bf16.mxu0 %v752
      %3264 = vmatmul.mubr.bf16.gmra.mrb[0].mxu0 %v751
      %v3265 = vpop.f32.mrb[0].mxu0
      %v3266 = vadd.f32 %v3073, %v3265
      %v3267 = vpop.f32.mrb[0].mxu0
      %v3268 = vadd.f32 %v3075, %v3267
      %v3269 = vpop.f32.mrb[0].mxu0
      %v3270 = vadd.f32 %v3077, %v3269
      %v3271 = vpop.f32.mrb[0].mxu0
      %v3272 = vadd.f32 %v3079, %v3271
      %3273 = vmatprep.mubr.bf16.mxu0 %v759
      %3274 = vmatmul.mubr.bf16.gmra.mrb[0].mxu0 %v758
      %v3275 = vpop.f32.mrb[0].mxu0
      %v3276 = vadd.f32 %v3083, %v3275
      %v3277 = vpop.f32.mrb[0].mxu0
      %v3278 = vadd.f32 %v3085, %v3277
      %v3279 = vpop.f32.mrb[0].mxu0
      %v3280 = vadd.f32 %v3087, %v3279
      %v3281 = vpop.f32.mrb[0].mxu0
      %v3282 = vadd.f32 %v3089, %v3281
      %3283 = vmatprep.mubr.bf16.mxu0 %v766
      %3284 = vmatmul.mubr.bf16.gmra.mrb[0].mxu0 %v765
      %v3285 = vpop.f32.mrb[0].mxu0
      %v3286 = vadd.f32 %v3093, %v3285
      %v3287 = vpop.f32.mrb[0].mxu0
      %v3288 = vadd.f32 %v3095, %v3287
      %v3289 = vpop.f32.mrb[0].mxu0
      %v3290 = vadd.f32 %v3097, %v3289
      %v3291 = vpop.f32.mrb[0].mxu0
      %v3292 = vadd.f32 %v3099, %v3291
      %3293 = vdwg.mxu0
      %3294 = vmatprep.subr.bf16.mxu0 %v1819
      %3295 = vmatpush1.bf16.msra.mxu0 %v1818
      %3296 = vmatprep.subr.bf16.mxu0 %v1823
      %3297 = vmatpush1.bf16.msra.mxu0 %v1822
      %3298 = vmatprep.subr.bf16.mxu0 %v1827
      %3299 = vmatpush1.bf16.msra.mxu0 %v1826
      %3300 = vmatprep.subr.bf16.mxu0 %v1831
      %3301 = vmatpush1.bf16.msra.mxu0 %v1830
      %3302 = vmatprep.subr.bf16.mxu0 %v1835
      %3303 = vmatpush1.bf16.msra.mxu0 %v1834
      %3304 = vmatprep.subr.bf16.mxu0 %v1839
      %3305 = vmatpush1.bf16.msra.mxu0 %v1838
      %3306 = vmatprep.subr.bf16.mxu0 %v1843
      %3307 = vmatpush1.bf16.msra.mxu0 %v1842
      %3308 = vmatprep.subr.bf16.mxu0 %v1847
      %3309 = vmatpush1.bf16.msra.mxu0 %v1846
      %3310 = vmatprep.subr.bf16.mxu0 %v1851
      %3311 = vmatpush1.bf16.msra.mxu0 %v1850
      %3312 = vmatprep.subr.bf16.mxu0 %v1855
      %3313 = vmatpush1.bf16.msra.mxu0 %v1854
      %3314 = vmatprep.subr.bf16.mxu0 %v1859
      %3315 = vmatpush1.bf16.msra.mxu0 %v1858
      %3316 = vmatprep.subr.bf16.mxu0 %v1863
      %3317 = vmatpush1.bf16.msra.mxu0 %v1862
      %3318 = vmatprep.subr.bf16.mxu0 %v1867
      %3319 = vmatpush1.bf16.msra.mxu0 %v1866
      %3320 = vmatprep.subr.bf16.mxu0 %v1871
      %3321 = vmatpush1.bf16.msra.mxu0 %v1870
      %3322 = vmatprep.subr.bf16.mxu0 %v1875
      %3323 = vmatpush1.bf16.msra.mxu0 %v1874
      %3324 = vmatprep.subr.bf16.mxu0 %v1879
      %3325 = vmatpush1.bf16.msra.mxu0 %v1878
      %3326 = vmatprep.mubr.bf16.mxu0 %v663
      %3327 = vmatmul.mubr.bf16.gmra.mrb[0].mxu0 %v662
      %v3328 = vpop.f32.mrb[0].mxu0
      %v3329 = vadd.f32 %v3136, %v3328
      %v3330 = vpop.f32.mrb[0].mxu0
      %v3331 = vadd.f32 %v3138, %v3330
      %v3332 = vpop.f32.mrb[0].mxu0
      %v3333 = vadd.f32 %v3140, %v3332
      %v3334 = vpop.f32.mrb[0].mxu0
      %v3335 = vadd.f32 %v3142, %v3334
      %3336 = vmatprep.mubr.bf16.mxu0 %v670
      %3337 = vmatmul.mubr.bf16.gmra.mrb[0].mxu0 %v669
      %v3338 = vpop.f32.mrb[0].mxu0
      %v3339 = vadd.f32 %v3146, %v3338
      %v3340 = vpop.f32.mrb[0].mxu0
      %v3341 = vadd.f32 %v3148, %v3340
      %v3342 = vpop.f32.mrb[0].mxu0
      %v3343 = vadd.f32 %v3150, %v3342
      %v3344 = vpop.f32.mrb[0].mxu0
      %v3345 = vadd.f32 %v3152, %v3344
      %3346 = vmatprep.mubr.bf16.mxu0 %v677
      %3347 = vmatmul.mubr.bf16.gmra.mrb[0].mxu0 %v676
      %v3348 = vpop.f32.mrb[0].mxu0
      %v3349 = vadd.f32 %v3156, %v3348
      %v3350 = vpop.f32.mrb[0].mxu0
      %v3351 = vadd.f32 %v3158, %v3350
      %v3352 = vpop.f32.mrb[0].mxu0
      %v3353 = vadd.f32 %v3160, %v3352
      %v3354 = vpop.f32.mrb[0].mxu0
      %v3355 = vadd.f32 %v3162, %v3354
      %3356 = vmatprep.mubr.bf16.mxu0 %v684
      %3357 = vmatmul.mubr.bf16.gmra.mrb[0].mxu0 %v683
      %v3358 = vpop.f32.mrb[0].mxu0
      %v3359 = vadd.f32 %v3166, %v3358
      %v3360 = vpop.f32.mrb[0].mxu0
      %v3361 = vadd.f32 %v3168, %v3360
      %v3362 = vpop.f32.mrb[0].mxu0
      %v3363 = vadd.f32 %v3170, %v3362
      %v3364 = vpop.f32.mrb[0].mxu0
      %v3365 = vadd.f32 %v3172, %v3364
      %3366 = vmatprep.mubr.bf16.mxu0 %v691
      %3367 = vmatmul.mubr.bf16.gmra.mrb[0].mxu0 %v690
      %v3368 = vpop.f32.mrb[0].mxu0
      %v3369 = vadd.f32 %v3176, %v3368
      %v3370 = vpop.f32.mrb[0].mxu0
      %v3371 = vadd.f32 %v3178, %v3370
      %v3372 = vpop.f32.mrb[0].mxu0
      %v3373 = vadd.f32 %v3180, %v3372
      %v3374 = vpop.f32.mrb[0].mxu0
      %v3375 = vadd.f32 %v3182, %v3374
      %3376 = vmatprep.mubr.bf16.mxu0 %v698
      %3377 = vmatmul.mubr.bf16.gmra.mrb[0].mxu0 %v697
      %v3378 = vpop.f32.mrb[0].mxu0
      %v3379 = vadd.f32 %v3186, %v3378
      %v3380 = vpop.f32.mrb[0].mxu0
      %v3381 = vadd.f32 %v3188, %v3380
      %v3382 = vpop.f32.mrb[0].mxu0
      %v3383 = vadd.f32 %v3190, %v3382
      %v3384 = vpop.f32.mrb[0].mxu0
      %v3385 = vadd.f32 %v3192, %v3384
      %3386 = vmatprep.mubr.bf16.mxu0 %v705
      %3387 = vmatmul.mubr.bf16.gmra.mrb[0].mxu0 %v704
      %v3388 = vpop.f32.mrb[0].mxu0
      %v3389 = vadd.f32 %v3196, %v3388
      %v3390 = vpop.f32.mrb[0].mxu0
      %v3391 = vadd.f32 %v3198, %v3390
      %v3392 = vpop.f32.mrb[0].mxu0
      %v3393 = vadd.f32 %v3200, %v3392
      %v3394 = vpop.f32.mrb[0].mxu0
      %v3395 = vadd.f32 %v3202, %v3394
      %3396 = vmatprep.mubr.bf16.mxu0 %v712
      %3397 = vmatmul.mubr.bf16.gmra.mrb[0].mxu0 %v711
      %v3398 = vpop.f32.mrb[0].mxu0
      %v3399 = vadd.f32 %v3206, %v3398
      %v3400 = vpop.f32.mrb[0].mxu0
      %v3401 = vadd.f32 %v3208, %v3400
      %v3402 = vpop.f32.mrb[0].mxu0
      %v3403 = vadd.f32 %v3210, %v3402
      %v3404 = vpop.f32.mrb[0].mxu0
      %v3405 = vadd.f32 %v3212, %v3404
      %3406 = vmatprep.mubr.bf16.mxu0 %v719
      %3407 = vmatmul.mubr.bf16.gmra.mrb[0].mxu0 %v718
      %v3408 = vpop.f32.mrb[0].mxu0
      %v3409 = vadd.f32 %v3216, %v3408
      %v3410 = vpop.f32.mrb[0].mxu0
      %v3411 = vadd.f32 %v3218, %v3410
      %v3412 = vpop.f32.mrb[0].mxu0
      %v3413 = vadd.f32 %v3220, %v3412
      %v3414 = vpop.f32.mrb[0].mxu0
      %v3415 = vadd.f32 %v3222, %v3414
      %3416 = vmatprep.mubr.bf16.mxu0 %v726
      %3417 = vmatmul.mubr.bf16.gmra.mrb[0].mxu0 %v725
      %v3418 = vpop.f32.mrb[0].mxu0
      %v3419 = vadd.f32 %v3226, %v3418
      %v3420 = vpop.f32.mrb[0].mxu0
      %v3421 = vadd.f32 %v3228, %v3420
      %v3422 = vpop.f32.mrb[0].mxu0
      %v3423 = vadd.f32 %v3230, %v3422
      %v3424 = vpop.f32.mrb[0].mxu0
      %v3425 = vadd.f32 %v3232, %v3424
      %3426 = vmatprep.mubr.bf16.mxu0 %v733
      %3427 = vmatmul.mubr.bf16.gmra.mrb[0].mxu0 %v732
      %v3428 = vpop.f32.mrb[0].mxu0
      %v3429 = vadd.f32 %v3236, %v3428
      %v3430 = vpop.f32.mrb[0].mxu0
      %v3431 = vadd.f32 %v3238, %v3430
      %v3432 = vpop.f32.mrb[0].mxu0
      %v3433 = vadd.f32 %v3240, %v3432
      %v3434 = vpop.f32.mrb[0].mxu0
      %v3435 = vadd.f32 %v3242, %v3434
      %3436 = vmatprep.mubr.bf16.mxu0 %v740
      %3437 = vmatmul.mubr.bf16.gmra.mrb[0].mxu0 %v739
      %v3438 = vpop.f32.mrb[0].mxu0
      %v3439 = vadd.f32 %v3246, %v3438
      %v3440 = vpop.f32.mrb[0].mxu0
      %v3441 = vadd.f32 %v3248, %v3440
      %v3442 = vpop.f32.mrb[0].mxu0
      %v3443 = vadd.f32 %v3250, %v3442
      %v3444 = vpop.f32.mrb[0].mxu0
      %v3445 = vadd.f32 %v3252, %v3444
      %3446 = vmatprep.mubr.bf16.mxu0 %v747
      %3447 = vmatmul.mubr.bf16.gmra.mrb[0].mxu0 %v746
      %v3448 = vpop.f32.mrb[0].mxu0
      %v3449 = vadd.f32 %v3256, %v3448
      %v3450 = vpop.f32.mrb[0].mxu0
      %v3451 = vadd.f32 %v3258, %v3450
      %v3452 = vpop.f32.mrb[0].mxu0
      %v3453 = vadd.f32 %v3260, %v3452
      %v3454 = vpop.f32.mrb[0].mxu0
      %v3455 = vadd.f32 %v3262, %v3454
      %3456 = vmatprep.mubr.bf16.mxu0 %v754
      %3457 = vmatmul.mubr.bf16.gmra.mrb[0].mxu0 %v753
      %v3458 = vpop.f32.mrb[0].mxu0
      %v3459 = vadd.f32 %v3266, %v3458
      %v3460 = vpop.f32.mrb[0].mxu0
      %v3461 = vadd.f32 %v3268, %v3460
      %v3462 = vpop.f32.mrb[0].mxu0
      %v3463 = vadd.f32 %v3270, %v3462
      %v3464 = vpop.f32.mrb[0].mxu0
      %v3465 = vadd.f32 %v3272, %v3464
      %3466 = vmatprep.mubr.bf16.mxu0 %v761
      %3467 = vmatmul.mubr.bf16.gmra.mrb[0].mxu0 %v760
      %v3468 = vpop.f32.mrb[0].mxu0
      %v3469 = vadd.f32 %v3276, %v3468
      %v3470 = vpop.f32.mrb[0].mxu0
      %v3471 = vadd.f32 %v3278, %v3470
      %v3472 = vpop.f32.mrb[0].mxu0
      %v3473 = vadd.f32 %v3280, %v3472
      %v3474 = vpop.f32.mrb[0].mxu0
      %v3475 = vadd.f32 %v3282, %v3474
      %3476 = vmatprep.mubr.bf16.mxu0 %v768
      %3477 = vmatmul.mubr.bf16.gmra.mrb[0].mxu0 %v767
      %v3478 = vpop.f32.mrb[0].mxu0
      %v3479 = vadd.f32 %v3286, %v3478
      %v3480 = vpop.f32.mrb[0].mxu0
      %v3481 = vadd.f32 %v3288, %v3480
      %v3482 = vpop.f32.mrb[0].mxu0
      %v3483 = vadd.f32 %v3290, %v3482
      %v3484 = vpop.f32.mrb[0].mxu0
      %v3485 = vadd.f32 %v3292, %v3484
      %3486 = vdwg.mxu0
      %3487 = vmatprep.subr.bf16.mxu0 %v1883
      %3488 = vmatpush1.bf16.msra.mxu0 %v1882
      %3489 = vmatprep.subr.bf16.mxu0 %v1887
      %3490 = vmatpush1.bf16.msra.mxu0 %v1886
      %3491 = vmatprep.subr.bf16.mxu0 %v1891
      %3492 = vmatpush1.bf16.msra.mxu0 %v1890
      %3493 = vmatprep.subr.bf16.mxu0 %v1895
      %3494 = vmatpush1.bf16.msra.mxu0 %v1894
      %3495 = vmatprep.subr.bf16.mxu0 %v1899
      %3496 = vmatpush1.bf16.msra.mxu0 %v1898
      %3497 = vmatprep.subr.bf16.mxu0 %v1903
      %3498 = vmatpush1.bf16.msra.mxu0 %v1902
      %3499 = vmatprep.subr.bf16.mxu0 %v1907
      %3500 = vmatpush1.bf16.msra.mxu0 %v1906
      %3501 = vmatprep.subr.bf16.mxu0 %v1911
      %3502 = vmatpush1.bf16.msra.mxu0 %v1910
      %3503 = vmatprep.subr.bf16.mxu0 0
      %3504 = vmatpush1.bf16.msra.mxu0 0
      %3505 = vmatprep.subr.bf16.mxu0 0
      %3506 = vmatpush1.bf16.msra.mxu0 0
      %3507 = vmatprep.subr.bf16.mxu0 0
      %3508 = vmatpush1.bf16.msra.mxu0 0
      %3509 = vmatprep.subr.bf16.mxu0 0
      %3510 = vmatpush1.bf16.msra.mxu0 0
      %3511 = vmatprep.subr.bf16.mxu0 0
      %3512 = vmatpush1.bf16.msra.mxu0 0
      %3513 = vmatprep.subr.bf16.mxu0 0
      %3514 = vmatpush1.bf16.msra.mxu0 0
      %3515 = vmatprep.subr.bf16.mxu0 0
      %3516 = vmatpush1.bf16.msra.mxu0 0
      %3517 = vmatprep.subr.bf16.mxu0 0
      %3518 = vmatpush1.bf16.msra.mxu0 0
      %3519 = vmatprep.mubr.bf16.mxu0 0
      %3520 = vmatmul.mubr.bf16.gmra.mrb[0].mxu0 %v664
      %v3521 = vpop.f32.mrb[0].mxu0
      %v3522 = vadd.f32 %v3329, %v3521
      %v3523 = vpop.f32.mrb[0].mxu0
      %v3524 = vadd.f32 %v3331, %v3523
      %v3525 = vpop.f32.mrb[0].mxu0
      %v3526 = vadd.f32 %v3333, %v3525
      %v3527 = vpop.f32.mrb[0].mxu0
      %v3528 = vadd.f32 %v3335, %v3527
      %3529 = vmatprep.mubr.bf16.mxu0 0
      %3530 = vmatmul.mubr.bf16.gmra.mrb[0].mxu0 %v671
      %v3531 = vpop.f32.mrb[0].mxu0
      %v3532 = vadd.f32 %v3339, %v3531
      %v3533 = vpop.f32.mrb[0].mxu0
      %v3534 = vadd.f32 %v3341, %v3533
      %v3535 = vpop.f32.mrb[0].mxu0
      %v3536 = vadd.f32 %v3343, %v3535
      %v3537 = vpop.f32.mrb[0].mxu0
      %v3538 = vadd.f32 %v3345, %v3537
      %3539 = vmatprep.mubr.bf16.mxu0 0
      %3540 = vmatmul.mubr.bf16.gmra.mrb[0].mxu0 %v678
      %v3541 = vpop.f32.mrb[0].mxu0
      %v3542 = vadd.f32 %v3349, %v3541
      %v3543 = vpop.f32.mrb[0].mxu0
      %v3544 = vadd.f32 %v3351, %v3543
      %v3545 = vpop.f32.mrb[0].mxu0
      %v3546 = vadd.f32 %v3353, %v3545
      %v3547 = vpop.f32.mrb[0].mxu0
      %v3548 = vadd.f32 %v3355, %v3547
      %3549 = vmatprep.mubr.bf16.mxu0 0
      %3550 = vmatmul.mubr.bf16.gmra.mrb[0].mxu0 %v685
      %v3551 = vpop.f32.mrb[0].mxu0
      %v3552 = vadd.f32 %v3359, %v3551
      %v3553 = vpop.f32.mrb[0].mxu0
      %v3554 = vadd.f32 %v3361, %v3553
      %v3555 = vpop.f32.mrb[0].mxu0
      %v3556 = vadd.f32 %v3363, %v3555
      %v3557 = vpop.f32.mrb[0].mxu0
      %v3558 = vadd.f32 %v3365, %v3557
      %3559 = vmatprep.mubr.bf16.mxu0 0
      %3560 = vmatmul.mubr.bf16.gmra.mrb[0].mxu0 %v692
      %v3561 = vpop.f32.mrb[0].mxu0
      %v3562 = vadd.f32 %v3369, %v3561
      %v3563 = vpop.f32.mrb[0].mxu0
      %v3564 = vadd.f32 %v3371, %v3563
      %v3565 = vpop.f32.mrb[0].mxu0
      %v3566 = vadd.f32 %v3373, %v3565
      %v3567 = vpop.f32.mrb[0].mxu0
      %v3568 = vadd.f32 %v3375, %v3567
      %3569 = vmatprep.mubr.bf16.mxu0 0
      %3570 = vmatmul.mubr.bf16.gmra.mrb[0].mxu0 %v699
      %v3571 = vpop.f32.mrb[0].mxu0
      %v3572 = vadd.f32 %v3379, %v3571
      %v3573 = vpop.f32.mrb[0].mxu0
      %v3574 = vadd.f32 %v3381, %v3573
      %v3575 = vpop.f32.mrb[0].mxu0
      %v3576 = vadd.f32 %v3383, %v3575
      %v3577 = vpop.f32.mrb[0].mxu0
      %v3578 = vadd.f32 %v3385, %v3577
      %3579 = vmatprep.mubr.bf16.mxu0 0
      %3580 = vmatmul.mubr.bf16.gmra.mrb[0].mxu0 %v706
      %v3581 = vpop.f32.mrb[0].mxu0
      %v3582 = vadd.f32 %v3389, %v3581
      %v3583 = vpop.f32.mrb[0].mxu0
      %v3584 = vadd.f32 %v3391, %v3583
      %v3585 = vpop.f32.mrb[0].mxu0
      %v3586 = vadd.f32 %v3393, %v3585
      %v3587 = vpop.f32.mrb[0].mxu0
      %v3588 = vadd.f32 %v3395, %v3587
      %3589 = vmatprep.mubr.bf16.mxu0 0
      %3590 = vmatmul.mubr.bf16.gmra.mrb[0].mxu0 %v713
      %v3591 = vpop.f32.mrb[0].mxu0
      %v3592 = vadd.f32 %v3399, %v3591
      %v3593 = vpop.f32.mrb[0].mxu0
      %v3594 = vadd.f32 %v3401, %v3593
      %v3595 = vpop.f32.mrb[0].mxu0
      %v3596 = vadd.f32 %v3403, %v3595
      %v3597 = vpop.f32.mrb[0].mxu0
      %v3598 = vadd.f32 %v3405, %v3597
      %3599 = vmatprep.mubr.bf16.mxu0 0
      %3600 = vmatmul.mubr.bf16.gmra.mrb[0].mxu0 %v720
      %v3601 = vpop.f32.mrb[0].mxu0
      %v3602 = vadd.f32 %v3409, %v3601
      %v3603 = vpop.f32.mrb[0].mxu0
      %v3604 = vadd.f32 %v3411, %v3603
      %v3605 = vpop.f32.mrb[0].mxu0
      %v3606 = vadd.f32 %v3413, %v3605
      %v3607 = vpop.f32.mrb[0].mxu0
      %v3608 = vadd.f32 %v3415, %v3607
      %3609 = vmatprep.mubr.bf16.mxu0 0
      %3610 = vmatmul.mubr.bf16.gmra.mrb[0].mxu0 %v727
      %v3611 = vpop.f32.mrb[0].mxu0
      %v3612 = vadd.f32 %v3419, %v3611
      %v3613 = vpop.f32.mrb[0].mxu0
      %v3614 = vadd.f32 %v3421, %v3613
      %v3615 = vpop.f32.mrb[0].mxu0
      %v3616 = vadd.f32 %v3423, %v3615
      %v3617 = vpop.f32.mrb[0].mxu0
      %v3618 = vadd.f32 %v3425, %v3617
      %3619 = vmatprep.mubr.bf16.mxu0 0
      %3620 = vmatmul.mubr.bf16.gmra.mrb[0].mxu0 %v734
      %v3621 = vpop.f32.mrb[0].mxu0
      %v3622 = vadd.f32 %v3429, %v3621
      %v3623 = vpop.f32.mrb[0].mxu0
      %v3624 = vadd.f32 %v3431, %v3623
      %v3625 = vpop.f32.mrb[0].mxu0
      %v3626 = vadd.f32 %v3433, %v3625
      %v3627 = vpop.f32.mrb[0].mxu0
      %v3628 = vadd.f32 %v3435, %v3627
      %3629 = vmatprep.mubr.bf16.mxu0 0
      %3630 = vmatmul.mubr.bf16.gmra.mrb[0].mxu0 %v741
      %v3631 = vpop.f32.mrb[0].mxu0
      %v3632 = vadd.f32 %v3439, %v3631
      %v3633 = vpop.f32.mrb[0].mxu0
      %v3634 = vadd.f32 %v3441, %v3633
      %v3635 = vpop.f32.mrb[0].mxu0
      %v3636 = vadd.f32 %v3443, %v3635
      %v3637 = vpop.f32.mrb[0].mxu0
      %v3638 = vadd.f32 %v3445, %v3637
      %3639 = vmatprep.mubr.bf16.mxu0 0
      %3640 = vmatmul.mubr.bf16.gmra.mrb[0].mxu0 %v748
      %v3641 = vpop.f32.mrb[0].mxu0
      %v3642 = vadd.f32 %v3449, %v3641
      %v3643 = vpop.f32.mrb[0].mxu0
      %v3644 = vadd.f32 %v3451, %v3643
      %v3645 = vpop.f32.mrb[0].mxu0
      %v3646 = vadd.f32 %v3453, %v3645
      %v3647 = vpop.f32.mrb[0].mxu0
      %v3648 = vadd.f32 %v3455, %v3647
      %3649 = vmatprep.mubr.bf16.mxu0 0
      %3650 = vmatmul.mubr.bf16.gmra.mrb[0].mxu0 %v755
      %v3651 = vpop.f32.mrb[0].mxu0
      %v3652 = vadd.f32 %v3459, %v3651
      %v3653 = vpop.f32.mrb[0].mxu0
      %v3654 = vadd.f32 %v3461, %v3653
      %v3655 = vpop.f32.mrb[0].mxu0
      %v3656 = vadd.f32 %v3463, %v3655
      %v3657 = vpop.f32.mrb[0].mxu0
      %v3658 = vadd.f32 %v3465, %v3657
      %3659 = vmatprep.mubr.bf16.mxu0 0
      %3660 = vmatmul.mubr.bf16.gmra.mrb[0].mxu0 %v762
      %v3661 = vpop.f32.mrb[0].mxu0
      %v3662 = vadd.f32 %v3469, %v3661
      %v3663 = vpop.f32.mrb[0].mxu0
      %v3664 = vadd.f32 %v3471, %v3663
      %v3665 = vpop.f32.mrb[0].mxu0
      %v3666 = vadd.f32 %v3473, %v3665
      %v3667 = vpop.f32.mrb[0].mxu0
      %v3668 = vadd.f32 %v3475, %v3667
      %3669 = vmatprep.mubr.bf16.mxu0 0
      %3670 = vmatmul.mubr.bf16.gmra.mrb[0].mxu0 %v769
      %v3671 = vpop.f32.mrb[0].mxu0
      %v3672 = vadd.f32 %v3479, %v3671
      %v3673 = vpop.f32.mrb[0].mxu0
      %v3674 = vadd.f32 %v3481, %v3673
      %v3675 = vpop.f32.mrb[0].mxu0
      %v3676 = vadd.f32 %v3483, %v3675
      %v3677 = vpop.f32.mrb[0].mxu0
      %v3678 = vadd.f32 %v3485, %v3677
      %3679 = vdwg.mxu0
      %v3680 = vmax.f32 %v2750, 0.0
      %v3681 = vmax.f32 %v2752, 0.0
      %v3682 = vmax.f32 %v3522, 0.0
      %v3683 = vmax.f32 %v3524, 0.0
      %v3684 = vmax.f32 %v2754, 0.0
      %v3685 = vmax.f32 %v2756, 0.0
      %v3686 = vmax.f32 %v3526, 0.0
      %v3687 = vmax.f32 %v3528, 0.0
      %v3688 = vmax.f32 %v2760, 0.0
      %v3689 = vmax.f32 %v2762, 0.0
      %v3690 = vmax.f32 %v3532, 0.0
      %v3691 = vmax.f32 %v3534, 0.0
      %v3692 = vmax.f32 %v2764, 0.0
      %v3693 = vmax.f32 %v2766, 0.0
      %v3694 = vmax.f32 %v3536, 0.0
      %v3695 = vmax.f32 %v3538, 0.0
      %v3696 = vmax.f32 %v2770, 0.0
      %v3697 = vmax.f32 %v2772, 0.0
      %v3698 = vmax.f32 %v3542, 0.0
      %v3699 = vmax.f32 %v3544, 0.0
      %v3700 = vmax.f32 %v2774, 0.0
      %v3701 = vmax.f32 %v2776, 0.0
      %v3702 = vmax.f32 %v3546, 0.0
      %v3703 = vmax.f32 %v3548, 0.0
      %v3704 = vmax.f32 %v2780, 0.0
      %v3705 = vmax.f32 %v2782, 0.0
      %v3706 = vmax.f32 %v3552, 0.0
      %v3707 = vmax.f32 %v3554, 0.0
      %v3708 = vmax.f32 %v2784, 0.0
      %v3709 = vmax.f32 %v2786, 0.0
      %v3710 = vmax.f32 %v3556, 0.0
      %v3711 = vmax.f32 %v3558, 0.0
      %v3712 = vmax.f32 %v2790, 0.0
      %v3713 = vmax.f32 %v2792, 0.0
      %v3714 = vmax.f32 %v3562, 0.0
      %v3715 = vmax.f32 %v3564, 0.0
      %v3716 = vmax.f32 %v2794, 0.0
      %v3717 = vmax.f32 %v2796, 0.0
      %v3718 = vmax.f32 %v3566, 0.0
      %v3719 = vmax.f32 %v3568, 0.0
      %v3720 = vmax.f32 %v2800, 0.0
      %v3721 = vmax.f32 %v2802, 0.0
      %v3722 = vmax.f32 %v3572, 0.0
      %v3723 = vmax.f32 %v3574, 0.0
      %v3724 = vmax.f32 %v2804, 0.0
      %v3725 = vmax.f32 %v2806, 0.0
      %v3726 = vmax.f32 %v3576, 0.0
      %v3727 = vmax.f32 %v3578, 0.0
      %v3728 = vmax.f32 %v2810, 0.0
      %v3729 = vmax.f32 %v2812, 0.0
      %v3730 = vmax.f32 %v3582, 0.0
      %v3731 = vmax.f32 %v3584, 0.0
      %v3732 = vmax.f32 %v2814, 0.0
      %v3733 = vmax.f32 %v2816, 0.0
      %v3734 = vmax.f32 %v3586, 0.0
      %v3735 = vmax.f32 %v3588, 0.0
      %v3736 = vmax.f32 %v2820, 0.0
      %v3737 = vmax.f32 %v2822, 0.0
      %v3738 = vmax.f32 %v3592, 0.0
      %v3739 = vmax.f32 %v3594, 0.0
      %v3740 = vmax.f32 %v2824, 0.0
      %v3741 = vmax.f32 %v2826, 0.0
      %v3742 = vmax.f32 %v3596, 0.0
      %v3743 = vmax.f32 %v3598, 0.0
      %v3744 = vmax.f32 %v2830, 0.0
      %v3745 = vmax.f32 %v2832, 0.0
      %v3746 = vmax.f32 %v3602, 0.0
      %v3747 = vmax.f32 %v3604, 0.0
      %v3748 = vmax.f32 %v2834, 0.0
      %v3749 = vmax.f32 %v2836, 0.0
      %v3750 = vmax.f32 %v3606, 0.0
      %v3751 = vmax.f32 %v3608, 0.0
      %v3752 = vmax.f32 %v2840, 0.0
      %v3753 = vmax.f32 %v2842, 0.0
      %v3754 = vmax.f32 %v3612, 0.0
      %v3755 = vmax.f32 %v3614, 0.0
      %v3756 = vmax.f32 %v2844, 0.0
      %v3757 = vmax.f32 %v2846, 0.0
      %v3758 = vmax.f32 %v3616, 0.0
      %v3759 = vmax.f32 %v3618, 0.0
      %v3760 = vmax.f32 %v2850, 0.0
      %v3761 = vmax.f32 %v2852, 0.0
      %v3762 = vmax.f32 %v3622, 0.0
      %v3763 = vmax.f32 %v3624, 0.0
      %v3764 = vmax.f32 %v2854, 0.0
      %v3765 = vmax.f32 %v2856, 0.0
      %v3766 = vmax.f32 %v3626, 0.0
      %v3767 = vmax.f32 %v3628, 0.0
      %v3768 = vmax.f32 %v2860, 0.0
      %v3769 = vmax.f32 %v2862, 0.0
      %v3770 = vmax.f32 %v3632, 0.0
      %v3771 = vmax.f32 %v3634, 0.0
      %v3772 = vmax.f32 %v2864, 0.0
      %v3773 = vmax.f32 %v2866, 0.0
      %v3774 = vmax.f32 %v3636, 0.0
      %v3775 = vmax.f32 %v3638, 0.0
      %v3776 = vmax.f32 %v2870, 0.0
      %v3777 = vmax.f32 %v2872, 0.0
      %v3778 = vmax.f32 %v3642, 0.0
      %v3779 = vmax.f32 %v3644, 0.0
      %v3780 = vmax.f32 %v2874, 0.0
      %v3781 = vmax.f32 %v2876, 0.0
      %v3782 = vmax.f32 %v3646, 0.0
      %v3783 = vmax.f32 %v3648, 0.0
      %v3784 = vmax.f32 %v2880, 0.0
      %v3785 = vmax.f32 %v2882, 0.0
      %v3786 = vmax.f32 %v3652, 0.0
      %v3787 = vmax.f32 %v3654, 0.0
      %v3788 = vmax.f32 %v2884, 0.0
      %v3789 = vmax.f32 %v2886, 0.0
      %v3790 = vmax.f32 %v3656, 0.0
      %v3791 = vmax.f32 %v3658, 0.0
      %v3792 = vmax.f32 %v2890, 0.0
      %v3793 = vmax.f32 %v2892, 0.0
      %v3794 = vmax.f32 %v3662, 0.0
      %v3795 = vmax.f32 %v3664, 0.0
      %v3796 = vmax.f32 %v2894, 0.0
      %v3797 = vmax.f32 %v2896, 0.0
      %v3798 = vmax.f32 %v3666, 0.0
      %v3799 = vmax.f32 %v3668, 0.0
      %v3800 = vmax.f32 %v2900, 0.0
      %v3801 = vmax.f32 %v2902, 0.0
      %v3802 = vmax.f32 %v3672, 0.0
      %v3803 = vmax.f32 %v3674, 0.0
      %v3804 = vmax.f32 %v2904, 0.0
      %v3805 = vmax.f32 %v2906, 0.0
      %v3806 = vmax.f32 %v3676, 0.0
      %v3807 = vmax.f32 %v3678, 0.0
      %v3808 = vpack.c.bf16 %v3684, %v3680
      %v3809 = vpack.c.bf16 %v3685, %v3681
      %v3810 = vpack.c.bf16 %v3686, %v3682
      %v3811 = vpack.c.bf16 %v3687, %v3683
      %v3812 = vpack.c.bf16 %v3692, %v3688
      %v3813 = vpack.c.bf16 %v3693, %v3689
      %v3814 = vpack.c.bf16 %v3694, %v3690
      %v3815 = vpack.c.bf16 %v3695, %v3691
      %v3816 = vpack.c.bf16 %v3700, %v3696
      %v3817 = vpack.c.bf16 %v3701, %v3697
      %v3818 = vpack.c.bf16 %v3702, %v3698
      %v3819 = vpack.c.bf16 %v3703, %v3699
      %v3820 = vpack.c.bf16 %v3708, %v3704
      %v3821 = vpack.c.bf16 %v3709, %v3705
      %v3822 = vpack.c.bf16 %v3710, %v3706
      %v3823 = vpack.c.bf16 %v3711, %v3707
      %v3824 = vpack.c.bf16 %v3716, %v3712
      %v3825 = vpack.c.bf16 %v3717, %v3713
      %v3826 = vpack.c.bf16 %v3718, %v3714
      %v3827 = vpack.c.bf16 %v3719, %v3715
      %v3828 = vpack.c.bf16 %v3724, %v3720
      %v3829 = vpack.c.bf16 %v3725, %v3721
      %v3830 = vpack.c.bf16 %v3726, %v3722
      %v3831 = vpack.c.bf16 %v3727, %v3723
      %v3832 = vpack.c.bf16 %v3732, %v3728
      %v3833 = vpack.c.bf16 %v3733, %v3729
      %v3834 = vpack.c.bf16 %v3734, %v3730
      %v3835 = vpack.c.bf16 %v3735, %v3731
      %v3836 = vpack.c.bf16 %v3740, %v3736
      %v3837 = vpack.c.bf16 %v3741, %v3737
      %v3838 = vpack.c.bf16 %v3742, %v3738
      %v3839 = vpack.c.bf16 %v3743, %v3739
      %v3840 = vpack.c.bf16 %v3748, %v3744
      %v3841 = vpack.c.bf16 %v3749, %v3745
      %v3842 = vpack.c.bf16 %v3750, %v3746
      %v3843 = vpack.c.bf16 %v3751, %v3747
      %v3844 = vpack.c.bf16 %v3756, %v3752
      %v3845 = vpack.c.bf16 %v3757, %v3753
      %v3846 = vpack.c.bf16 %v3758, %v3754
      %v3847 = vpack.c.bf16 %v3759, %v3755
      %v3848 = vpack.c.bf16 %v3764, %v3760
      %v3849 = vpack.c.bf16 %v3765, %v3761
      %v3850 = vpack.c.bf16 %v3766, %v3762
      %v3851 = vpack.c.bf16 %v3767, %v3763
      %v3852 = vpack.c.bf16 %v3772, %v3768
      %v3853 = vpack.c.bf16 %v3773, %v3769
      %v3854 = vpack.c.bf16 %v3774, %v3770
      %v3855 = vpack.c.bf16 %v3775, %v3771
      %v3856 = vpack.c.bf16 %v3780, %v3776
      %v3857 = vpack.c.bf16 %v3781, %v3777
      %v3858 = vpack.c.bf16 %v3782, %v3778
      %v3859 = vpack.c.bf16 %v3783, %v3779
      %v3860 = vpack.c.bf16 %v3788, %v3784
      %v3861 = vpack.c.bf16 %v3789, %v3785
      %v3862 = vpack.c.bf16 %v3790, %v3786
      %v3863 = vpack.c.bf16 %v3791, %v3787
      %v3864 = vpack.c.bf16 %v3796, %v3792
      %v3865 = vpack.c.bf16 %v3797, %v3793
      %v3866 = vpack.c.bf16 %v3798, %v3794
      %v3867 = vpack.c.bf16 %v3799, %v3795
      %v3868 = vpack.c.bf16 %v3804, %v3800
      %v3869 = vpack.c.bf16 %v3805, %v3801
      %v3870 = vpack.c.bf16 %v3806, %v3802
      %v3871 = vpack.c.bf16 %v3807, %v3803
      %v3872 = vld [vmem:[%s4] sm:$0xff]
      %v3873 = vld [vmem:[%s4 + $0x8] sm:$0xff]
      %v3874 = vld [vmem:[%s4 + $0x10] sm:$0xff]
      %v3875 = vld [vmem:[%s4 + $0x18] sm:$0xff]
      %v3876 = vld [vmem:[%s4 + $0x20] sm:$0xff]
      %v3877 = vld [vmem:[%s4 + $0x28] sm:$0xff]
      %v3878 = vld [vmem:[%s4 + $0x30] sm:$0xff]
      %v3879 = vld [vmem:[%s4 + $0x38] sm:$0xff]
      %v3880 = vld [vmem:[%s4 + $0x40] sm:$0xff]
      %v3881 = vld [vmem:[%s4 + $0x48] sm:$0xff]
      %v3882 = vld [vmem:[%s4 + $0x50] sm:$0xff]
      %v3883 = vld [vmem:[%s4 + $0x58] sm:$0xff]
      %v3884 = vld [vmem:[%s4 + $0x60] sm:$0xff]
      %v3885 = vld [vmem:[%s4 + $0x68] sm:$0xff]
      %v3886 = vld [vmem:[%s4 + $0x70] sm:$0xff]
      %v3887 = vld [vmem:[%s4 + $0x78] sm:$0xff]
      %v3888 = vld [vmem:[%s4 + $0x80] sm:$0xff]
      %v3889 = vld [vmem:[%s4 + $0x88] sm:$0xff]
      %v3890 = vld [vmem:[%s4 + $0x90] sm:$0xff]
      %v3891 = vld [vmem:[%s4 + $0x98] sm:$0xff]
      %v3892 = vld [vmem:[%s4 + $0xa0] sm:$0xff]
      %v3893 = vld [vmem:[%s4 + $0xa8] sm:$0xff]
      %v3894 = vld [vmem:[%s4 + $0xb0] sm:$0xff]
      %v3895 = vld [vmem:[%s4 + $0xb8] sm:$0xff]
      %v3896 = vld [vmem:[%s4 + $0xc0] sm:$0xff]
      %v3897 = vld [vmem:[%s4 + $0xc8] sm:$0xff]
      %v3898 = vld [vmem:[%s4 + $0xd0] sm:$0xff]
      %v3899 = vld [vmem:[%s4 + $0xd8] sm:$0xff]
      %v3900 = vld [vmem:[%s4 + $0xe0] sm:$0xff]
      %v3901 = vld [vmem:[%s4 + $0xe8] sm:$0xff]
      %v3902 = vld [vmem:[%s4 + $0xf0] sm:$0xff]
      %v3903 = vld [vmem:[%s4 + $0xf8] sm:$0xff]
      %v3904 = vld [vmem:[%s4 + $0x100] sm:$0xff]
      %v3905 = vld [vmem:[%s4 + $0x108] sm:$0xff]
      %v3906 = vld [vmem:[%s4 + $0x110] sm:$0xff]
      %v3907 = vld [vmem:[%s4 + $0x118] sm:$0xff]
      %v3908 = vld [vmem:[%s4 + $0x120] sm:$0xff]
      %v3909 = vld [vmem:[%s4 + $0x128] sm:$0xff]
      %v3910 = vld [vmem:[%s4 + $0x130] sm:$0xff]
      %v3911 = vld [vmem:[%s4 + $0x138] sm:$0xff]
      %v3912 = vld [vmem:[%s4 + $0x140] sm:$0xff]
      %v3913 = vld [vmem:[%s4 + $0x148] sm:$0xff]
      %v3914 = vld [vmem:[%s4 + $0x150] sm:$0xff]
      %v3915 = vld [vmem:[%s4 + $0x158] sm:$0xff]
      %v3916 = vld [vmem:[%s4 + $0x160] sm:$0xff]
      %v3917 = vld [vmem:[%s4 + $0x168] sm:$0xff]
      %v3918 = vld [vmem:[%s4 + $0x170] sm:$0xff]
      %v3919 = vld [vmem:[%s4 + $0x178] sm:$0xff]
      %v3920 = vld [vmem:[%s4 + $0x180] sm:$0xff]
      %v3921 = vld [vmem:[%s4 + $0x188] sm:$0xff]
      %v3922 = vld [vmem:[%s4 + $0x190] sm:$0xff]
      %v3923 = vld [vmem:[%s4 + $0x198] sm:$0xff]
      %v3924 = vld [vmem:[%s4 + $0x1a0] sm:$0xff]
      %v3925 = vld [vmem:[%s4 + $0x1a8] sm:$0xff]
      %v3926 = vld [vmem:[%s4 + $0x1b0] sm:$0xff]
      %v3927 = vld [vmem:[%s4 + $0x1b8] sm:$0xff]
      %v3928 = vld [vmem:[%s4 + $0x1c0] sm:$0xff]
      %v3929 = vld [vmem:[%s4 + $0x1c8] sm:$0xff]
      %v3930 = vld [vmem:[%s4 + $0x1d0] sm:$0xff]
      %v3931 = vld [vmem:[%s4 + $0x1d8] sm:$0xff]
      %v3932 = vld [vmem:[%s4 + $0x1e0] sm:$0xff]
      %v3933 = vld [vmem:[%s4 + $0x1e8] sm:$0xff]
      %v3934 = vld [vmem:[%s4 + $0x1f0] sm:$0xff]
      %v3935 = vld [vmem:[%s4 + $0x1f8] sm:$0xff]
      %v3936 = vld [vmem:[%s5] sm:$0x3]
      %v3938 = vlaneseq
      %v3939 = vshrl.u32 %v3938, 7
      %v3940 = vsub.s32 0, %v3939
      %v3941 = vrot.slane %v3936, %v3940
      %v3942 = vlaneseq
      %v3943 = vshrl.u32 %v3942, 7
      %v3944 = vsub.s32 1, %v3943
      %v3945 = vrot.slane %v3936, %v3944
      %v4012 = vunpack.c.l.b16 %v3872
      %v4013 = vunpack.c.h.b16 %v3872
      %v4014 = vunpack.c.l.b16 %v3873
      %v4015 = vunpack.c.h.b16 %v3873
      %v4016 = vunpack.c.l.b16 %v3874
      %v4017 = vunpack.c.h.b16 %v3874
      %v4018 = vunpack.c.l.b16 %v3875
      %v4019 = vunpack.c.h.b16 %v3875
      %v4020 = vunpack.c.l.b16 %v3876
      %v4021 = vunpack.c.h.b16 %v3876
      %v4022 = vunpack.c.l.b16 %v3877
      %v4023 = vunpack.c.h.b16 %v3877
      %v4024 = vunpack.c.l.b16 %v3878
      %v4025 = vunpack.c.h.b16 %v3878
      %v4026 = vunpack.c.l.b16 %v3879
      %v4027 = vunpack.c.h.b16 %v3879
      %v4028 = vunpack.c.l.b16 %v3880
      %v4029 = vunpack.c.h.b16 %v3880
      %v4030 = vunpack.c.l.b16 %v3881
      %v4031 = vunpack.c.h.b16 %v3881
      %v4032 = vunpack.c.l.b16 %v3882
      %v4033 = vunpack.c.h.b16 %v3882
      %v4034 = vunpack.c.l.b16 %v3883
      %v4035 = vunpack.c.h.b16 %v3883
      %v4036 = vunpack.c.l.b16 %v3884
      %v4037 = vunpack.c.h.b16 %v3884
      %v4038 = vunpack.c.l.b16 %v3885
      %v4039 = vunpack.c.h.b16 %v3885
      %v4040 = vunpack.c.l.b16 %v3886
      %v4041 = vunpack.c.h.b16 %v3886
      %v4042 = vunpack.c.l.b16 %v3887
      %v4043 = vunpack.c.h.b16 %v3887
      %v4044 = vunpack.c.l.b16 %v3888
      %v4045 = vunpack.c.h.b16 %v3888
      %v4046 = vunpack.c.l.b16 %v3889
      %v4047 = vunpack.c.h.b16 %v3889
      %v4048 = vunpack.c.l.b16 %v3890
      %v4049 = vunpack.c.h.b16 %v3890
      %v4050 = vunpack.c.l.b16 %v3891
      %v4051 = vunpack.c.h.b16 %v3891
      %v4052 = vunpack.c.l.b16 %v3892
      %v4053 = vunpack.c.h.b16 %v3892
      %v4054 = vunpack.c.l.b16 %v3893
      %v4055 = vunpack.c.h.b16 %v3893
      %v4056 = vunpack.c.l.b16 %v3894
      %v4057 = vunpack.c.h.b16 %v3894
      %v4058 = vunpack.c.l.b16 %v3895
      %v4059 = vunpack.c.h.b16 %v3895
      %v4060 = vunpack.c.l.b16 %v3896
      %v4061 = vunpack.c.h.b16 %v3896
      %v4062 = vunpack.c.l.b16 %v3897
      %v4063 = vunpack.c.h.b16 %v3897
      %v4064 = vunpack.c.l.b16 %v3898
      %v4065 = vunpack.c.h.b16 %v3898
      %v4066 = vunpack.c.l.b16 %v3899
      %v4067 = vunpack.c.h.b16 %v3899
      %v4068 = vunpack.c.l.b16 %v3900
      %v4069 = vunpack.c.h.b16 %v3900
      %v4070 = vunpack.c.l.b16 %v3901
      %v4071 = vunpack.c.h.b16 %v3901
      %v4072 = vunpack.c.l.b16 %v3902
      %v4073 = vunpack.c.h.b16 %v3902
      %v4074 = vunpack.c.l.b16 %v3903
      %v4075 = vunpack.c.h.b16 %v3903
      %v4076 = vunpack.c.l.b16 %v3904
      %v4077 = vunpack.c.h.b16 %v3904
      %v4078 = vunpack.c.l.b16 %v3905
      %v4079 = vunpack.c.h.b16 %v3905
      %v4080 = vunpack.c.l.b16 %v3906
      %v4081 = vunpack.c.h.b16 %v3906
      %v4082 = vunpack.c.l.b16 %v3907
      %v4083 = vunpack.c.h.b16 %v3907
      %v4084 = vunpack.c.l.b16 %v3908
      %v4085 = vunpack.c.h.b16 %v3908
      %v4086 = vunpack.c.l.b16 %v3909
      %v4087 = vunpack.c.h.b16 %v3909
      %v4088 = vunpack.c.l.b16 %v3910
      %v4089 = vunpack.c.h.b16 %v3910
      %v4090 = vunpack.c.l.b16 %v3911
      %v4091 = vunpack.c.h.b16 %v3911
      %v4092 = vunpack.c.l.b16 %v3912
      %v4093 = vunpack.c.h.b16 %v3912
      %v4094 = vunpack.c.l.b16 %v3913
      %v4095 = vunpack.c.h.b16 %v3913
      %v4096 = vunpack.c.l.b16 %v3914
      %v4097 = vunpack.c.h.b16 %v3914
      %v4098 = vunpack.c.l.b16 %v3915
      %v4099 = vunpack.c.h.b16 %v3915
      %v4100 = vunpack.c.l.b16 %v3916
      %v4101 = vunpack.c.h.b16 %v3916
      %v4102 = vunpack.c.l.b16 %v3917
      %v4103 = vunpack.c.h.b16 %v3917
      %v4104 = vunpack.c.l.b16 %v3918
      %v4105 = vunpack.c.h.b16 %v3918
      %v4106 = vunpack.c.l.b16 %v3919
      %v4107 = vunpack.c.h.b16 %v3919
      %v4108 = vunpack.c.l.b16 %v3920
      %v4109 = vunpack.c.h.b16 %v3920
      %v4110 = vunpack.c.l.b16 %v3921
      %v4111 = vunpack.c.h.b16 %v3921
      %v4112 = vunpack.c.l.b16 %v3922
      %v4113 = vunpack.c.h.b16 %v3922
      %v4114 = vunpack.c.l.b16 %v3923
      %v4115 = vunpack.c.h.b16 %v3923
      %v4116 = vunpack.c.l.b16 %v3924
      %v4117 = vunpack.c.h.b16 %v3924
      %v4118 = vunpack.c.l.b16 %v3925
      %v4119 = vunpack.c.h.b16 %v3925
      %v4120 = vunpack.c.l.b16 %v3926
      %v4121 = vunpack.c.h.b16 %v3926
      %v4122 = vunpack.c.l.b16 %v3927
      %v4123 = vunpack.c.h.b16 %v3927
      %v4124 = vunpack.c.l.b16 %v3928
      %v4125 = vunpack.c.h.b16 %v3928
      %v4126 = vunpack.c.l.b16 %v3929
      %v4127 = vunpack.c.h.b16 %v3929
      %v4128 = vunpack.c.l.b16 %v3930
      %v4129 = vunpack.c.h.b16 %v3930
      %v4130 = vunpack.c.l.b16 %v3931
      %v4131 = vunpack.c.h.b16 %v3931
      %v4132 = vunpack.c.l.b16 %v3932
      %v4133 = vunpack.c.h.b16 %v3932
      %v4134 = vunpack.c.l.b16 %v3933
      %v4135 = vunpack.c.h.b16 %v3933
      %v4136 = vunpack.c.l.b16 %v3934
      %v4137 = vunpack.c.h.b16 %v3934
      %v4138 = vunpack.c.l.b16 %v3935
      %v4139 = vunpack.c.h.b16 %v3935
      %v4140 = vpack.c.b16 %v4014, %v4012
      %v4141 = vpack.c.b16 %v4015, %v4013
      %v4142 = vpack.c.b16 %v4018, %v4016
      %v4143 = vpack.c.b16 %v4019, %v4017
      %v4144 = vpack.c.b16 %v4022, %v4020
      %v4145 = vpack.c.b16 %v4023, %v4021
      %v4146 = vpack.c.b16 %v4026, %v4024
      %v4147 = vpack.c.b16 %v4027, %v4025
      %v4148 = vpack.c.b16 %v4030, %v4028
      %v4149 = vpack.c.b16 %v4031, %v4029
      %v4150 = vpack.c.b16 %v4034, %v4032
      %v4151 = vpack.c.b16 %v4035, %v4033
      %v4152 = vpack.c.b16 %v4038, %v4036
      %v4153 = vpack.c.b16 %v4039, %v4037
      %v4154 = vpack.c.b16 %v4042, %v4040
      %v4155 = vpack.c.b16 %v4043, %v4041
      %v4156 = vpack.c.b16 %v4046, %v4044
      %v4157 = vpack.c.b16 %v4047, %v4045
      %v4158 = vpack.c.b16 %v4050, %v4048
      %v4159 = vpack.c.b16 %v4051, %v4049
      %v4160 = vpack.c.b16 %v4054, %v4052
      %v4161 = vpack.c.b16 %v4055, %v4053
      %v4162 = vpack.c.b16 %v4058, %v4056
      %v4163 = vpack.c.b16 %v4059, %v4057
      %v4164 = vpack.c.b16 %v4062, %v4060
      %v4165 = vpack.c.b16 %v4063, %v4061
      %v4166 = vpack.c.b16 %v4066, %v4064
      %v4167 = vpack.c.b16 %v4067, %v4065
      %v4168 = vpack.c.b16 %v4070, %v4068
      %v4169 = vpack.c.b16 %v4071, %v4069
      %v4170 = vpack.c.b16 %v4074, %v4072
      %v4171 = vpack.c.b16 %v4075, %v4073
      %v4172 = vpack.c.b16 %v4078, %v4076
      %v4173 = vpack.c.b16 %v4079, %v4077
      %v4174 = vpack.c.b16 %v4082, %v4080
      %v4175 = vpack.c.b16 %v4083, %v4081
      %v4176 = vpack.c.b16 %v4086, %v4084
      %v4177 = vpack.c.b16 %v4087, %v4085
      %v4178 = vpack.c.b16 %v4090, %v4088
      %v4179 = vpack.c.b16 %v4091, %v4089
      %v4180 = vpack.c.b16 %v4094, %v4092
      %v4181 = vpack.c.b16 %v4095, %v4093
      %v4182 = vpack.c.b16 %v4098, %v4096
      %v4183 = vpack.c.b16 %v4099, %v4097
      %v4184 = vpack.c.b16 %v4102, %v4100
      %v4185 = vpack.c.b16 %v4103, %v4101
      %v4186 = vpack.c.b16 %v4106, %v4104
      %v4187 = vpack.c.b16 %v4107, %v4105
      %v4188 = vpack.c.b16 %v4110, %v4108
      %v4189 = vpack.c.b16 %v4111, %v4109
      %v4190 = vpack.c.b16 %v4114, %v4112
      %v4191 = vpack.c.b16 %v4115, %v4113
      %v4192 = vpack.c.b16 %v4118, %v4116
      %v4193 = vpack.c.b16 %v4119, %v4117
      %v4194 = vpack.c.b16 %v4122, %v4120
      %v4195 = vpack.c.b16 %v4123, %v4121
      %v4196 = vpack.c.b16 %v4126, %v4124
      %v4197 = vpack.c.b16 %v4127, %v4125
      %v4198 = vpack.c.b16 %v4130, %v4128
      %v4199 = vpack.c.b16 %v4131, %v4129
      %v4200 = vpack.c.b16 %v4134, %v4132
      %v4201 = vpack.c.b16 %v4135, %v4133
      %v4202 = vpack.c.b16 %v4138, %v4136
      %v4203 = vpack.c.b16 %v4139, %v4137
      %4268 = vmatprep.subr.bf16.mxu0 %v4141
      %4269 = vmatpush1.bf16.msra.mxu0 %v4140
      %4270 = vmatprep.subr.bf16.mxu0 %v4143
      %4271 = vmatpush1.bf16.msra.mxu0 %v4142
      %4272 = vmatprep.subr.bf16.mxu0 %v4145
      %4273 = vmatpush1.bf16.msra.mxu0 %v4144
      %4274 = vmatprep.subr.bf16.mxu0 %v4147
      %4275 = vmatpush1.bf16.msra.mxu0 %v4146
      %4276 = vmatprep.subr.bf16.mxu0 %v4149
      %4277 = vmatpush1.bf16.msra.mxu0 %v4148
      %4278 = vmatprep.subr.bf16.mxu0 %v4151
      %4279 = vmatpush1.bf16.msra.mxu0 %v4150
      %4280 = vmatprep.subr.bf16.mxu0 %v4153
      %4281 = vmatpush1.bf16.msra.mxu0 %v4152
      %4282 = vmatprep.subr.bf16.mxu0 %v4155
      %4283 = vmatpush1.bf16.msra.mxu0 %v4154
      %4284 = vmatprep.subr.bf16.mxu0 %v4157
      %4285 = vmatpush1.bf16.msra.mxu0 %v4156
      %4286 = vmatprep.subr.bf16.mxu0 %v4159
      %4287 = vmatpush1.bf16.msra.mxu0 %v4158
      %4288 = vmatprep.subr.bf16.mxu0 %v4161
      %4289 = vmatpush1.bf16.msra.mxu0 %v4160
      %4290 = vmatprep.subr.bf16.mxu0 %v4163
      %4291 = vmatpush1.bf16.msra.mxu0 %v4162
      %4292 = vmatprep.subr.bf16.mxu0 %v4165
      %4293 = vmatpush1.bf16.msra.mxu0 %v4164
      %4294 = vmatprep.subr.bf16.mxu0 %v4167
      %4295 = vmatpush1.bf16.msra.mxu0 %v4166
      %4296 = vmatprep.subr.bf16.mxu0 %v4169
      %4297 = vmatpush1.bf16.msra.mxu0 %v4168
      %4298 = vmatprep.subr.bf16.mxu0 %v4171
      %4299 = vmatpush1.bf16.msra.mxu0 %v4170
      %4300 = vmatprep.mubr.bf16.mxu0 %v3809
      %4301 = vmatmul.mubr.bf16.gmra.mrb[0].mxu0 %v3808
      %v4302 = vpop.f32.mrb[0].mxu0
      %v4303 = vadd.f32 %v3941, %v4302
      %v4304 = vpop.f32.mrb[0].mxu0
      %v4305 = vadd.f32 %v3945, %v4304
      %v4306 = vpop.f32.mrb[0].mxu0
      %v4307 = vadd.f32 %v3941, %v4306
      %v4308 = vpop.f32.mrb[0].mxu0
      %v4309 = vadd.f32 %v3945, %v4308
      %4310 = vmatprep.mubr.bf16.mxu0 %v3813
      %4311 = vmatmul.mubr.bf16.gmra.mrb[0].mxu0 %v3812
      %v4312 = vpop.f32.mrb[0].mxu0
      %v4313 = vadd.f32 %v3941, %v4312
      %v4314 = vpop.f32.mrb[0].mxu0
      %v4315 = vadd.f32 %v3945, %v4314
      %v4316 = vpop.f32.mrb[0].mxu0
      %v4317 = vadd.f32 %v3941, %v4316
      %v4318 = vpop.f32.mrb[0].mxu0
      %v4319 = vadd.f32 %v3945, %v4318
      %4320 = vmatprep.mubr.bf16.mxu0 %v3817
      %4321 = vmatmul.mubr.bf16.gmra.mrb[0].mxu0 %v3816
      %v4322 = vpop.f32.mrb[0].mxu0
      %v4323 = vadd.f32 %v3941, %v4322
      %v4324 = vpop.f32.mrb[0].mxu0
      %v4325 = vadd.f32 %v3945, %v4324
      %v4326 = vpop.f32.mrb[0].mxu0
      %v4327 = vadd.f32 %v3941, %v4326
      %v4328 = vpop.f32.mrb[0].mxu0
      %v4329 = vadd.f32 %v3945, %v4328
      %4330 = vmatprep.mubr.bf16.mxu0 %v3821
      %4331 = vmatmul.mubr.bf16.gmra.mrb[0].mxu0 %v3820
      %v4332 = vpop.f32.mrb[0].mxu0
      %v4333 = vadd.f32 %v3941, %v4332
      %v4334 = vpop.f32.mrb[0].mxu0
      %v4335 = vadd.f32 %v3945, %v4334
      %v4336 = vpop.f32.mrb[0].mxu0
      %v4337 = vadd.f32 %v3941, %v4336
      %v4338 = vpop.f32.mrb[0].mxu0
      %v4339 = vadd.f32 %v3945, %v4338
      %4340 = vmatprep.mubr.bf16.mxu0 %v3825
      %4341 = vmatmul.mubr.bf16.gmra.mrb[0].mxu0 %v3824
      %v4342 = vpop.f32.mrb[0].mxu0
      %v4343 = vadd.f32 %v3941, %v4342
      %v4344 = vpop.f32.mrb[0].mxu0
      %v4345 = vadd.f32 %v3945, %v4344
      %v4346 = vpop.f32.mrb[0].mxu0
      %v4347 = vadd.f32 %v3941, %v4346
      %v4348 = vpop.f32.mrb[0].mxu0
      %v4349 = vadd.f32 %v3945, %v4348
      %4350 = vmatprep.mubr.bf16.mxu0 %v3829
      %4351 = vmatmul.mubr.bf16.gmra.mrb[0].mxu0 %v3828
      %v4352 = vpop.f32.mrb[0].mxu0
      %v4353 = vadd.f32 %v3941, %v4352
      %v4354 = vpop.f32.mrb[0].mxu0
      %v4355 = vadd.f32 %v3945, %v4354
      %v4356 = vpop.f32.mrb[0].mxu0
      %v4357 = vadd.f32 %v3941, %v4356
      %v4358 = vpop.f32.mrb[0].mxu0
      %v4359 = vadd.f32 %v3945, %v4358
      %4360 = vmatprep.mubr.bf16.mxu0 %v3833
      %4361 = vmatmul.mubr.bf16.gmra.mrb[0].mxu0 %v3832
      %v4362 = vpop.f32.mrb[0].mxu0
      %v4363 = vadd.f32 %v3941, %v4362
      %v4364 = vpop.f32.mrb[0].mxu0
      %v4365 = vadd.f32 %v3945, %v4364
      %v4366 = vpop.f32.mrb[0].mxu0
      %v4367 = vadd.f32 %v3941, %v4366
      %v4368 = vpop.f32.mrb[0].mxu0
      %v4369 = vadd.f32 %v3945, %v4368
      %4370 = vmatprep.mubr.bf16.mxu0 %v3837
      %4371 = vmatmul.mubr.bf16.gmra.mrb[0].mxu0 %v3836
      %v4372 = vpop.f32.mrb[0].mxu0
      %v4373 = vadd.f32 %v3941, %v4372
      %v4374 = vpop.f32.mrb[0].mxu0
      %v4375 = vadd.f32 %v3945, %v4374
      %v4376 = vpop.f32.mrb[0].mxu0
      %v4377 = vadd.f32 %v3941, %v4376
      %v4378 = vpop.f32.mrb[0].mxu0
      %v4379 = vadd.f32 %v3945, %v4378
      %4380 = vmatprep.mubr.bf16.mxu0 %v3841
      %4381 = vmatmul.mubr.bf16.gmra.mrb[0].mxu0 %v3840
      %v4382 = vpop.f32.mrb[0].mxu0
      %v4383 = vadd.f32 %v3941, %v4382
      %v4384 = vpop.f32.mrb[0].mxu0
      %v4385 = vadd.f32 %v3945, %v4384
      %v4386 = vpop.f32.mrb[0].mxu0
      %v4387 = vadd.f32 %v3941, %v4386
      %v4388 = vpop.f32.mrb[0].mxu0
      %v4389 = vadd.f32 %v3945, %v4388
      %4390 = vmatprep.mubr.bf16.mxu0 %v3845
      %4391 = vmatmul.mubr.bf16.gmra.mrb[0].mxu0 %v3844
      %v4392 = vpop.f32.mrb[0].mxu0
      %v4393 = vadd.f32 %v3941, %v4392
      %v4394 = vpop.f32.mrb[0].mxu0
      %v4395 = vadd.f32 %v3945, %v4394
      %v4396 = vpop.f32.mrb[0].mxu0
      %v4397 = vadd.f32 %v3941, %v4396
      %v4398 = vpop.f32.mrb[0].mxu0
      %v4399 = vadd.f32 %v3945, %v4398
      %4400 = vmatprep.mubr.bf16.mxu0 %v3849
      %4401 = vmatmul.mubr.bf16.gmra.mrb[0].mxu0 %v3848
      %v4402 = vpop.f32.mrb[0].mxu0
      %v4403 = vadd.f32 %v3941, %v4402
      %v4404 = vpop.f32.mrb[0].mxu0
      %v4405 = vadd.f32 %v3945, %v4404
      %v4406 = vpop.f32.mrb[0].mxu0
      %v4407 = vadd.f32 %v3941, %v4406
      %v4408 = vpop.f32.mrb[0].mxu0
      %v4409 = vadd.f32 %v3945, %v4408
      %4410 = vmatprep.mubr.bf16.mxu0 %v3853
      %4411 = vmatmul.mubr.bf16.gmra.mrb[0].mxu0 %v3852
      %v4412 = vpop.f32.mrb[0].mxu0
      %v4413 = vadd.f32 %v3941, %v4412
      %v4414 = vpop.f32.mrb[0].mxu0
      %v4415 = vadd.f32 %v3945, %v4414
      %v4416 = vpop.f32.mrb[0].mxu0
      %v4417 = vadd.f32 %v3941, %v4416
      %v4418 = vpop.f32.mrb[0].mxu0
      %v4419 = vadd.f32 %v3945, %v4418
      %4420 = vmatprep.mubr.bf16.mxu0 %v3857
      %4421 = vmatmul.mubr.bf16.gmra.mrb[0].mxu0 %v3856
      %v4422 = vpop.f32.mrb[0].mxu0
      %v4423 = vadd.f32 %v3941, %v4422
      %v4424 = vpop.f32.mrb[0].mxu0
      %v4425 = vadd.f32 %v3945, %v4424
      %v4426 = vpop.f32.mrb[0].mxu0
      %v4427 = vadd.f32 %v3941, %v4426
      %v4428 = vpop.f32.mrb[0].mxu0
      %v4429 = vadd.f32 %v3945, %v4428
      %4430 = vmatprep.mubr.bf16.mxu0 %v3861
      %4431 = vmatmul.mubr.bf16.gmra.mrb[0].mxu0 %v3860
      %v4432 = vpop.f32.mrb[0].mxu0
      %v4433 = vadd.f32 %v3941, %v4432
      %v4434 = vpop.f32.mrb[0].mxu0
      %v4435 = vadd.f32 %v3945, %v4434
      %v4436 = vpop.f32.mrb[0].mxu0
      %v4437 = vadd.f32 %v3941, %v4436
      %v4438 = vpop.f32.mrb[0].mxu0
      %v4439 = vadd.f32 %v3945, %v4438
      %4440 = vmatprep.mubr.bf16.mxu0 %v3865
      %4441 = vmatmul.mubr.bf16.gmra.mrb[0].mxu0 %v3864
      %v4442 = vpop.f32.mrb[0].mxu0
      %v4443 = vadd.f32 %v3941, %v4442
      %v4444 = vpop.f32.mrb[0].mxu0
      %v4445 = vadd.f32 %v3945, %v4444
      %v4446 = vpop.f32.mrb[0].mxu0
      %v4447 = vadd.f32 %v3941, %v4446
      %v4448 = vpop.f32.mrb[0].mxu0
      %v4449 = vadd.f32 %v3945, %v4448
      %4450 = vmatprep.mubr.bf16.mxu0 %v3869
      %4451 = vmatmul.mubr.bf16.gmra.mrb[0].mxu0 %v3868
      %v4452 = vpop.f32.mrb[0].mxu0
      %v4453 = vadd.f32 %v3941, %v4452
      %v4454 = vpop.f32.mrb[0].mxu0
      %v4455 = vadd.f32 %v3945, %v4454
      %v4456 = vpop.f32.mrb[0].mxu0
      %v4457 = vadd.f32 %v3941, %v4456
      %v4458 = vpop.f32.mrb[0].mxu0
      %v4459 = vadd.f32 %v3945, %v4458
      %4460 = vdwg.mxu0
      %4461 = vmatprep.subr.bf16.mxu0 %v4173
      %4462 = vmatpush1.bf16.msra.mxu0 %v4172
      %4463 = vmatprep.subr.bf16.mxu0 %v4175
      %4464 = vmatpush1.bf16.msra.mxu0 %v4174
      %4465 = vmatprep.subr.bf16.mxu0 %v4177
      %4466 = vmatpush1.bf16.msra.mxu0 %v4176
      %4467 = vmatprep.subr.bf16.mxu0 %v4179
      %4468 = vmatpush1.bf16.msra.mxu0 %v4178
      %4469 = vmatprep.subr.bf16.mxu0 %v4181
      %4470 = vmatpush1.bf16.msra.mxu0 %v4180
      %4471 = vmatprep.subr.bf16.mxu0 %v4183
      %4472 = vmatpush1.bf16.msra.mxu0 %v4182
      %4473 = vmatprep.subr.bf16.mxu0 %v4185
      %4474 = vmatpush1.bf16.msra.mxu0 %v4184
      %4475 = vmatprep.subr.bf16.mxu0 %v4187
      %4476 = vmatpush1.bf16.msra.mxu0 %v4186
      %4477 = vmatprep.subr.bf16.mxu0 %v4189
      %4478 = vmatpush1.bf16.msra.mxu0 %v4188
      %4479 = vmatprep.subr.bf16.mxu0 %v4191
      %4480 = vmatpush1.bf16.msra.mxu0 %v4190
      %4481 = vmatprep.subr.bf16.mxu0 %v4193
      %4482 = vmatpush1.bf16.msra.mxu0 %v4192
      %4483 = vmatprep.subr.bf16.mxu0 %v4195
      %4484 = vmatpush1.bf16.msra.mxu0 %v4194
      %4485 = vmatprep.subr.bf16.mxu0 %v4197
      %4486 = vmatpush1.bf16.msra.mxu0 %v4196
      %4487 = vmatprep.subr.bf16.mxu0 %v4199
      %4488 = vmatpush1.bf16.msra.mxu0 %v4198
      %4489 = vmatprep.subr.bf16.mxu0 %v4201
      %4490 = vmatpush1.bf16.msra.mxu0 %v4200
      %4491 = vmatprep.subr.bf16.mxu0 %v4203
      %4492 = vmatpush1.bf16.msra.mxu0 %v4202
      %4493 = vmatprep.mubr.bf16.mxu0 %v3811
      %4494 = vmatmul.mubr.bf16.gmra.mrb[0].mxu0 %v3810
      %v4495 = vpop.f32.mrb[0].mxu0
      %v4496 = vadd.f32 %v4303, %v4495
      %v4497 = vpop.f32.mrb[0].mxu0
      %v4498 = vadd.f32 %v4305, %v4497
      %v4499 = vpop.f32.mrb[0].mxu0
      %v4500 = vadd.f32 %v4307, %v4499
      %v4501 = vpop.f32.mrb[0].mxu0
      %v4502 = vadd.f32 %v4309, %v4501
      %4503 = vmatprep.mubr.bf16.mxu0 %v3815
      %4504 = vmatmul.mubr.bf16.gmra.mrb[0].mxu0 %v3814
      %v4505 = vpop.f32.mrb[0].mxu0
      %v4506 = vadd.f32 %v4313, %v4505
      %v4507 = vpop.f32.mrb[0].mxu0
      %v4508 = vadd.f32 %v4315, %v4507
      %v4509 = vpop.f32.mrb[0].mxu0
      %v4510 = vadd.f32 %v4317, %v4509
      %v4511 = vpop.f32.mrb[0].mxu0
      %v4512 = vadd.f32 %v4319, %v4511
      %4513 = vmatprep.mubr.bf16.mxu0 %v3819
      %4514 = vmatmul.mubr.bf16.gmra.mrb[0].mxu0 %v3818
      %v4515 = vpop.f32.mrb[0].mxu0
      %v4516 = vadd.f32 %v4323, %v4515
      %v4517 = vpop.f32.mrb[0].mxu0
      %v4518 = vadd.f32 %v4325, %v4517
      %v4519 = vpop.f32.mrb[0].mxu0
      %v4520 = vadd.f32 %v4327, %v4519
      %v4521 = vpop.f32.mrb[0].mxu0
      %v4522 = vadd.f32 %v4329, %v4521
      %4523 = vmatprep.mubr.bf16.mxu0 %v3823
      %4524 = vmatmul.mubr.bf16.gmra.mrb[0].mxu0 %v3822
      %v4525 = vpop.f32.mrb[0].mxu0
      %v4526 = vadd.f32 %v4333, %v4525
      %v4527 = vpop.f32.mrb[0].mxu0
      %v4528 = vadd.f32 %v4335, %v4527
      %v4529 = vpop.f32.mrb[0].mxu0
      %v4530 = vadd.f32 %v4337, %v4529
      %v4531 = vpop.f32.mrb[0].mxu0
      %v4532 = vadd.f32 %v4339, %v4531
      %4533 = vmatprep.mubr.bf16.mxu0 %v3827
      %4534 = vmatmul.mubr.bf16.gmra.mrb[0].mxu0 %v3826
      %v4535 = vpop.f32.mrb[0].mxu0
      %v4536 = vadd.f32 %v4343, %v4535
      %v4537 = vpop.f32.mrb[0].mxu0
      %v4538 = vadd.f32 %v4345, %v4537
      %v4539 = vpop.f32.mrb[0].mxu0
      %v4540 = vadd.f32 %v4347, %v4539
      %v4541 = vpop.f32.mrb[0].mxu0
      %v4542 = vadd.f32 %v4349, %v4541
      %4543 = vmatprep.mubr.bf16.mxu0 %v3831
      %4544 = vmatmul.mubr.bf16.gmra.mrb[0].mxu0 %v3830
      %v4545 = vpop.f32.mrb[0].mxu0
      %v4546 = vadd.f32 %v4353, %v4545
      %v4547 = vpop.f32.mrb[0].mxu0
      %v4548 = vadd.f32 %v4355, %v4547
      %v4549 = vpop.f32.mrb[0].mxu0
      %v4550 = vadd.f32 %v4357, %v4549
      %v4551 = vpop.f32.mrb[0].mxu0
      %v4552 = vadd.f32 %v4359, %v4551
      %4553 = vmatprep.mubr.bf16.mxu0 %v3835
      %4554 = vmatmul.mubr.bf16.gmra.mrb[0].mxu0 %v3834
      %v4555 = vpop.f32.mrb[0].mxu0
      %v4556 = vadd.f32 %v4363, %v4555
      %v4557 = vpop.f32.mrb[0].mxu0
      %v4558 = vadd.f32 %v4365, %v4557
      %v4559 = vpop.f32.mrb[0].mxu0
      %v4560 = vadd.f32 %v4367, %v4559
      %v4561 = vpop.f32.mrb[0].mxu0
      %v4562 = vadd.f32 %v4369, %v4561
      %4563 = vmatprep.mubr.bf16.mxu0 %v3839
      %4564 = vmatmul.mubr.bf16.gmra.mrb[0].mxu0 %v3838
      %v4565 = vpop.f32.mrb[0].mxu0
      %v4566 = vadd.f32 %v4373, %v4565
      %v4567 = vpop.f32.mrb[0].mxu0
      %v4568 = vadd.f32 %v4375, %v4567
      %v4569 = vpop.f32.mrb[0].mxu0
      %v4570 = vadd.f32 %v4377, %v4569
      %v4571 = vpop.f32.mrb[0].mxu0
      %v4572 = vadd.f32 %v4379, %v4571
      %4573 = vmatprep.mubr.bf16.mxu0 %v3843
      %4574 = vmatmul.mubr.bf16.gmra.mrb[0].mxu0 %v3842
      %v4575 = vpop.f32.mrb[0].mxu0
      %v4576 = vadd.f32 %v4383, %v4575
      %v4577 = vpop.f32.mrb[0].mxu0
      %v4578 = vadd.f32 %v4385, %v4577
      %v4579 = vpop.f32.mrb[0].mxu0
      %v4580 = vadd.f32 %v4387, %v4579
      %v4581 = vpop.f32.mrb[0].mxu0
      %v4582 = vadd.f32 %v4389, %v4581
      %4583 = vmatprep.mubr.bf16.mxu0 %v3847
      %4584 = vmatmul.mubr.bf16.gmra.mrb[0].mxu0 %v3846
      %v4585 = vpop.f32.mrb[0].mxu0
      %v4586 = vadd.f32 %v4393, %v4585
      %v4587 = vpop.f32.mrb[0].mxu0
      %v4588 = vadd.f32 %v4395, %v4587
      %v4589 = vpop.f32.mrb[0].mxu0
      %v4590 = vadd.f32 %v4397, %v4589
      %v4591 = vpop.f32.mrb[0].mxu0
      %v4592 = vadd.f32 %v4399, %v4591
      %4593 = vmatprep.mubr.bf16.mxu0 %v3851
      %4594 = vmatmul.mubr.bf16.gmra.mrb[0].mxu0 %v3850
      %v4595 = vpop.f32.mrb[0].mxu0
      %v4596 = vadd.f32 %v4403, %v4595
      %v4597 = vpop.f32.mrb[0].mxu0
      %v4598 = vadd.f32 %v4405, %v4597
      %v4599 = vpop.f32.mrb[0].mxu0
      %v4600 = vadd.f32 %v4407, %v4599
      %v4601 = vpop.f32.mrb[0].mxu0
      %v4602 = vadd.f32 %v4409, %v4601
      %4603 = vmatprep.mubr.bf16.mxu0 %v3855
      %4604 = vmatmul.mubr.bf16.gmra.mrb[0].mxu0 %v3854
      %v4605 = vpop.f32.mrb[0].mxu0
      %v4606 = vadd.f32 %v4413, %v4605
      %v4607 = vpop.f32.mrb[0].mxu0
      %v4608 = vadd.f32 %v4415, %v4607
      %v4609 = vpop.f32.mrb[0].mxu0
      %v4610 = vadd.f32 %v4417, %v4609
      %v4611 = vpop.f32.mrb[0].mxu0
      %v4612 = vadd.f32 %v4419, %v4611
      %4613 = vmatprep.mubr.bf16.mxu0 %v3859
      %4614 = vmatmul.mubr.bf16.gmra.mrb[0].mxu0 %v3858
      %v4615 = vpop.f32.mrb[0].mxu0
      %v4616 = vadd.f32 %v4423, %v4615
      %v4617 = vpop.f32.mrb[0].mxu0
      %v4618 = vadd.f32 %v4425, %v4617
      %v4619 = vpop.f32.mrb[0].mxu0
      %v4620 = vadd.f32 %v4427, %v4619
      %v4621 = vpop.f32.mrb[0].mxu0
      %v4622 = vadd.f32 %v4429, %v4621
      %4623 = vmatprep.mubr.bf16.mxu0 %v3863
      %4624 = vmatmul.mubr.bf16.gmra.mrb[0].mxu0 %v3862
      %v4625 = vpop.f32.mrb[0].mxu0
      %v4626 = vadd.f32 %v4433, %v4625
      %v4627 = vpop.f32.mrb[0].mxu0
      %v4628 = vadd.f32 %v4435, %v4627
      %v4629 = vpop.f32.mrb[0].mxu0
      %v4630 = vadd.f32 %v4437, %v4629
      %v4631 = vpop.f32.mrb[0].mxu0
      %v4632 = vadd.f32 %v4439, %v4631
      %4633 = vmatprep.mubr.bf16.mxu0 %v3867
      %4634 = vmatmul.mubr.bf16.gmra.mrb[0].mxu0 %v3866
      %v4635 = vpop.f32.mrb[0].mxu0
      %v4636 = vadd.f32 %v4443, %v4635
      %v4637 = vpop.f32.mrb[0].mxu0
      %v4638 = vadd.f32 %v4445, %v4637
      %v4639 = vpop.f32.mrb[0].mxu0
      %v4640 = vadd.f32 %v4447, %v4639
      %v4641 = vpop.f32.mrb[0].mxu0
      %v4642 = vadd.f32 %v4449, %v4641
      %4643 = vmatprep.mubr.bf16.mxu0 %v3871
      %4644 = vmatmul.mubr.bf16.gmra.mrb[0].mxu0 %v3870
      %v4645 = vpop.f32.mrb[0].mxu0
      %v4646 = vadd.f32 %v4453, %v4645
      %v4647 = vpop.f32.mrb[0].mxu0
      %v4648 = vadd.f32 %v4455, %v4647
      %v4649 = vpop.f32.mrb[0].mxu0
      %v4650 = vadd.f32 %v4457, %v4649
      %v4651 = vpop.f32.mrb[0].mxu0
      %v4652 = vadd.f32 %v4459, %v4651
      %4653 = vdwg.mxu0
      %4654 = vst [vmem:[%s431] sm:$0xff] %v4496
      %4655 = vst [vmem:[%s431 + $0x8] sm:$0xff] %v4498
      %4656 = vst [vmem:[%s431 + $0x10] sm:$0xff] %v4500
      %4657 = vst [vmem:[%s431 + $0x18] sm:$0xff] %v4502
      %4658 = vst [vmem:[%s431 + $0x20] sm:$0xff] %v4506
      %4659 = vst [vmem:[%s431 + $0x28] sm:$0xff] %v4508
      %4660 = vst [vmem:[%s431 + $0x30] sm:$0xff] %v4510
      %4661 = vst [vmem:[%s431 + $0x38] sm:$0xff] %v4512
      %4662 = vst [vmem:[%s431 + $0x40] sm:$0xff] %v4516
      %4663 = vst [vmem:[%s431 + $0x48] sm:$0xff] %v4518
      %4664 = vst [vmem:[%s431 + $0x50] sm:$0xff] %v4520
      %4665 = vst [vmem:[%s431 + $0x58] sm:$0xff] %v4522
      %4666 = vst [vmem:[%s431 + $0x60] sm:$0xff] %v4526
      %4667 = vst [vmem:[%s431 + $0x68] sm:$0xff] %v4528
      %4668 = vst [vmem:[%s431 + $0x70] sm:$0xff] %v4530
      %4669 = vst [vmem:[%s431 + $0x78] sm:$0xff] %v4532
      %4670 = vst [vmem:[%s431 + $0x80] sm:$0xff] %v4536
      %4671 = vst [vmem:[%s431 + $0x88] sm:$0xff] %v4538
      %4672 = vst [vmem:[%s431 + $0x90] sm:$0xff] %v4540
      %4673 = vst [vmem:[%s431 + $0x98] sm:$0xff] %v4542
      %4674 = vst [vmem:[%s431 + $0xa0] sm:$0xff] %v4546
      %4675 = vst [vmem:[%s431 + $0xa8] sm:$0xff] %v4548
      %4676 = vst [vmem:[%s431 + $0xb0] sm:$0xff] %v4550
      %4677 = vst [vmem:[%s431 + $0xb8] sm:$0xff] %v4552
      %4678 = vst [vmem:[%s431 + $0xc0] sm:$0xff] %v4556
      %4679 = vst [vmem:[%s431 + $0xc8] sm:$0xff] %v4558
      %4680 = vst [vmem:[%s431 + $0xd0] sm:$0xff] %v4560
      %4681 = vst [vmem:[%s431 + $0xd8] sm:$0xff] %v4562
      %4682 = vst [vmem:[%s431 + $0xe0] sm:$0xff] %v4566
      %4683 = vst [vmem:[%s431 + $0xe8] sm:$0xff] %v4568
      %4684 = vst [vmem:[%s431 + $0xf0] sm:$0xff] %v4570
      %4685 = vst [vmem:[%s431 + $0xf8] sm:$0xff] %v4572
      %4686 = vst [vmem:[%s431 + $0x100] sm:$0xff] %v4576
      %4687 = vst [vmem:[%s431 + $0x108] sm:$0xff] %v4578
      %4688 = vst [vmem:[%s431 + $0x110] sm:$0xff] %v4580
      %4689 = vst [vmem:[%s431 + $0x118] sm:$0xff] %v4582
      %4690 = vst [vmem:[%s431 + $0x120] sm:$0xff] %v4586
      %4691 = vst [vmem:[%s431 + $0x128] sm:$0xff] %v4588
      %4692 = vst [vmem:[%s431 + $0x130] sm:$0xff] %v4590
      %4693 = vst [vmem:[%s431 + $0x138] sm:$0xff] %v4592
      %4694 = vst [vmem:[%s431 + $0x140] sm:$0xff] %v4596
      %4695 = vst [vmem:[%s431 + $0x148] sm:$0xff] %v4598
      %4696 = vst [vmem:[%s431 + $0x150] sm:$0xff] %v4600
      %4697 = vst [vmem:[%s431 + $0x158] sm:$0xff] %v4602
      %4698 = vst [vmem:[%s431 + $0x160] sm:$0xff] %v4606
      %4699 = vst [vmem:[%s431 + $0x168] sm:$0xff] %v4608
      %4700 = vst [vmem:[%s431 + $0x170] sm:$0xff] %v4610
      %4701 = vst [vmem:[%s431 + $0x178] sm:$0xff] %v4612
      %4702 = vst [vmem:[%s431 + $0x180] sm:$0xff] %v4616
      %4703 = vst [vmem:[%s431 + $0x188] sm:$0xff] %v4618
      %4704 = vst [vmem:[%s431 + $0x190] sm:$0xff] %v4620
      %4705 = vst [vmem:[%s431 + $0x198] sm:$0xff] %v4622
      %4706 = vst [vmem:[%s431 + $0x1a0] sm:$0xff] %v4626
      %4707 = vst [vmem:[%s431 + $0x1a8] sm:$0xff] %v4628
      %4708 = vst [vmem:[%s431 + $0x1b0] sm:$0xff] %v4630
      %4709 = vst [vmem:[%s431 + $0x1b8] sm:$0xff] %v4632
      %4710 = vst [vmem:[%s431 + $0x1c0] sm:$0xff] %v4636
      %4711 = vst [vmem:[%s431 + $0x1c8] sm:$0xff] %v4638
      %4712 = vst [vmem:[%s431 + $0x1d0] sm:$0xff] %v4640
      %4713 = vst [vmem:[%s431 + $0x1d8] sm:$0xff] %v4642
      %4714 = vst [vmem:[%s431 + $0x1e0] sm:$0xff] %v4646
      %4715 = vst [vmem:[%s431 + $0x1e8] sm:$0xff] %v4648
      %4716 = vst [vmem:[%s431 + $0x1f0] sm:$0xff] %v4650
      %4717 = vst [vmem:[%s431 + $0x1f8] sm:$0xff] %v4652
      %v4718 = vmul.f32 %v4498, 0.5
      %v4719 = vmul.f32 %v4502, 0.5
      %v4720 = vmul.f32 %v4508, 0.5
      %v4721 = vmul.f32 %v4512, 0.5
      %v4722 = vmul.f32 %v4518, 0.5
      %v4723 = vmul.f32 %v4522, 0.5
      %v4724 = vmul.f32 %v4528, 0.5
      %v4725 = vmul.f32 %v4532, 0.5
      %v4726 = vmul.f32 %v4538, 0.5
      %v4727 = vmul.f32 %v4542, 0.5
      %v4728 = vmul.f32 %v4548, 0.5
      %v4729 = vmul.f32 %v4552, 0.5
      %v4730 = vmul.f32 %v4558, 0.5
      %v4731 = vmul.f32 %v4562, 0.5
      %v4732 = vmul.f32 %v4568, 0.5
      %v4733 = vmul.f32 %v4572, 0.5
      %v4734 = vmul.f32 %v4578, 0.5
      %v4735 = vmul.f32 %v4582, 0.5
      %v4736 = vmul.f32 %v4588, 0.5
      %v4737 = vmul.f32 %v4592, 0.5
      %v4738 = vmul.f32 %v4598, 0.5
      %v4739 = vmul.f32 %v4602, 0.5
      %v4740 = vmul.f32 %v4608, 0.5
      %v4741 = vmul.f32 %v4612, 0.5
      %v4742 = vmul.f32 %v4618, 0.5
      %v4743 = vmul.f32 %v4622, 0.5
      %v4744 = vmul.f32 %v4628, 0.5
      %v4745 = vmul.f32 %v4632, 0.5
      %v4746 = vmul.f32 %v4638, 0.5
      %v4747 = vmul.f32 %v4642, 0.5
      %v4748 = vmul.f32 %v4648, 0.5
      %v4749 = vmul.f32 %v4652, 0.5
      %v4750 = vmul.f32 %v4718, 1.442695
      %v4751 = vpow.pop %v4750
      %v4752 = vmul.f32 %v4719, 1.442695
      %v4753 = vpow.pop %v4752
      %v4754 = vmul.f32 %v4720, 1.442695
      %v4755 = vpow.pop %v4754
      %v4756 = vmul.f32 %v4721, 1.442695
      %v4757 = vpow.pop %v4756
      %v4758 = vmul.f32 %v4722, 1.442695
      %v4759 = vpow.pop %v4758
      %v4760 = vmul.f32 %v4723, 1.442695
      %v4761 = vpow.pop %v4760
      %v4762 = vmul.f32 %v4724, 1.442695
      %v4763 = vpow.pop %v4762
      %v4764 = vmul.f32 %v4725, 1.442695
      %v4765 = vpow.pop %v4764
      %v4766 = vmul.f32 %v4726, 1.442695
      %v4767 = vpow.pop %v4766
      %v4768 = vmul.f32 %v4727, 1.442695
      %v4769 = vpow.pop %v4768
      %v4770 = vmul.f32 %v4728, 1.442695
      %v4771 = vpow.pop %v4770
      %v4772 = vmul.f32 %v4729, 1.442695
      %v4773 = vpow.pop %v4772
      %v4774 = vmul.f32 %v4730, 1.442695
      %v4775 = vpow.pop %v4774
      %v4776 = vmul.f32 %v4731, 1.442695
      %v4777 = vpow.pop %v4776
      %v4778 = vmul.f32 %v4732, 1.442695
      %v4779 = vpow.pop %v4778
      %v4780 = vmul.f32 %v4733, 1.442695
      %v4781 = vpow.pop %v4780
      %v4782 = vmul.f32 %v4734, 1.442695
      %v4783 = vpow.pop %v4782
      %v4784 = vmul.f32 %v4735, 1.442695
      %v4785 = vpow.pop %v4784
      %v4786 = vmul.f32 %v4736, 1.442695
      %v4787 = vpow.pop %v4786
      %v4788 = vmul.f32 %v4737, 1.442695
      %v4789 = vpow.pop %v4788
      %v4790 = vmul.f32 %v4738, 1.442695
      %v4791 = vpow.pop %v4790
      %v4792 = vmul.f32 %v4739, 1.442695
      %v4793 = vpow.pop %v4792
      %v4794 = vmul.f32 %v4740, 1.442695
      %v4795 = vpow.pop %v4794
      %v4796 = vmul.f32 %v4741, 1.442695
      %v4797 = vpow.pop %v4796
      %v4798 = vmul.f32 %v4742, 1.442695
      %v4799 = vpow.pop %v4798
      %v4800 = vmul.f32 %v4743, 1.442695
      %v4801 = vpow.pop %v4800
      %v4802 = vmul.f32 %v4744, 1.442695
      %v4803 = vpow.pop %v4802
      %v4804 = vmul.f32 %v4745, 1.442695
      %v4805 = vpow.pop %v4804
      %v4806 = vmul.f32 %v4746, 1.442695
      %v4807 = vpow.pop %v4806
      %v4808 = vmul.f32 %v4747, 1.442695
      %v4809 = vpow.pop %v4808
      %v4810 = vmul.f32 %v4748, 1.442695
      %v4811 = vpow.pop %v4810
      %v4812 = vmul.f32 %v4749, 1.442695
      %v4813 = vpow.pop %v4812
      %v4814 = vld [vmem:[%s417] sm:$0xff]
      %v4815 = vld [vmem:[%s417 + $0x8] sm:$0xff]
      %v4816 = vld [vmem:[%s417 + $0x10] sm:$0xff]
      %v4817 = vld [vmem:[%s417 + $0x18] sm:$0xff]
      %v4818 = vld [vmem:[%s417 + $0x20] sm:$0xff]
      %v4819 = vld [vmem:[%s417 + $0x28] sm:$0xff]
      %v4820 = vld [vmem:[%s417 + $0x30] sm:$0xff]
      %v4821 = vld [vmem:[%s417 + $0x38] sm:$0xff]
      %v4822 = vld [vmem:[%s417 + $0x40] sm:$0xff]
      %v4823 = vld [vmem:[%s417 + $0x48] sm:$0xff]
      %v4824 = vld [vmem:[%s417 + $0x50] sm:$0xff]
      %v4825 = vld [vmem:[%s417 + $0x58] sm:$0xff]
      %v4826 = vld [vmem:[%s417 + $0x60] sm:$0xff]
      %v4827 = vld [vmem:[%s417 + $0x68] sm:$0xff]
      %v4828 = vld [vmem:[%s417 + $0x70] sm:$0xff]
      %v4829 = vld [vmem:[%s417 + $0x78] sm:$0xff]
      %v4830 = vld [vmem:[%s417 + $0x80] sm:$0xff]
      %v4831 = vld [vmem:[%s417 + $0x88] sm:$0xff]
      %v4832 = vld [vmem:[%s417 + $0x90] sm:$0xff]
      %v4833 = vld [vmem:[%s417 + $0x98] sm:$0xff]
      %v4834 = vld [vmem:[%s417 + $0xa0] sm:$0xff]
      %v4835 = vld [vmem:[%s417 + $0xa8] sm:$0xff]
      %v4836 = vld [vmem:[%s417 + $0xb0] sm:$0xff]
      %v4837 = vld [vmem:[%s417 + $0xb8] sm:$0xff]
      %v4838 = vld [vmem:[%s417 + $0xc0] sm:$0xff]
      %v4839 = vld [vmem:[%s417 + $0xc8] sm:$0xff]
      %v4840 = vld [vmem:[%s417 + $0xd0] sm:$0xff]
      %v4841 = vld [vmem:[%s417 + $0xd8] sm:$0xff]
      %v4842 = vld [vmem:[%s417 + $0xe0] sm:$0xff]
      %v4843 = vld [vmem:[%s417 + $0xe8] sm:$0xff]
      %v4844 = vld [vmem:[%s417 + $0xf0] sm:$0xff]
      %v4845 = vld [vmem:[%s417 + $0xf8] sm:$0xff]
      %v4846 = vmul.f32 %v4814, %v4751
      %v4847 = vmul.f32 %v4815, %v4753
      %v4848 = vmul.f32 %v4816, %v4755
      %v4849 = vmul.f32 %v4817, %v4757
      %v4850 = vmul.f32 %v4818, %v4759
      %v4851 = vmul.f32 %v4819, %v4761
      %v4852 = vmul.f32 %v4820, %v4763
      %v4853 = vmul.f32 %v4821, %v4765
      %v4854 = vmul.f32 %v4822, %v4767
      %v4855 = vmul.f32 %v4823, %v4769
      %v4856 = vmul.f32 %v4824, %v4771
      %v4857 = vmul.f32 %v4825, %v4773
      %v4858 = vmul.f32 %v4826, %v4775
      %v4859 = vmul.f32 %v4827, %v4777
      %v4860 = vmul.f32 %v4828, %v4779
      %v4861 = vmul.f32 %v4829, %v4781
      %v4862 = vmul.f32 %v4830, %v4783
      %v4863 = vmul.f32 %v4831, %v4785
      %v4864 = vmul.f32 %v4832, %v4787
      %v4865 = vmul.f32 %v4833, %v4789
      %v4866 = vmul.f32 %v4834, %v4791
      %v4867 = vmul.f32 %v4835, %v4793
      %v4868 = vmul.f32 %v4836, %v4795
      %v4869 = vmul.f32 %v4837, %v4797
      %v4870 = vmul.f32 %v4838, %v4799
      %v4871 = vmul.f32 %v4839, %v4801
      %v4872 = vmul.f32 %v4840, %v4803
      %v4873 = vmul.f32 %v4841, %v4805
      %v4874 = vmul.f32 %v4842, %v4807
      %v4875 = vmul.f32 %v4843, %v4809
      %v4876 = vmul.f32 %v4844, %v4811
      %v4877 = vmul.f32 %v4845, %v4813
      %v4878 = vadd.f32 %v4496, %v4846
      %v4879 = vadd.f32 %v4500, %v4847
      %v4880 = vadd.f32 %v4506, %v4848
      %v4881 = vadd.f32 %v4510, %v4849
      %v4882 = vadd.f32 %v4516, %v4850
      %v4883 = vadd.f32 %v4520, %v4851
      %v4884 = vadd.f32 %v4526, %v4852
      %v4885 = vadd.f32 %v4530, %v4853
      %v4886 = vadd.f32 %v4536, %v4854
      %v4887 = vadd.f32 %v4540, %v4855
      %v4888 = vadd.f32 %v4546, %v4856
      %v4889 = vadd.f32 %v4550, %v4857
      %v4890 = vadd.f32 %v4556, %v4858
      %v4891 = vadd.f32 %v4560, %v4859
      %v4892 = vadd.f32 %v4566, %v4860
      %v4893 = vadd.f32 %v4570, %v4861
      %v4894 = vadd.f32 %v4576, %v4862
      %v4895 = vadd.f32 %v4580, %v4863
      %v4896 = vadd.f32 %v4586, %v4864
      %v4897 = vadd.f32 %v4590, %v4865
      %v4898 = vadd.f32 %v4596, %v4866
      %v4899 = vadd.f32 %v4600, %v4867
      %v4900 = vadd.f32 %v4606, %v4868
      %v4901 = vadd.f32 %v4610, %v4869
      %v4902 = vadd.f32 %v4616, %v4870
      %v4903 = vadd.f32 %v4620, %v4871
      %v4904 = vadd.f32 %v4626, %v4872
      %v4905 = vadd.f32 %v4630, %v4873
      %v4906 = vadd.f32 %v4636, %v4874
      %v4907 = vadd.f32 %v4640, %v4875
      %v4908 = vadd.f32 %v4646, %v4876
      %v4909 = vadd.f32 %v4650, %v4877
      %v4910 = vpack.c.bf16 %v4879, %v4878
      %v4911 = vpack.c.bf16 %v4881, %v4880
      %v4912 = vpack.c.bf16 %v4883, %v4882
      %v4913 = vpack.c.bf16 %v4885, %v4884
      %v4914 = vpack.c.bf16 %v4887, %v4886
      %v4915 = vpack.c.bf16 %v4889, %v4888
      %v4916 = vpack.c.bf16 %v4891, %v4890
      %v4917 = vpack.c.bf16 %v4893, %v4892
      %v4918 = vpack.c.bf16 %v4895, %v4894
      %v4919 = vpack.c.bf16 %v4897, %v4896
      %v4920 = vpack.c.bf16 %v4899, %v4898
      %v4921 = vpack.c.bf16 %v4901, %v4900
      %v4922 = vpack.c.bf16 %v4903, %v4902
      %v4923 = vpack.c.bf16 %v4905, %v4904
      %v4924 = vpack.c.bf16 %v4907, %v4906
      %v4925 = vpack.c.bf16 %v4909, %v4908
      %v4926 = vld [vmem:[%s6] sm:$0xff]
      %v4927 = vld [vmem:[%s6 + $0x8] sm:$0xff]
      %v4928 = vld [vmem:[%s6 + $0x10] sm:$0xff]
      %v4929 = vld [vmem:[%s6 + $0x18] sm:$0xff]
      %v4930 = vld [vmem:[%s6 + $0x20] sm:$0xff]
      %v4931 = vld [vmem:[%s6 + $0x28] sm:$0xff]
      %v4932 = vld [vmem:[%s6 + $0x30] sm:$0xff]
      %v4933 = vld [vmem:[%s6 + $0x38] sm:$0xff]
      %v4934 = vld [vmem:[%s6 + $0x40] sm:$0xff]
      %v4935 = vld [vmem:[%s6 + $0x48] sm:$0xff]
      %v4936 = vld [vmem:[%s6 + $0x50] sm:$0xff]
      %v4937 = vld [vmem:[%s6 + $0x58] sm:$0xff]
      %v4938 = vld [vmem:[%s6 + $0x60] sm:$0xff]
      %v4939 = vld [vmem:[%s6 + $0x68] sm:$0xff]
      %v4940 = vld [vmem:[%s6 + $0x70] sm:$0xff]
      %v4941 = vld [vmem:[%s6 + $0x78] sm:$0xff]
      %v4942 = vld [vmem:[%s6 + $0x80] sm:$0xff]
      %v4943 = vld [vmem:[%s6 + $0x88] sm:$0xff]
      %v4944 = vld [vmem:[%s6 + $0x90] sm:$0xff]
      %v4945 = vld [vmem:[%s6 + $0x98] sm:$0xff]
      %v4946 = vld [vmem:[%s6 + $0xa0] sm:$0xff]
      %v4947 = vld [vmem:[%s6 + $0xa8] sm:$0xff]
      %v4948 = vld [vmem:[%s6 + $0xb0] sm:$0xff]
      %v4949 = vld [vmem:[%s6 + $0xb8] sm:$0xff]
      %v4950 = vld [vmem:[%s6 + $0xc0] sm:$0xff]
      %v4951 = vld [vmem:[%s6 + $0xc8] sm:$0xff]
      %v4952 = vld [vmem:[%s6 + $0xd0] sm:$0xff]
      %v4953 = vld [vmem:[%s6 + $0xd8] sm:$0xff]
      %v4954 = vld [vmem:[%s6 + $0xe0] sm:$0xff]
      %v4955 = vld [vmem:[%s6 + $0xe8] sm:$0xff]
      %v4956 = vld [vmem:[%s6 + $0xf0] sm:$0xff]
      %v4957 = vld [vmem:[%s6 + $0xf8] sm:$0xff]
      %v4958 = vld [vmem:[%s7] sm:$0xf]
      %v4960 = vlaneseq
      %v4961 = vshrl.u32 %v4960, 7
      %v4962 = vsub.s32 0, %v4961
      %v4963 = vrot.slane %v4958, %v4962
      %v4964 = vlaneseq
      %v4965 = vshrl.u32 %v4964, 7
      %v4966 = vsub.s32 1, %v4965
      %v4967 = vrot.slane %v4958, %v4966
      %v4968 = vlaneseq
      %v4969 = vshrl.u32 %v4968, 7
      %v4970 = vsub.s32 2, %v4969
      %v4971 = vrot.slane %v4958, %v4970
      %v4972 = vlaneseq
      %v4973 = vshrl.u32 %v4972, 7
      %v4974 = vsub.s32 3, %v4973
      %v4975 = vrot.slane %v4958, %v4974
      %v5012 = vunpack.c.l.b16 %v4926
      %v5013 = vunpack.c.h.b16 %v4926
      %v5014 = vunpack.c.l.b16 %v4927
      %v5015 = vunpack.c.h.b16 %v4927
      %v5016 = vunpack.c.l.b16 %v4928
      %v5017 = vunpack.c.h.b16 %v4928
      %v5018 = vunpack.c.l.b16 %v4929
      %v5019 = vunpack.c.h.b16 %v4929
      %v5020 = vunpack.c.l.b16 %v4930
      %v5021 = vunpack.c.h.b16 %v4930
      %v5022 = vunpack.c.l.b16 %v4931
      %v5023 = vunpack.c.h.b16 %v4931
      %v5024 = vunpack.c.l.b16 %v4932
      %v5025 = vunpack.c.h.b16 %v4932
      %v5026 = vunpack.c.l.b16 %v4933
      %v5027 = vunpack.c.h.b16 %v4933
      %v5028 = vunpack.c.l.b16 %v4934
      %v5029 = vunpack.c.h.b16 %v4934
      %v5030 = vunpack.c.l.b16 %v4935
      %v5031 = vunpack.c.h.b16 %v4935
      %v5032 = vunpack.c.l.b16 %v4936
      %v5033 = vunpack.c.h.b16 %v4936
      %v5034 = vunpack.c.l.b16 %v4937
      %v5035 = vunpack.c.h.b16 %v4937
      %v5036 = vunpack.c.l.b16 %v4938
      %v5037 = vunpack.c.h.b16 %v4938
      %v5038 = vunpack.c.l.b16 %v4939
      %v5039 = vunpack.c.h.b16 %v4939
      %v5040 = vunpack.c.l.b16 %v4940
      %v5041 = vunpack.c.h.b16 %v4940
      %v5042 = vunpack.c.l.b16 %v4941
      %v5043 = vunpack.c.h.b16 %v4941
      %v5044 = vunpack.c.l.b16 %v4942
      %v5045 = vunpack.c.h.b16 %v4942
      %v5046 = vunpack.c.l.b16 %v4943
      %v5047 = vunpack.c.h.b16 %v4943
      %v5048 = vunpack.c.l.b16 %v4944
      %v5049 = vunpack.c.h.b16 %v4944
      %v5050 = vunpack.c.l.b16 %v4945
      %v5051 = vunpack.c.h.b16 %v4945
      %v5052 = vunpack.c.l.b16 %v4946
      %v5053 = vunpack.c.h.b16 %v4946
      %v5054 = vunpack.c.l.b16 %v4947
      %v5055 = vunpack.c.h.b16 %v4947
      %v5056 = vunpack.c.l.b16 %v4948
      %v5057 = vunpack.c.h.b16 %v4948
      %v5058 = vunpack.c.l.b16 %v4949
      %v5059 = vunpack.c.h.b16 %v4949
      %v5060 = vunpack.c.l.b16 %v4950
      %v5061 = vunpack.c.h.b16 %v4950
      %v5062 = vunpack.c.l.b16 %v4951
      %v5063 = vunpack.c.h.b16 %v4951
      %v5064 = vunpack.c.l.b16 %v4952
      %v5065 = vunpack.c.h.b16 %v4952
      %v5066 = vunpack.c.l.b16 %v4953
      %v5067 = vunpack.c.h.b16 %v4953
      %v5068 = vunpack.c.l.b16 %v4954
      %v5069 = vunpack.c.h.b16 %v4954
      %v5070 = vunpack.c.l.b16 %v4955
      %v5071 = vunpack.c.h.b16 %v4955
      %v5072 = vunpack.c.l.b16 %v4956
      %v5073 = vunpack.c.h.b16 %v4956
      %v5074 = vunpack.c.l.b16 %v4957
      %v5075 = vunpack.c.h.b16 %v4957
      %v5076 = vpack.c.b16 %v5016, %v5012
      %v5077 = vpack.c.b16 %v5017, %v5013
      %v5078 = vpack.c.b16 %v5018, %v5014
      %v5079 = vpack.c.b16 %v5019, %v5015
      %v5080 = vpack.c.b16 %v5024, %v5020
      %v5081 = vpack.c.b16 %v5025, %v5021
      %v5082 = vpack.c.b16 %v5026, %v5022
      %v5083 = vpack.c.b16 %v5027, %v5023
      %v5084 = vpack.c.b16 %v5032, %v5028
      %v5085 = vpack.c.b16 %v5033, %v5029
      %v5086 = vpack.c.b16 %v5034, %v5030
      %v5087 = vpack.c.b16 %v5035, %v5031
      %v5088 = vpack.c.b16 %v5040, %v5036
      %v5089 = vpack.c.b16 %v5041, %v5037
      %v5090 = vpack.c.b16 %v5042, %v5038
      %v5091 = vpack.c.b16 %v5043, %v5039
      %v5092 = vpack.c.b16 %v5048, %v5044
      %v5093 = vpack.c.b16 %v5049, %v5045
      %v5094 = vpack.c.b16 %v5050, %v5046
      %v5095 = vpack.c.b16 %v5051, %v5047
      %v5096 = vpack.c.b16 %v5056, %v5052
      %v5097 = vpack.c.b16 %v5057, %v5053
      %v5098 = vpack.c.b16 %v5058, %v5054
      %v5099 = vpack.c.b16 %v5059, %v5055
      %v5100 = vpack.c.b16 %v5064, %v5060
      %v5101 = vpack.c.b16 %v5065, %v5061
      %v5102 = vpack.c.b16 %v5066, %v5062
      %v5103 = vpack.c.b16 %v5067, %v5063
      %v5104 = vpack.c.b16 %v5072, %v5068
      %v5105 = vpack.c.b16 %v5073, %v5069
      %v5106 = vpack.c.b16 %v5074, %v5070
      %v5107 = vpack.c.b16 %v5075, %v5071
      %5140 = vmatprep.subr.bf16.mxu0 %v5077
      %5141 = vmatpush1.bf16.msra.mxu0 %v5076
      %5142 = vmatprep.subr.bf16.mxu0 %v5081
      %5143 = vmatpush1.bf16.msra.mxu0 %v5080
      %5144 = vmatprep.subr.bf16.mxu0 %v5085
      %5145 = vmatpush1.bf16.msra.mxu0 %v5084
      %5146 = vmatprep.subr.bf16.mxu0 %v5089
      %5147 = vmatpush1.bf16.msra.mxu0 %v5088
      %5148 = vmatprep.subr.bf16.mxu0 %v5093
      %5149 = vmatpush1.bf16.msra.mxu0 %v5092
      %5150 = vmatprep.subr.bf16.mxu0 %v5097
      %5151 = vmatpush1.bf16.msra.mxu0 %v5096
      %5152 = vmatprep.subr.bf16.mxu0 %v5101
      %5153 = vmatpush1.bf16.msra.mxu0 %v5100
      %5154 = vmatprep.subr.bf16.mxu0 %v5105
      %5155 = vmatpush1.bf16.msra.mxu0 %v5104
      %5156 = vmatprep.subr.bf16.mxu0 0
      %5157 = vmatpush1.bf16.msra.mxu0 0
      %5158 = vmatprep.subr.bf16.mxu0 0
      %5159 = vmatpush1.bf16.msra.mxu0 0
      %5160 = vmatprep.subr.bf16.mxu0 0
      %5161 = vmatpush1.bf16.msra.mxu0 0
      %5162 = vmatprep.subr.bf16.mxu0 0
      %5163 = vmatpush1.bf16.msra.mxu0 0
      %5164 = vmatprep.subr.bf16.mxu0 0
      %5165 = vmatpush1.bf16.msra.mxu0 0
      %5166 = vmatprep.subr.bf16.mxu0 0
      %5167 = vmatpush1.bf16.msra.mxu0 0
      %5168 = vmatprep.subr.bf16.mxu0 0
      %5169 = vmatpush1.bf16.msra.mxu0 0
      %5170 = vmatprep.subr.bf16.mxu0 0
      %5171 = vmatpush1.bf16.msra.mxu0 0
      %5172 = vmatprep.mubr.bf16.mxu0 0
      %5173 = vmatmul.mubr.bf16.gmra.mrb[0].mxu0 %v4910
      %v5174 = vpop.f32.mrb[0].mxu0
      %v5175 = vadd.f32 %v4963, %v5174
      %v5176 = vpop.f32.mrb[0].mxu0
      %v5177 = vadd.f32 %v4967, %v5176
      %v5178 = vpop.f32.mrb[0].mxu0
      %v5179 = vadd.f32 %v4963, %v5178
      %v5180 = vpop.f32.mrb[0].mxu0
      %v5181 = vadd.f32 %v4967, %v5180
      %5182 = vmatprep.mubr.bf16.mxu0 0
      %5183 = vmatmul.mubr.bf16.gmra.mrb[0].mxu0 %v4911
      %v5184 = vpop.f32.mrb[0].mxu0
      %v5185 = vadd.f32 %v4963, %v5184
      %v5186 = vpop.f32.mrb[0].mxu0
      %v5187 = vadd.f32 %v4967, %v5186
      %v5188 = vpop.f32.mrb[0].mxu0
      %v5189 = vadd.f32 %v4963, %v5188
      %v5190 = vpop.f32.mrb[0].mxu0
      %v5191 = vadd.f32 %v4967, %v5190
      %5192 = vmatprep.mubr.bf16.mxu0 0
      %5193 = vmatmul.mubr.bf16.gmra.mrb[0].mxu0 %v4912
      %v5194 = vpop.f32.mrb[0].mxu0
      %v5195 = vadd.f32 %v4963, %v5194
      %v5196 = vpop.f32.mrb[0].mxu0
      %v5197 = vadd.f32 %v4967, %v5196
      %v5198 = vpop.f32.mrb[0].mxu0
      %v5199 = vadd.f32 %v4963, %v5198
      %v5200 = vpop.f32.mrb[0].mxu0
      %v5201 = vadd.f32 %v4967, %v5200
      %5202 = vmatprep.mubr.bf16.mxu0 0
      %5203 = vmatmul.mubr.bf16.gmra.mrb[0].mxu0 %v4913
      %v5204 = vpop.f32.mrb[0].mxu0
      %v5205 = vadd.f32 %v4963, %v5204
      %v5206 = vpop.f32.mrb[0].mxu0
      %v5207 = vadd.f32 %v4967, %v5206
      %v5208 = vpop.f32.mrb[0].mxu0
      %v5209 = vadd.f32 %v4963, %v5208
      %v5210 = vpop.f32.mrb[0].mxu0
      %v5211 = vadd.f32 %v4967, %v5210
      %5212 = vmatprep.mubr.bf16.mxu0 0
      %5213 = vmatmul.mubr.bf16.gmra.mrb[0].mxu0 %v4914
      %v5214 = vpop.f32.mrb[0].mxu0
      %v5215 = vadd.f32 %v4963, %v5214
      %v5216 = vpop.f32.mrb[0].mxu0
      %v5217 = vadd.f32 %v4967, %v5216
      %v5218 = vpop.f32.mrb[0].mxu0
      %v5219 = vadd.f32 %v4963, %v5218
      %v5220 = vpop.f32.mrb[0].mxu0
      %v5221 = vadd.f32 %v4967, %v5220
      %5222 = vmatprep.mubr.bf16.mxu0 0
      %5223 = vmatmul.mubr.bf16.gmra.mrb[0].mxu0 %v4915
      %v5224 = vpop.f32.mrb[0].mxu0
      %v5225 = vadd.f32 %v4963, %v5224
      %v5226 = vpop.f32.mrb[0].mxu0
      %v5227 = vadd.f32 %v4967, %v5226
      %v5228 = vpop.f32.mrb[0].mxu0
      %v5229 = vadd.f32 %v4963, %v5228
      %v5230 = vpop.f32.mrb[0].mxu0
      %v5231 = vadd.f32 %v4967, %v5230
      %5232 = vmatprep.mubr.bf16.mxu0 0
      %5233 = vmatmul.mubr.bf16.gmra.mrb[0].mxu0 %v4916
      %v5234 = vpop.f32.mrb[0].mxu0
      %v5235 = vadd.f32 %v4963, %v5234
      %v5236 = vpop.f32.mrb[0].mxu0
      %v5237 = vadd.f32 %v4967, %v5236
      %v5238 = vpop.f32.mrb[0].mxu0
      %v5239 = vadd.f32 %v4963, %v5238
      %v5240 = vpop.f32.mrb[0].mxu0
      %v5241 = vadd.f32 %v4967, %v5240
      %5242 = vmatprep.mubr.bf16.mxu0 0
      %5243 = vmatmul.mubr.bf16.gmra.mrb[0].mxu0 %v4917
      %v5244 = vpop.f32.mrb[0].mxu0
      %v5245 = vadd.f32 %v4963, %v5244
      %v5246 = vpop.f32.mrb[0].mxu0
      %v5247 = vadd.f32 %v4967, %v5246
      %v5248 = vpop.f32.mrb[0].mxu0
      %v5249 = vadd.f32 %v4963, %v5248
      %v5250 = vpop.f32.mrb[0].mxu0
      %v5251 = vadd.f32 %v4967, %v5250
      %5252 = vmatprep.mubr.bf16.mxu0 0
      %5253 = vmatmul.mubr.bf16.gmra.mrb[0].mxu0 %v4918
      %v5254 = vpop.f32.mrb[0].mxu0
      %v5255 = vadd.f32 %v4963, %v5254
      %v5256 = vpop.f32.mrb[0].mxu0
      %v5257 = vadd.f32 %v4967, %v5256
      %v5258 = vpop.f32.mrb[0].mxu0
      %v5259 = vadd.f32 %v4963, %v5258
      %v5260 = vpop.f32.mrb[0].mxu0
      %v5261 = vadd.f32 %v4967, %v5260
      %5262 = vmatprep.mubr.bf16.mxu0 0
      %5263 = vmatmul.mubr.bf16.gmra.mrb[0].mxu0 %v4919
      %v5264 = vpop.f32.mrb[0].mxu0
      %v5265 = vadd.f32 %v4963, %v5264
      %v5266 = vpop.f32.mrb[0].mxu0
      %v5267 = vadd.f32 %v4967, %v5266
      %v5268 = vpop.f32.mrb[0].mxu0
      %v5269 = vadd.f32 %v4963, %v5268
      %v5270 = vpop.f32.mrb[0].mxu0
      %v5271 = vadd.f32 %v4967, %v5270
      %5272 = vmatprep.mubr.bf16.mxu0 0
      %5273 = vmatmul.mubr.bf16.gmra.mrb[0].mxu0 %v4920
      %v5274 = vpop.f32.mrb[0].mxu0
      %v5275 = vadd.f32 %v4963, %v5274
      %v5276 = vpop.f32.mrb[0].mxu0
      %v5277 = vadd.f32 %v4967, %v5276
      %v5278 = vpop.f32.mrb[0].mxu0
      %v5279 = vadd.f32 %v4963, %v5278
      %v5280 = vpop.f32.mrb[0].mxu0
      %v5281 = vadd.f32 %v4967, %v5280
      %5282 = vmatprep.mubr.bf16.mxu0 0
      %5283 = vmatmul.mubr.bf16.gmra.mrb[0].mxu0 %v4921
      %v5284 = vpop.f32.mrb[0].mxu0
      %v5285 = vadd.f32 %v4963, %v5284
      %v5286 = vpop.f32.mrb[0].mxu0
      %v5287 = vadd.f32 %v4967, %v5286
      %v5288 = vpop.f32.mrb[0].mxu0
      %v5289 = vadd.f32 %v4963, %v5288
      %v5290 = vpop.f32.mrb[0].mxu0
      %v5291 = vadd.f32 %v4967, %v5290
      %5292 = vmatprep.mubr.bf16.mxu0 0
      %5293 = vmatmul.mubr.bf16.gmra.mrb[0].mxu0 %v4922
      %v5294 = vpop.f32.mrb[0].mxu0
      %v5295 = vadd.f32 %v4963, %v5294
      %v5296 = vpop.f32.mrb[0].mxu0
      %v5297 = vadd.f32 %v4967, %v5296
      %v5298 = vpop.f32.mrb[0].mxu0
      %v5299 = vadd.f32 %v4963, %v5298
      %v5300 = vpop.f32.mrb[0].mxu0
      %v5301 = vadd.f32 %v4967, %v5300
      %5302 = vmatprep.mubr.bf16.mxu0 0
      %5303 = vmatmul.mubr.bf16.gmra.mrb[0].mxu0 %v4923
      %v5304 = vpop.f32.mrb[0].mxu0
      %v5305 = vadd.f32 %v4963, %v5304
      %v5306 = vpop.f32.mrb[0].mxu0
      %v5307 = vadd.f32 %v4967, %v5306
      %v5308 = vpop.f32.mrb[0].mxu0
      %v5309 = vadd.f32 %v4963, %v5308
      %v5310 = vpop.f32.mrb[0].mxu0
      %v5311 = vadd.f32 %v4967, %v5310
      %5312 = vmatprep.mubr.bf16.mxu0 0
      %5313 = vmatmul.mubr.bf16.gmra.mrb[0].mxu0 %v4924
      %v5314 = vpop.f32.mrb[0].mxu0
      %v5315 = vadd.f32 %v4963, %v5314
      %v5316 = vpop.f32.mrb[0].mxu0
      %v5317 = vadd.f32 %v4967, %v5316
      %v5318 = vpop.f32.mrb[0].mxu0
      %v5319 = vadd.f32 %v4963, %v5318
      %v5320 = vpop.f32.mrb[0].mxu0
      %v5321 = vadd.f32 %v4967, %v5320
      %5322 = vmatprep.mubr.bf16.mxu0 0
      %5323 = vmatmul.mubr.bf16.gmra.mrb[0].mxu0 %v4925
      %v5324 = vpop.f32.mrb[0].mxu0
      %v5325 = vadd.f32 %v4963, %v5324
      %v5326 = vpop.f32.mrb[0].mxu0
      %v5327 = vadd.f32 %v4967, %v5326
      %v5328 = vpop.f32.mrb[0].mxu0
      %v5329 = vadd.f32 %v4963, %v5328
      %v5330 = vpop.f32.mrb[0].mxu0
      %v5331 = vadd.f32 %v4967, %v5330
      %5332 = vdwg.mxu0
      %5333 = vmatprep.subr.bf16.mxu0 %v5079
      %5334 = vmatpush1.bf16.msra.mxu0 %v5078
      %5335 = vmatprep.subr.bf16.mxu0 %v5083
      %5336 = vmatpush1.bf16.msra.mxu0 %v5082
      %5337 = vmatprep.subr.bf16.mxu0 %v5087
      %5338 = vmatpush1.bf16.msra.mxu0 %v5086
      %5339 = vmatprep.subr.bf16.mxu0 %v5091
      %5340 = vmatpush1.bf16.msra.mxu0 %v5090
      %5341 = vmatprep.subr.bf16.mxu0 %v5095
      %5342 = vmatpush1.bf16.msra.mxu0 %v5094
      %5343 = vmatprep.subr.bf16.mxu0 %v5099
      %5344 = vmatpush1.bf16.msra.mxu0 %v5098
      %5345 = vmatprep.subr.bf16.mxu0 %v5103
      %5346 = vmatpush1.bf16.msra.mxu0 %v5102
      %5347 = vmatprep.subr.bf16.mxu0 %v5107
      %5348 = vmatpush1.bf16.msra.mxu0 %v5106
      %5349 = vmatprep.subr.bf16.mxu0 0
      %5350 = vmatpush1.bf16.msra.mxu0 0
      %5351 = vmatprep.subr.bf16.mxu0 0
      %5352 = vmatpush1.bf16.msra.mxu0 0
      %5353 = vmatprep.subr.bf16.mxu0 0
      %5354 = vmatpush1.bf16.msra.mxu0 0
      %5355 = vmatprep.subr.bf16.mxu0 0
      %5356 = vmatpush1.bf16.msra.mxu0 0
      %5357 = vmatprep.subr.bf16.mxu0 0
      %5358 = vmatpush1.bf16.msra.mxu0 0
      %5359 = vmatprep.subr.bf16.mxu0 0
      %5360 = vmatpush1.bf16.msra.mxu0 0
      %5361 = vmatprep.subr.bf16.mxu0 0
      %5362 = vmatpush1.bf16.msra.mxu0 0
      %5363 = vmatprep.subr.bf16.mxu0 0
      %5364 = vmatpush1.bf16.msra.mxu0 0
      %5365 = vmatprep.mubr.bf16.mxu0 0
      %5366 = vmatmul.mubr.bf16.gmra.mrb[0].mxu0 %v4910
      %v5367 = vpop.f32.mrb[0].mxu0
      %v5368 = vadd.f32 %v4971, %v5367
      %v5369 = vpop.f32.mrb[0].mxu0
      %v5370 = vadd.f32 %v4975, %v5369
      %v5371 = vpop.f32.mrb[0].mxu0
      %v5372 = vadd.f32 %v4971, %v5371
      %v5373 = vpop.f32.mrb[0].mxu0
      %v5374 = vadd.f32 %v4975, %v5373
      %5375 = vmatprep.mubr.bf16.mxu0 0
      %5376 = vmatmul.mubr.bf16.gmra.mrb[0].mxu0 %v4911
      %v5377 = vpop.f32.mrb[0].mxu0
      %v5378 = vadd.f32 %v4971, %v5377
      %v5379 = vpop.f32.mrb[0].mxu0
      %v5380 = vadd.f32 %v4975, %v5379
      %v5381 = vpop.f32.mrb[0].mxu0
      %v5382 = vadd.f32 %v4971, %v5381
      %v5383 = vpop.f32.mrb[0].mxu0
      %v5384 = vadd.f32 %v4975, %v5383
      %5385 = vmatprep.mubr.bf16.mxu0 0
      %5386 = vmatmul.mubr.bf16.gmra.mrb[0].mxu0 %v4912
      %v5387 = vpop.f32.mrb[0].mxu0
      %v5388 = vadd.f32 %v4971, %v5387
      %v5389 = vpop.f32.mrb[0].mxu0
      %v5390 = vadd.f32 %v4975, %v5389
      %v5391 = vpop.f32.mrb[0].mxu0
      %v5392 = vadd.f32 %v4971, %v5391
      %v5393 = vpop.f32.mrb[0].mxu0
      %v5394 = vadd.f32 %v4975, %v5393
      %5395 = vmatprep.mubr.bf16.mxu0 0
      %5396 = vmatmul.mubr.bf16.gmra.mrb[0].mxu0 %v4913
      %v5397 = vpop.f32.mrb[0].mxu0
      %v5398 = vadd.f32 %v4971, %v5397
      %v5399 = vpop.f32.mrb[0].mxu0
      %v5400 = vadd.f32 %v4975, %v5399
      %v5401 = vpop.f32.mrb[0].mxu0
      %v5402 = vadd.f32 %v4971, %v5401
      %v5403 = vpop.f32.mrb[0].mxu0
      %v5404 = vadd.f32 %v4975, %v5403
      %5405 = vmatprep.mubr.bf16.mxu0 0
      %5406 = vmatmul.mubr.bf16.gmra.mrb[0].mxu0 %v4914
      %v5407 = vpop.f32.mrb[0].mxu0
      %v5408 = vadd.f32 %v4971, %v5407
      %v5409 = vpop.f32.mrb[0].mxu0
      %v5410 = vadd.f32 %v4975, %v5409
      %v5411 = vpop.f32.mrb[0].mxu0
      %v5412 = vadd.f32 %v4971, %v5411
      %v5413 = vpop.f32.mrb[0].mxu0
      %v5414 = vadd.f32 %v4975, %v5413
      %5415 = vmatprep.mubr.bf16.mxu0 0
      %5416 = vmatmul.mubr.bf16.gmra.mrb[0].mxu0 %v4915
      %v5417 = vpop.f32.mrb[0].mxu0
      %v5418 = vadd.f32 %v4971, %v5417
      %v5419 = vpop.f32.mrb[0].mxu0
      %v5420 = vadd.f32 %v4975, %v5419
      %v5421 = vpop.f32.mrb[0].mxu0
      %v5422 = vadd.f32 %v4971, %v5421
      %v5423 = vpop.f32.mrb[0].mxu0
      %v5424 = vadd.f32 %v4975, %v5423
      %5425 = vmatprep.mubr.bf16.mxu0 0
      %5426 = vmatmul.mubr.bf16.gmra.mrb[0].mxu0 %v4916
      %v5427 = vpop.f32.mrb[0].mxu0
      %v5428 = vadd.f32 %v4971, %v5427
      %v5429 = vpop.f32.mrb[0].mxu0
      %v5430 = vadd.f32 %v4975, %v5429
      %v5431 = vpop.f32.mrb[0].mxu0
      %v5432 = vadd.f32 %v4971, %v5431
      %v5433 = vpop.f32.mrb[0].mxu0
      %v5434 = vadd.f32 %v4975, %v5433
      %5435 = vmatprep.mubr.bf16.mxu0 0
      %5436 = vmatmul.mubr.bf16.gmra.mrb[0].mxu0 %v4917
      %v5437 = vpop.f32.mrb[0].mxu0
      %v5438 = vadd.f32 %v4971, %v5437
      %v5439 = vpop.f32.mrb[0].mxu0
      %v5440 = vadd.f32 %v4975, %v5439
      %v5441 = vpop.f32.mrb[0].mxu0
      %v5442 = vadd.f32 %v4971, %v5441
      %v5443 = vpop.f32.mrb[0].mxu0
      %v5444 = vadd.f32 %v4975, %v5443
      %5445 = vmatprep.mubr.bf16.mxu0 0
      %5446 = vmatmul.mubr.bf16.gmra.mrb[0].mxu0 %v4918
      %v5447 = vpop.f32.mrb[0].mxu0
      %v5448 = vadd.f32 %v4971, %v5447
      %v5449 = vpop.f32.mrb[0].mxu0
      %v5450 = vadd.f32 %v4975, %v5449
      %v5451 = vpop.f32.mrb[0].mxu0
      %v5452 = vadd.f32 %v4971, %v5451
      %v5453 = vpop.f32.mrb[0].mxu0
      %v5454 = vadd.f32 %v4975, %v5453
      %5455 = vmatprep.mubr.bf16.mxu0 0
      %5456 = vmatmul.mubr.bf16.gmra.mrb[0].mxu0 %v4919
      %v5457 = vpop.f32.mrb[0].mxu0
      %v5458 = vadd.f32 %v4971, %v5457
      %v5459 = vpop.f32.mrb[0].mxu0
      %v5460 = vadd.f32 %v4975, %v5459
      %v5461 = vpop.f32.mrb[0].mxu0
      %v5462 = vadd.f32 %v4971, %v5461
      %v5463 = vpop.f32.mrb[0].mxu0
      %v5464 = vadd.f32 %v4975, %v5463
      %5465 = vmatprep.mubr.bf16.mxu0 0
      %5466 = vmatmul.mubr.bf16.gmra.mrb[0].mxu0 %v4920
      %v5467 = vpop.f32.mrb[0].mxu0
      %v5468 = vadd.f32 %v4971, %v5467
      %v5469 = vpop.f32.mrb[0].mxu0
      %v5470 = vadd.f32 %v4975, %v5469
      %v5471 = vpop.f32.mrb[0].mxu0
      %v5472 = vadd.f32 %v4971, %v5471
      %v5473 = vpop.f32.mrb[0].mxu0
      %v5474 = vadd.f32 %v4975, %v5473
      %5475 = vmatprep.mubr.bf16.mxu0 0
      %5476 = vmatmul.mubr.bf16.gmra.mrb[0].mxu0 %v4921
      %v5477 = vpop.f32.mrb[0].mxu0
      %v5478 = vadd.f32 %v4971, %v5477
      %v5479 = vpop.f32.mrb[0].mxu0
      %v5480 = vadd.f32 %v4975, %v5479
      %v5481 = vpop.f32.mrb[0].mxu0
      %v5482 = vadd.f32 %v4971, %v5481
      %v5483 = vpop.f32.mrb[0].mxu0
      %v5484 = vadd.f32 %v4975, %v5483
      %5485 = vmatprep.mubr.bf16.mxu0 0
      %5486 = vmatmul.mubr.bf16.gmra.mrb[0].mxu0 %v4922
      %v5487 = vpop.f32.mrb[0].mxu0
      %v5488 = vadd.f32 %v4971, %v5487
      %v5489 = vpop.f32.mrb[0].mxu0
      %v5490 = vadd.f32 %v4975, %v5489
      %v5491 = vpop.f32.mrb[0].mxu0
      %v5492 = vadd.f32 %v4971, %v5491
      %v5493 = vpop.f32.mrb[0].mxu0
      %v5494 = vadd.f32 %v4975, %v5493
      %5495 = vmatprep.mubr.bf16.mxu0 0
      %5496 = vmatmul.mubr.bf16.gmra.mrb[0].mxu0 %v4923
      %v5497 = vpop.f32.mrb[0].mxu0
      %v5498 = vadd.f32 %v4971, %v5497
      %v5499 = vpop.f32.mrb[0].mxu0
      %v5500 = vadd.f32 %v4975, %v5499
      %v5501 = vpop.f32.mrb[0].mxu0
      %v5502 = vadd.f32 %v4971, %v5501
      %v5503 = vpop.f32.mrb[0].mxu0
      %v5504 = vadd.f32 %v4975, %v5503
      %5505 = vmatprep.mubr.bf16.mxu0 0
      %5506 = vmatmul.mubr.bf16.gmra.mrb[0].mxu0 %v4924
      %v5507 = vpop.f32.mrb[0].mxu0
      %v5508 = vadd.f32 %v4971, %v5507
      %v5509 = vpop.f32.mrb[0].mxu0
      %v5510 = vadd.f32 %v4975, %v5509
      %v5511 = vpop.f32.mrb[0].mxu0
      %v5512 = vadd.f32 %v4971, %v5511
      %v5513 = vpop.f32.mrb[0].mxu0
      %v5514 = vadd.f32 %v4975, %v5513
      %5515 = vmatprep.mubr.bf16.mxu0 0
      %5516 = vmatmul.mubr.bf16.gmra.mrb[0].mxu0 %v4925
      %v5517 = vpop.f32.mrb[0].mxu0
      %v5518 = vadd.f32 %v4971, %v5517
      %v5519 = vpop.f32.mrb[0].mxu0
      %v5520 = vadd.f32 %v4975, %v5519
      %v5521 = vpop.f32.mrb[0].mxu0
      %v5522 = vadd.f32 %v4971, %v5521
      %v5523 = vpop.f32.mrb[0].mxu0
      %v5524 = vadd.f32 %v4975, %v5523
      %5525 = vdwg.mxu0
      %v5526 = vmax.f32 %v5175, 0.0
      %v5527 = vmax.f32 %v5177, 0.0
      %v5528 = vmax.f32 %v5368, 0.0
      %v5529 = vmax.f32 %v5370, 0.0
      %v5530 = vmax.f32 %v5179, 0.0
      %v5531 = vmax.f32 %v5181, 0.0
      %v5532 = vmax.f32 %v5372, 0.0
      %v5533 = vmax.f32 %v5374, 0.0
      %v5534 = vmax.f32 %v5185, 0.0
      %v5535 = vmax.f32 %v5187, 0.0
      %v5536 = vmax.f32 %v5378, 0.0
      %v5537 = vmax.f32 %v5380, 0.0
      %v5538 = vmax.f32 %v5189, 0.0
      %v5539 = vmax.f32 %v5191, 0.0
      %v5540 = vmax.f32 %v5382, 0.0
      %v5541 = vmax.f32 %v5384, 0.0
      %v5542 = vmax.f32 %v5195, 0.0
      %v5543 = vmax.f32 %v5197, 0.0
      %v5544 = vmax.f32 %v5388, 0.0
      %v5545 = vmax.f32 %v5390, 0.0
      %v5546 = vmax.f32 %v5199, 0.0
      %v5547 = vmax.f32 %v5201, 0.0
      %v5548 = vmax.f32 %v5392, 0.0
      %v5549 = vmax.f32 %v5394, 0.0
      %v5550 = vmax.f32 %v5205, 0.0
      %v5551 = vmax.f32 %v5207, 0.0
      %v5552 = vmax.f32 %v5398, 0.0
      %v5553 = vmax.f32 %v5400, 0.0
      %v5554 = vmax.f32 %v5209, 0.0
      %v5555 = vmax.f32 %v5211, 0.0
      %v5556 = vmax.f32 %v5402, 0.0
      %v5557 = vmax.f32 %v5404, 0.0
      %v5558 = vmax.f32 %v5215, 0.0
      %v5559 = vmax.f32 %v5217, 0.0
      %v5560 = vmax.f32 %v5408, 0.0
      %v5561 = vmax.f32 %v5410, 0.0
      %v5562 = vmax.f32 %v5219, 0.0
      %v5563 = vmax.f32 %v5221, 0.0
      %v5564 = vmax.f32 %v5412, 0.0
      %v5565 = vmax.f32 %v5414, 0.0
      %v5566 = vmax.f32 %v5225, 0.0
      %v5567 = vmax.f32 %v5227, 0.0
      %v5568 = vmax.f32 %v5418, 0.0
      %v5569 = vmax.f32 %v5420, 0.0
      %v5570 = vmax.f32 %v5229, 0.0
      %v5571 = vmax.f32 %v5231, 0.0
      %v5572 = vmax.f32 %v5422, 0.0
      %v5573 = vmax.f32 %v5424, 0.0
      %v5574 = vmax.f32 %v5235, 0.0
      %v5575 = vmax.f32 %v5237, 0.0
      %v5576 = vmax.f32 %v5428, 0.0
      %v5577 = vmax.f32 %v5430, 0.0
      %v5578 = vmax.f32 %v5239, 0.0
      %v5579 = vmax.f32 %v5241, 0.0
      %v5580 = vmax.f32 %v5432, 0.0
      %v5581 = vmax.f32 %v5434, 0.0
      %v5582 = vmax.f32 %v5245, 0.0
      %v5583 = vmax.f32 %v5247, 0.0
      %v5584 = vmax.f32 %v5438, 0.0
      %v5585 = vmax.f32 %v5440, 0.0
      %v5586 = vmax.f32 %v5249, 0.0
      %v5587 = vmax.f32 %v5251, 0.0
      %v5588 = vmax.f32 %v5442, 0.0
      %v5589 = vmax.f32 %v5444, 0.0
      %v5590 = vmax.f32 %v5255, 0.0
      %v5591 = vmax.f32 %v5257, 0.0
      %v5592 = vmax.f32 %v5448, 0.0
      %v5593 = vmax.f32 %v5450, 0.0
      %v5594 = vmax.f32 %v5259, 0.0
      %v5595 = vmax.f32 %v5261, 0.0
      %v5596 = vmax.f32 %v5452, 0.0
      %v5597 = vmax.f32 %v5454, 0.0
      %v5598 = vmax.f32 %v5265, 0.0
      %v5599 = vmax.f32 %v5267, 0.0
      %v5600 = vmax.f32 %v5458, 0.0
      %v5601 = vmax.f32 %v5460, 0.0
      %v5602 = vmax.f32 %v5269, 0.0
      %v5603 = vmax.f32 %v5271, 0.0
      %v5604 = vmax.f32 %v5462, 0.0
      %v5605 = vmax.f32 %v5464, 0.0
      %v5606 = vmax.f32 %v5275, 0.0
      %v5607 = vmax.f32 %v5277, 0.0
      %v5608 = vmax.f32 %v5468, 0.0
      %v5609 = vmax.f32 %v5470, 0.0
      %v5610 = vmax.f32 %v5279, 0.0
      %v5611 = vmax.f32 %v5281, 0.0
      %v5612 = vmax.f32 %v5472, 0.0
      %v5613 = vmax.f32 %v5474, 0.0
      %v5614 = vmax.f32 %v5285, 0.0
      %v5615 = vmax.f32 %v5287, 0.0
      %v5616 = vmax.f32 %v5478, 0.0
      %v5617 = vmax.f32 %v5480, 0.0
      %v5618 = vmax.f32 %v5289, 0.0
      %v5619 = vmax.f32 %v5291, 0.0
      %v5620 = vmax.f32 %v5482, 0.0
      %v5621 = vmax.f32 %v5484, 0.0
      %v5622 = vmax.f32 %v5295, 0.0
      %v5623 = vmax.f32 %v5297, 0.0
      %v5624 = vmax.f32 %v5488, 0.0
      %v5625 = vmax.f32 %v5490, 0.0
      %v5626 = vmax.f32 %v5299, 0.0
      %v5627 = vmax.f32 %v5301, 0.0
      %v5628 = vmax.f32 %v5492, 0.0
      %v5629 = vmax.f32 %v5494, 0.0
      %v5630 = vmax.f32 %v5305, 0.0
      %v5631 = vmax.f32 %v5307, 0.0
      %v5632 = vmax.f32 %v5498, 0.0
      %v5633 = vmax.f32 %v5500, 0.0
      %v5634 = vmax.f32 %v5309, 0.0
      %v5635 = vmax.f32 %v5311, 0.0
      %v5636 = vmax.f32 %v5502, 0.0
      %v5637 = vmax.f32 %v5504, 0.0
      %v5638 = vmax.f32 %v5315, 0.0
      %v5639 = vmax.f32 %v5317, 0.0
      %v5640 = vmax.f32 %v5508, 0.0
      %v5641 = vmax.f32 %v5510, 0.0
      %v5642 = vmax.f32 %v5319, 0.0
      %v5643 = vmax.f32 %v5321, 0.0
      %v5644 = vmax.f32 %v5512, 0.0
      %v5645 = vmax.f32 %v5514, 0.0
      %v5646 = vmax.f32 %v5325, 0.0
      %v5647 = vmax.f32 %v5327, 0.0
      %v5648 = vmax.f32 %v5518, 0.0
      %v5649 = vmax.f32 %v5520, 0.0
      %v5650 = vmax.f32 %v5329, 0.0
      %v5651 = vmax.f32 %v5331, 0.0
      %v5652 = vmax.f32 %v5522, 0.0
      %v5653 = vmax.f32 %v5524, 0.0
      %v5654 = vpack.c.bf16 %v5530, %v5526
      %v5655 = vpack.c.bf16 %v5531, %v5527
      %v5656 = vpack.c.bf16 %v5532, %v5528
      %v5657 = vpack.c.bf16 %v5533, %v5529
      %v5658 = vpack.c.bf16 %v5538, %v5534
      %v5659 = vpack.c.bf16 %v5539, %v5535
      %v5660 = vpack.c.bf16 %v5540, %v5536
      %v5661 = vpack.c.bf16 %v5541, %v5537
      %v5662 = vpack.c.bf16 %v5546, %v5542
      %v5663 = vpack.c.bf16 %v5547, %v5543
      %v5664 = vpack.c.bf16 %v5548, %v5544
      %v5665 = vpack.c.bf16 %v5549, %v5545
      %v5666 = vpack.c.bf16 %v5554, %v5550
      %v5667 = vpack.c.bf16 %v5555, %v5551
      %v5668 = vpack.c.bf16 %v5556, %v5552
      %v5669 = vpack.c.bf16 %v5557, %v5553
      %v5670 = vpack.c.bf16 %v5562, %v5558
      %v5671 = vpack.c.bf16 %v5563, %v5559
      %v5672 = vpack.c.bf16 %v5564, %v5560
      %v5673 = vpack.c.bf16 %v5565, %v5561
      %v5674 = vpack.c.bf16 %v5570, %v5566
      %v5675 = vpack.c.bf16 %v5571, %v5567
      %v5676 = vpack.c.bf16 %v5572, %v5568
      %v5677 = vpack.c.bf16 %v5573, %v5569
      %v5678 = vpack.c.bf16 %v5578, %v5574
      %v5679 = vpack.c.bf16 %v5579, %v5575
      %v5680 = vpack.c.bf16 %v5580, %v5576
      %v5681 = vpack.c.bf16 %v5581, %v5577
      %v5682 = vpack.c.bf16 %v5586, %v5582
      %v5683 = vpack.c.bf16 %v5587, %v5583
      %v5684 = vpack.c.bf16 %v5588, %v5584
      %v5685 = vpack.c.bf16 %v5589, %v5585
      %v5686 = vpack.c.bf16 %v5594, %v5590
      %v5687 = vpack.c.bf16 %v5595, %v5591
      %v5688 = vpack.c.bf16 %v5596, %v5592
      %v5689 = vpack.c.bf16 %v5597, %v5593
      %v5690 = vpack.c.bf16 %v5602, %v5598
      %v5691 = vpack.c.bf16 %v5603, %v5599
      %v5692 = vpack.c.bf16 %v5604, %v5600
      %v5693 = vpack.c.bf16 %v5605, %v5601
      %v5694 = vpack.c.bf16 %v5610, %v5606
      %v5695 = vpack.c.bf16 %v5611, %v5607
      %v5696 = vpack.c.bf16 %v5612, %v5608
      %v5697 = vpack.c.bf16 %v5613, %v5609
      %v5698 = vpack.c.bf16 %v5618, %v5614
      %v5699 = vpack.c.bf16 %v5619, %v5615
      %v5700 = vpack.c.bf16 %v5620, %v5616
      %v5701 = vpack.c.bf16 %v5621, %v5617
      %v5702 = vpack.c.bf16 %v5626, %v5622
      %v5703 = vpack.c.bf16 %v5627, %v5623
      %v5704 = vpack.c.bf16 %v5628, %v5624
      %v5705 = vpack.c.bf16 %v5629, %v5625
      %v5706 = vpack.c.bf16 %v5634, %v5630
      %v5707 = vpack.c.bf16 %v5635, %v5631
      %v5708 = vpack.c.bf16 %v5636, %v5632
      %v5709 = vpack.c.bf16 %v5637, %v5633
      %v5710 = vpack.c.bf16 %v5642, %v5638
      %v5711 = vpack.c.bf16 %v5643, %v5639
      %v5712 = vpack.c.bf16 %v5644, %v5640
      %v5713 = vpack.c.bf16 %v5645, %v5641
      %v5714 = vpack.c.bf16 %v5650, %v5646
      %v5715 = vpack.c.bf16 %v5651, %v5647
      %v5716 = vpack.c.bf16 %v5652, %v5648
      %v5717 = vpack.c.bf16 %v5653, %v5649
      %v5718 = vld [vmem:[%s8] sm:$0xff]
      %v5719 = vld [vmem:[%s8 + $0x8] sm:$0xff]
      %v5720 = vld [vmem:[%s8 + $0x10] sm:$0xff]
      %v5721 = vld [vmem:[%s8 + $0x18] sm:$0xf]
      %v5722 = vld [vmem:[%s8 + $0x1c] sm:$0xff]
      %v5723 = vld [vmem:[%s8 + $0x24] sm:$0xff]
      %v5724 = vld [vmem:[%s8 + $0x2c] sm:$0xff]
      %v5725 = vld [vmem:[%s8 + $0x34] sm:$0xf]
      %v5726 = vld [vmem:[%s8 + $0x38] sm:$0xff]
      %v5727 = vld [vmem:[%s8 + $0x40] sm:$0xff]
      %v5728 = vld [vmem:[%s8 + $0x48] sm:$0xff]
      %v5729 = vld [vmem:[%s8 + $0x50] sm:$0xf]
      %v5730 = vld [vmem:[%s8 + $0x54] sm:$0xff]
      %v5731 = vld [vmem:[%s8 + $0x5c] sm:$0xff]
      %v5732 = vld [vmem:[%s8 + $0x64] sm:$0xff]
      %v5733 = vld [vmem:[%s8 + $0x6c] sm:$0xf]
      %v5734 = vld [vmem:[%s8 + $0x70] sm:$0xff]
      %v5735 = vld [vmem:[%s8 + $0x78] sm:$0xff]
      %v5736 = vld [vmem:[%s8 + $0x80] sm:$0xff]
      %v5737 = vld [vmem:[%s8 + $0x88] sm:$0xf]
      %v5738 = vld [vmem:[%s8 + $0x8c] sm:$0xff]
      %v5739 = vld [vmem:[%s8 + $0x94] sm:$0xff]
      %v5740 = vld [vmem:[%s8 + $0x9c] sm:$0xff]
      %v5741 = vld [vmem:[%s8 + $0xa4] sm:$0xf]
      %v5742 = vld [vmem:[%s8 + $0xa8] sm:$0xff]
      %v5743 = vld [vmem:[%s8 + $0xb0] sm:$0xff]
      %v5744 = vld [vmem:[%s8 + $0xb8] sm:$0xff]
      %v5745 = vld [vmem:[%s8 + $0xc0] sm:$0xf]
      %v5746 = vld [vmem:[%s8 + $0xc4] sm:$0xff]
      %v5747 = vld [vmem:[%s8 + $0xcc] sm:$0xff]
      %v5748 = vld [vmem:[%s8 + $0xd4] sm:$0xff]
      %v5749 = vld [vmem:[%s8 + $0xdc] sm:$0xf]
      %v5750 = vld [vmem:[%s8 + $0xe0] sm:$0xff]
      %v5751 = vld [vmem:[%s8 + $0xe8] sm:$0xff]
      %v5752 = vld [vmem:[%s8 + $0xf0] sm:$0xff]
      %v5753 = vld [vmem:[%s8 + $0xf8] sm:$0xf]
      %v5754 = vld [vmem:[%s8 + $0xfc] sm:$0xff]
      %v5755 = vld [vmem:[%s8 + $0x104] sm:$0xff]
      %v5756 = vld [vmem:[%s8 + $0x10c] sm:$0xff]
      %v5757 = vld [vmem:[%s8 + $0x114] sm:$0xf]
      %v5758 = vld [vmem:[%s8 + $0x118] sm:$0xff]
      %v5759 = vld [vmem:[%s8 + $0x120] sm:$0xff]
      %v5760 = vld [vmem:[%s8 + $0x128] sm:$0xff]
      %v5761 = vld [vmem:[%s8 + $0x130] sm:$0xf]
      %v5762 = vld [vmem:[%s8 + $0x134] sm:$0xff]
      %v5763 = vld [vmem:[%s8 + $0x13c] sm:$0xff]
      %v5764 = vld [vmem:[%s8 + $0x144] sm:$0xff]
      %v5765 = vld [vmem:[%s8 + $0x14c] sm:$0xf]
      %v5766 = vld [vmem:[%s8 + $0x150] sm:$0xff]
      %v5767 = vld [vmem:[%s8 + $0x158] sm:$0xff]
      %v5768 = vld [vmem:[%s8 + $0x160] sm:$0xff]
      %v5769 = vld [vmem:[%s8 + $0x168] sm:$0xf]
      %v5770 = vld [vmem:[%s8 + $0x16c] sm:$0xff]
      %v5771 = vld [vmem:[%s8 + $0x174] sm:$0xff]
      %v5772 = vld [vmem:[%s8 + $0x17c] sm:$0xff]
      %v5773 = vld [vmem:[%s8 + $0x184] sm:$0xf]
      %v5774 = vld [vmem:[%s8 + $0x188] sm:$0xff]
      %v5775 = vld [vmem:[%s8 + $0x190] sm:$0xff]
      %v5776 = vld [vmem:[%s8 + $0x198] sm:$0xff]
      %v5777 = vld [vmem:[%s8 + $0x1a0] sm:$0xf]
      %v5778 = vld [vmem:[%s8 + $0x1a4] sm:$0xff]
      %v5779 = vld [vmem:[%s8 + $0x1ac] sm:$0xff]
      %v5780 = vld [vmem:[%s8 + $0x1b4] sm:$0xff]
      %v5781 = vld [vmem:[%s8 + $0x1bc] sm:$0xf]
      %v5782 = vld [vmem:[%s8 + $0x1c0] sm:$0xff]
      %v5783 = vld [vmem:[%s8 + $0x1c8] sm:$0xff]
      %v5784 = vld [vmem:[%s8 + $0x1d0] sm:$0xff]
      %v5785 = vld [vmem:[%s8 + $0x1d8] sm:$0xf]
      %v5786 = vld [vmem:[%s8 + $0x1dc] sm:$0xff]
      %v5787 = vld [vmem:[%s8 + $0x1e4] sm:$0xff]
      %v5788 = vld [vmem:[%s8 + $0x1ec] sm:$0xff]
      %v5789 = vld [vmem:[%s8 + $0x1f4] sm:$0xf]
      %v5790 = vld [vmem:[%s8 + $0x1f8] sm:$0xff]
      %v5791 = vld [vmem:[%s8 + $0x200] sm:$0xff]
      %v5792 = vld [vmem:[%s8 + $0x208] sm:$0xff]
      %v5793 = vld [vmem:[%s8 + $0x210] sm:$0xf]
      %v5794 = vld [vmem:[%s8 + $0x214] sm:$0xff]
      %v5795 = vld [vmem:[%s8 + $0x21c] sm:$0xff]
      %v5796 = vld [vmem:[%s8 + $0x224] sm:$0xff]
      %v5797 = vld [vmem:[%s8 + $0x22c] sm:$0xf]
      %v5798 = vld [vmem:[%s8 + $0x230] sm:$0xff]
      %v5799 = vld [vmem:[%s8 + $0x238] sm:$0xff]
      %v5800 = vld [vmem:[%s8 + $0x240] sm:$0xff]
      %v5801 = vld [vmem:[%s8 + $0x248] sm:$0xf]
      %v5802 = vld [vmem:[%s8 + $0x24c] sm:$0xff]
      %v5803 = vld [vmem:[%s8 + $0x254] sm:$0xff]
      %v5804 = vld [vmem:[%s8 + $0x25c] sm:$0xff]
      %v5805 = vld [vmem:[%s8 + $0x264] sm:$0xf]
      %v5806 = vld [vmem:[%s8 + $0x268] sm:$0xff]
      %v5807 = vld [vmem:[%s8 + $0x270] sm:$0xff]
      %v5808 = vld [vmem:[%s8 + $0x278] sm:$0xff]
      %v5809 = vld [vmem:[%s8 + $0x280] sm:$0xf]
      %v5810 = vld [vmem:[%s8 + $0x284] sm:$0xff]
      %v5811 = vld [vmem:[%s8 + $0x28c] sm:$0xff]
      %v5812 = vld [vmem:[%s8 + $0x294] sm:$0xff]
      %v5813 = vld [vmem:[%s8 + $0x29c] sm:$0xf]
      %v5814 = vld [vmem:[%s8 + $0x2a0] sm:$0xff]
      %v5815 = vld [vmem:[%s8 + $0x2a8] sm:$0xff]
      %v5816 = vld [vmem:[%s8 + $0x2b0] sm:$0xff]
      %v5817 = vld [vmem:[%s8 + $0x2b8] sm:$0xf]
      %v5818 = vld [vmem:[%s8 + $0x2bc] sm:$0xff]
      %v5819 = vld [vmem:[%s8 + $0x2c4] sm:$0xff]
      %v5820 = vld [vmem:[%s8 + $0x2cc] sm:$0xff]
      %v5821 = vld [vmem:[%s8 + $0x2d4] sm:$0xf]
      %v5822 = vld [vmem:[%s8 + $0x2d8] sm:$0xff]
      %v5823 = vld [vmem:[%s8 + $0x2e0] sm:$0xff]
      %v5824 = vld [vmem:[%s8 + $0x2e8] sm:$0xff]
      %v5825 = vld [vmem:[%s8 + $0x2f0] sm:$0xf]
      %v5826 = vld [vmem:[%s8 + $0x2f4] sm:$0xff]
      %v5827 = vld [vmem:[%s8 + $0x2fc] sm:$0xff]
      %v5828 = vld [vmem:[%s8 + $0x304] sm:$0xff]
      %v5829 = vld [vmem:[%s8 + $0x30c] sm:$0xf]
      %v5830 = vld [vmem:[%s8 + $0x310] sm:$0xff]
      %v5831 = vld [vmem:[%s8 + $0x318] sm:$0xff]
      %v5832 = vld [vmem:[%s8 + $0x320] sm:$0xff]
      %v5833 = vld [vmem:[%s8 + $0x328] sm:$0xf]
      %v5834 = vld [vmem:[%s8 + $0x32c] sm:$0xff]
      %v5835 = vld [vmem:[%s8 + $0x334] sm:$0xff]
      %v5836 = vld [vmem:[%s8 + $0x33c] sm:$0xff]
      %v5837 = vld [vmem:[%s8 + $0x344] sm:$0xf]
      %v5838 = vld [vmem:[%s8 + $0x348] sm:$0xff]
      %v5839 = vld [vmem:[%s8 + $0x350] sm:$0xff]
      %v5840 = vld [vmem:[%s8 + $0x358] sm:$0xff]
      %v5841 = vld [vmem:[%s8 + $0x360] sm:$0xf]
      %v5842 = vld [vmem:[%s8 + $0x364] sm:$0xff]
      %v5843 = vld [vmem:[%s8 + $0x36c] sm:$0xff]
      %v5844 = vld [vmem:[%s8 + $0x374] sm:$0xff]
      %v5845 = vld [vmem:[%s8 + $0x37c] sm:$0xf]
      %v5846 = vld [vmem:[%s8 + $0x380] sm:$0xff]
      %v5847 = vld [vmem:[%s8 + $0x388] sm:$0xff]
      %v5848 = vld [vmem:[%s8 + $0x390] sm:$0xff]
      %v5849 = vld [vmem:[%s8 + $0x398] sm:$0xf]
      %v5850 = vld [vmem:[%s8 + $0x39c] sm:$0xff]
      %v5851 = vld [vmem:[%s8 + $0x3a4] sm:$0xff]
      %v5852 = vld [vmem:[%s8 + $0x3ac] sm:$0xff]
      %v5853 = vld [vmem:[%s8 + $0x3b4] sm:$0xf]
      %v5854 = vld [vmem:[%s8 + $0x3b8] sm:$0xff]
      %v5855 = vld [vmem:[%s8 + $0x3c0] sm:$0xff]
      %v5856 = vld [vmem:[%s8 + $0x3c8] sm:$0xff]
      %v5857 = vld [vmem:[%s8 + $0x3d0] sm:$0xf]
      %v5858 = vld [vmem:[%s8 + $0x3d4] sm:$0xff]
      %v5859 = vld [vmem:[%s8 + $0x3dc] sm:$0xff]
      %v5860 = vld [vmem:[%s8 + $0x3e4] sm:$0xff]
      %v5861 = vld [vmem:[%s8 + $0x3ec] sm:$0xf]
      %v5862 = vld [vmem:[%s8 + $0x3f0] sm:$0xff]
      %v5863 = vld [vmem:[%s8 + $0x3f8] sm:$0xff]
      %v5864 = vld [vmem:[%s8 + $0x400] sm:$0xff]
      %v5865 = vld [vmem:[%s8 + $0x408] sm:$0xf]
      %v5866 = vld [vmem:[%s8 + $0x40c] sm:$0xff]
      %v5867 = vld [vmem:[%s8 + $0x414] sm:$0xff]
      %v5868 = vld [vmem:[%s8 + $0x41c] sm:$0xff]
      %v5869 = vld [vmem:[%s8 + $0x424] sm:$0xf]
      %v5870 = vld [vmem:[%s8 + $0x428] sm:$0xff]
      %v5871 = vld [vmem:[%s8 + $0x430] sm:$0xff]
      %v5872 = vld [vmem:[%s8 + $0x438] sm:$0xff]
      %v5873 = vld [vmem:[%s8 + $0x440] sm:$0xf]
      %v5874 = vld [vmem:[%s8 + $0x444] sm:$0xff]
      %v5875 = vld [vmem:[%s8 + $0x44c] sm:$0xff]
      %v5876 = vld [vmem:[%s8 + $0x454] sm:$0xff]
      %v5877 = vld [vmem:[%s8 + $0x45c] sm:$0xf]
      %v5878 = vld [vmem:[%s8 + $0x460] sm:$0xff]
      %v5879 = vld [vmem:[%s8 + $0x468] sm:$0xff]
      %v5880 = vld [vmem:[%s8 + $0x470] sm:$0xff]
      %v5881 = vld [vmem:[%s8 + $0x478] sm:$0xf]
      %v5882 = vld [vmem:[%s8 + $0x47c] sm:$0xff]
      %v5883 = vld [vmem:[%s8 + $0x484] sm:$0xff]
      %v5884 = vld [vmem:[%s8 + $0x48c] sm:$0xff]
      %v5885 = vld [vmem:[%s8 + $0x494] sm:$0xf]
      %v5886 = vld [vmem:[%s8 + $0x498] sm:$0xff]
      %v5887 = vld [vmem:[%s8 + $0x4a0] sm:$0xff]
      %v5888 = vld [vmem:[%s8 + $0x4a8] sm:$0xff]
      %v5889 = vld [vmem:[%s8 + $0x4b0] sm:$0xf]
      %v5890 = vld [vmem:[%s8 + $0x4b4] sm:$0xff]
      %v5891 = vld [vmem:[%s8 + $0x4bc] sm:$0xff]
      %v5892 = vld [vmem:[%s8 + $0x4c4] sm:$0xff]
      %v5893 = vld [vmem:[%s8 + $0x4cc] sm:$0xf]
      %v5894 = vld [vmem:[%s8 + $0x4d0] sm:$0xff]
      %v5895 = vld [vmem:[%s8 + $0x4d8] sm:$0xff]
      %v5896 = vld [vmem:[%s8 + $0x4e0] sm:$0xff]
      %v5897 = vld [vmem:[%s8 + $0x4e8] sm:$0xf]
      %v5898 = vld [vmem:[%s8 + $0x4ec] sm:$0xff]
      %v5899 = vld [vmem:[%s8 + $0x4f4] sm:$0xff]
      %v5900 = vld [vmem:[%s8 + $0x4fc] sm:$0xff]
      %v5901 = vld [vmem:[%s8 + $0x504] sm:$0xf]
      %v5902 = vld [vmem:[%s8 + $0x508] sm:$0xff]
      %v5903 = vld [vmem:[%s8 + $0x510] sm:$0xff]
      %v5904 = vld [vmem:[%s8 + $0x518] sm:$0xff]
      %v5905 = vld [vmem:[%s8 + $0x520] sm:$0xf]
      %v5906 = vld [vmem:[%s8 + $0x524] sm:$0xff]
      %v5907 = vld [vmem:[%s8 + $0x52c] sm:$0xff]
      %v5908 = vld [vmem:[%s8 + $0x534] sm:$0xff]
      %v5909 = vld [vmem:[%s8 + $0x53c] sm:$0xf]
      %v5910 = vld [vmem:[%s8 + $0x540] sm:$0xff]
      %v5911 = vld [vmem:[%s8 + $0x548] sm:$0xff]
      %v5912 = vld [vmem:[%s8 + $0x550] sm:$0xff]
      %v5913 = vld [vmem:[%s8 + $0x558] sm:$0xf]
      %v5914 = vld [vmem:[%s8 + $0x55c] sm:$0xff]
      %v5915 = vld [vmem:[%s8 + $0x564] sm:$0xff]
      %v5916 = vld [vmem:[%s8 + $0x56c] sm:$0xff]
      %v5917 = vld [vmem:[%s8 + $0x574] sm:$0xf]
      %v5918 = vld [vmem:[%s8 + $0x578] sm:$0xff]
      %v5919 = vld [vmem:[%s8 + $0x580] sm:$0xff]
      %v5920 = vld [vmem:[%s8 + $0x588] sm:$0xff]
      %v5921 = vld [vmem:[%s8 + $0x590] sm:$0xf]
      %v5922 = vld [vmem:[%s8 + $0x594] sm:$0xff]
      %v5923 = vld [vmem:[%s8 + $0x59c] sm:$0xff]
      %v5924 = vld [vmem:[%s8 + $0x5a4] sm:$0xff]
      %v5925 = vld [vmem:[%s8 + $0x5ac] sm:$0xf]
      %v5926 = vld [vmem:[%s8 + $0x5b0] sm:$0xff]
      %v5927 = vld [vmem:[%s8 + $0x5b8] sm:$0xff]
      %v5928 = vld [vmem:[%s8 + $0x5c0] sm:$0xff]
      %v5929 = vld [vmem:[%s8 + $0x5c8] sm:$0xf]
      %v5930 = vld [vmem:[%s8 + $0x5cc] sm:$0xff]
      %v5931 = vld [vmem:[%s8 + $0x5d4] sm:$0xff]
      %v5932 = vld [vmem:[%s8 + $0x5dc] sm:$0xff]
      %v5933 = vld [vmem:[%s8 + $0x5e4] sm:$0xf]
      %v5934 = vld [vmem:[%s8 + $0x5e8] sm:$0xff]
      %v5935 = vld [vmem:[%s8 + $0x5f0] sm:$0xff]
      %v5936 = vld [vmem:[%s8 + $0x5f8] sm:$0xff]
      %v5937 = vld [vmem:[%s8 + $0x600] sm:$0xf]
      %v5938 = vld [vmem:[%s8 + $0x604] sm:$0xff]
      %v5939 = vld [vmem:[%s8 + $0x60c] sm:$0xff]
      %v5940 = vld [vmem:[%s8 + $0x614] sm:$0xff]
      %v5941 = vld [vmem:[%s8 + $0x61c] sm:$0xf]
      %v5942 = vld [vmem:[%s8 + $0x620] sm:$0xff]
      %v5943 = vld [vmem:[%s8 + $0x628] sm:$0xff]
      %v5944 = vld [vmem:[%s8 + $0x630] sm:$0xff]
      %v5945 = vld [vmem:[%s8 + $0x638] sm:$0xf]
      %v5946 = vld [vmem:[%s8 + $0x63c] sm:$0xff]
      %v5947 = vld [vmem:[%s8 + $0x644] sm:$0xff]
      %v5948 = vld [vmem:[%s8 + $0x64c] sm:$0xff]
      %v5949 = vld [vmem:[%s8 + $0x654] sm:$0xf]
      %v5950 = vld [vmem:[%s8 + $0x658] sm:$0xff]
      %v5951 = vld [vmem:[%s8 + $0x660] sm:$0xff]
      %v5952 = vld [vmem:[%s8 + $0x668] sm:$0xff]
      %v5953 = vld [vmem:[%s8 + $0x670] sm:$0xf]
      %v5954 = vld [vmem:[%s8 + $0x674] sm:$0xff]
      %v5955 = vld [vmem:[%s8 + $0x67c] sm:$0xff]
      %v5956 = vld [vmem:[%s8 + $0x684] sm:$0xff]
      %v5957 = vld [vmem:[%s8 + $0x68c] sm:$0xf]
      %v5958 = vld [vmem:[%s8 + $0x690] sm:$0xff]
      %v5959 = vld [vmem:[%s8 + $0x698] sm:$0xff]
      %v5960 = vld [vmem:[%s8 + $0x6a0] sm:$0xff]
      %v5961 = vld [vmem:[%s8 + $0x6a8] sm:$0xf]
      %v5962 = vld [vmem:[%s8 + $0x6ac] sm:$0xff]
      %v5963 = vld [vmem:[%s8 + $0x6b4] sm:$0xff]
      %v5964 = vld [vmem:[%s8 + $0x6bc] sm:$0xff]
      %v5965 = vld [vmem:[%s8 + $0x6c4] sm:$0xf]
      %v5966 = vld [vmem:[%s8 + $0x6c8] sm:$0xff]
      %v5967 = vld [vmem:[%s8 + $0x6d0] sm:$0xff]
      %v5968 = vld [vmem:[%s8 + $0x6d8] sm:$0xff]
      %v5969 = vld [vmem:[%s8 + $0x6e0] sm:$0xf]
      %v5970 = vld [vmem:[%s8 + $0x6e4] sm:$0xff]
      %v5971 = vld [vmem:[%s8 + $0x6ec] sm:$0xff]
      %v5972 = vld [vmem:[%s8 + $0x6f4] sm:$0xff]
      %v5973 = vld [vmem:[%s8 + $0x6fc] sm:$0xf]
      %v5974 = vld [vmem:[%s9] sm:$0xff]
      %v5976 = vlaneseq
      %v5977 = vshrl.u32 %v5976, 7
      %v5978 = vsub.s32 0, %v5977
      %v5979 = vrot.slane %v5974, %v5978
      %v5980 = vlaneseq
      %v5981 = vshrl.u32 %v5980, 7
      %v5982 = vsub.s32 1, %v5981
      %v5983 = vrot.slane %v5974, %v5982
      %v5984 = vlaneseq
      %v5985 = vshrl.u32 %v5984, 7
      %v5986 = vsub.s32 2, %v5985
      %v5987 = vrot.slane %v5974, %v5986
      %v5988 = vlaneseq
      %v5989 = vshrl.u32 %v5988, 7
      %v5990 = vsub.s32 3, %v5989
      %v5991 = vrot.slane %v5974, %v5990
      %v5992 = vlaneseq
      %v5993 = vshrl.u32 %v5992, 7
      %v5994 = vsub.s32 4, %v5993
      %v5995 = vrot.slane %v5974, %v5994
      %v5996 = vlaneseq
      %v5997 = vshrl.u32 %v5996, 7
      %v5998 = vsub.s32 5, %v5997
      %v5999 = vrot.slane %v5974, %v5998
      %v6000 = vlaneseq
      %v6001 = vshrl.u32 %v6000, 7
      %v6002 = vsub.s32 6, %v6001
      %v6003 = vrot.slane %v5974, %v6002
      %v6267 = vunpack.c.l.b16 %v5718
      %v6268 = vunpack.c.h.b16 %v5718
      %v6269 = vunpack.c.l.b16 %v5719
      %v6270 = vunpack.c.h.b16 %v5719
      %v6271 = vunpack.c.l.b16 %v5720
      %v6272 = vunpack.c.h.b16 %v5720
      %v6273 = vunpack.c.l.b16 %v5721
      %v6274 = vunpack.c.l.b16 %v5722
      %v6275 = vunpack.c.h.b16 %v5722
      %v6276 = vunpack.c.l.b16 %v5723
      %v6277 = vunpack.c.h.b16 %v5723
      %v6278 = vunpack.c.l.b16 %v5724
      %v6279 = vunpack.c.h.b16 %v5724
      %v6280 = vunpack.c.l.b16 %v5725
      %v6281 = vunpack.c.l.b16 %v5726
      %v6282 = vunpack.c.h.b16 %v5726
      %v6283 = vunpack.c.l.b16 %v5727
      %v6284 = vunpack.c.h.b16 %v5727
      %v6285 = vunpack.c.l.b16 %v5728
      %v6286 = vunpack.c.h.b16 %v5728
      %v6287 = vunpack.c.l.b16 %v5729
      %v6288 = vunpack.c.l.b16 %v5730
      %v6289 = vunpack.c.h.b16 %v5730
      %v6290 = vunpack.c.l.b16 %v5731
      %v6291 = vunpack.c.h.b16 %v5731
      %v6292 = vunpack.c.l.b16 %v5732
      %v6293 = vunpack.c.h.b16 %v5732
      %v6294 = vunpack.c.l.b16 %v5733
      %v6295 = vunpack.c.l.b16 %v5734
      %v6296 = vunpack.c.h.b16 %v5734
      %v6297 = vunpack.c.l.b16 %v5735
      %v6298 = vunpack.c.h.b16 %v5735
      %v6299 = vunpack.c.l.b16 %v5736
      %v6300 = vunpack.c.h.b16 %v5736
      %v6301 = vunpack.c.l.b16 %v5737
      %v6302 = vunpack.c.l.b16 %v5738
      %v6303 = vunpack.c.h.b16 %v5738
      %v6304 = vunpack.c.l.b16 %v5739
      %v6305 = vunpack.c.h.b16 %v5739
      %v6306 = vunpack.c.l.b16 %v5740
      %v6307 = vunpack.c.h.b16 %v5740
      %v6308 = vunpack.c.l.b16 %v5741
      %v6309 = vunpack.c.l.b16 %v5742
      %v6310 = vunpack.c.h.b16 %v5742
      %v6311 = vunpack.c.l.b16 %v5743
      %v6312 = vunpack.c.h.b16 %v5743
      %v6313 = vunpack.c.l.b16 %v5744
      %v6314 = vunpack.c.h.b16 %v5744
      %v6315 = vunpack.c.l.b16 %v5745
      %v6316 = vunpack.c.l.b16 %v5746
      %v6317 = vunpack.c.h.b16 %v5746
      %v6318 = vunpack.c.l.b16 %v5747
      %v6319 = vunpack.c.h.b16 %v5747
      %v6320 = vunpack.c.l.b16 %v5748
      %v6321 = vunpack.c.h.b16 %v5748
      %v6322 = vunpack.c.l.b16 %v5749
      %v6323 = vunpack.c.l.b16 %v5750
      %v6324 = vunpack.c.h.b16 %v5750
      %v6325 = vunpack.c.l.b16 %v5751
      %v6326 = vunpack.c.h.b16 %v5751
      %v6327 = vunpack.c.l.b16 %v5752
      %v6328 = vunpack.c.h.b16 %v5752
      %v6329 = vunpack.c.l.b16 %v5753
      %v6330 = vunpack.c.l.b16 %v5754
      %v6331 = vunpack.c.h.b16 %v5754
      %v6332 = vunpack.c.l.b16 %v5755
      %v6333 = vunpack.c.h.b16 %v5755
      %v6334 = vunpack.c.l.b16 %v5756
      %v6335 = vunpack.c.h.b16 %v5756
      %v6336 = vunpack.c.l.b16 %v5757
      %v6337 = vunpack.c.l.b16 %v5758
      %v6338 = vunpack.c.h.b16 %v5758
      %v6339 = vunpack.c.l.b16 %v5759
      %v6340 = vunpack.c.h.b16 %v5759
      %v6341 = vunpack.c.l.b16 %v5760
      %v6342 = vunpack.c.h.b16 %v5760
      %v6343 = vunpack.c.l.b16 %v5761
      %v6344 = vunpack.c.l.b16 %v5762
      %v6345 = vunpack.c.h.b16 %v5762
      %v6346 = vunpack.c.l.b16 %v5763
      %v6347 = vunpack.c.h.b16 %v5763
      %v6348 = vunpack.c.l.b16 %v5764
      %v6349 = vunpack.c.h.b16 %v5764
      %v6350 = vunpack.c.l.b16 %v5765
      %v6351 = vunpack.c.l.b16 %v5766
      %v6352 = vunpack.c.h.b16 %v5766
      %v6353 = vunpack.c.l.b16 %v5767
      %v6354 = vunpack.c.h.b16 %v5767
      %v6355 = vunpack.c.l.b16 %v5768
      %v6356 = vunpack.c.h.b16 %v5768
      %v6357 = vunpack.c.l.b16 %v5769
      %v6358 = vunpack.c.l.b16 %v5770
      %v6359 = vunpack.c.h.b16 %v5770
      %v6360 = vunpack.c.l.b16 %v5771
      %v6361 = vunpack.c.h.b16 %v5771
      %v6362 = vunpack.c.l.b16 %v5772
      %v6363 = vunpack.c.h.b16 %v5772
      %v6364 = vunpack.c.l.b16 %v5773
      %v6365 = vunpack.c.l.b16 %v5774
      %v6366 = vunpack.c.h.b16 %v5774
      %v6367 = vunpack.c.l.b16 %v5775
      %v6368 = vunpack.c.h.b16 %v5775
      %v6369 = vunpack.c.l.b16 %v5776
      %v6370 = vunpack.c.h.b16 %v5776
      %v6371 = vunpack.c.l.b16 %v5777
      %v6372 = vunpack.c.l.b16 %v5778
      %v6373 = vunpack.c.h.b16 %v5778
      %v6374 = vunpack.c.l.b16 %v5779
      %v6375 = vunpack.c.h.b16 %v5779
      %v6376 = vunpack.c.l.b16 %v5780
      %v6377 = vunpack.c.h.b16 %v5780
      %v6378 = vunpack.c.l.b16 %v5781
      %v6379 = vunpack.c.l.b16 %v5782
      %v6380 = vunpack.c.h.b16 %v5782
      %v6381 = vunpack.c.l.b16 %v5783
      %v6382 = vunpack.c.h.b16 %v5783
      %v6383 = vunpack.c.l.b16 %v5784
      %v6384 = vunpack.c.h.b16 %v5784
      %v6385 = vunpack.c.l.b16 %v5785
      %v6386 = vunpack.c.l.b16 %v5786
      %v6387 = vunpack.c.h.b16 %v5786
      %v6388 = vunpack.c.l.b16 %v5787
      %v6389 = vunpack.c.h.b16 %v5787
      %v6390 = vunpack.c.l.b16 %v5788
      %v6391 = vunpack.c.h.b16 %v5788
      %v6392 = vunpack.c.l.b16 %v5789
      %v6393 = vunpack.c.l.b16 %v5790
      %v6394 = vunpack.c.h.b16 %v5790
      %v6395 = vunpack.c.l.b16 %v5791
      %v6396 = vunpack.c.h.b16 %v5791
      %v6397 = vunpack.c.l.b16 %v5792
      %v6398 = vunpack.c.h.b16 %v5792
      %v6399 = vunpack.c.l.b16 %v5793
      %v6400 = vunpack.c.l.b16 %v5794
      %v6401 = vunpack.c.h.b16 %v5794
      %v6402 = vunpack.c.l.b16 %v5795
      %v6403 = vunpack.c.h.b16 %v5795
      %v6404 = vunpack.c.l.b16 %v5796
      %v6405 = vunpack.c.h.b16 %v5796
      %v6406 = vunpack.c.l.b16 %v5797
      %v6407 = vunpack.c.l.b16 %v5798
      %v6408 = vunpack.c.h.b16 %v5798
      %v6409 = vunpack.c.l.b16 %v5799
      %v6410 = vunpack.c.h.b16 %v5799
      %v6411 = vunpack.c.l.b16 %v5800
      %v6412 = vunpack.c.h.b16 %v5800
      %v6413 = vunpack.c.l.b16 %v5801
      %v6414 = vunpack.c.l.b16 %v5802
      %v6415 = vunpack.c.h.b16 %v5802
      %v6416 = vunpack.c.l.b16 %v5803
      %v6417 = vunpack.c.h.b16 %v5803
      %v6418 = vunpack.c.l.b16 %v5804
      %v6419 = vunpack.c.h.b16 %v5804
      %v6420 = vunpack.c.l.b16 %v5805
      %v6421 = vunpack.c.l.b16 %v5806
      %v6422 = vunpack.c.h.b16 %v5806
      %v6423 = vunpack.c.l.b16 %v5807
      %v6424 = vunpack.c.h.b16 %v5807
      %v6425 = vunpack.c.l.b16 %v5808
      %v6426 = vunpack.c.h.b16 %v5808
      %v6427 = vunpack.c.l.b16 %v5809
      %v6428 = vunpack.c.l.b16 %v5810
      %v6429 = vunpack.c.h.b16 %v5810
      %v6430 = vunpack.c.l.b16 %v5811
      %v6431 = vunpack.c.h.b16 %v5811
      %v6432 = vunpack.c.l.b16 %v5812
      %v6433 = vunpack.c.h.b16 %v5812
      %v6434 = vunpack.c.l.b16 %v5813
      %v6435 = vunpack.c.l.b16 %v5814
      %v6436 = vunpack.c.h.b16 %v5814
      %v6437 = vunpack.c.l.b16 %v5815
      %v6438 = vunpack.c.h.b16 %v5815
      %v6439 = vunpack.c.l.b16 %v5816
      %v6440 = vunpack.c.h.b16 %v5816
      %v6441 = vunpack.c.l.b16 %v5817
      %v6442 = vunpack.c.l.b16 %v5818
      %v6443 = vunpack.c.h.b16 %v5818
      %v6444 = vunpack.c.l.b16 %v5819
      %v6445 = vunpack.c.h.b16 %v5819
      %v6446 = vunpack.c.l.b16 %v5820
      %v6447 = vunpack.c.h.b16 %v5820
      %v6448 = vunpack.c.l.b16 %v5821
      %v6449 = vunpack.c.l.b16 %v5822
      %v6450 = vunpack.c.h.b16 %v5822
      %v6451 = vunpack.c.l.b16 %v5823
      %v6452 = vunpack.c.h.b16 %v5823
      %v6453 = vunpack.c.l.b16 %v5824
      %v6454 = vunpack.c.h.b16 %v5824
      %v6455 = vunpack.c.l.b16 %v5825
      %v6456 = vunpack.c.l.b16 %v5826
      %v6457 = vunpack.c.h.b16 %v5826
      %v6458 = vunpack.c.l.b16 %v5827
      %v6459 = vunpack.c.h.b16 %v5827
      %v6460 = vunpack.c.l.b16 %v5828
      %v6461 = vunpack.c.h.b16 %v5828
      %v6462 = vunpack.c.l.b16 %v5829
      %v6463 = vunpack.c.l.b16 %v5830
      %v6464 = vunpack.c.h.b16 %v5830
      %v6465 = vunpack.c.l.b16 %v5831
      %v6466 = vunpack.c.h.b16 %v5831
      %v6467 = vunpack.c.l.b16 %v5832
      %v6468 = vunpack.c.h.b16 %v5832
      %v6469 = vunpack.c.l.b16 %v5833
      %v6470 = vunpack.c.l.b16 %v5834
      %v6471 = vunpack.c.h.b16 %v5834
      %v6472 = vunpack.c.l.b16 %v5835
      %v6473 = vunpack.c.h.b16 %v5835
      %v6474 = vunpack.c.l.b16 %v5836
      %v6475 = vunpack.c.h.b16 %v5836
      %v6476 = vunpack.c.l.b16 %v5837
      %v6477 = vunpack.c.l.b16 %v5838
      %v6478 = vunpack.c.h.b16 %v5838
      %v6479 = vunpack.c.l.b16 %v5839
      %v6480 = vunpack.c.h.b16 %v5839
      %v6481 = vunpack.c.l.b16 %v5840
      %v6482 = vunpack.c.h.b16 %v5840
      %v6483 = vunpack.c.l.b16 %v5841
      %v6484 = vunpack.c.l.b16 %v5842
      %v6485 = vunpack.c.h.b16 %v5842
      %v6486 = vunpack.c.l.b16 %v5843
      %v6487 = vunpack.c.h.b16 %v5843
      %v6488 = vunpack.c.l.b16 %v5844
      %v6489 = vunpack.c.h.b16 %v5844
      %v6490 = vunpack.c.l.b16 %v5845
      %v6491 = vunpack.c.l.b16 %v5846
      %v6492 = vunpack.c.h.b16 %v5846
      %v6493 = vunpack.c.l.b16 %v5847
      %v6494 = vunpack.c.h.b16 %v5847
      %v6495 = vunpack.c.l.b16 %v5848
      %v6496 = vunpack.c.h.b16 %v5848
      %v6497 = vunpack.c.l.b16 %v5849
      %v6498 = vunpack.c.l.b16 %v5850
      %v6499 = vunpack.c.h.b16 %v5850
      %v6500 = vunpack.c.l.b16 %v5851
      %v6501 = vunpack.c.h.b16 %v5851
      %v6502 = vunpack.c.l.b16 %v5852
      %v6503 = vunpack.c.h.b16 %v5852
      %v6504 = vunpack.c.l.b16 %v5853
      %v6505 = vunpack.c.l.b16 %v5854
      %v6506 = vunpack.c.h.b16 %v5854
      %v6507 = vunpack.c.l.b16 %v5855
      %v6508 = vunpack.c.h.b16 %v5855
      %v6509 = vunpack.c.l.b16 %v5856
      %v6510 = vunpack.c.h.b16 %v5856
      %v6511 = vunpack.c.l.b16 %v5857
      %v6512 = vunpack.c.l.b16 %v5858
      %v6513 = vunpack.c.h.b16 %v5858
      %v6514 = vunpack.c.l.b16 %v5859
      %v6515 = vunpack.c.h.b16 %v5859
      %v6516 = vunpack.c.l.b16 %v5860
      %v6517 = vunpack.c.h.b16 %v5860
      %v6518 = vunpack.c.l.b16 %v5861
      %v6519 = vunpack.c.l.b16 %v5862
      %v6520 = vunpack.c.h.b16 %v5862
      %v6521 = vunpack.c.l.b16 %v5863
      %v6522 = vunpack.c.h.b16 %v5863
      %v6523 = vunpack.c.l.b16 %v5864
      %v6524 = vunpack.c.h.b16 %v5864
      %v6525 = vunpack.c.l.b16 %v5865
      %v6526 = vunpack.c.l.b16 %v5866
      %v6527 = vunpack.c.h.b16 %v5866
      %v6528 = vunpack.c.l.b16 %v5867
      %v6529 = vunpack.c.h.b16 %v5867
      %v6530 = vunpack.c.l.b16 %v5868
      %v6531 = vunpack.c.h.b16 %v5868
      %v6532 = vunpack.c.l.b16 %v5869
      %v6533 = vunpack.c.l.b16 %v5870
      %v6534 = vunpack.c.h.b16 %v5870
      %v6535 = vunpack.c.l.b16 %v5871
      %v6536 = vunpack.c.h.b16 %v5871
      %v6537 = vunpack.c.l.b16 %v5872
      %v6538 = vunpack.c.h.b16 %v5872
      %v6539 = vunpack.c.l.b16 %v5873
      %v6540 = vunpack.c.l.b16 %v5874
      %v6541 = vunpack.c.h.b16 %v5874
      %v6542 = vunpack.c.l.b16 %v5875
      %v6543 = vunpack.c.h.b16 %v5875
      %v6544 = vunpack.c.l.b16 %v5876
      %v6545 = vunpack.c.h.b16 %v5876
      %v6546 = vunpack.c.l.b16 %v5877
      %v6547 = vunpack.c.l.b16 %v5878
      %v6548 = vunpack.c.h.b16 %v5878
      %v6549 = vunpack.c.l.b16 %v5879
      %v6550 = vunpack.c.h.b16 %v5879
      %v6551 = vunpack.c.l.b16 %v5880
      %v6552 = vunpack.c.h.b16 %v5880
      %v6553 = vunpack.c.l.b16 %v5881
      %v6554 = vunpack.c.l.b16 %v5882
      %v6555 = vunpack.c.h.b16 %v5882
      %v6556 = vunpack.c.l.b16 %v5883
      %v6557 = vunpack.c.h.b16 %v5883
      %v6558 = vunpack.c.l.b16 %v5884
      %v6559 = vunpack.c.h.b16 %v5884
      %v6560 = vunpack.c.l.b16 %v5885
      %v6561 = vunpack.c.l.b16 %v5886
      %v6562 = vunpack.c.h.b16 %v5886
      %v6563 = vunpack.c.l.b16 %v5887
      %v6564 = vunpack.c.h.b16 %v5887
      %v6565 = vunpack.c.l.b16 %v5888
      %v6566 = vunpack.c.h.b16 %v5888
      %v6567 = vunpack.c.l.b16 %v5889
      %v6568 = vunpack.c.l.b16 %v5890
      %v6569 = vunpack.c.h.b16 %v5890
      %v6570 = vunpack.c.l.b16 %v5891
      %v6571 = vunpack.c.h.b16 %v5891
      %v6572 = vunpack.c.l.b16 %v5892
      %v6573 = vunpack.c.h.b16 %v5892
      %v6574 = vunpack.c.l.b16 %v5893
      %v6575 = vunpack.c.l.b16 %v5894
      %v6576 = vunpack.c.h.b16 %v5894
      %v6577 = vunpack.c.l.b16 %v5895
      %v6578 = vunpack.c.h.b16 %v5895
      %v6579 = vunpack.c.l.b16 %v5896
      %v6580 = vunpack.c.h.b16 %v5896
      %v6581 = vunpack.c.l.b16 %v5897
      %v6582 = vunpack.c.l.b16 %v5898
      %v6583 = vunpack.c.h.b16 %v5898
      %v6584 = vunpack.c.l.b16 %v5899
      %v6585 = vunpack.c.h.b16 %v5899
      %v6586 = vunpack.c.l.b16 %v5900
      %v6587 = vunpack.c.h.b16 %v5900
      %v6588 = vunpack.c.l.b16 %v5901
      %v6589 = vunpack.c.l.b16 %v5902
      %v6590 = vunpack.c.h.b16 %v5902
      %v6591 = vunpack.c.l.b16 %v5903
      %v6592 = vunpack.c.h.b16 %v5903
      %v6593 = vunpack.c.l.b16 %v5904
      %v6594 = vunpack.c.h.b16 %v5904
      %v6595 = vunpack.c.l.b16 %v5905
      %v6596 = vunpack.c.l.b16 %v5906
      %v6597 = vunpack.c.h.b16 %v5906
      %v6598 = vunpack.c.l.b16 %v5907
      %v6599 = vunpack.c.h.b16 %v5907
      %v6600 = vunpack.c.l.b16 %v5908
      %v6601 = vunpack.c.h.b16 %v5908
      %v6602 = vunpack.c.l.b16 %v5909
      %v6603 = vunpack.c.l.b16 %v5910
      %v6604 = vunpack.c.h.b16 %v5910
      %v6605 = vunpack.c.l.b16 %v5911
      %v6606 = vunpack.c.h.b16 %v5911
      %v6607 = vunpack.c.l.b16 %v5912
      %v6608 = vunpack.c.h.b16 %v5912
      %v6609 = vunpack.c.l.b16 %v5913
      %v6610 = vunpack.c.l.b16 %v5914
      %v6611 = vunpack.c.h.b16 %v5914
      %v6612 = vunpack.c.l.b16 %v5915
      %v6613 = vunpack.c.h.b16 %v5915
      %v6614 = vunpack.c.l.b16 %v5916
      %v6615 = vunpack.c.h.b16 %v5916
      %v6616 = vunpack.c.l.b16 %v5917
      %v6617 = vunpack.c.l.b16 %v5918
      %v6618 = vunpack.c.h.b16 %v5918
      %v6619 = vunpack.c.l.b16 %v5919
      %v6620 = vunpack.c.h.b16 %v5919
      %v6621 = vunpack.c.l.b16 %v5920
      %v6622 = vunpack.c.h.b16 %v5920
      %v6623 = vunpack.c.l.b16 %v5921
      %v6624 = vunpack.c.l.b16 %v5922
      %v6625 = vunpack.c.h.b16 %v5922
      %v6626 = vunpack.c.l.b16 %v5923
      %v6627 = vunpack.c.h.b16 %v5923
      %v6628 = vunpack.c.l.b16 %v5924
      %v6629 = vunpack.c.h.b16 %v5924
      %v6630 = vunpack.c.l.b16 %v5925
      %v6631 = vunpack.c.l.b16 %v5926
      %v6632 = vunpack.c.h.b16 %v5926
      %v6633 = vunpack.c.l.b16 %v5927
      %v6634 = vunpack.c.h.b16 %v5927
      %v6635 = vunpack.c.l.b16 %v5928
      %v6636 = vunpack.c.h.b16 %v5928
      %v6637 = vunpack.c.l.b16 %v5929
      %v6638 = vunpack.c.l.b16 %v5930
      %v6639 = vunpack.c.h.b16 %v5930
      %v6640 = vunpack.c.l.b16 %v5931
      %v6641 = vunpack.c.h.b16 %v5931
      %v6642 = vunpack.c.l.b16 %v5932
      %v6643 = vunpack.c.h.b16 %v5932
      %v6644 = vunpack.c.l.b16 %v5933
      %v6645 = vunpack.c.l.b16 %v5934
      %v6646 = vunpack.c.h.b16 %v5934
      %v6647 = vunpack.c.l.b16 %v5935
      %v6648 = vunpack.c.h.b16 %v5935
      %v6649 = vunpack.c.l.b16 %v5936
      %v6650 = vunpack.c.h.b16 %v5936
      %v6651 = vunpack.c.l.b16 %v5937
      %v6652 = vunpack.c.l.b16 %v5938
      %v6653 = vunpack.c.h.b16 %v5938
      %v6654 = vunpack.c.l.b16 %v5939
      %v6655 = vunpack.c.h.b16 %v5939
      %v6656 = vunpack.c.l.b16 %v5940
      %v6657 = vunpack.c.h.b16 %v5940
      %v6658 = vunpack.c.l.b16 %v5941
      %v6659 = vunpack.c.l.b16 %v5942
      %v6660 = vunpack.c.h.b16 %v5942
      %v6661 = vunpack.c.l.b16 %v5943
      %v6662 = vunpack.c.h.b16 %v5943
      %v6663 = vunpack.c.l.b16 %v5944
      %v6664 = vunpack.c.h.b16 %v5944
      %v6665 = vunpack.c.l.b16 %v5945
      %v6666 = vunpack.c.l.b16 %v5946
      %v6667 = vunpack.c.h.b16 %v5946
      %v6668 = vunpack.c.l.b16 %v5947
      %v6669 = vunpack.c.h.b16 %v5947
      %v6670 = vunpack.c.l.b16 %v5948
      %v6671 = vunpack.c.h.b16 %v5948
      %v6672 = vunpack.c.l.b16 %v5949
      %v6673 = vunpack.c.l.b16 %v5950
      %v6674 = vunpack.c.h.b16 %v5950
      %v6675 = vunpack.c.l.b16 %v5951
      %v6676 = vunpack.c.h.b16 %v5951
      %v6677 = vunpack.c.l.b16 %v5952
      %v6678 = vunpack.c.h.b16 %v5952
      %v6679 = vunpack.c.l.b16 %v5953
      %v6680 = vunpack.c.l.b16 %v5954
      %v6681 = vunpack.c.h.b16 %v5954
      %v6682 = vunpack.c.l.b16 %v5955
      %v6683 = vunpack.c.h.b16 %v5955
      %v6684 = vunpack.c.l.b16 %v5956
      %v6685 = vunpack.c.h.b16 %v5956
      %v6686 = vunpack.c.l.b16 %v5957
      %v6687 = vunpack.c.l.b16 %v5958
      %v6688 = vunpack.c.h.b16 %v5958
      %v6689 = vunpack.c.l.b16 %v5959
      %v6690 = vunpack.c.h.b16 %v5959
      %v6691 = vunpack.c.l.b16 %v5960
      %v6692 = vunpack.c.h.b16 %v5960
      %v6693 = vunpack.c.l.b16 %v5961
      %v6694 = vunpack.c.l.b16 %v5962
      %v6695 = vunpack.c.h.b16 %v5962
      %v6696 = vunpack.c.l.b16 %v5963
      %v6697 = vunpack.c.h.b16 %v5963
      %v6698 = vunpack.c.l.b16 %v5964
      %v6699 = vunpack.c.h.b16 %v5964
      %v6700 = vunpack.c.l.b16 %v5965
      %v6701 = vunpack.c.l.b16 %v5966
      %v6702 = vunpack.c.h.b16 %v5966
      %v6703 = vunpack.c.l.b16 %v5967
      %v6704 = vunpack.c.h.b16 %v5967
      %v6705 = vunpack.c.l.b16 %v5968
      %v6706 = vunpack.c.h.b16 %v5968
      %v6707 = vunpack.c.l.b16 %v5969
      %v6708 = vunpack.c.l.b16 %v5970
      %v6709 = vunpack.c.h.b16 %v5970
      %v6710 = vunpack.c.l.b16 %v5971
      %v6711 = vunpack.c.h.b16 %v5971
      %v6712 = vunpack.c.l.b16 %v5972
      %v6713 = vunpack.c.h.b16 %v5972
      %v6714 = vunpack.c.l.b16 %v5973
      %v6715 = vpack.c.b16 %v6274, %v6267
      %v6716 = vpack.c.b16 %v6275, %v6268
      %v6717 = vpack.c.b16 %v6276, %v6269
      %v6718 = vpack.c.b16 %v6277, %v6270
      %v6719 = vpack.c.b16 %v6278, %v6271
      %v6720 = vpack.c.b16 %v6279, %v6272
      %v6721 = vpack.c.b16 %v6280, %v6273
      %v6722 = vpack.c.b16 %v6288, %v6281
      %v6723 = vpack.c.b16 %v6289, %v6282
      %v6724 = vpack.c.b16 %v6290, %v6283
      %v6725 = vpack.c.b16 %v6291, %v6284
      %v6726 = vpack.c.b16 %v6292, %v6285
      %v6727 = vpack.c.b16 %v6293, %v6286
      %v6728 = vpack.c.b16 %v6294, %v6287
      %v6729 = vpack.c.b16 %v6302, %v6295
      %v6730 = vpack.c.b16 %v6303, %v6296
      %v6731 = vpack.c.b16 %v6304, %v6297
      %v6732 = vpack.c.b16 %v6305, %v6298
      %v6733 = vpack.c.b16 %v6306, %v6299
      %v6734 = vpack.c.b16 %v6307, %v6300
      %v6735 = vpack.c.b16 %v6308, %v6301
      %v6736 = vpack.c.b16 %v6316, %v6309
      %v6737 = vpack.c.b16 %v6317, %v6310
      %v6738 = vpack.c.b16 %v6318, %v6311
      %v6739 = vpack.c.b16 %v6319, %v6312
      %v6740 = vpack.c.b16 %v6320, %v6313
      %v6741 = vpack.c.b16 %v6321, %v6314
      %v6742 = vpack.c.b16 %v6322, %v6315
      %v6743 = vpack.c.b16 %v6330, %v6323
      %v6744 = vpack.c.b16 %v6331, %v6324
      %v6745 = vpack.c.b16 %v6332, %v6325
      %v6746 = vpack.c.b16 %v6333, %v6326
      %v6747 = vpack.c.b16 %v6334, %v6327
      %v6748 = vpack.c.b16 %v6335, %v6328
      %v6749 = vpack.c.b16 %v6336, %v6329
      %v6750 = vpack.c.b16 %v6344, %v6337
      %v6751 = vpack.c.b16 %v6345, %v6338
      %v6752 = vpack.c.b16 %v6346, %v6339
      %v6753 = vpack.c.b16 %v6347, %v6340
      %v6754 = vpack.c.b16 %v6348, %v6341
      %v6755 = vpack.c.b16 %v6349, %v6342
      %v6756 = vpack.c.b16 %v6350, %v6343
      %v6757 = vpack.c.b16 %v6358, %v6351
      %v6758 = vpack.c.b16 %v6359, %v6352
      %v6759 = vpack.c.b16 %v6360, %v6353
      %v6760 = vpack.c.b16 %v6361, %v6354
      %v6761 = vpack.c.b16 %v6362, %v6355
      %v6762 = vpack.c.b16 %v6363, %v6356
      %v6763 = vpack.c.b16 %v6364, %v6357
      %v6764 = vpack.c.b16 %v6372, %v6365
      %v6765 = vpack.c.b16 %v6373, %v6366
      %v6766 = vpack.c.b16 %v6374, %v6367
      %v6767 = vpack.c.b16 %v6375, %v6368
      %v6768 = vpack.c.b16 %v6376, %v6369
      %v6769 = vpack.c.b16 %v6377, %v6370
      %v6770 = vpack.c.b16 %v6378, %v6371
      %v6771 = vpack.c.b16 %v6386, %v6379
      %v6772 = vpack.c.b16 %v6387, %v6380
      %v6773 = vpack.c.b16 %v6388, %v6381
      %v6774 = vpack.c.b16 %v6389, %v6382
      %v6775 = vpack.c.b16 %v6390, %v6383
      %v6776 = vpack.c.b16 %v6391, %v6384
      %v6777 = vpack.c.b16 %v6392, %v6385
      %v6778 = vpack.c.b16 %v6400, %v6393
      %v6779 = vpack.c.b16 %v6401, %v6394
      %v6780 = vpack.c.b16 %v6402, %v6395
      %v6781 = vpack.c.b16 %v6403, %v6396
      %v6782 = vpack.c.b16 %v6404, %v6397
      %v6783 = vpack.c.b16 %v6405, %v6398
      %v6784 = vpack.c.b16 %v6406, %v6399
      %v6785 = vpack.c.b16 %v6414, %v6407
      %v6786 = vpack.c.b16 %v6415, %v6408
      %v6787 = vpack.c.b16 %v6416, %v6409
      %v6788 = vpack.c.b16 %v6417, %v6410
      %v6789 = vpack.c.b16 %v6418, %v6411
      %v6790 = vpack.c.b16 %v6419, %v6412
      %v6791 = vpack.c.b16 %v6420, %v6413
      %v6792 = vpack.c.b16 %v6428, %v6421
      %v6793 = vpack.c.b16 %v6429, %v6422
      %v6794 = vpack.c.b16 %v6430, %v6423
      %v6795 = vpack.c.b16 %v6431, %v6424
      %v6796 = vpack.c.b16 %v6432, %v6425
      %v6797 = vpack.c.b16 %v6433, %v6426
      %v6798 = vpack.c.b16 %v6434, %v6427
      %v6799 = vpack.c.b16 %v6442, %v6435
      %v6800 = vpack.c.b16 %v6443, %v6436
      %v6801 = vpack.c.b16 %v6444, %v6437
      %v6802 = vpack.c.b16 %v6445, %v6438
      %v6803 = vpack.c.b16 %v6446, %v6439
      %v6804 = vpack.c.b16 %v6447, %v6440
      %v6805 = vpack.c.b16 %v6448, %v6441
      %v6806 = vpack.c.b16 %v6456, %v6449
      %v6807 = vpack.c.b16 %v6457, %v6450
      %v6808 = vpack.c.b16 %v6458, %v6451
      %v6809 = vpack.c.b16 %v6459, %v6452
      %v6810 = vpack.c.b16 %v6460, %v6453
      %v6811 = vpack.c.b16 %v6461, %v6454
      %v6812 = vpack.c.b16 %v6462, %v6455
      %v6813 = vpack.c.b16 %v6470, %v6463
      %v6814 = vpack.c.b16 %v6471, %v6464
      %v6815 = vpack.c.b16 %v6472, %v6465
      %v6816 = vpack.c.b16 %v6473, %v6466
      %v6817 = vpack.c.b16 %v6474, %v6467
      %v6818 = vpack.c.b16 %v6475, %v6468
      %v6819 = vpack.c.b16 %v6476, %v6469
      %v6820 = vpack.c.b16 %v6484, %v6477
      %v6821 = vpack.c.b16 %v6485, %v6478
      %v6822 = vpack.c.b16 %v6486, %v6479
      %v6823 = vpack.c.b16 %v6487, %v6480
      %v6824 = vpack.c.b16 %v6488, %v6481
      %v6825 = vpack.c.b16 %v6489, %v6482
      %v6826 = vpack.c.b16 %v6490, %v6483
      %v6827 = vpack.c.b16 %v6498, %v6491
      %v6828 = vpack.c.b16 %v6499, %v6492
      %v6829 = vpack.c.b16 %v6500, %v6493
      %v6830 = vpack.c.b16 %v6501, %v6494
      %v6831 = vpack.c.b16 %v6502, %v6495
      %v6832 = vpack.c.b16 %v6503, %v6496
      %v6833 = vpack.c.b16 %v6504, %v6497
      %v6834 = vpack.c.b16 %v6512, %v6505
      %v6835 = vpack.c.b16 %v6513, %v6506
      %v6836 = vpack.c.b16 %v6514, %v6507
      %v6837 = vpack.c.b16 %v6515, %v6508
      %v6838 = vpack.c.b16 %v6516, %v6509
      %v6839 = vpack.c.b16 %v6517, %v6510
      %v6840 = vpack.c.b16 %v6518, %v6511
      %v6841 = vpack.c.b16 %v6526, %v6519
      %v6842 = vpack.c.b16 %v6527, %v6520
      %v6843 = vpack.c.b16 %v6528, %v6521
      %v6844 = vpack.c.b16 %v6529, %v6522
      %v6845 = vpack.c.b16 %v6530, %v6523
      %v6846 = vpack.c.b16 %v6531, %v6524
      %v6847 = vpack.c.b16 %v6532, %v6525
      %v6848 = vpack.c.b16 %v6540, %v6533
      %v6849 = vpack.c.b16 %v6541, %v6534
      %v6850 = vpack.c.b16 %v6542, %v6535
      %v6851 = vpack.c.b16 %v6543, %v6536
      %v6852 = vpack.c.b16 %v6544, %v6537
      %v6853 = vpack.c.b16 %v6545, %v6538
      %v6854 = vpack.c.b16 %v6546, %v6539
      %v6855 = vpack.c.b16 %v6554, %v6547
      %v6856 = vpack.c.b16 %v6555, %v6548
      %v6857 = vpack.c.b16 %v6556, %v6549
      %v6858 = vpack.c.b16 %v6557, %v6550
      %v6859 = vpack.c.b16 %v6558, %v6551
      %v6860 = vpack.c.b16 %v6559, %v6552
      %v6861 = vpack.c.b16 %v6560, %v6553
      %v6862 = vpack.c.b16 %v6568, %v6561
      %v6863 = vpack.c.b16 %v6569, %v6562
      %v6864 = vpack.c.b16 %v6570, %v6563
      %v6865 = vpack.c.b16 %v6571, %v6564
      %v6866 = vpack.c.b16 %v6572, %v6565
      %v6867 = vpack.c.b16 %v6573, %v6566
      %v6868 = vpack.c.b16 %v6574, %v6567
      %v6869 = vpack.c.b16 %v6582, %v6575
      %v6870 = vpack.c.b16 %v6583, %v6576
      %v6871 = vpack.c.b16 %v6584, %v6577
      %v6872 = vpack.c.b16 %v6585, %v6578
      %v6873 = vpack.c.b16 %v6586, %v6579
      %v6874 = vpack.c.b16 %v6587, %v6580
      %v6875 = vpack.c.b16 %v6588, %v6581
      %v6876 = vpack.c.b16 %v6596, %v6589
      %v6877 = vpack.c.b16 %v6597, %v6590
      %v6878 = vpack.c.b16 %v6598, %v6591
      %v6879 = vpack.c.b16 %v6599, %v6592
      %v6880 = vpack.c.b16 %v6600, %v6593
      %v6881 = vpack.c.b16 %v6601, %v6594
      %v6882 = vpack.c.b16 %v6602, %v6595
      %v6883 = vpack.c.b16 %v6610, %v6603
      %v6884 = vpack.c.b16 %v6611, %v6604
      %v6885 = vpack.c.b16 %v6612, %v6605
      %v6886 = vpack.c.b16 %v6613, %v6606
      %v6887 = vpack.c.b16 %v6614, %v6607
      %v6888 = vpack.c.b16 %v6615, %v6608
      %v6889 = vpack.c.b16 %v6616, %v6609
      %v6890 = vpack.c.b16 %v6624, %v6617
      %v6891 = vpack.c.b16 %v6625, %v6618
      %v6892 = vpack.c.b16 %v6626, %v6619
      %v6893 = vpack.c.b16 %v6627, %v6620
      %v6894 = vpack.c.b16 %v6628, %v6621
      %v6895 = vpack.c.b16 %v6629, %v6622
      %v6896 = vpack.c.b16 %v6630, %v6623
      %v6897 = vpack.c.b16 %v6638, %v6631
      %v6898 = vpack.c.b16 %v6639, %v6632
      %v6899 = vpack.c.b16 %v6640, %v6633
      %v6900 = vpack.c.b16 %v6641, %v6634
      %v6901 = vpack.c.b16 %v6642, %v6635
      %v6902 = vpack.c.b16 %v6643, %v6636
      %v6903 = vpack.c.b16 %v6644, %v6637
      %v6904 = vpack.c.b16 %v6652, %v6645
      %v6905 = vpack.c.b16 %v6653, %v6646
      %v6906 = vpack.c.b16 %v6654, %v6647
      %v6907 = vpack.c.b16 %v6655, %v6648
      %v6908 = vpack.c.b16 %v6656, %v6649
      %v6909 = vpack.c.b16 %v6657, %v6650
      %v6910 = vpack.c.b16 %v6658, %v6651
      %v6911 = vpack.c.b16 %v6666, %v6659
      %v6912 = vpack.c.b16 %v6667, %v6660
      %v6913 = vpack.c.b16 %v6668, %v6661
      %v6914 = vpack.c.b16 %v6669, %v6662
      %v6915 = vpack.c.b16 %v6670, %v6663
      %v6916 = vpack.c.b16 %v6671, %v6664
      %v6917 = vpack.c.b16 %v6672, %v6665
      %v6918 = vpack.c.b16 %v6680, %v6673
      %v6919 = vpack.c.b16 %v6681, %v6674
      %v6920 = vpack.c.b16 %v6682, %v6675
      %v6921 = vpack.c.b16 %v6683, %v6676
      %v6922 = vpack.c.b16 %v6684, %v6677
      %v6923 = vpack.c.b16 %v6685, %v6678
      %v6924 = vpack.c.b16 %v6686, %v6679
      %v6925 = vpack.c.b16 %v6694, %v6687
      %v6926 = vpack.c.b16 %v6695, %v6688
      %v6927 = vpack.c.b16 %v6696, %v6689
      %v6928 = vpack.c.b16 %v6697, %v6690
      %v6929 = vpack.c.b16 %v6698, %v6691
      %v6930 = vpack.c.b16 %v6699, %v6692
      %v6931 = vpack.c.b16 %v6700, %v6693
      %v6932 = vpack.c.b16 %v6708, %v6701
      %v6933 = vpack.c.b16 %v6709, %v6702
      %v6934 = vpack.c.b16 %v6710, %v6703
      %v6935 = vpack.c.b16 %v6711, %v6704
      %v6936 = vpack.c.b16 %v6712, %v6705
      %v6937 = vpack.c.b16 %v6713, %v6706
      %v6938 = vpack.c.b16 %v6714, %v6707
      %7163 = vmatprep.subr.bf16.mxu0 %v6716
      %7164 = vmatpush1.bf16.msra.mxu0 %v6715
      %7165 = vmatprep.subr.bf16.mxu0 %v6723
      %7166 = vmatpush1.bf16.msra.mxu0 %v6722
      %7167 = vmatprep.subr.bf16.mxu0 %v6730
      %7168 = vmatpush1.bf16.msra.mxu0 %v6729
      %7169 = vmatprep.subr.bf16.mxu0 %v6737
      %7170 = vmatpush1.bf16.msra.mxu0 %v6736
      %7171 = vmatprep.subr.bf16.mxu0 %v6744
      %7172 = vmatpush1.bf16.msra.mxu0 %v6743
      %7173 = vmatprep.subr.bf16.mxu0 %v6751
      %7174 = vmatpush1.bf16.msra.mxu0 %v6750
      %7175 = vmatprep.subr.bf16.mxu0 %v6758
      %7176 = vmatpush1.bf16.msra.mxu0 %v6757
      %7177 = vmatprep.subr.bf16.mxu0 %v6765
      %7178 = vmatpush1.bf16.msra.mxu0 %v6764
      %7179 = vmatprep.subr.bf16.mxu0 %v6772
      %7180 = vmatpush1.bf16.msra.mxu0 %v6771
      %7181 = vmatprep.subr.bf16.mxu0 %v6779
      %7182 = vmatpush1.bf16.msra.mxu0 %v6778
      %7183 = vmatprep.subr.bf16.mxu0 %v6786
      %7184 = vmatpush1.bf16.msra.mxu0 %v6785
      %7185 = vmatprep.subr.bf16.mxu0 %v6793
      %7186 = vmatpush1.bf16.msra.mxu0 %v6792
      %7187 = vmatprep.subr.bf16.mxu0 %v6800
      %7188 = vmatpush1.bf16.msra.mxu0 %v6799
      %7189 = vmatprep.subr.bf16.mxu0 %v6807
      %7190 = vmatpush1.bf16.msra.mxu0 %v6806
      %7191 = vmatprep.subr.bf16.mxu0 %v6814
      %7192 = vmatpush1.bf16.msra.mxu0 %v6813
      %7193 = vmatprep.subr.bf16.mxu0 %v6821
      %7194 = vmatpush1.bf16.msra.mxu0 %v6820
      %7195 = vmatprep.mubr.bf16.mxu0 %v5655
      %7196 = vmatmul.mubr.bf16.gmra.mrb[0].mxu0 %v5654
      %v7197 = vpop.f32.mrb[0].mxu0
      %v7198 = vadd.f32 %v5979, %v7197
      %v7199 = vpop.f32.mrb[0].mxu0
      %v7200 = vadd.f32 %v5983, %v7199
      %v7201 = vpop.f32.mrb[0].mxu0
      %v7202 = vadd.f32 %v5979, %v7201
      %v7203 = vpop.f32.mrb[0].mxu0
      %v7204 = vadd.f32 %v5983, %v7203
      %7205 = vmatprep.mubr.bf16.mxu0 %v5659
      %7206 = vmatmul.mubr.bf16.gmra.mrb[0].mxu0 %v5658
      %v7207 = vpop.f32.mrb[0].mxu0
      %v7208 = vadd.f32 %v5979, %v7207
      %v7209 = vpop.f32.mrb[0].mxu0
      %v7210 = vadd.f32 %v5983, %v7209
      %v7211 = vpop.f32.mrb[0].mxu0
      %v7212 = vadd.f32 %v5979, %v7211
      %v7213 = vpop.f32.mrb[0].mxu0
      %v7214 = vadd.f32 %v5983, %v7213
      %7215 = vmatprep.mubr.bf16.mxu0 %v5663
      %7216 = vmatmul.mubr.bf16.gmra.mrb[0].mxu0 %v5662
      %v7217 = vpop.f32.mrb[0].mxu0
      %v7218 = vadd.f32 %v5979, %v7217
      %v7219 = vpop.f32.mrb[0].mxu0
      %v7220 = vadd.f32 %v5983, %v7219
      %v7221 = vpop.f32.mrb[0].mxu0
      %v7222 = vadd.f32 %v5979, %v7221
      %v7223 = vpop.f32.mrb[0].mxu0
      %v7224 = vadd.f32 %v5983, %v7223
      %7225 = vmatprep.mubr.bf16.mxu0 %v5667
      %7226 = vmatmul.mubr.bf16.gmra.mrb[0].mxu0 %v5666
      %v7227 = vpop.f32.mrb[0].mxu0
      %v7228 = vadd.f32 %v5979, %v7227
      %v7229 = vpop.f32.mrb[0].mxu0
      %v7230 = vadd.f32 %v5983, %v7229
      %v7231 = vpop.f32.mrb[0].mxu0
      %v7232 = vadd.f32 %v5979, %v7231
      %v7233 = vpop.f32.mrb[0].mxu0
      %v7234 = vadd.f32 %v5983, %v7233
      %7235 = vmatprep.mubr.bf16.mxu0 %v5671
      %7236 = vmatmul.mubr.bf16.gmra.mrb[0].mxu0 %v5670
      %v7237 = vpop.f32.mrb[0].mxu0
      %v7238 = vadd.f32 %v5979, %v7237
      %v7239 = vpop.f32.mrb[0].mxu0
      %v7240 = vadd.f32 %v5983, %v7239
      %v7241 = vpop.f32.mrb[0].mxu0
      %v7242 = vadd.f32 %v5979, %v7241
      %v7243 = vpop.f32.mrb[0].mxu0
      %v7244 = vadd.f32 %v5983, %v7243
      %7245 = vmatprep.mubr.bf16.mxu0 %v5675
      %7246 = vmatmul.mubr.bf16.gmra.mrb[0].mxu0 %v5674
      %v7247 = vpop.f32.mrb[0].mxu0
      %v7248 = vadd.f32 %v5979, %v7247
      %v7249 = vpop.f32.mrb[0].mxu0
      %v7250 = vadd.f32 %v5983, %v7249
      %v7251 = vpop.f32.mrb[0].mxu0
      %v7252 = vadd.f32 %v5979, %v7251
      %v7253 = vpop.f32.mrb[0].mxu0
      %v7254 = vadd.f32 %v5983, %v7253
      %7255 = vmatprep.mubr.bf16.mxu0 %v5679
      %7256 = vmatmul.mubr.bf16.gmra.mrb[0].mxu0 %v5678
      %v7257 = vpop.f32.mrb[0].mxu0
      %v7258 = vadd.f32 %v5979, %v7257
      %v7259 = vpop.f32.mrb[0].mxu0
      %v7260 = vadd.f32 %v5983, %v7259
      %v7261 = vpop.f32.mrb[0].mxu0
      %v7262 = vadd.f32 %v5979, %v7261
      %v7263 = vpop.f32.mrb[0].mxu0
      %v7264 = vadd.f32 %v5983, %v7263
      %7265 = vmatprep.mubr.bf16.mxu0 %v5683
      %7266 = vmatmul.mubr.bf16.gmra.mrb[0].mxu0 %v5682
      %v7267 = vpop.f32.mrb[0].mxu0
      %v7268 = vadd.f32 %v5979, %v7267
      %v7269 = vpop.f32.mrb[0].mxu0
      %v7270 = vadd.f32 %v5983, %v7269
      %v7271 = vpop.f32.mrb[0].mxu0
      %v7272 = vadd.f32 %v5979, %v7271
      %v7273 = vpop.f32.mrb[0].mxu0
      %v7274 = vadd.f32 %v5983, %v7273
      %7275 = vmatprep.mubr.bf16.mxu0 %v5687
      %7276 = vmatmul.mubr.bf16.gmra.mrb[0].mxu0 %v5686
      %v7277 = vpop.f32.mrb[0].mxu0
      %v7278 = vadd.f32 %v5979, %v7277
      %v7279 = vpop.f32.mrb[0].mxu0
      %v7280 = vadd.f32 %v5983, %v7279
      %v7281 = vpop.f32.mrb[0].mxu0
      %v7282 = vadd.f32 %v5979, %v7281
      %v7283 = vpop.f32.mrb[0].mxu0
      %v7284 = vadd.f32 %v5983, %v7283
      %7285 = vmatprep.mubr.bf16.mxu0 %v5691
      %7286 = vmatmul.mubr.bf16.gmra.mrb[0].mxu0 %v5690
      %v7287 = vpop.f32.mrb[0].mxu0
      %v7288 = vadd.f32 %v5979, %v7287
      %v7289 = vpop.f32.mrb[0].mxu0
      %v7290 = vadd.f32 %v5983, %v7289
      %v7291 = vpop.f32.mrb[0].mxu0
      %v7292 = vadd.f32 %v5979, %v7291
      %v7293 = vpop.f32.mrb[0].mxu0
      %v7294 = vadd.f32 %v5983, %v7293
      %7295 = vmatprep.mubr.bf16.mxu0 %v5695
      %7296 = vmatmul.mubr.bf16.gmra.mrb[0].mxu0 %v5694
      %v7297 = vpop.f32.mrb[0].mxu0
      %v7298 = vadd.f32 %v5979, %v7297
      %v7299 = vpop.f32.mrb[0].mxu0
      %v7300 = vadd.f32 %v5983, %v7299
      %v7301 = vpop.f32.mrb[0].mxu0
      %v7302 = vadd.f32 %v5979, %v7301
      %v7303 = vpop.f32.mrb[0].mxu0
      %v7304 = vadd.f32 %v5983, %v7303
      %7305 = vmatprep.mubr.bf16.mxu0 %v5699
      %7306 = vmatmul.mubr.bf16.gmra.mrb[0].mxu0 %v5698
      %v7307 = vpop.f32.mrb[0].mxu0
      %v7308 = vadd.f32 %v5979, %v7307
      %v7309 = vpop.f32.mrb[0].mxu0
      %v7310 = vadd.f32 %v5983, %v7309
      %v7311 = vpop.f32.mrb[0].mxu0
      %v7312 = vadd.f32 %v5979, %v7311
      %v7313 = vpop.f32.mrb[0].mxu0
      %v7314 = vadd.f32 %v5983, %v7313
      %7315 = vmatprep.mubr.bf16.mxu0 %v5703
      %7316 = vmatmul.mubr.bf16.gmra.mrb[0].mxu0 %v5702
      %v7317 = vpop.f32.mrb[0].mxu0
      %v7318 = vadd.f32 %v5979, %v7317
      %v7319 = vpop.f32.mrb[0].mxu0
      %v7320 = vadd.f32 %v5983, %v7319
      %v7321 = vpop.f32.mrb[0].mxu0
      %v7322 = vadd.f32 %v5979, %v7321
      %v7323 = vpop.f32.mrb[0].mxu0
      %v7324 = vadd.f32 %v5983, %v7323
      %7325 = vmatprep.mubr.bf16.mxu0 %v5707
      %7326 = vmatmul.mubr.bf16.gmra.mrb[0].mxu0 %v5706
      %v7327 = vpop.f32.mrb[0].mxu0
      %v7328 = vadd.f32 %v5979, %v7327
      %v7329 = vpop.f32.mrb[0].mxu0
      %v7330 = vadd.f32 %v5983, %v7329
      %v7331 = vpop.f32.mrb[0].mxu0
      %v7332 = vadd.f32 %v5979, %v7331
      %v7333 = vpop.f32.mrb[0].mxu0
      %v7334 = vadd.f32 %v5983, %v7333
      %7335 = vmatprep.mubr.bf16.mxu0 %v5711
      %7336 = vmatmul.mubr.bf16.gmra.mrb[0].mxu0 %v5710
      %v7337 = vpop.f32.mrb[0].mxu0
      %v7338 = vadd.f32 %v5979, %v7337
      %v7339 = vpop.f32.mrb[0].mxu0
      %v7340 = vadd.f32 %v5983, %v7339
      %v7341 = vpop.f32.mrb[0].mxu0
      %v7342 = vadd.f32 %v5979, %v7341
      %v7343 = vpop.f32.mrb[0].mxu0
      %v7344 = vadd.f32 %v5983, %v7343
      %7345 = vmatprep.mubr.bf16.mxu0 %v5715
      %7346 = vmatmul.mubr.bf16.gmra.mrb[0].mxu0 %v5714
      %v7347 = vpop.f32.mrb[0].mxu0
      %v7348 = vadd.f32 %v5979, %v7347
      %v7349 = vpop.f32.mrb[0].mxu0
      %v7350 = vadd.f32 %v5983, %v7349
      %v7351 = vpop.f32.mrb[0].mxu0
      %v7352 = vadd.f32 %v5979, %v7351
      %v7353 = vpop.f32.mrb[0].mxu0
      %v7354 = vadd.f32 %v5983, %v7353
      %7355 = vdwg.mxu0
      %7356 = vmatprep.subr.bf16.mxu0 %v6828
      %7357 = vmatpush1.bf16.msra.mxu0 %v6827
      %7358 = vmatprep.subr.bf16.mxu0 %v6835
      %7359 = vmatpush1.bf16.msra.mxu0 %v6834
      %7360 = vmatprep.subr.bf16.mxu0 %v6842
      %7361 = vmatpush1.bf16.msra.mxu0 %v6841
      %7362 = vmatprep.subr.bf16.mxu0 %v6849
      %7363 = vmatpush1.bf16.msra.mxu0 %v6848
      %7364 = vmatprep.subr.bf16.mxu0 %v6856
      %7365 = vmatpush1.bf16.msra.mxu0 %v6855
      %7366 = vmatprep.subr.bf16.mxu0 %v6863
      %7367 = vmatpush1.bf16.msra.mxu0 %v6862
      %7368 = vmatprep.subr.bf16.mxu0 %v6870
      %7369 = vmatpush1.bf16.msra.mxu0 %v6869
      %7370 = vmatprep.subr.bf16.mxu0 %v6877
      %7371 = vmatpush1.bf16.msra.mxu0 %v6876
      %7372 = vmatprep.subr.bf16.mxu0 %v6884
      %7373 = vmatpush1.bf16.msra.mxu0 %v6883
      %7374 = vmatprep.subr.bf16.mxu0 %v6891
      %7375 = vmatpush1.bf16.msra.mxu0 %v6890
      %7376 = vmatprep.subr.bf16.mxu0 %v6898
      %7377 = vmatpush1.bf16.msra.mxu0 %v6897
      %7378 = vmatprep.subr.bf16.mxu0 %v6905
      %7379 = vmatpush1.bf16.msra.mxu0 %v6904
      %7380 = vmatprep.subr.bf16.mxu0 %v6912
      %7381 = vmatpush1.bf16.msra.mxu0 %v6911
      %7382 = vmatprep.subr.bf16.mxu0 %v6919
      %7383 = vmatpush1.bf16.msra.mxu0 %v6918
      %7384 = vmatprep.subr.bf16.mxu0 %v6926
      %7385 = vmatpush1.bf16.msra.mxu0 %v6925
      %7386 = vmatprep.subr.bf16.mxu0 %v6933
      %7387 = vmatpush1.bf16.msra.mxu0 %v6932
      %7388 = vmatprep.mubr.bf16.mxu0 %v5657
      %7389 = vmatmul.mubr.bf16.gmra.mrb[0].mxu0 %v5656
      %v7390 = vpop.f32.mrb[0].mxu0
      %v7391 = vadd.f32 %v7198, %v7390
      %v7392 = vpop.f32.mrb[0].mxu0
      %v7393 = vadd.f32 %v7200, %v7392
      %v7394 = vpop.f32.mrb[0].mxu0
      %v7395 = vadd.f32 %v7202, %v7394
      %v7396 = vpop.f32.mrb[0].mxu0
      %v7397 = vadd.f32 %v7204, %v7396
      %7398 = vmatprep.mubr.bf16.mxu0 %v5661
      %7399 = vmatmul.mubr.bf16.gmra.mrb[0].mxu0 %v5660
      %v7400 = vpop.f32.mrb[0].mxu0
      %v7401 = vadd.f32 %v7208, %v7400
      %v7402 = vpop.f32.mrb[0].mxu0
      %v7403 = vadd.f32 %v7210, %v7402
      %v7404 = vpop.f32.mrb[0].mxu0
      %v7405 = vadd.f32 %v7212, %v7404
      %v7406 = vpop.f32.mrb[0].mxu0
      %v7407 = vadd.f32 %v7214, %v7406
      %7408 = vmatprep.mubr.bf16.mxu0 %v5665
      %7409 = vmatmul.mubr.bf16.gmra.mrb[0].mxu0 %v5664
      %v7410 = vpop.f32.mrb[0].mxu0
      %v7411 = vadd.f32 %v7218, %v7410
      %v7412 = vpop.f32.mrb[0].mxu0
      %v7413 = vadd.f32 %v7220, %v7412
      %v7414 = vpop.f32.mrb[0].mxu0
      %v7415 = vadd.f32 %v7222, %v7414
      %v7416 = vpop.f32.mrb[0].mxu0
      %v7417 = vadd.f32 %v7224, %v7416
      %7418 = vmatprep.mubr.bf16.mxu0 %v5669
      %7419 = vmatmul.mubr.bf16.gmra.mrb[0].mxu0 %v5668
      %v7420 = vpop.f32.mrb[0].mxu0
      %v7421 = vadd.f32 %v7228, %v7420
      %v7422 = vpop.f32.mrb[0].mxu0
      %v7423 = vadd.f32 %v7230, %v7422
      %v7424 = vpop.f32.mrb[0].mxu0
      %v7425 = vadd.f32 %v7232, %v7424
      %v7426 = vpop.f32.mrb[0].mxu0
      %v7427 = vadd.f32 %v7234, %v7426
      %7428 = vmatprep.mubr.bf16.mxu0 %v5673
      %7429 = vmatmul.mubr.bf16.gmra.mrb[0].mxu0 %v5672
      %v7430 = vpop.f32.mrb[0].mxu0
      %v7431 = vadd.f32 %v7238, %v7430
      %v7432 = vpop.f32.mrb[0].mxu0
      %v7433 = vadd.f32 %v7240, %v7432
      %v7434 = vpop.f32.mrb[0].mxu0
      %v7435 = vadd.f32 %v7242, %v7434
      %v7436 = vpop.f32.mrb[0].mxu0
      %v7437 = vadd.f32 %v7244, %v7436
      %7438 = vmatprep.mubr.bf16.mxu0 %v5677
      %7439 = vmatmul.mubr.bf16.gmra.mrb[0].mxu0 %v5676
      %v7440 = vpop.f32.mrb[0].mxu0
      %v7441 = vadd.f32 %v7248, %v7440
      %v7442 = vpop.f32.mrb[0].mxu0
      %v7443 = vadd.f32 %v7250, %v7442
      %v7444 = vpop.f32.mrb[0].mxu0
      %v7445 = vadd.f32 %v7252, %v7444
      %v7446 = vpop.f32.mrb[0].mxu0
      %v7447 = vadd.f32 %v7254, %v7446
      %7448 = vmatprep.mubr.bf16.mxu0 %v5681
      %7449 = vmatmul.mubr.bf16.gmra.mrb[0].mxu0 %v5680
      %v7450 = vpop.f32.mrb[0].mxu0
      %v7451 = vadd.f32 %v7258, %v7450
      %v7452 = vpop.f32.mrb[0].mxu0
      %v7453 = vadd.f32 %v7260, %v7452
      %v7454 = vpop.f32.mrb[0].mxu0
      %v7455 = vadd.f32 %v7262, %v7454
      %v7456 = vpop.f32.mrb[0].mxu0
      %v7457 = vadd.f32 %v7264, %v7456
      %7458 = vmatprep.mubr.bf16.mxu0 %v5685
      %7459 = vmatmul.mubr.bf16.gmra.mrb[0].mxu0 %v5684
      %v7460 = vpop.f32.mrb[0].mxu0
      %v7461 = vadd.f32 %v7268, %v7460
      %v7462 = vpop.f32.mrb[0].mxu0
      %v7463 = vadd.f32 %v7270, %v7462
      %v7464 = vpop.f32.mrb[0].mxu0
      %v7465 = vadd.f32 %v7272, %v7464
      %v7466 = vpop.f32.mrb[0].mxu0
      %v7467 = vadd.f32 %v7274, %v7466
      %7468 = vmatprep.mubr.bf16.mxu0 %v5689
      %7469 = vmatmul.mubr.bf16.gmra.mrb[0].mxu0 %v5688
      %v7470 = vpop.f32.mrb[0].mxu0
      %v7471 = vadd.f32 %v7278, %v7470
      %v7472 = vpop.f32.mrb[0].mxu0
      %v7473 = vadd.f32 %v7280, %v7472
      %v7474 = vpop.f32.mrb[0].mxu0
      %v7475 = vadd.f32 %v7282, %v7474
      %v7476 = vpop.f32.mrb[0].mxu0
      %v7477 = vadd.f32 %v7284, %v7476
      %7478 = vmatprep.mubr.bf16.mxu0 %v5693
      %7479 = vmatmul.mubr.bf16.gmra.mrb[0].mxu0 %v5692
      %v7480 = vpop.f32.mrb[0].mxu0
      %v7481 = vadd.f32 %v7288, %v7480
      %v7482 = vpop.f32.mrb[0].mxu0
      %v7483 = vadd.f32 %v7290, %v7482
      %v7484 = vpop.f32.mrb[0].mxu0
      %v7485 = vadd.f32 %v7292, %v7484
      %v7486 = vpop.f32.mrb[0].mxu0
      %v7487 = vadd.f32 %v7294, %v7486
      %7488 = vmatprep.mubr.bf16.mxu0 %v5697
      %7489 = vmatmul.mubr.bf16.gmra.mrb[0].mxu0 %v5696
      %v7490 = vpop.f32.mrb[0].mxu0
      %v7491 = vadd.f32 %v7298, %v7490
      %v7492 = vpop.f32.mrb[0].mxu0
      %v7493 = vadd.f32 %v7300, %v7492
      %v7494 = vpop.f32.mrb[0].mxu0
      %v7495 = vadd.f32 %v7302, %v7494
      %v7496 = vpop.f32.mrb[0].mxu0
      %v7497 = vadd.f32 %v7304, %v7496
      %7498 = vmatprep.mubr.bf16.mxu0 %v5701
      %7499 = vmatmul.mubr.bf16.gmra.mrb[0].mxu0 %v5700
      %v7500 = vpop.f32.mrb[0].mxu0
      %v7501 = vadd.f32 %v7308, %v7500
      %v7502 = vpop.f32.mrb[0].mxu0
      %v7503 = vadd.f32 %v7310, %v7502
      %v7504 = vpop.f32.mrb[0].mxu0
      %v7505 = vadd.f32 %v7312, %v7504
      %v7506 = vpop.f32.mrb[0].mxu0
      %v7507 = vadd.f32 %v7314, %v7506
      %7508 = vmatprep.mubr.bf16.mxu0 %v5705
      %7509 = vmatmul.mubr.bf16.gmra.mrb[0].mxu0 %v5704
      %v7510 = vpop.f32.mrb[0].mxu0
      %v7511 = vadd.f32 %v7318, %v7510
      %v7512 = vpop.f32.mrb[0].mxu0
      %v7513 = vadd.f32 %v7320, %v7512
      %v7514 = vpop.f32.mrb[0].mxu0
      %v7515 = vadd.f32 %v7322, %v7514
      %v7516 = vpop.f32.mrb[0].mxu0
      %v7517 = vadd.f32 %v7324, %v7516
      %7518 = vmatprep.mubr.bf16.mxu0 %v5709
      %7519 = vmatmul.mubr.bf16.gmra.mrb[0].mxu0 %v5708
      %v7520 = vpop.f32.mrb[0].mxu0
      %v7521 = vadd.f32 %v7328, %v7520
      %v7522 = vpop.f32.mrb[0].mxu0
      %v7523 = vadd.f32 %v7330, %v7522
      %v7524 = vpop.f32.mrb[0].mxu0
      %v7525 = vadd.f32 %v7332, %v7524
      %v7526 = vpop.f32.mrb[0].mxu0
      %v7527 = vadd.f32 %v7334, %v7526
      %7528 = vmatprep.mubr.bf16.mxu0 %v5713
      %7529 = vmatmul.mubr.bf16.gmra.mrb[0].mxu0 %v5712
      %v7530 = vpop.f32.mrb[0].mxu0
      %v7531 = vadd.f32 %v7338, %v7530
      %v7532 = vpop.f32.mrb[0].mxu0
      %v7533 = vadd.f32 %v7340, %v7532
      %v7534 = vpop.f32.mrb[0].mxu0
      %v7535 = vadd.f32 %v7342, %v7534
      %v7536 = vpop.f32.mrb[0].mxu0
      %v7537 = vadd.f32 %v7344, %v7536
      %7538 = vmatprep.mubr.bf16.mxu0 %v5717
      %7539 = vmatmul.mubr.bf16.gmra.mrb[0].mxu0 %v5716
      %v7540 = vpop.f32.mrb[0].mxu0
      %v7541 = vadd.f32 %v7348, %v7540
      %v7542 = vpop.f32.mrb[0].mxu0
      %v7543 = vadd.f32 %v7350, %v7542
      %v7544 = vpop.f32.mrb[0].mxu0
      %v7545 = vadd.f32 %v7352, %v7544
      %v7546 = vpop.f32.mrb[0].mxu0
      %v7547 = vadd.f32 %v7354, %v7546
      %7548 = vdwg.mxu0
      %7549 = vmatprep.subr.bf16.mxu0 %v6718
      %7550 = vmatpush1.bf16.msra.mxu0 %v6717
      %7551 = vmatprep.subr.bf16.mxu0 %v6725
      %7552 = vmatpush1.bf16.msra.mxu0 %v6724
      %7553 = vmatprep.subr.bf16.mxu0 %v6732
      %7554 = vmatpush1.bf16.msra.mxu0 %v6731
      %7555 = vmatprep.subr.bf16.mxu0 %v6739
      %7556 = vmatpush1.bf16.msra.mxu0 %v6738
      %7557 = vmatprep.subr.bf16.mxu0 %v6746
      %7558 = vmatpush1.bf16.msra.mxu0 %v6745
      %7559 = vmatprep.subr.bf16.mxu0 %v6753
      %7560 = vmatpush1.bf16.msra.mxu0 %v6752
      %7561 = vmatprep.subr.bf16.mxu0 %v6760
      %7562 = vmatpush1.bf16.msra.mxu0 %v6759
      %7563 = vmatprep.subr.bf16.mxu0 %v6767
      %7564 = vmatpush1.bf16.msra.mxu0 %v6766
      %7565 = vmatprep.subr.bf16.mxu0 %v6774
      %7566 = vmatpush1.bf16.msra.mxu0 %v6773
      %7567 = vmatprep.subr.bf16.mxu0 %v6781
      %7568 = vmatpush1.bf16.msra.mxu0 %v6780
      %7569 = vmatprep.subr.bf16.mxu0 %v6788
      %7570 = vmatpush1.bf16.msra.mxu0 %v6787
      %7571 = vmatprep.subr.bf16.mxu0 %v6795
      %7572 = vmatpush1.bf16.msra.mxu0 %v6794
      %7573 = vmatprep.subr.bf16.mxu0 %v6802
      %7574 = vmatpush1.bf16.msra.mxu0 %v6801
      %7575 = vmatprep.subr.bf16.mxu0 %v6809
      %7576 = vmatpush1.bf16.msra.mxu0 %v6808
      %7577 = vmatprep.subr.bf16.mxu0 %v6816
      %7578 = vmatpush1.bf16.msra.mxu0 %v6815
      %7579 = vmatprep.subr.bf16.mxu0 %v6823
      %7580 = vmatpush1.bf16.msra.mxu0 %v6822
      %7581 = vmatprep.mubr.bf16.mxu0 %v5655
      %7582 = vmatmul.mubr.bf16.gmra.mrb[0].mxu0 %v5654
      %v7583 = vpop.f32.mrb[0].mxu0
      %v7584 = vadd.f32 %v5987, %v7583
      %v7585 = vpop.f32.mrb[0].mxu0
      %v7586 = vadd.f32 %v5991, %v7585
      %v7587 = vpop.f32.mrb[0].mxu0
      %v7588 = vadd.f32 %v5987, %v7587
      %v7589 = vpop.f32.mrb[0].mxu0
      %v7590 = vadd.f32 %v5991, %v7589
      %7591 = vmatprep.mubr.bf16.mxu0 %v5659
      %7592 = vmatmul.mubr.bf16.gmra.mrb[0].mxu0 %v5658
      %v7593 = vpop.f32.mrb[0].mxu0
      %v7594 = vadd.f32 %v5987, %v7593
      %v7595 = vpop.f32.mrb[0].mxu0
      %v7596 = vadd.f32 %v5991, %v7595
      %v7597 = vpop.f32.mrb[0].mxu0
      %v7598 = vadd.f32 %v5987, %v7597
      %v7599 = vpop.f32.mrb[0].mxu0
      %v7600 = vadd.f32 %v5991, %v7599
      %7601 = vmatprep.mubr.bf16.mxu0 %v5663
      %7602 = vmatmul.mubr.bf16.gmra.mrb[0].mxu0 %v5662
      %v7603 = vpop.f32.mrb[0].mxu0
      %v7604 = vadd.f32 %v5987, %v7603
      %v7605 = vpop.f32.mrb[0].mxu0
      %v7606 = vadd.f32 %v5991, %v7605
      %v7607 = vpop.f32.mrb[0].mxu0
      %v7608 = vadd.f32 %v5987, %v7607
      %v7609 = vpop.f32.mrb[0].mxu0
      %v7610 = vadd.f32 %v5991, %v7609
      %7611 = vmatprep.mubr.bf16.mxu0 %v5667
      %7612 = vmatmul.mubr.bf16.gmra.mrb[0].mxu0 %v5666
      %v7613 = vpop.f32.mrb[0].mxu0
      %v7614 = vadd.f32 %v5987, %v7613
      %v7615 = vpop.f32.mrb[0].mxu0
      %v7616 = vadd.f32 %v5991, %v7615
      %v7617 = vpop.f32.mrb[0].mxu0
      %v7618 = vadd.f32 %v5987, %v7617
      %v7619 = vpop.f32.mrb[0].mxu0
      %v7620 = vadd.f32 %v5991, %v7619
      %7621 = vmatprep.mubr.bf16.mxu0 %v5671
      %7622 = vmatmul.mubr.bf16.gmra.mrb[0].mxu0 %v5670
      %v7623 = vpop.f32.mrb[0].mxu0
      %v7624 = vadd.f32 %v5987, %v7623
      %v7625 = vpop.f32.mrb[0].mxu0
      %v7626 = vadd.f32 %v5991, %v7625
      %v7627 = vpop.f32.mrb[0].mxu0
      %v7628 = vadd.f32 %v5987, %v7627
      %v7629 = vpop.f32.mrb[0].mxu0
      %v7630 = vadd.f32 %v5991, %v7629
      %7631 = vmatprep.mubr.bf16.mxu0 %v5675
      %7632 = vmatmul.mubr.bf16.gmra.mrb[0].mxu0 %v5674
      %v7633 = vpop.f32.mrb[0].mxu0
      %v7634 = vadd.f32 %v5987, %v7633
      %v7635 = vpop.f32.mrb[0].mxu0
      %v7636 = vadd.f32 %v5991, %v7635
      %v7637 = vpop.f32.mrb[0].mxu0
      %v7638 = vadd.f32 %v5987, %v7637
      %v7639 = vpop.f32.mrb[0].mxu0
      %v7640 = vadd.f32 %v5991, %v7639
      %7641 = vmatprep.mubr.bf16.mxu0 %v5679
      %7642 = vmatmul.mubr.bf16.gmra.mrb[0].mxu0 %v5678
      %v7643 = vpop.f32.mrb[0].mxu0
      %v7644 = vadd.f32 %v5987, %v7643
      %v7645 = vpop.f32.mrb[0].mxu0
      %v7646 = vadd.f32 %v5991, %v7645
      %v7647 = vpop.f32.mrb[0].mxu0
      %v7648 = vadd.f32 %v5987, %v7647
      %v7649 = vpop.f32.mrb[0].mxu0
      %v7650 = vadd.f32 %v5991, %v7649
      %7651 = vmatprep.mubr.bf16.mxu0 %v5683
      %7652 = vmatmul.mubr.bf16.gmra.mrb[0].mxu0 %v5682
      %v7653 = vpop.f32.mrb[0].mxu0
      %v7654 = vadd.f32 %v5987, %v7653
      %v7655 = vpop.f32.mrb[0].mxu0
      %v7656 = vadd.f32 %v5991, %v7655
      %v7657 = vpop.f32.mrb[0].mxu0
      %v7658 = vadd.f32 %v5987, %v7657
      %v7659 = vpop.f32.mrb[0].mxu0
      %v7660 = vadd.f32 %v5991, %v7659
      %7661 = vmatprep.mubr.bf16.mxu0 %v5687
      %7662 = vmatmul.mubr.bf16.gmra.mrb[0].mxu0 %v5686
      %v7663 = vpop.f32.mrb[0].mxu0
      %v7664 = vadd.f32 %v5987, %v7663
      %v7665 = vpop.f32.mrb[0].mxu0
      %v7666 = vadd.f32 %v5991, %v7665
      %v7667 = vpop.f32.mrb[0].mxu0
      %v7668 = vadd.f32 %v5987, %v7667
      %v7669 = vpop.f32.mrb[0].mxu0
      %v7670 = vadd.f32 %v5991, %v7669
      %7671 = vmatprep.mubr.bf16.mxu0 %v5691
      %7672 = vmatmul.mubr.bf16.gmra.mrb[0].mxu0 %v5690
      %v7673 = vpop.f32.mrb[0].mxu0
      %v7674 = vadd.f32 %v5987, %v7673
      %v7675 = vpop.f32.mrb[0].mxu0
      %v7676 = vadd.f32 %v5991, %v7675
      %v7677 = vpop.f32.mrb[0].mxu0
      %v7678 = vadd.f32 %v5987, %v7677
      %v7679 = vpop.f32.mrb[0].mxu0
      %v7680 = vadd.f32 %v5991, %v7679
      %7681 = vmatprep.mubr.bf16.mxu0 %v5695
      %7682 = vmatmul.mubr.bf16.gmra.mrb[0].mxu0 %v5694
      %v7683 = vpop.f32.mrb[0].mxu0
      %v7684 = vadd.f32 %v5987, %v7683
      %v7685 = vpop.f32.mrb[0].mxu0
      %v7686 = vadd.f32 %v5991, %v7685
      %v7687 = vpop.f32.mrb[0].mxu0
      %v7688 = vadd.f32 %v5987, %v7687
      %v7689 = vpop.f32.mrb[0].mxu0
      %v7690 = vadd.f32 %v5991, %v7689
      %7691 = vmatprep.mubr.bf16.mxu0 %v5699
      %7692 = vmatmul.mubr.bf16.gmra.mrb[0].mxu0 %v5698
      %v7693 = vpop.f32.mrb[0].mxu0
      %v7694 = vadd.f32 %v5987, %v7693
      %v7695 = vpop.f32.mrb[0].mxu0
      %v7696 = vadd.f32 %v5991, %v7695
      %v7697 = vpop.f32.mrb[0].mxu0
      %v7698 = vadd.f32 %v5987, %v7697
      %v7699 = vpop.f32.mrb[0].mxu0
      %v7700 = vadd.f32 %v5991, %v7699
      %7701 = vmatprep.mubr.bf16.mxu0 %v5703
      %7702 = vmatmul.mubr.bf16.gmra.mrb[0].mxu0 %v5702
      %v7703 = vpop.f32.mrb[0].mxu0
      %v7704 = vadd.f32 %v5987, %v7703
      %v7705 = vpop.f32.mrb[0].mxu0
      %v7706 = vadd.f32 %v5991, %v7705
      %v7707 = vpop.f32.mrb[0].mxu0
      %v7708 = vadd.f32 %v5987, %v7707
      %v7709 = vpop.f32.mrb[0].mxu0
      %v7710 = vadd.f32 %v5991, %v7709
      %7711 = vmatprep.mubr.bf16.mxu0 %v5707
      %7712 = vmatmul.mubr.bf16.gmra.mrb[0].mxu0 %v5706
      %v7713 = vpop.f32.mrb[0].mxu0
      %v7714 = vadd.f32 %v5987, %v7713
      %v7715 = vpop.f32.mrb[0].mxu0
      %v7716 = vadd.f32 %v5991, %v7715
      %v7717 = vpop.f32.mrb[0].mxu0
      %v7718 = vadd.f32 %v5987, %v7717
      %v7719 = vpop.f32.mrb[0].mxu0
      %v7720 = vadd.f32 %v5991, %v7719
      %7721 = vmatprep.mubr.bf16.mxu0 %v5711
      %7722 = vmatmul.mubr.bf16.gmra.mrb[0].mxu0 %v5710
      %v7723 = vpop.f32.mrb[0].mxu0
      %v7724 = vadd.f32 %v5987, %v7723
      %v7725 = vpop.f32.mrb[0].mxu0
      %v7726 = vadd.f32 %v5991, %v7725
      %v7727 = vpop.f32.mrb[0].mxu0
      %v7728 = vadd.f32 %v5987, %v7727
      %v7729 = vpop.f32.mrb[0].mxu0
      %v7730 = vadd.f32 %v5991, %v7729
      %7731 = vmatprep.mubr.bf16.mxu0 %v5715
      %7732 = vmatmul.mubr.bf16.gmra.mrb[0].mxu0 %v5714
      %v7733 = vpop.f32.mrb[0].mxu0
      %v7734 = vadd.f32 %v5987, %v7733
      %v7735 = vpop.f32.mrb[0].mxu0
      %v7736 = vadd.f32 %v5991, %v7735
      %v7737 = vpop.f32.mrb[0].mxu0
      %v7738 = vadd.f32 %v5987, %v7737
      %v7739 = vpop.f32.mrb[0].mxu0
      %v7740 = vadd.f32 %v5991, %v7739
      %7741 = vdwg.mxu0
      %7742 = vmatprep.subr.bf16.mxu0 %v6830
      %7743 = vmatpush1.bf16.msra.mxu0 %v6829
      %7744 = vmatprep.subr.bf16.mxu0 %v6837
      %7745 = vmatpush1.bf16.msra.mxu0 %v6836
      %7746 = vmatprep.subr.bf16.mxu0 %v6844
      %7747 = vmatpush1.bf16.msra.mxu0 %v6843
      %7748 = vmatprep.subr.bf16.mxu0 %v6851
      %7749 = vmatpush1.bf16.msra.mxu0 %v6850
      %7750 = vmatprep.subr.bf16.mxu0 %v6858
      %7751 = vmatpush1.bf16.msra.mxu0 %v6857
      %7752 = vmatprep.subr.bf16.mxu0 %v6865
      %7753 = vmatpush1.bf16.msra.mxu0 %v6864
      %7754 = vmatprep.subr.bf16.mxu0 %v6872
      %7755 = vmatpush1.bf16.msra.mxu0 %v6871
      %7756 = vmatprep.subr.bf16.mxu0 %v6879
      %7757 = vmatpush1.bf16.msra.mxu0 %v6878
      %7758 = vmatprep.subr.bf16.mxu0 %v6886
      %7759 = vmatpush1.bf16.msra.mxu0 %v6885
      %7760 = vmatprep.subr.bf16.mxu0 %v6893
      %7761 = vmatpush1.bf16.msra.mxu0 %v6892
      %7762 = vmatprep.subr.bf16.mxu0 %v6900
      %7763 = vmatpush1.bf16.msra.mxu0 %v6899
      %7764 = vmatprep.subr.bf16.mxu0 %v6907
      %7765 = vmatpush1.bf16.msra.mxu0 %v6906
      %7766 = vmatprep.subr.bf16.mxu0 %v6914
      %7767 = vmatpush1.bf16.msra.mxu0 %v6913
      %7768 = vmatprep.subr.bf16.mxu0 %v6921
      %7769 = vmatpush1.bf16.msra.mxu0 %v6920
      %7770 = vmatprep.subr.bf16.mxu0 %v6928
      %7771 = vmatpush1.bf16.msra.mxu0 %v6927
      %7772 = vmatprep.subr.bf16.mxu0 %v6935
      %7773 = vmatpush1.bf16.msra.mxu0 %v6934
      %7774 = vmatprep.mubr.bf16.mxu0 %v5657
      %7775 = vmatmul.mubr.bf16.gmra.mrb[0].mxu0 %v5656
      %v7776 = vpop.f32.mrb[0].mxu0
      %v7777 = vadd.f32 %v7584, %v7776
      %v7778 = vpop.f32.mrb[0].mxu0
      %v7779 = vadd.f32 %v7586, %v7778
      %v7780 = vpop.f32.mrb[0].mxu0
      %v7781 = vadd.f32 %v7588, %v7780
      %v7782 = vpop.f32.mrb[0].mxu0
      %v7783 = vadd.f32 %v7590, %v7782
      %7784 = vmatprep.mubr.bf16.mxu0 %v5661
      %7785 = vmatmul.mubr.bf16.gmra.mrb[0].mxu0 %v5660
      %v7786 = vpop.f32.mrb[0].mxu0
      %v7787 = vadd.f32 %v7594, %v7786
      %v7788 = vpop.f32.mrb[0].mxu0
      %v7789 = vadd.f32 %v7596, %v7788
      %v7790 = vpop.f32.mrb[0].mxu0
      %v7791 = vadd.f32 %v7598, %v7790
      %v7792 = vpop.f32.mrb[0].mxu0
      %v7793 = vadd.f32 %v7600, %v7792
      %7794 = vmatprep.mubr.bf16.mxu0 %v5665
      %7795 = vmatmul.mubr.bf16.gmra.mrb[0].mxu0 %v5664
      %v7796 = vpop.f32.mrb[0].mxu0
      %v7797 = vadd.f32 %v7604, %v7796
      %v7798 = vpop.f32.mrb[0].mxu0
      %v7799 = vadd.f32 %v7606, %v7798
      %v7800 = vpop.f32.mrb[0].mxu0
      %v7801 = vadd.f32 %v7608, %v7800
      %v7802 = vpop.f32.mrb[0].mxu0
      %v7803 = vadd.f32 %v7610, %v7802
      %7804 = vmatprep.mubr.bf16.mxu0 %v5669
      %7805 = vmatmul.mubr.bf16.gmra.mrb[0].mxu0 %v5668
      %v7806 = vpop.f32.mrb[0].mxu0
      %v7807 = vadd.f32 %v7614, %v7806
      %v7808 = vpop.f32.mrb[0].mxu0
      %v7809 = vadd.f32 %v7616, %v7808
      %v7810 = vpop.f32.mrb[0].mxu0
      %v7811 = vadd.f32 %v7618, %v7810
      %v7812 = vpop.f32.mrb[0].mxu0
      %v7813 = vadd.f32 %v7620, %v7812
      %7814 = vmatprep.mubr.bf16.mxu0 %v5673
      %7815 = vmatmul.mubr.bf16.gmra.mrb[0].mxu0 %v5672
      %v7816 = vpop.f32.mrb[0].mxu0
      %v7817 = vadd.f32 %v7624, %v7816
      %v7818 = vpop.f32.mrb[0].mxu0
      %v7819 = vadd.f32 %v7626, %v7818
      %v7820 = vpop.f32.mrb[0].mxu0
      %v7821 = vadd.f32 %v7628, %v7820
      %v7822 = vpop.f32.mrb[0].mxu0
      %v7823 = vadd.f32 %v7630, %v7822
      %7824 = vmatprep.mubr.bf16.mxu0 %v5677
      %7825 = vmatmul.mubr.bf16.gmra.mrb[0].mxu0 %v5676
      %v7826 = vpop.f32.mrb[0].mxu0
      %v7827 = vadd.f32 %v7634, %v7826
      %v7828 = vpop.f32.mrb[0].mxu0
      %v7829 = vadd.f32 %v7636, %v7828
      %v7830 = vpop.f32.mrb[0].mxu0
      %v7831 = vadd.f32 %v7638, %v7830
      %v7832 = vpop.f32.mrb[0].mxu0
      %v7833 = vadd.f32 %v7640, %v7832
      %7834 = vmatprep.mubr.bf16.mxu0 %v5681
      %7835 = vmatmul.mubr.bf16.gmra.mrb[0].mxu0 %v5680
      %v7836 = vpop.f32.mrb[0].mxu0
      %v7837 = vadd.f32 %v7644, %v7836
      %v7838 = vpop.f32.mrb[0].mxu0
      %v7839 = vadd.f32 %v7646, %v7838
      %v7840 = vpop.f32.mrb[0].mxu0
      %v7841 = vadd.f32 %v7648, %v7840
      %v7842 = vpop.f32.mrb[0].mxu0
      %v7843 = vadd.f32 %v7650, %v7842
      %7844 = vmatprep.mubr.bf16.mxu0 %v5685
      %7845 = vmatmul.mubr.bf16.gmra.mrb[0].mxu0 %v5684
      %v7846 = vpop.f32.mrb[0].mxu0
      %v7847 = vadd.f32 %v7654, %v7846
      %v7848 = vpop.f32.mrb[0].mxu0
      %v7849 = vadd.f32 %v7656, %v7848
      %v7850 = vpop.f32.mrb[0].mxu0
      %v7851 = vadd.f32 %v7658, %v7850
      %v7852 = vpop.f32.mrb[0].mxu0
      %v7853 = vadd.f32 %v7660, %v7852
      %7854 = vmatprep.mubr.bf16.mxu0 %v5689
      %7855 = vmatmul.mubr.bf16.gmra.mrb[0].mxu0 %v5688
      %v7856 = vpop.f32.mrb[0].mxu0
      %v7857 = vadd.f32 %v7664, %v7856
      %v7858 = vpop.f32.mrb[0].mxu0
      %v7859 = vadd.f32 %v7666, %v7858
      %v7860 = vpop.f32.mrb[0].mxu0
      %v7861 = vadd.f32 %v7668, %v7860
      %v7862 = vpop.f32.mrb[0].mxu0
      %v7863 = vadd.f32 %v7670, %v7862
      %7864 = vmatprep.mubr.bf16.mxu0 %v5693
      %7865 = vmatmul.mubr.bf16.gmra.mrb[0].mxu0 %v5692
      %v7866 = vpop.f32.mrb[0].mxu0
      %v7867 = vadd.f32 %v7674, %v7866
      %v7868 = vpop.f32.mrb[0].mxu0
      %v7869 = vadd.f32 %v7676, %v7868
      %v7870 = vpop.f32.mrb[0].mxu0
      %v7871 = vadd.f32 %v7678, %v7870
      %v7872 = vpop.f32.mrb[0].mxu0
      %v7873 = vadd.f32 %v7680, %v7872
      %7874 = vmatprep.mubr.bf16.mxu0 %v5697
      %7875 = vmatmul.mubr.bf16.gmra.mrb[0].mxu0 %v5696
      %v7876 = vpop.f32.mrb[0].mxu0
      %v7877 = vadd.f32 %v7684, %v7876
      %v7878 = vpop.f32.mrb[0].mxu0
      %v7879 = vadd.f32 %v7686, %v7878
      %v7880 = vpop.f32.mrb[0].mxu0
      %v7881 = vadd.f32 %v7688, %v7880
      %v7882 = vpop.f32.mrb[0].mxu0
      %v7883 = vadd.f32 %v7690, %v7882
      %7884 = vmatprep.mubr.bf16.mxu0 %v5701
      %7885 = vmatmul.mubr.bf16.gmra.mrb[0].mxu0 %v5700
      %v7886 = vpop.f32.mrb[0].mxu0
      %v7887 = vadd.f32 %v7694, %v7886
      %v7888 = vpop.f32.mrb[0].mxu0
      %v7889 = vadd.f32 %v7696, %v7888
      %v7890 = vpop.f32.mrb[0].mxu0
      %v7891 = vadd.f32 %v7698, %v7890
      %v7892 = vpop.f32.mrb[0].mxu0
      %v7893 = vadd.f32 %v7700, %v7892
      %7894 = vmatprep.mubr.bf16.mxu0 %v5705
      %7895 = vmatmul.mubr.bf16.gmra.mrb[0].mxu0 %v5704
      %v7896 = vpop.f32.mrb[0].mxu0
      %v7897 = vadd.f32 %v7704, %v7896
      %v7898 = vpop.f32.mrb[0].mxu0
      %v7899 = vadd.f32 %v7706, %v7898
      %v7900 = vpop.f32.mrb[0].mxu0
      %v7901 = vadd.f32 %v7708, %v7900
      %v7902 = vpop.f32.mrb[0].mxu0
      %v7903 = vadd.f32 %v7710, %v7902
      %7904 = vmatprep.mubr.bf16.mxu0 %v5709
      %7905 = vmatmul.mubr.bf16.gmra.mrb[0].mxu0 %v5708
      %v7906 = vpop.f32.mrb[0].mxu0
      %v7907 = vadd.f32 %v7714, %v7906
      %v7908 = vpop.f32.mrb[0].mxu0
      %v7909 = vadd.f32 %v7716, %v7908
      %v7910 = vpop.f32.mrb[0].mxu0
      %v7911 = vadd.f32 %v7718, %v7910
      %v7912 = vpop.f32.mrb[0].mxu0
      %v7913 = vadd.f32 %v7720, %v7912
      %7914 = vmatprep.mubr.bf16.mxu0 %v5713
      %7915 = vmatmul.mubr.bf16.gmra.mrb[0].mxu0 %v5712
      %v7916 = vpop.f32.mrb[0].mxu0
      %v7917 = vadd.f32 %v7724, %v7916
      %v7918 = vpop.f32.mrb[0].mxu0
      %v7919 = vadd.f32 %v7726, %v7918
      %v7920 = vpop.f32.mrb[0].mxu0
      %v7921 = vadd.f32 %v7728, %v7920
      %v7922 = vpop.f32.mrb[0].mxu0
      %v7923 = vadd.f32 %v7730, %v7922
      %7924 = vmatprep.mubr.bf16.mxu0 %v5717
      %7925 = vmatmul.mubr.bf16.gmra.mrb[0].mxu0 %v5716
      %v7926 = vpop.f32.mrb[0].mxu0
      %v7927 = vadd.f32 %v7734, %v7926
      %v7928 = vpop.f32.mrb[0].mxu0
      %v7929 = vadd.f32 %v7736, %v7928
      %v7930 = vpop.f32.mrb[0].mxu0
      %v7931 = vadd.f32 %v7738, %v7930
      %v7932 = vpop.f32.mrb[0].mxu0
      %v7933 = vadd.f32 %v7740, %v7932
      %7934 = vdwg.mxu0
      %7935 = vmatprep.subr.bf16.mxu0 %v6720
      %7936 = vmatpush1.bf16.msra.mxu0 %v6719
      %7937 = vmatprep.subr.bf16.mxu0 %v6727
      %7938 = vmatpush1.bf16.msra.mxu0 %v6726
      %7939 = vmatprep.subr.bf16.mxu0 %v6734
      %7940 = vmatpush1.bf16.msra.mxu0 %v6733
      %7941 = vmatprep.subr.bf16.mxu0 %v6741
      %7942 = vmatpush1.bf16.msra.mxu0 %v6740
      %7943 = vmatprep.subr.bf16.mxu0 %v6748
      %7944 = vmatpush1.bf16.msra.mxu0 %v6747
      %7945 = vmatprep.subr.bf16.mxu0 %v6755
      %7946 = vmatpush1.bf16.msra.mxu0 %v6754
      %7947 = vmatprep.subr.bf16.mxu0 %v6762
      %7948 = vmatpush1.bf16.msra.mxu0 %v6761
      %7949 = vmatprep.subr.bf16.mxu0 %v6769
      %7950 = vmatpush1.bf16.msra.mxu0 %v6768
      %7951 = vmatprep.subr.bf16.mxu0 %v6776
      %7952 = vmatpush1.bf16.msra.mxu0 %v6775
      %7953 = vmatprep.subr.bf16.mxu0 %v6783
      %7954 = vmatpush1.bf16.msra.mxu0 %v6782
      %7955 = vmatprep.subr.bf16.mxu0 %v6790
      %7956 = vmatpush1.bf16.msra.mxu0 %v6789
      %7957 = vmatprep.subr.bf16.mxu0 %v6797
      %7958 = vmatpush1.bf16.msra.mxu0 %v6796
      %7959 = vmatprep.subr.bf16.mxu0 %v6804
      %7960 = vmatpush1.bf16.msra.mxu0 %v6803
      %7961 = vmatprep.subr.bf16.mxu0 %v6811
      %7962 = vmatpush1.bf16.msra.mxu0 %v6810
      %7963 = vmatprep.subr.bf16.mxu0 %v6818
      %7964 = vmatpush1.bf16.msra.mxu0 %v6817
      %7965 = vmatprep.subr.bf16.mxu0 %v6825
      %7966 = vmatpush1.bf16.msra.mxu0 %v6824
      %7967 = vmatprep.mubr.bf16.mxu0 %v5655
      %7968 = vmatmul.mubr.bf16.gmra.mrb[0].mxu0 %v5654
      %v7969 = vpop.f32.mrb[0].mxu0
      %v7970 = vadd.f32 %v5995, %v7969
      %v7971 = vpop.f32.mrb[0].mxu0
      %v7972 = vadd.f32 %v5999, %v7971
      %v7973 = vpop.f32.mrb[0].mxu0
      %v7974 = vadd.f32 %v5995, %v7973
      %v7975 = vpop.f32.mrb[0].mxu0
      %v7976 = vadd.f32 %v5999, %v7975
      %7977 = vmatprep.mubr.bf16.mxu0 %v5659
      %7978 = vmatmul.mubr.bf16.gmra.mrb[0].mxu0 %v5658
      %v7979 = vpop.f32.mrb[0].mxu0
      %v7980 = vadd.f32 %v5995, %v7979
      %v7981 = vpop.f32.mrb[0].mxu0
      %v7982 = vadd.f32 %v5999, %v7981
      %v7983 = vpop.f32.mrb[0].mxu0
      %v7984 = vadd.f32 %v5995, %v7983
      %v7985 = vpop.f32.mrb[0].mxu0
      %v7986 = vadd.f32 %v5999, %v7985
      %7987 = vmatprep.mubr.bf16.mxu0 %v5663
      %7988 = vmatmul.mubr.bf16.gmra.mrb[0].mxu0 %v5662
      %v7989 = vpop.f32.mrb[0].mxu0
      %v7990 = vadd.f32 %v5995, %v7989
      %v7991 = vpop.f32.mrb[0].mxu0
      %v7992 = vadd.f32 %v5999, %v7991
      %v7993 = vpop.f32.mrb[0].mxu0
      %v7994 = vadd.f32 %v5995, %v7993
      %v7995 = vpop.f32.mrb[0].mxu0
      %v7996 = vadd.f32 %v5999, %v7995
      %7997 = vmatprep.mubr.bf16.mxu0 %v5667
      %7998 = vmatmul.mubr.bf16.gmra.mrb[0].mxu0 %v5666
      %v7999 = vpop.f32.mrb[0].mxu0
      %v8000 = vadd.f32 %v5995, %v7999
      %v8001 = vpop.f32.mrb[0].mxu0
      %v8002 = vadd.f32 %v5999, %v8001
      %v8003 = vpop.f32.mrb[0].mxu0
      %v8004 = vadd.f32 %v5995, %v8003
      %v8005 = vpop.f32.mrb[0].mxu0
      %v8006 = vadd.f32 %v5999, %v8005
      %8007 = vmatprep.mubr.bf16.mxu0 %v5671
      %8008 = vmatmul.mubr.bf16.gmra.mrb[0].mxu0 %v5670
      %v8009 = vpop.f32.mrb[0].mxu0
      %v8010 = vadd.f32 %v5995, %v8009
      %v8011 = vpop.f32.mrb[0].mxu0
      %v8012 = vadd.f32 %v5999, %v8011
      %v8013 = vpop.f32.mrb[0].mxu0
      %v8014 = vadd.f32 %v5995, %v8013
      %v8015 = vpop.f32.mrb[0].mxu0
      %v8016 = vadd.f32 %v5999, %v8015
      %8017 = vmatprep.mubr.bf16.mxu0 %v5675
      %8018 = vmatmul.mubr.bf16.gmra.mrb[0].mxu0 %v5674
      %v8019 = vpop.f32.mrb[0].mxu0
      %v8020 = vadd.f32 %v5995, %v8019
      %v8021 = vpop.f32.mrb[0].mxu0
      %v8022 = vadd.f32 %v5999, %v8021
      %v8023 = vpop.f32.mrb[0].mxu0
      %v8024 = vadd.f32 %v5995, %v8023
      %v8025 = vpop.f32.mrb[0].mxu0
      %v8026 = vadd.f32 %v5999, %v8025
      %8027 = vmatprep.mubr.bf16.mxu0 %v5679
      %8028 = vmatmul.mubr.bf16.gmra.mrb[0].mxu0 %v5678
      %v8029 = vpop.f32.mrb[0].mxu0
      %v8030 = vadd.f32 %v5995, %v8029
      %v8031 = vpop.f32.mrb[0].mxu0
      %v8032 = vadd.f32 %v5999, %v8031
      %v8033 = vpop.f32.mrb[0].mxu0
      %v8034 = vadd.f32 %v5995, %v8033
      %v8035 = vpop.f32.mrb[0].mxu0
      %v8036 = vadd.f32 %v5999, %v8035
      %8037 = vmatprep.mubr.bf16.mxu0 %v5683
      %8038 = vmatmul.mubr.bf16.gmra.mrb[0].mxu0 %v5682
      %v8039 = vpop.f32.mrb[0].mxu0
      %v8040 = vadd.f32 %v5995, %v8039
      %v8041 = vpop.f32.mrb[0].mxu0
      %v8042 = vadd.f32 %v5999, %v8041
      %v8043 = vpop.f32.mrb[0].mxu0
      %v8044 = vadd.f32 %v5995, %v8043
      %v8045 = vpop.f32.mrb[0].mxu0
      %v8046 = vadd.f32 %v5999, %v8045
      %8047 = vmatprep.mubr.bf16.mxu0 %v5687
      %8048 = vmatmul.mubr.bf16.gmra.mrb[0].mxu0 %v5686
      %v8049 = vpop.f32.mrb[0].mxu0
      %v8050 = vadd.f32 %v5995, %v8049
      %v8051 = vpop.f32.mrb[0].mxu0
      %v8052 = vadd.f32 %v5999, %v8051
      %v8053 = vpop.f32.mrb[0].mxu0
      %v8054 = vadd.f32 %v5995, %v8053
      %v8055 = vpop.f32.mrb[0].mxu0
      %v8056 = vadd.f32 %v5999, %v8055
      %8057 = vmatprep.mubr.bf16.mxu0 %v5691
      %8058 = vmatmul.mubr.bf16.gmra.mrb[0].mxu0 %v5690
      %v8059 = vpop.f32.mrb[0].mxu0
      %v8060 = vadd.f32 %v5995, %v8059
      %v8061 = vpop.f32.mrb[0].mxu0
      %v8062 = vadd.f32 %v5999, %v8061
      %v8063 = vpop.f32.mrb[0].mxu0
      %v8064 = vadd.f32 %v5995, %v8063
      %v8065 = vpop.f32.mrb[0].mxu0
      %v8066 = vadd.f32 %v5999, %v8065
      %8067 = vmatprep.mubr.bf16.mxu0 %v5695
      %8068 = vmatmul.mubr.bf16.gmra.mrb[0].mxu0 %v5694
      %v8069 = vpop.f32.mrb[0].mxu0
      %v8070 = vadd.f32 %v5995, %v8069
      %v8071 = vpop.f32.mrb[0].mxu0
      %v8072 = vadd.f32 %v5999, %v8071
      %v8073 = vpop.f32.mrb[0].mxu0
      %v8074 = vadd.f32 %v5995, %v8073
      %v8075 = vpop.f32.mrb[0].mxu0
      %v8076 = vadd.f32 %v5999, %v8075
      %8077 = vmatprep.mubr.bf16.mxu0 %v5699
      %8078 = vmatmul.mubr.bf16.gmra.mrb[0].mxu0 %v5698
      %v8079 = vpop.f32.mrb[0].mxu0
      %v8080 = vadd.f32 %v5995, %v8079
      %v8081 = vpop.f32.mrb[0].mxu0
      %v8082 = vadd.f32 %v5999, %v8081
      %v8083 = vpop.f32.mrb[0].mxu0
      %v8084 = vadd.f32 %v5995, %v8083
      %v8085 = vpop.f32.mrb[0].mxu0
      %v8086 = vadd.f32 %v5999, %v8085
      %8087 = vmatprep.mubr.bf16.mxu0 %v5703
      %8088 = vmatmul.mubr.bf16.gmra.mrb[0].mxu0 %v5702
      %v8089 = vpop.f32.mrb[0].mxu0
      %v8090 = vadd.f32 %v5995, %v8089
      %v8091 = vpop.f32.mrb[0].mxu0
      %v8092 = vadd.f32 %v5999, %v8091
      %v8093 = vpop.f32.mrb[0].mxu0
      %v8094 = vadd.f32 %v5995, %v8093
      %v8095 = vpop.f32.mrb[0].mxu0
      %v8096 = vadd.f32 %v5999, %v8095
      %8097 = vmatprep.mubr.bf16.mxu0 %v5707
      %8098 = vmatmul.mubr.bf16.gmra.mrb[0].mxu0 %v5706
      %v8099 = vpop.f32.mrb[0].mxu0
      %v8100 = vadd.f32 %v5995, %v8099
      %v8101 = vpop.f32.mrb[0].mxu0
      %v8102 = vadd.f32 %v5999, %v8101
      %v8103 = vpop.f32.mrb[0].mxu0
      %v8104 = vadd.f32 %v5995, %v8103
      %v8105 = vpop.f32.mrb[0].mxu0
      %v8106 = vadd.f32 %v5999, %v8105
      %8107 = vmatprep.mubr.bf16.mxu0 %v5711
      %8108 = vmatmul.mubr.bf16.gmra.mrb[0].mxu0 %v5710
      %v8109 = vpop.f32.mrb[0].mxu0
      %v8110 = vadd.f32 %v5995, %v8109
      %v8111 = vpop.f32.mrb[0].mxu0
      %v8112 = vadd.f32 %v5999, %v8111
      %v8113 = vpop.f32.mrb[0].mxu0
      %v8114 = vadd.f32 %v5995, %v8113
      %v8115 = vpop.f32.mrb[0].mxu0
      %v8116 = vadd.f32 %v5999, %v8115
      %8117 = vmatprep.mubr.bf16.mxu0 %v5715
      %8118 = vmatmul.mubr.bf16.gmra.mrb[0].mxu0 %v5714
      %v8119 = vpop.f32.mrb[0].mxu0
      %v8120 = vadd.f32 %v5995, %v8119
      %v8121 = vpop.f32.mrb[0].mxu0
      %v8122 = vadd.f32 %v5999, %v8121
      %v8123 = vpop.f32.mrb[0].mxu0
      %v8124 = vadd.f32 %v5995, %v8123
      %v8125 = vpop.f32.mrb[0].mxu0
      %v8126 = vadd.f32 %v5999, %v8125
      %8127 = vdwg.mxu0
      %8128 = vmatprep.subr.bf16.mxu0 %v6832
      %8129 = vmatpush1.bf16.msra.mxu0 %v6831
      %8130 = vmatprep.subr.bf16.mxu0 %v6839
      %8131 = vmatpush1.bf16.msra.mxu0 %v6838
      %8132 = vmatprep.subr.bf16.mxu0 %v6846
      %8133 = vmatpush1.bf16.msra.mxu0 %v6845
      %8134 = vmatprep.subr.bf16.mxu0 %v6853
      %8135 = vmatpush1.bf16.msra.mxu0 %v6852
      %8136 = vmatprep.subr.bf16.mxu0 %v6860
      %8137 = vmatpush1.bf16.msra.mxu0 %v6859
      %8138 = vmatprep.subr.bf16.mxu0 %v6867
      %8139 = vmatpush1.bf16.msra.mxu0 %v6866
      %8140 = vmatprep.subr.bf16.mxu0 %v6874
      %8141 = vmatpush1.bf16.msra.mxu0 %v6873
      %8142 = vmatprep.subr.bf16.mxu0 %v6881
      %8143 = vmatpush1.bf16.msra.mxu0 %v6880
      %8144 = vmatprep.subr.bf16.mxu0 %v6888
      %8145 = vmatpush1.bf16.msra.mxu0 %v6887
      %8146 = vmatprep.subr.bf16.mxu0 %v6895
      %8147 = vmatpush1.bf16.msra.mxu0 %v6894
      %8148 = vmatprep.subr.bf16.mxu0 %v6902
      %8149 = vmatpush1.bf16.msra.mxu0 %v6901
      %8150 = vmatprep.subr.bf16.mxu0 %v6909
      %8151 = vmatpush1.bf16.msra.mxu0 %v6908
      %8152 = vmatprep.subr.bf16.mxu0 %v6916
      %8153 = vmatpush1.bf16.msra.mxu0 %v6915
      %8154 = vmatprep.subr.bf16.mxu0 %v6923
      %8155 = vmatpush1.bf16.msra.mxu0 %v6922
      %8156 = vmatprep.subr.bf16.mxu0 %v6930
      %8157 = vmatpush1.bf16.msra.mxu0 %v6929
      %8158 = vmatprep.subr.bf16.mxu0 %v6937
      %8159 = vmatpush1.bf16.msra.mxu0 %v6936
      %8160 = vmatprep.mubr.bf16.mxu0 %v5657
      %8161 = vmatmul.mubr.bf16.gmra.mrb[0].mxu0 %v5656
      %v8162 = vpop.f32.mrb[0].mxu0
      %v8163 = vadd.f32 %v7970, %v8162
      %v8164 = vpop.f32.mrb[0].mxu0
      %v8165 = vadd.f32 %v7972, %v8164
      %v8166 = vpop.f32.mrb[0].mxu0
      %v8167 = vadd.f32 %v7974, %v8166
      %v8168 = vpop.f32.mrb[0].mxu0
      %v8169 = vadd.f32 %v7976, %v8168
      %8170 = vmatprep.mubr.bf16.mxu0 %v5661
      %8171 = vmatmul.mubr.bf16.gmra.mrb[0].mxu0 %v5660
      %v8172 = vpop.f32.mrb[0].mxu0
      %v8173 = vadd.f32 %v7980, %v8172
      %v8174 = vpop.f32.mrb[0].mxu0
      %v8175 = vadd.f32 %v7982, %v8174
      %v8176 = vpop.f32.mrb[0].mxu0
      %v8177 = vadd.f32 %v7984, %v8176
      %v8178 = vpop.f32.mrb[0].mxu0
      %v8179 = vadd.f32 %v7986, %v8178
      %8180 = vmatprep.mubr.bf16.mxu0 %v5665
      %8181 = vmatmul.mubr.bf16.gmra.mrb[0].mxu0 %v5664
      %v8182 = vpop.f32.mrb[0].mxu0
      %v8183 = vadd.f32 %v7990, %v8182
      %v8184 = vpop.f32.mrb[0].mxu0
      %v8185 = vadd.f32 %v7992, %v8184
      %v8186 = vpop.f32.mrb[0].mxu0
      %v8187 = vadd.f32 %v7994, %v8186
      %v8188 = vpop.f32.mrb[0].mxu0
      %v8189 = vadd.f32 %v7996, %v8188
      %8190 = vmatprep.mubr.bf16.mxu0 %v5669
      %8191 = vmatmul.mubr.bf16.gmra.mrb[0].mxu0 %v5668
      %v8192 = vpop.f32.mrb[0].mxu0
      %v8193 = vadd.f32 %v8000, %v8192
      %v8194 = vpop.f32.mrb[0].mxu0
      %v8195 = vadd.f32 %v8002, %v8194
      %v8196 = vpop.f32.mrb[0].mxu0
      %v8197 = vadd.f32 %v8004, %v8196
      %v8198 = vpop.f32.mrb[0].mxu0
      %v8199 = vadd.f32 %v8006, %v8198
      %8200 = vmatprep.mubr.bf16.mxu0 %v5673
      %8201 = vmatmul.mubr.bf16.gmra.mrb[0].mxu0 %v5672
      %v8202 = vpop.f32.mrb[0].mxu0
      %v8203 = vadd.f32 %v8010, %v8202
      %v8204 = vpop.f32.mrb[0].mxu0
      %v8205 = vadd.f32 %v8012, %v8204
      %v8206 = vpop.f32.mrb[0].mxu0
      %v8207 = vadd.f32 %v8014, %v8206
      %v8208 = vpop.f32.mrb[0].mxu0
      %v8209 = vadd.f32 %v8016, %v8208
      %8210 = vmatprep.mubr.bf16.mxu0 %v5677
      %8211 = vmatmul.mubr.bf16.gmra.mrb[0].mxu0 %v5676
      %v8212 = vpop.f32.mrb[0].mxu0
      %v8213 = vadd.f32 %v8020, %v8212
      %v8214 = vpop.f32.mrb[0].mxu0
      %v8215 = vadd.f32 %v8022, %v8214
      %v8216 = vpop.f32.mrb[0].mxu0
      %v8217 = vadd.f32 %v8024, %v8216
      %v8218 = vpop.f32.mrb[0].mxu0
      %v8219 = vadd.f32 %v8026, %v8218
      %8220 = vmatprep.mubr.bf16.mxu0 %v5681
      %8221 = vmatmul.mubr.bf16.gmra.mrb[0].mxu0 %v5680
      %v8222 = vpop.f32.mrb[0].mxu0
      %v8223 = vadd.f32 %v8030, %v8222
      %v8224 = vpop.f32.mrb[0].mxu0
      %v8225 = vadd.f32 %v8032, %v8224
      %v8226 = vpop.f32.mrb[0].mxu0
      %v8227 = vadd.f32 %v8034, %v8226
      %v8228 = vpop.f32.mrb[0].mxu0
      %v8229 = vadd.f32 %v8036, %v8228
      %8230 = vmatprep.mubr.bf16.mxu0 %v5685
      %8231 = vmatmul.mubr.bf16.gmra.mrb[0].mxu0 %v5684
      %v8232 = vpop.f32.mrb[0].mxu0
      %v8233 = vadd.f32 %v8040, %v8232
      %v8234 = vpop.f32.mrb[0].mxu0
      %v8235 = vadd.f32 %v8042, %v8234
      %v8236 = vpop.f32.mrb[0].mxu0
      %v8237 = vadd.f32 %v8044, %v8236
      %v8238 = vpop.f32.mrb[0].mxu0
      %v8239 = vadd.f32 %v8046, %v8238
      %8240 = vmatprep.mubr.bf16.mxu0 %v5689
      %8241 = vmatmul.mubr.bf16.gmra.mrb[0].mxu0 %v5688
      %v8242 = vpop.f32.mrb[0].mxu0
      %v8243 = vadd.f32 %v8050, %v8242
      %v8244 = vpop.f32.mrb[0].mxu0
      %v8245 = vadd.f32 %v8052, %v8244
      %v8246 = vpop.f32.mrb[0].mxu0
      %v8247 = vadd.f32 %v8054, %v8246
      %v8248 = vpop.f32.mrb[0].mxu0
      %v8249 = vadd.f32 %v8056, %v8248
      %8250 = vmatprep.mubr.bf16.mxu0 %v5693
      %8251 = vmatmul.mubr.bf16.gmra.mrb[0].mxu0 %v5692
      %v8252 = vpop.f32.mrb[0].mxu0
      %v8253 = vadd.f32 %v8060, %v8252
      %v8254 = vpop.f32.mrb[0].mxu0
      %v8255 = vadd.f32 %v8062, %v8254
      %v8256 = vpop.f32.mrb[0].mxu0
      %v8257 = vadd.f32 %v8064, %v8256
      %v8258 = vpop.f32.mrb[0].mxu0
      %v8259 = vadd.f32 %v8066, %v8258
      %8260 = vmatprep.mubr.bf16.mxu0 %v5697
      %8261 = vmatmul.mubr.bf16.gmra.mrb[0].mxu0 %v5696
      %v8262 = vpop.f32.mrb[0].mxu0
      %v8263 = vadd.f32 %v8070, %v8262
      %v8264 = vpop.f32.mrb[0].mxu0
      %v8265 = vadd.f32 %v8072, %v8264
      %v8266 = vpop.f32.mrb[0].mxu0
      %v8267 = vadd.f32 %v8074, %v8266
      %v8268 = vpop.f32.mrb[0].mxu0
      %v8269 = vadd.f32 %v8076, %v8268
      %8270 = vmatprep.mubr.bf16.mxu0 %v5701
      %8271 = vmatmul.mubr.bf16.gmra.mrb[0].mxu0 %v5700
      %v8272 = vpop.f32.mrb[0].mxu0
      %v8273 = vadd.f32 %v8080, %v8272
      %v8274 = vpop.f32.mrb[0].mxu0
      %v8275 = vadd.f32 %v8082, %v8274
      %v8276 = vpop.f32.mrb[0].mxu0
      %v8277 = vadd.f32 %v8084, %v8276
      %v8278 = vpop.f32.mrb[0].mxu0
      %v8279 = vadd.f32 %v8086, %v8278
      %8280 = vmatprep.mubr.bf16.mxu0 %v5705
      %8281 = vmatmul.mubr.bf16.gmra.mrb[0].mxu0 %v5704
      %v8282 = vpop.f32.mrb[0].mxu0
      %v8283 = vadd.f32 %v8090, %v8282
      %v8284 = vpop.f32.mrb[0].mxu0
      %v8285 = vadd.f32 %v8092, %v8284
      %v8286 = vpop.f32.mrb[0].mxu0
      %v8287 = vadd.f32 %v8094, %v8286
      %v8288 = vpop.f32.mrb[0].mxu0
      %v8289 = vadd.f32 %v8096, %v8288
      %8290 = vmatprep.mubr.bf16.mxu0 %v5709
      %8291 = vmatmul.mubr.bf16.gmra.mrb[0].mxu0 %v5708
      %v8292 = vpop.f32.mrb[0].mxu0
      %v8293 = vadd.f32 %v8100, %v8292
      %v8294 = vpop.f32.mrb[0].mxu0
      %v8295 = vadd.f32 %v8102, %v8294
      %v8296 = vpop.f32.mrb[0].mxu0
      %v8297 = vadd.f32 %v8104, %v8296
      %v8298 = vpop.f32.mrb[0].mxu0
      %v8299 = vadd.f32 %v8106, %v8298
      %8300 = vmatprep.mubr.bf16.mxu0 %v5713
      %8301 = vmatmul.mubr.bf16.gmra.mrb[0].mxu0 %v5712
      %v8302 = vpop.f32.mrb[0].mxu0
      %v8303 = vadd.f32 %v8110, %v8302
      %v8304 = vpop.f32.mrb[0].mxu0
      %v8305 = vadd.f32 %v8112, %v8304
      %v8306 = vpop.f32.mrb[0].mxu0
      %v8307 = vadd.f32 %v8114, %v8306
      %v8308 = vpop.f32.mrb[0].mxu0
      %v8309 = vadd.f32 %v8116, %v8308
      %8310 = vmatprep.mubr.bf16.mxu0 %v5717
      %8311 = vmatmul.mubr.bf16.gmra.mrb[0].mxu0 %v5716
      %v8312 = vpop.f32.mrb[0].mxu0
      %v8313 = vadd.f32 %v8120, %v8312
      %v8314 = vpop.f32.mrb[0].mxu0
      %v8315 = vadd.f32 %v8122, %v8314
      %v8316 = vpop.f32.mrb[0].mxu0
      %v8317 = vadd.f32 %v8124, %v8316
      %v8318 = vpop.f32.mrb[0].mxu0
      %v8319 = vadd.f32 %v8126, %v8318
      %8320 = vdwg.mxu0
      %8321 = vmatprep.subr.bf16.mxu0 0
      %8322 = vmatpush1.bf16.msra.mxu0 %v6721
      %8323 = vmatprep.subr.bf16.mxu0 0
      %8324 = vmatpush1.bf16.msra.mxu0 %v6728
      %8325 = vmatprep.subr.bf16.mxu0 0
      %8326 = vmatpush1.bf16.msra.mxu0 %v6735
      %8327 = vmatprep.subr.bf16.mxu0 0
      %8328 = vmatpush1.bf16.msra.mxu0 %v6742
      %8329 = vmatprep.subr.bf16.mxu0 0
      %8330 = vmatpush1.bf16.msra.mxu0 %v6749
      %8331 = vmatprep.subr.bf16.mxu0 0
      %8332 = vmatpush1.bf16.msra.mxu0 %v6756
      %8333 = vmatprep.subr.bf16.mxu0 0
      %8334 = vmatpush1.bf16.msra.mxu0 %v6763
      %8335 = vmatprep.subr.bf16.mxu0 0
      %8336 = vmatpush1.bf16.msra.mxu0 %v6770
      %8337 = vmatprep.subr.bf16.mxu0 0
      %8338 = vmatpush1.bf16.msra.mxu0 %v6777
      %8339 = vmatprep.subr.bf16.mxu0 0
      %8340 = vmatpush1.bf16.msra.mxu0 %v6784
      %8341 = vmatprep.subr.bf16.mxu0 0
      %8342 = vmatpush1.bf16.msra.mxu0 %v6791
      %8343 = vmatprep.subr.bf16.mxu0 0
      %8344 = vmatpush1.bf16.msra.mxu0 %v6798
      %8345 = vmatprep.subr.bf16.mxu0 0
      %8346 = vmatpush1.bf16.msra.mxu0 %v6805
      %8347 = vmatprep.subr.bf16.mxu0 0
      %8348 = vmatpush1.bf16.msra.mxu0 %v6812
      %8349 = vmatprep.subr.bf16.mxu0 0
      %8350 = vmatpush1.bf16.msra.mxu0 %v6819
      %8351 = vmatprep.subr.bf16.mxu0 0
      %8352 = vmatpush1.bf16.msra.mxu0 %v6826
      %8353 = vmatprep.mubr.bf16.mxu0 %v5655
      %8354 = vmatmul.mubr.bf16.gmra.mrb[0].mxu0 %v5654
      %v8355 = vpop.f32.mrb[0].mxu0
      %v8356 = vadd.f32 %v6003, %v8355
      %v8357 = vpop.f32.mrb[0].mxu0
      %v8358 = vpop.f32.mrb[0].mxu0
      %v8359 = vadd.f32 %v6003, %v8358
      %v8360 = vpop.f32.mrb[0].mxu0
      %8361 = vmatprep.mubr.bf16.mxu0 %v5659
      %8362 = vmatmul.mubr.bf16.gmra.mrb[0].mxu0 %v5658
      %v8363 = vpop.f32.mrb[0].mxu0
      %v8364 = vadd.f32 %v6003, %v8363
      %v8365 = vpop.f32.mrb[0].mxu0
      %v8366 = vpop.f32.mrb[0].mxu0
      %v8367 = vadd.f32 %v6003, %v8366
      %v8368 = vpop.f32.mrb[0].mxu0
      %8369 = vmatprep.mubr.bf16.mxu0 %v5663
      %8370 = vmatmul.mubr.bf16.gmra.mrb[0].mxu0 %v5662
      %v8371 = vpop.f32.mrb[0].mxu0
      %v8372 = vadd.f32 %v6003, %v8371
      %v8373 = vpop.f32.mrb[0].mxu0
      %v8374 = vpop.f32.mrb[0].mxu0
      %v8375 = vadd.f32 %v6003, %v8374
      %v8376 = vpop.f32.mrb[0].mxu0
      %8377 = vmatprep.mubr.bf16.mxu0 %v5667
      %8378 = vmatmul.mubr.bf16.gmra.mrb[0].mxu0 %v5666
      %v8379 = vpop.f32.mrb[0].mxu0
      %v8380 = vadd.f32 %v6003, %v8379
      %v8381 = vpop.f32.mrb[0].mxu0
      %v8382 = vpop.f32.mrb[0].mxu0
      %v8383 = vadd.f32 %v6003, %v8382
      %v8384 = vpop.f32.mrb[0].mxu0
      %8385 = vmatprep.mubr.bf16.mxu0 %v5671
      %8386 = vmatmul.mubr.bf16.gmra.mrb[0].mxu0 %v5670
      %v8387 = vpop.f32.mrb[0].mxu0
      %v8388 = vadd.f32 %v6003, %v8387
      %v8389 = vpop.f32.mrb[0].mxu0
      %v8390 = vpop.f32.mrb[0].mxu0
      %v8391 = vadd.f32 %v6003, %v8390
      %v8392 = vpop.f32.mrb[0].mxu0
      %8393 = vmatprep.mubr.bf16.mxu0 %v5675
      %8394 = vmatmul.mubr.bf16.gmra.mrb[0].mxu0 %v5674
      %v8395 = vpop.f32.mrb[0].mxu0
      %v8396 = vadd.f32 %v6003, %v8395
      %v8397 = vpop.f32.mrb[0].mxu0
      %v8398 = vpop.f32.mrb[0].mxu0
      %v8399 = vadd.f32 %v6003, %v8398
      %v8400 = vpop.f32.mrb[0].mxu0
      %8401 = vmatprep.mubr.bf16.mxu0 %v5679
      %8402 = vmatmul.mubr.bf16.gmra.mrb[0].mxu0 %v5678
      %v8403 = vpop.f32.mrb[0].mxu0
      %v8404 = vadd.f32 %v6003, %v8403
      %v8405 = vpop.f32.mrb[0].mxu0
      %v8406 = vpop.f32.mrb[0].mxu0
      %v8407 = vadd.f32 %v6003, %v8406
      %v8408 = vpop.f32.mrb[0].mxu0
      %8409 = vmatprep.mubr.bf16.mxu0 %v5683
      %8410 = vmatmul.mubr.bf16.gmra.mrb[0].mxu0 %v5682
      %v8411 = vpop.f32.mrb[0].mxu0
      %v8412 = vadd.f32 %v6003, %v8411
      %v8413 = vpop.f32.mrb[0].mxu0
      %v8414 = vpop.f32.mrb[0].mxu0
      %v8415 = vadd.f32 %v6003, %v8414
      %v8416 = vpop.f32.mrb[0].mxu0
      %8417 = vmatprep.mubr.bf16.mxu0 %v5687
      %8418 = vmatmul.mubr.bf16.gmra.mrb[0].mxu0 %v5686
      %v8419 = vpop.f32.mrb[0].mxu0
      %v8420 = vadd.f32 %v6003, %v8419
      %v8421 = vpop.f32.mrb[0].mxu0
      %v8422 = vpop.f32.mrb[0].mxu0
      %v8423 = vadd.f32 %v6003, %v8422
      %v8424 = vpop.f32.mrb[0].mxu0
      %8425 = vmatprep.mubr.bf16.mxu0 %v5691
      %8426 = vmatmul.mubr.bf16.gmra.mrb[0].mxu0 %v5690
      %v8427 = vpop.f32.mrb[0].mxu0
      %v8428 = vadd.f32 %v6003, %v8427
      %v8429 = vpop.f32.mrb[0].mxu0
      %v8430 = vpop.f32.mrb[0].mxu0
      %v8431 = vadd.f32 %v6003, %v8430
      %v8432 = vpop.f32.mrb[0].mxu0
      %8433 = vmatprep.mubr.bf16.mxu0 %v5695
      %8434 = vmatmul.mubr.bf16.gmra.mrb[0].mxu0 %v5694
      %v8435 = vpop.f32.mrb[0].mxu0
      %v8436 = vadd.f32 %v6003, %v8435
      %v8437 = vpop.f32.mrb[0].mxu0
      %v8438 = vpop.f32.mrb[0].mxu0
      %v8439 = vadd.f32 %v6003, %v8438
      %v8440 = vpop.f32.mrb[0].mxu0
      %8441 = vmatprep.mubr.bf16.mxu0 %v5699
      %8442 = vmatmul.mubr.bf16.gmra.mrb[0].mxu0 %v5698
      %v8443 = vpop.f32.mrb[0].mxu0
      %v8444 = vadd.f32 %v6003, %v8443
      %v8445 = vpop.f32.mrb[0].mxu0
      %v8446 = vpop.f32.mrb[0].mxu0
      %v8447 = vadd.f32 %v6003, %v8446
      %v8448 = vpop.f32.mrb[0].mxu0
      %8449 = vmatprep.mubr.bf16.mxu0 %v5703
      %8450 = vmatmul.mubr.bf16.gmra.mrb[0].mxu0 %v5702
      %v8451 = vpop.f32.mrb[0].mxu0
      %v8452 = vadd.f32 %v6003, %v8451
      %v8453 = vpop.f32.mrb[0].mxu0
      %v8454 = vpop.f32.mrb[0].mxu0
      %v8455 = vadd.f32 %v6003, %v8454
      %v8456 = vpop.f32.mrb[0].mxu0
      %8457 = vmatprep.mubr.bf16.mxu0 %v5707
      %8458 = vmatmul.mubr.bf16.gmra.mrb[0].mxu0 %v5706
      %v8459 = vpop.f32.mrb[0].mxu0
      %v8460 = vadd.f32 %v6003, %v8459
      %v8461 = vpop.f32.mrb[0].mxu0
      %v8462 = vpop.f32.mrb[0].mxu0
      %v8463 = vadd.f32 %v6003, %v8462
      %v8464 = vpop.f32.mrb[0].mxu0
      %8465 = vmatprep.mubr.bf16.mxu0 %v5711
      %8466 = vmatmul.mubr.bf16.gmra.mrb[0].mxu0 %v5710
      %v8467 = vpop.f32.mrb[0].mxu0
      %v8468 = vadd.f32 %v6003, %v8467
      %v8469 = vpop.f32.mrb[0].mxu0
      %v8470 = vpop.f32.mrb[0].mxu0
      %v8471 = vadd.f32 %v6003, %v8470
      %v8472 = vpop.f32.mrb[0].mxu0
      %8473 = vmatprep.mubr.bf16.mxu0 %v5715
      %8474 = vmatmul.mubr.bf16.gmra.mrb[0].mxu0 %v5714
      %v8475 = vpop.f32.mrb[0].mxu0
      %v8476 = vadd.f32 %v6003, %v8475
      %v8477 = vpop.f32.mrb[0].mxu0
      %v8478 = vpop.f32.mrb[0].mxu0
      %v8479 = vadd.f32 %v6003, %v8478
      %v8480 = vpop.f32.mrb[0].mxu0
      %8481 = vdwg.mxu0
      %8482 = vmatprep.subr.bf16.mxu0 0
      %8483 = vmatpush1.bf16.msra.mxu0 %v6833
      %8484 = vmatprep.subr.bf16.mxu0 0
      %8485 = vmatpush1.bf16.msra.mxu0 %v6840
      %8486 = vmatprep.subr.bf16.mxu0 0
      %8487 = vmatpush1.bf16.msra.mxu0 %v6847
      %8488 = vmatprep.subr.bf16.mxu0 0
      %8489 = vmatpush1.bf16.msra.mxu0 %v6854
      %8490 = vmatprep.subr.bf16.mxu0 0
      %8491 = vmatpush1.bf16.msra.mxu0 %v6861
      %8492 = vmatprep.subr.bf16.mxu0 0
      %8493 = vmatpush1.bf16.msra.mxu0 %v6868
      %8494 = vmatprep.subr.bf16.mxu0 0
      %8495 = vmatpush1.bf16.msra.mxu0 %v6875
      %8496 = vmatprep.subr.bf16.mxu0 0
      %8497 = vmatpush1.bf16.msra.mxu0 %v6882
      %8498 = vmatprep.subr.bf16.mxu0 0
      %8499 = vmatpush1.bf16.msra.mxu0 %v6889
      %8500 = vmatprep.subr.bf16.mxu0 0
      %8501 = vmatpush1.bf16.msra.mxu0 %v6896
      %8502 = vmatprep.subr.bf16.mxu0 0
      %8503 = vmatpush1.bf16.msra.mxu0 %v6903
      %8504 = vmatprep.subr.bf16.mxu0 0
      %8505 = vmatpush1.bf16.msra.mxu0 %v6910
      %8506 = vmatprep.subr.bf16.mxu0 0
      %8507 = vmatpush1.bf16.msra.mxu0 %v6917
      %8508 = vmatprep.subr.bf16.mxu0 0
      %8509 = vmatpush1.bf16.msra.mxu0 %v6924
      %8510 = vmatprep.subr.bf16.mxu0 0
      %8511 = vmatpush1.bf16.msra.mxu0 %v6931
      %8512 = vmatprep.subr.bf16.mxu0 0
      %8513 = vmatpush1.bf16.msra.mxu0 %v6938
      %8514 = vmatprep.mubr.bf16.mxu0 %v5657
      %8515 = vmatmul.mubr.bf16.gmra.mrb[0].mxu0 %v5656
      %v8516 = vpop.f32.mrb[0].mxu0
      %v8517 = vadd.f32 %v8356, %v8516
      %v8518 = vpop.f32.mrb[0].mxu0
      %v8519 = vpop.f32.mrb[0].mxu0
      %v8520 = vadd.f32 %v8359, %v8519
      %v8521 = vpop.f32.mrb[0].mxu0
      %8522 = vmatprep.mubr.bf16.mxu0 %v5661
      %8523 = vmatmul.mubr.bf16.gmra.mrb[0].mxu0 %v5660
      %v8524 = vpop.f32.mrb[0].mxu0
      %v8525 = vadd.f32 %v8364, %v8524
      %v8526 = vpop.f32.mrb[0].mxu0
      %v8527 = vpop.f32.mrb[0].mxu0
      %v8528 = vadd.f32 %v8367, %v8527
      %v8529 = vpop.f32.mrb[0].mxu0
      %8530 = vmatprep.mubr.bf16.mxu0 %v5665
      %8531 = vmatmul.mubr.bf16.gmra.mrb[0].mxu0 %v5664
      %v8532 = vpop.f32.mrb[0].mxu0
      %v8533 = vadd.f32 %v8372, %v8532
      %v8534 = vpop.f32.mrb[0].mxu0
      %v8535 = vpop.f32.mrb[0].mxu0
      %v8536 = vadd.f32 %v8375, %v8535
      %v8537 = vpop.f32.mrb[0].mxu0
      %8538 = vmatprep.mubr.bf16.mxu0 %v5669
      %8539 = vmatmul.mubr.bf16.gmra.mrb[0].mxu0 %v5668
      %v8540 = vpop.f32.mrb[0].mxu0
      %v8541 = vadd.f32 %v8380, %v8540
      %v8542 = vpop.f32.mrb[0].mxu0
      %v8543 = vpop.f32.mrb[0].mxu0
      %v8544 = vadd.f32 %v8383, %v8543
      %v8545 = vpop.f32.mrb[0].mxu0
      %8546 = vmatprep.mubr.bf16.mxu0 %v5673
      %8547 = vmatmul.mubr.bf16.gmra.mrb[0].mxu0 %v5672
      %v8548 = vpop.f32.mrb[0].mxu0
      %v8549 = vadd.f32 %v8388, %v8548
      %v8550 = vpop.f32.mrb[0].mxu0
      %v8551 = vpop.f32.mrb[0].mxu0
      %v8552 = vadd.f32 %v8391, %v8551
      %v8553 = vpop.f32.mrb[0].mxu0
      %8554 = vmatprep.mubr.bf16.mxu0 %v5677
      %8555 = vmatmul.mubr.bf16.gmra.mrb[0].mxu0 %v5676
      %v8556 = vpop.f32.mrb[0].mxu0
      %v8557 = vadd.f32 %v8396, %v8556
      %v8558 = vpop.f32.mrb[0].mxu0
      %v8559 = vpop.f32.mrb[0].mxu0
      %v8560 = vadd.f32 %v8399, %v8559
      %v8561 = vpop.f32.mrb[0].mxu0
      %8562 = vmatprep.mubr.bf16.mxu0 %v5681
      %8563 = vmatmul.mubr.bf16.gmra.mrb[0].mxu0 %v5680
      %v8564 = vpop.f32.mrb[0].mxu0
      %v8565 = vadd.f32 %v8404, %v8564
      %v8566 = vpop.f32.mrb[0].mxu0
      %v8567 = vpop.f32.mrb[0].mxu0
      %v8568 = vadd.f32 %v8407, %v8567
      %v8569 = vpop.f32.mrb[0].mxu0
      %8570 = vmatprep.mubr.bf16.mxu0 %v5685
      %8571 = vmatmul.mubr.bf16.gmra.mrb[0].mxu0 %v5684
      %v8572 = vpop.f32.mrb[0].mxu0
      %v8573 = vadd.f32 %v8412, %v8572
      %v8574 = vpop.f32.mrb[0].mxu0
      %v8575 = vpop.f32.mrb[0].mxu0
      %v8576 = vadd.f32 %v8415, %v8575
      %v8577 = vpop.f32.mrb[0].mxu0
      %8578 = vmatprep.mubr.bf16.mxu0 %v5689
      %8579 = vmatmul.mubr.bf16.gmra.mrb[0].mxu0 %v5688
      %v8580 = vpop.f32.mrb[0].mxu0
      %v8581 = vadd.f32 %v8420, %v8580
      %v8582 = vpop.f32.mrb[0].mxu0
      %v8583 = vpop.f32.mrb[0].mxu0
      %v8584 = vadd.f32 %v8423, %v8583
      %v8585 = vpop.f32.mrb[0].mxu0
      %8586 = vmatprep.mubr.bf16.mxu0 %v5693
      %8587 = vmatmul.mubr.bf16.gmra.mrb[0].mxu0 %v5692
      %v8588 = vpop.f32.mrb[0].mxu0
      %v8589 = vadd.f32 %v8428, %v8588
      %v8590 = vpop.f32.mrb[0].mxu0
      %v8591 = vpop.f32.mrb[0].mxu0
      %v8592 = vadd.f32 %v8431, %v8591
      %v8593 = vpop.f32.mrb[0].mxu0
      %8594 = vmatprep.mubr.bf16.mxu0 %v5697
      %8595 = vmatmul.mubr.bf16.gmra.mrb[0].mxu0 %v5696
      %v8596 = vpop.f32.mrb[0].mxu0
      %v8597 = vadd.f32 %v8436, %v8596
      %v8598 = vpop.f32.mrb[0].mxu0
      %v8599 = vpop.f32.mrb[0].mxu0
      %v8600 = vadd.f32 %v8439, %v8599
      %v8601 = vpop.f32.mrb[0].mxu0
      %8602 = vmatprep.mubr.bf16.mxu0 %v5701
      %8603 = vmatmul.mubr.bf16.gmra.mrb[0].mxu0 %v5700
      %v8604 = vpop.f32.mrb[0].mxu0
      %v8605 = vadd.f32 %v8444, %v8604
      %v8606 = vpop.f32.mrb[0].mxu0
      %v8607 = vpop.f32.mrb[0].mxu0
      %v8608 = vadd.f32 %v8447, %v8607
      %v8609 = vpop.f32.mrb[0].mxu0
      %8610 = vmatprep.mubr.bf16.mxu0 %v5705
      %8611 = vmatmul.mubr.bf16.gmra.mrb[0].mxu0 %v5704
      %v8612 = vpop.f32.mrb[0].mxu0
      %v8613 = vadd.f32 %v8452, %v8612
      %v8614 = vpop.f32.mrb[0].mxu0
      %v8615 = vpop.f32.mrb[0].mxu0
      %v8616 = vadd.f32 %v8455, %v8615
      %v8617 = vpop.f32.mrb[0].mxu0
      %8618 = vmatprep.mubr.bf16.mxu0 %v5709
      %8619 = vmatmul.mubr.bf16.gmra.mrb[0].mxu0 %v5708
      %v8620 = vpop.f32.mrb[0].mxu0
      %v8621 = vadd.f32 %v8460, %v8620
      %v8622 = vpop.f32.mrb[0].mxu0
      %v8623 = vpop.f32.mrb[0].mxu0
      %v8624 = vadd.f32 %v8463, %v8623
      %v8625 = vpop.f32.mrb[0].mxu0
      %8626 = vmatprep.mubr.bf16.mxu0 %v5713
      %8627 = vmatmul.mubr.bf16.gmra.mrb[0].mxu0 %v5712
      %v8628 = vpop.f32.mrb[0].mxu0
      %v8629 = vadd.f32 %v8468, %v8628
      %v8630 = vpop.f32.mrb[0].mxu0
      %v8631 = vpop.f32.mrb[0].mxu0
      %v8632 = vadd.f32 %v8471, %v8631
      %v8633 = vpop.f32.mrb[0].mxu0
      %8634 = vmatprep.mubr.bf16.mxu0 %v5717
      %8635 = vmatmul.mubr.bf16.gmra.mrb[0].mxu0 %v5716
      %v8636 = vpop.f32.mrb[0].mxu0
      %v8637 = vadd.f32 %v8476, %v8636
      %v8638 = vpop.f32.mrb[0].mxu0
      %v8639 = vpop.f32.mrb[0].mxu0
      %v8640 = vadd.f32 %v8479, %v8639
      %v8641 = vpop.f32.mrb[0].mxu0
      %8642 = vdwg.mxu0
      %v8643 = vxor.u32 %v7391, 2147483648
      %v8644 = vxor.u32 %v7393, 2147483648
      %v8645 = vxor.u32 %v7777, 2147483648
      %v8646 = vxor.u32 %v7779, 2147483648
      %v8647 = vxor.u32 %v8163, 2147483648
      %v8648 = vxor.u32 %v8165, 2147483648
      %v8649 = vxor.u32 %v8517, 2147483648
      %v8650 = vxor.u32 %v7395, 2147483648
      %v8651 = vxor.u32 %v7397, 2147483648
      %v8652 = vxor.u32 %v7781, 2147483648
      %v8653 = vxor.u32 %v7783, 2147483648
      %v8654 = vxor.u32 %v8167, 2147483648
      %v8655 = vxor.u32 %v8169, 2147483648
      %v8656 = vxor.u32 %v8520, 2147483648
      %v8657 = vxor.u32 %v7401, 2147483648
      %v8658 = vxor.u32 %v7403, 2147483648
      %v8659 = vxor.u32 %v7787, 2147483648
      %v8660 = vxor.u32 %v7789, 2147483648
      %v8661 = vxor.u32 %v8173, 2147483648
      %v8662 = vxor.u32 %v8175, 2147483648
      %v8663 = vxor.u32 %v8525, 2147483648
      %v8664 = vxor.u32 %v7405, 2147483648
      %v8665 = vxor.u32 %v7407, 2147483648
      %v8666 = vxor.u32 %v7791, 2147483648
      %v8667 = vxor.u32 %v7793, 2147483648
      %v8668 = vxor.u32 %v8177, 2147483648
      %v8669 = vxor.u32 %v8179, 2147483648
      %v8670 = vxor.u32 %v8528, 2147483648
      %v8671 = vxor.u32 %v7411, 2147483648
      %v8672 = vxor.u32 %v7413, 2147483648
      %v8673 = vxor.u32 %v7797, 2147483648
      %v8674 = vxor.u32 %v7799, 2147483648
      %v8675 = vxor.u32 %v8183, 2147483648
      %v8676 = vxor.u32 %v8185, 2147483648
      %v8677 = vxor.u32 %v8533, 2147483648
      %v8678 = vxor.u32 %v7415, 2147483648
      %v8679 = vxor.u32 %v7417, 2147483648
      %v8680 = vxor.u32 %v7801, 2147483648
      %v8681 = vxor.u32 %v7803, 2147483648
      %v8682 = vxor.u32 %v8187, 2147483648
      %v8683 = vxor.u32 %v8189, 2147483648
      %v8684 = vxor.u32 %v8536, 2147483648
      %v8685 = vxor.u32 %v7421, 2147483648
      %v8686 = vxor.u32 %v7423, 2147483648
      %v8687 = vxor.u32 %v7807, 2147483648
      %v8688 = vxor.u32 %v7809, 2147483648
      %v8689 = vxor.u32 %v8193, 2147483648
      %v8690 = vxor.u32 %v8195, 2147483648
      %v8691 = vxor.u32 %v8541, 2147483648
      %v8692 = vxor.u32 %v7425, 2147483648
      %v8693 = vxor.u32 %v7427, 2147483648
      %v8694 = vxor.u32 %v7811, 2147483648
      %v8695 = vxor.u32 %v7813, 2147483648
      %v8696 = vxor.u32 %v8197, 2147483648
      %v8697 = vxor.u32 %v8199, 2147483648
      %v8698 = vxor.u32 %v8544, 2147483648
      %v8699 = vxor.u32 %v7431, 2147483648
      %v8700 = vxor.u32 %v7433, 2147483648
      %v8701 = vxor.u32 %v7817, 2147483648
      %v8702 = vxor.u32 %v7819, 2147483648
      %v8703 = vxor.u32 %v8203, 2147483648
      %v8704 = vxor.u32 %v8205, 2147483648
      %v8705 = vxor.u32 %v8549, 2147483648
      %v8706 = vxor.u32 %v7435, 2147483648
      %v8707 = vxor.u32 %v7437, 2147483648
      %v8708 = vxor.u32 %v7821, 2147483648
      %v8709 = vxor.u32 %v7823, 2147483648
      %v8710 = vxor.u32 %v8207, 2147483648
      %v8711 = vxor.u32 %v8209, 2147483648
      %v8712 = vxor.u32 %v8552, 2147483648
      %v8713 = vxor.u32 %v7441, 2147483648
      %v8714 = vxor.u32 %v7443, 2147483648
      %v8715 = vxor.u32 %v7827, 2147483648
      %v8716 = vxor.u32 %v7829, 2147483648
      %v8717 = vxor.u32 %v8213, 2147483648
      %v8718 = vxor.u32 %v8215, 2147483648
      %v8719 = vxor.u32 %v8557, 2147483648
      %v8720 = vxor.u32 %v7445, 2147483648
      %v8721 = vxor.u32 %v7447, 2147483648
      %v8722 = vxor.u32 %v7831, 2147483648
      %v8723 = vxor.u32 %v7833, 2147483648
      %v8724 = vxor.u32 %v8217, 2147483648
      %v8725 = vxor.u32 %v8219, 2147483648
      %v8726 = vxor.u32 %v8560, 2147483648
      %v8727 = vxor.u32 %v7451, 2147483648
      %v8728 = vxor.u32 %v7453, 2147483648
      %v8729 = vxor.u32 %v7837, 2147483648
      %v8730 = vxor.u32 %v7839, 2147483648
      %v8731 = vxor.u32 %v8223, 2147483648
      %v8732 = vxor.u32 %v8225, 2147483648
      %v8733 = vxor.u32 %v8565, 2147483648
      %v8734 = vxor.u32 %v7455, 2147483648
      %v8735 = vxor.u32 %v7457, 2147483648
      %v8736 = vxor.u32 %v7841, 2147483648
      %v8737 = vxor.u32 %v7843, 2147483648
      %v8738 = vxor.u32 %v8227, 2147483648
      %v8739 = vxor.u32 %v8229, 2147483648
      %v8740 = vxor.u32 %v8568, 2147483648
      %v8741 = vxor.u32 %v7461, 2147483648
      %v8742 = vxor.u32 %v7463, 2147483648
      %v8743 = vxor.u32 %v7847, 2147483648
      %v8744 = vxor.u32 %v7849, 2147483648
      %v8745 = vxor.u32 %v8233, 2147483648
      %v8746 = vxor.u32 %v8235, 2147483648
      %v8747 = vxor.u32 %v8573, 2147483648
      %v8748 = vxor.u32 %v7465, 2147483648
      %v8749 = vxor.u32 %v7467, 2147483648
      %v8750 = vxor.u32 %v7851, 2147483648
      %v8751 = vxor.u32 %v7853, 2147483648
      %v8752 = vxor.u32 %v8237, 2147483648
      %v8753 = vxor.u32 %v8239, 2147483648
      %v8754 = vxor.u32 %v8576, 2147483648
      %v8755 = vxor.u32 %v7471, 2147483648
      %v8756 = vxor.u32 %v7473, 2147483648
      %v8757 = vxor.u32 %v7857, 2147483648
      %v8758 = vxor.u32 %v7859, 2147483648
      %v8759 = vxor.u32 %v8243, 2147483648
      %v8760 = vxor.u32 %v8245, 2147483648
      %v8761 = vxor.u32 %v8581, 2147483648
      %v8762 = vxor.u32 %v7475, 2147483648
      %v8763 = vxor.u32 %v7477, 2147483648
      %v8764 = vxor.u32 %v7861, 2147483648
      %v8765 = vxor.u32 %v7863, 2147483648
      %v8766 = vxor.u32 %v8247, 2147483648
      %v8767 = vxor.u32 %v8249, 2147483648
      %v8768 = vxor.u32 %v8584, 2147483648
      %v8769 = vxor.u32 %v7481, 2147483648
      %v8770 = vxor.u32 %v7483, 2147483648
      %v8771 = vxor.u32 %v7867, 2147483648
      %v8772 = vxor.u32 %v7869, 2147483648
      %v8773 = vxor.u32 %v8253, 2147483648
      %v8774 = vxor.u32 %v8255, 2147483648
      %v8775 = vxor.u32 %v8589, 2147483648
      %v8776 = vxor.u32 %v7485, 2147483648
      %v8777 = vxor.u32 %v7487, 2147483648
      %v8778 = vxor.u32 %v7871, 2147483648
      %v8779 = vxor.u32 %v7873, 2147483648
      %v8780 = vxor.u32 %v8257, 2147483648
      %v8781 = vxor.u32 %v8259, 2147483648
      %v8782 = vxor.u32 %v8592, 2147483648
      %v8783 = vxor.u32 %v7491, 2147483648
      %v8784 = vxor.u32 %v7493, 2147483648
      %v8785 = vxor.u32 %v7877, 2147483648
      %v8786 = vxor.u32 %v7879, 2147483648
      %v8787 = vxor.u32 %v8263, 2147483648
      %v8788 = vxor.u32 %v8265, 2147483648
      %v8789 = vxor.u32 %v8597, 2147483648
      %v8790 = vxor.u32 %v7495, 2147483648
      %v8791 = vxor.u32 %v7497, 2147483648
      %v8792 = vxor.u32 %v7881, 2147483648
      %v8793 = vxor.u32 %v7883, 2147483648
      %v8794 = vxor.u32 %v8267, 2147483648
      %v8795 = vxor.u32 %v8269, 2147483648
      %v8796 = vxor.u32 %v8600, 2147483648
      %v8797 = vxor.u32 %v7501, 2147483648
      %v8798 = vxor.u32 %v7503, 2147483648
      %v8799 = vxor.u32 %v7887, 2147483648
      %v8800 = vxor.u32 %v7889, 2147483648
      %v8801 = vxor.u32 %v8273, 2147483648
      %v8802 = vxor.u32 %v8275, 2147483648
      %v8803 = vxor.u32 %v8605, 2147483648
      %v8804 = vxor.u32 %v7505, 2147483648
      %v8805 = vxor.u32 %v7507, 2147483648
      %v8806 = vxor.u32 %v7891, 2147483648
      %v8807 = vxor.u32 %v7893, 2147483648
      %v8808 = vxor.u32 %v8277, 2147483648
      %v8809 = vxor.u32 %v8279, 2147483648
      %v8810 = vxor.u32 %v8608, 2147483648
      %v8811 = vxor.u32 %v7511, 2147483648
      %v8812 = vxor.u32 %v7513, 2147483648
      %v8813 = vxor.u32 %v7897, 2147483648
      %v8814 = vxor.u32 %v7899, 2147483648
      %v8815 = vxor.u32 %v8283, 2147483648
      %v8816 = vxor.u32 %v8285, 2147483648
      %v8817 = vxor.u32 %v8613, 2147483648
      %v8818 = vxor.u32 %v7515, 2147483648
      %v8819 = vxor.u32 %v7517, 2147483648
      %v8820 = vxor.u32 %v7901, 2147483648
      %v8821 = vxor.u32 %v7903, 2147483648
      %v8822 = vxor.u32 %v8287, 2147483648
      %v8823 = vxor.u32 %v8289, 2147483648
      %v8824 = vxor.u32 %v8616, 2147483648
      %v8825 = vxor.u32 %v7521, 2147483648
      %v8826 = vxor.u32 %v7523, 2147483648
      %v8827 = vxor.u32 %v7907, 2147483648
      %v8828 = vxor.u32 %v7909, 2147483648
      %v8829 = vxor.u32 %v8293, 2147483648
      %v8830 = vxor.u32 %v8295, 2147483648
      %v8831 = vxor.u32 %v8621, 2147483648
      %v8832 = vxor.u32 %v7525, 2147483648
      %v8833 = vxor.u32 %v7527, 2147483648
      %v8834 = vxor.u32 %v7911, 2147483648
      %v8835 = vxor.u32 %v7913, 2147483648
      %v8836 = vxor.u32 %v8297, 2147483648
      %v8837 = vxor.u32 %v8299, 2147483648
      %v8838 = vxor.u32 %v8624, 2147483648
      %v8839 = vxor.u32 %v7531, 2147483648
      %v8840 = vxor.u32 %v7533, 2147483648
      %v8841 = vxor.u32 %v7917, 2147483648
      %v8842 = vxor.u32 %v7919, 2147483648
      %v8843 = vxor.u32 %v8303, 2147483648
      %v8844 = vxor.u32 %v8305, 2147483648
      %v8845 = vxor.u32 %v8629, 2147483648
      %v8846 = vxor.u32 %v7535, 2147483648
      %v8847 = vxor.u32 %v7537, 2147483648
      %v8848 = vxor.u32 %v7921, 2147483648
      %v8849 = vxor.u32 %v7923, 2147483648
      %v8850 = vxor.u32 %v8307, 2147483648
      %v8851 = vxor.u32 %v8309, 2147483648
      %v8852 = vxor.u32 %v8632, 2147483648
      %v8853 = vxor.u32 %v7541, 2147483648
      %v8854 = vxor.u32 %v7543, 2147483648
      %v8855 = vxor.u32 %v7927, 2147483648
      %v8856 = vxor.u32 %v7929, 2147483648
      %v8857 = vxor.u32 %v8313, 2147483648
      %v8858 = vxor.u32 %v8315, 2147483648
      %v8859 = vxor.u32 %v8637, 2147483648
      %v8860 = vxor.u32 %v7545, 2147483648
      %v8861 = vxor.u32 %v7547, 2147483648
      %v8862 = vxor.u32 %v7931, 2147483648
      %v8863 = vxor.u32 %v7933, 2147483648
      %v8864 = vxor.u32 %v8317, 2147483648
      %v8865 = vxor.u32 %v8319, 2147483648
      %v8866 = vxor.u32 %v8640, 2147483648
      %v8867 = vmul.f32 %v8643, 1.442695
      %v8868 = vpow.pop %v8867
      %v8869 = vmul.f32 %v8644, 1.442695
      %v8870 = vpow.pop %v8869
      %v8871 = vmul.f32 %v8645, 1.442695
      %v8872 = vpow.pop %v8871
      %v8873 = vmul.f32 %v8646, 1.442695
      %v8874 = vpow.pop %v8873
      %v8875 = vmul.f32 %v8647, 1.442695
      %v8876 = vpow.pop %v8875
      %v8877 = vmul.f32 %v8648, 1.442695
      %v8878 = vpow.pop %v8877
      %v8879 = vmul.f32 %v8649, 1.442695
      %v8880 = vpow.pop %v8879
      %v8881 = vmul.f32 %v8650, 1.442695
      %v8882 = vpow.pop %v8881
      %v8883 = vmul.f32 %v8651, 1.442695
      %v8884 = vpow.pop %v8883
      %v8885 = vmul.f32 %v8652, 1.442695
      %v8886 = vpow.pop %v8885
      %v8887 = vmul.f32 %v8653, 1.442695
      %v8888 = vpow.pop %v8887
      %v8889 = vmul.f32 %v8654, 1.442695
      %v8890 = vpow.pop %v8889
      %v8891 = vmul.f32 %v8655, 1.442695
      %v8892 = vpow.pop %v8891
      %v8893 = vmul.f32 %v8656, 1.442695
      %v8894 = vpow.pop %v8893
      %v8895 = vmul.f32 %v8657, 1.442695
      %v8896 = vpow.pop %v8895
      %v8897 = vmul.f32 %v8658, 1.442695
      %v8898 = vpow.pop %v8897
      %v8899 = vmul.f32 %v8659, 1.442695
      %v8900 = vpow.pop %v8899
      %v8901 = vmul.f32 %v8660, 1.442695
      %v8902 = vpow.pop %v8901
      %v8903 = vmul.f32 %v8661, 1.442695
      %v8904 = vpow.pop %v8903
      %v8905 = vmul.f32 %v8662, 1.442695
      %v8906 = vpow.pop %v8905
      %v8907 = vmul.f32 %v8663, 1.442695
      %v8908 = vpow.pop %v8907
      %v8909 = vmul.f32 %v8664, 1.442695
      %v8910 = vpow.pop %v8909
      %v8911 = vmul.f32 %v8665, 1.442695
      %v8912 = vpow.pop %v8911
      %v8913 = vmul.f32 %v8666, 1.442695
      %v8914 = vpow.pop %v8913
      %v8915 = vmul.f32 %v8667, 1.442695
      %v8916 = vpow.pop %v8915
      %v8917 = vmul.f32 %v8668, 1.442695
      %v8918 = vpow.pop %v8917
      %v8919 = vmul.f32 %v8669, 1.442695
      %v8920 = vpow.pop %v8919
      %v8921 = vmul.f32 %v8670, 1.442695
      %v8922 = vpow.pop %v8921
      %v8923 = vmul.f32 %v8671, 1.442695
      %v8924 = vpow.pop %v8923
      %v8925 = vmul.f32 %v8672, 1.442695
      %v8926 = vpow.pop %v8925
      %v8927 = vmul.f32 %v8673, 1.442695
      %v8928 = vpow.pop %v8927
      %v8929 = vmul.f32 %v8674, 1.442695
      %v8930 = vpow.pop %v8929
      %v8931 = vmul.f32 %v8675, 1.442695
      %v8932 = vpow.pop %v8931
      %v8933 = vmul.f32 %v8676, 1.442695
      %v8934 = vpow.pop %v8933
      %v8935 = vmul.f32 %v8677, 1.442695
      %v8936 = vpow.pop %v8935
      %v8937 = vmul.f32 %v8678, 1.442695
      %v8938 = vpow.pop %v8937
      %v8939 = vmul.f32 %v8679, 1.442695
      %v8940 = vpow.pop %v8939
      %v8941 = vmul.f32 %v8680, 1.442695
      %v8942 = vpow.pop %v8941
      %v8943 = vmul.f32 %v8681, 1.442695
      %v8944 = vpow.pop %v8943
      %v8945 = vmul.f32 %v8682, 1.442695
      %v8946 = vpow.pop %v8945
      %v8947 = vmul.f32 %v8683, 1.442695
      %v8948 = vpow.pop %v8947
      %v8949 = vmul.f32 %v8684, 1.442695
      %v8950 = vpow.pop %v8949
      %v8951 = vmul.f32 %v8685, 1.442695
      %v8952 = vpow.pop %v8951
      %v8953 = vmul.f32 %v8686, 1.442695
      %v8954 = vpow.pop %v8953
      %v8955 = vmul.f32 %v8687, 1.442695
      %v8956 = vpow.pop %v8955
      %v8957 = vmul.f32 %v8688, 1.442695
      %v8958 = vpow.pop %v8957
      %v8959 = vmul.f32 %v8689, 1.442695
      %v8960 = vpow.pop %v8959
      %v8961 = vmul.f32 %v8690, 1.442695
      %v8962 = vpow.pop %v8961
      %v8963 = vmul.f32 %v8691, 1.442695
      %v8964 = vpow.pop %v8963
      %v8965 = vmul.f32 %v8692, 1.442695
      %v8966 = vpow.pop %v8965
      %v8967 = vmul.f32 %v8693, 1.442695
      %v8968 = vpow.pop %v8967
      %v8969 = vmul.f32 %v8694, 1.442695
      %v8970 = vpow.pop %v8969
      %v8971 = vmul.f32 %v8695, 1.442695
      %v8972 = vpow.pop %v8971
      %v8973 = vmul.f32 %v8696, 1.442695
      %v8974 = vpow.pop %v8973
      %v8975 = vmul.f32 %v8697, 1.442695
      %v8976 = vpow.pop %v8975
      %v8977 = vmul.f32 %v8698, 1.442695
      %v8978 = vpow.pop %v8977
      %v8979 = vmul.f32 %v8699, 1.442695
      %v8980 = vpow.pop %v8979
      %v8981 = vmul.f32 %v8700, 1.442695
      %v8982 = vpow.pop %v8981
      %v8983 = vmul.f32 %v8701, 1.442695
      %v8984 = vpow.pop %v8983
      %v8985 = vmul.f32 %v8702, 1.442695
      %v8986 = vpow.pop %v8985
      %v8987 = vmul.f32 %v8703, 1.442695
      %v8988 = vpow.pop %v8987
      %v8989 = vmul.f32 %v8704, 1.442695
      %v8990 = vpow.pop %v8989
      %v8991 = vmul.f32 %v8705, 1.442695
      %v8992 = vpow.pop %v8991
      %v8993 = vmul.f32 %v8706, 1.442695
      %v8994 = vpow.pop %v8993
      %v8995 = vmul.f32 %v8707, 1.442695
      %v8996 = vpow.pop %v8995
      %v8997 = vmul.f32 %v8708, 1.442695
      %v8998 = vpow.pop %v8997
      %v8999 = vmul.f32 %v8709, 1.442695
      %v9000 = vpow.pop %v8999
      %v9001 = vmul.f32 %v8710, 1.442695
      %v9002 = vpow.pop %v9001
      %v9003 = vmul.f32 %v8711, 1.442695
      %v9004 = vpow.pop %v9003
      %v9005 = vmul.f32 %v8712, 1.442695
      %v9006 = vpow.pop %v9005
      %v9007 = vmul.f32 %v8713, 1.442695
      %v9008 = vpow.pop %v9007
      %v9009 = vmul.f32 %v8714, 1.442695
      %v9010 = vpow.pop %v9009
      %v9011 = vmul.f32 %v8715, 1.442695
      %v9012 = vpow.pop %v9011
      %v9013 = vmul.f32 %v8716, 1.442695
      %v9014 = vpow.pop %v9013
      %v9015 = vmul.f32 %v8717, 1.442695
      %v9016 = vpow.pop %v9015
      %v9017 = vmul.f32 %v8718, 1.442695
      %v9018 = vpow.pop %v9017
      %v9019 = vmul.f32 %v8719, 1.442695
      %v9020 = vpow.pop %v9019
      %v9021 = vmul.f32 %v8720, 1.442695
      %v9022 = vpow.pop %v9021
      %v9023 = vmul.f32 %v8721, 1.442695
      %v9024 = vpow.pop %v9023
      %v9025 = vmul.f32 %v8722, 1.442695
      %v9026 = vpow.pop %v9025
      %v9027 = vmul.f32 %v8723, 1.442695
      %v9028 = vpow.pop %v9027
      %v9029 = vmul.f32 %v8724, 1.442695
      %v9030 = vpow.pop %v9029
      %v9031 = vmul.f32 %v8725, 1.442695
      %v9032 = vpow.pop %v9031
      %v9033 = vmul.f32 %v8726, 1.442695
      %v9034 = vpow.pop %v9033
      %v9035 = vmul.f32 %v8727, 1.442695
      %v9036 = vpow.pop %v9035
      %v9037 = vmul.f32 %v8728, 1.442695
      %v9038 = vpow.pop %v9037
      %v9039 = vmul.f32 %v8729, 1.442695
      %v9040 = vpow.pop %v9039
      %v9041 = vmul.f32 %v8730, 1.442695
      %v9042 = vpow.pop %v9041
      %v9043 = vmul.f32 %v8731, 1.442695
      %v9044 = vpow.pop %v9043
      %v9045 = vmul.f32 %v8732, 1.442695
      %v9046 = vpow.pop %v9045
      %v9047 = vmul.f32 %v8733, 1.442695
      %v9048 = vpow.pop %v9047
      %v9049 = vmul.f32 %v8734, 1.442695
      %v9050 = vpow.pop %v9049
      %v9051 = vmul.f32 %v8735, 1.442695
      %v9052 = vpow.pop %v9051
      %v9053 = vmul.f32 %v8736, 1.442695
      %v9054 = vpow.pop %v9053
      %v9055 = vmul.f32 %v8737, 1.442695
      %v9056 = vpow.pop %v9055
      %v9057 = vmul.f32 %v8738, 1.442695
      %v9058 = vpow.pop %v9057
      %v9059 = vmul.f32 %v8739, 1.442695
      %v9060 = vpow.pop %v9059
      %v9061 = vmul.f32 %v8740, 1.442695
      %v9062 = vpow.pop %v9061
      %v9063 = vmul.f32 %v8741, 1.442695
      %v9064 = vpow.pop %v9063
      %v9065 = vmul.f32 %v8742, 1.442695
      %v9066 = vpow.pop %v9065
      %v9067 = vmul.f32 %v8743, 1.442695
      %v9068 = vpow.pop %v9067
      %v9069 = vmul.f32 %v8744, 1.442695
      %v9070 = vpow.pop %v9069
      %v9071 = vmul.f32 %v8745, 1.442695
      %v9072 = vpow.pop %v9071
      %v9073 = vmul.f32 %v8746, 1.442695
      %v9074 = vpow.pop %v9073
      %v9075 = vmul.f32 %v8747, 1.442695
      %v9076 = vpow.pop %v9075
      %v9077 = vmul.f32 %v8748, 1.442695
      %v9078 = vpow.pop %v9077
      %v9079 = vmul.f32 %v8749, 1.442695
      %v9080 = vpow.pop %v9079
      %v9081 = vmul.f32 %v8750, 1.442695
      %v9082 = vpow.pop %v9081
      %v9083 = vmul.f32 %v8751, 1.442695
      %v9084 = vpow.pop %v9083
      %v9085 = vmul.f32 %v8752, 1.442695
      %v9086 = vpow.pop %v9085
      %v9087 = vmul.f32 %v8753, 1.442695
      %v9088 = vpow.pop %v9087
      %v9089 = vmul.f32 %v8754, 1.442695
      %v9090 = vpow.pop %v9089
      %v9091 = vmul.f32 %v8755, 1.442695
      %v9092 = vpow.pop %v9091
      %v9093 = vmul.f32 %v8756, 1.442695
      %v9094 = vpow.pop %v9093
      %v9095 = vmul.f32 %v8757, 1.442695
      %v9096 = vpow.pop %v9095
      %v9097 = vmul.f32 %v8758, 1.442695
      %v9098 = vpow.pop %v9097
      %v9099 = vmul.f32 %v8759, 1.442695
      %v9100 = vpow.pop %v9099
      %v9101 = vmul.f32 %v8760, 1.442695
      %v9102 = vpow.pop %v9101
      %v9103 = vmul.f32 %v8761, 1.442695
      %v9104 = vpow.pop %v9103
      %v9105 = vmul.f32 %v8762, 1.442695
      %v9106 = vpow.pop %v9105
      %v9107 = vmul.f32 %v8763, 1.442695
      %v9108 = vpow.pop %v9107
      %v9109 = vmul.f32 %v8764, 1.442695
      %v9110 = vpow.pop %v9109
      %v9111 = vmul.f32 %v8765, 1.442695
      %v9112 = vpow.pop %v9111
      %v9113 = vmul.f32 %v8766, 1.442695
      %v9114 = vpow.pop %v9113
      %v9115 = vmul.f32 %v8767, 1.442695
      %v9116 = vpow.pop %v9115
      %v9117 = vmul.f32 %v8768, 1.442695
      %v9118 = vpow.pop %v9117
      %v9119 = vmul.f32 %v8769, 1.442695
      %v9120 = vpow.pop %v9119
      %v9121 = vmul.f32 %v8770, 1.442695
      %v9122 = vpow.pop %v9121
      %v9123 = vmul.f32 %v8771, 1.442695
      %v9124 = vpow.pop %v9123
      %v9125 = vmul.f32 %v8772, 1.442695
      %v9126 = vpow.pop %v9125
      %v9127 = vmul.f32 %v8773, 1.442695
      %v9128 = vpow.pop %v9127
      %v9129 = vmul.f32 %v8774, 1.442695
      %v9130 = vpow.pop %v9129
      %v9131 = vmul.f32 %v8775, 1.442695
      %v9132 = vpow.pop %v9131
      %v9133 = vmul.f32 %v8776, 1.442695
      %v9134 = vpow.pop %v9133
      %v9135 = vmul.f32 %v8777, 1.442695
      %v9136 = vpow.pop %v9135
      %v9137 = vmul.f32 %v8778, 1.442695
      %v9138 = vpow.pop %v9137
      %v9139 = vmul.f32 %v8779, 1.442695
      %v9140 = vpow.pop %v9139
      %v9141 = vmul.f32 %v8780, 1.442695
      %v9142 = vpow.pop %v9141
      %v9143 = vmul.f32 %v8781, 1.442695
      %v9144 = vpow.pop %v9143
      %v9145 = vmul.f32 %v8782, 1.442695
      %v9146 = vpow.pop %v9145
      %v9147 = vmul.f32 %v8783, 1.442695
      %v9148 = vpow.pop %v9147
      %v9149 = vmul.f32 %v8784, 1.442695
      %v9150 = vpow.pop %v9149
      %v9151 = vmul.f32 %v8785, 1.442695
      %v9152 = vpow.pop %v9151
      %v9153 = vmul.f32 %v8786, 1.442695
      %v9154 = vpow.pop %v9153
      %v9155 = vmul.f32 %v8787, 1.442695
      %v9156 = vpow.pop %v9155
      %v9157 = vmul.f32 %v8788, 1.442695
      %v9158 = vpow.pop %v9157
      %v9159 = vmul.f32 %v8789, 1.442695
      %v9160 = vpow.pop %v9159
      %v9161 = vmul.f32 %v8790, 1.442695
      %v9162 = vpow.pop %v9161
      %v9163 = vmul.f32 %v8791, 1.442695
      %v9164 = vpow.pop %v9163
      %v9165 = vmul.f32 %v8792, 1.442695
      %v9166 = vpow.pop %v9165
      %v9167 = vmul.f32 %v8793, 1.442695
      %v9168 = vpow.pop %v9167
      %v9169 = vmul.f32 %v8794, 1.442695
      %v9170 = vpow.pop %v9169
      %v9171 = vmul.f32 %v8795, 1.442695
      %v9172 = vpow.pop %v9171
      %v9173 = vmul.f32 %v8796, 1.442695
      %v9174 = vpow.pop %v9173
      %v9175 = vmul.f32 %v8797, 1.442695
      %v9176 = vpow.pop %v9175
      %v9177 = vmul.f32 %v8798, 1.442695
      %v9178 = vpow.pop %v9177
      %v9179 = vmul.f32 %v8799, 1.442695
      %v9180 = vpow.pop %v9179
      %v9181 = vmul.f32 %v8800, 1.442695
      %v9182 = vpow.pop %v9181
      %v9183 = vmul.f32 %v8801, 1.442695
      %v9184 = vpow.pop %v9183
      %v9185 = vmul.f32 %v8802, 1.442695
      %v9186 = vpow.pop %v9185
      %v9187 = vmul.f32 %v8803, 1.442695
      %v9188 = vpow.pop %v9187
      %v9189 = vmul.f32 %v8804, 1.442695
      %v9190 = vpow.pop %v9189
      %v9191 = vmul.f32 %v8805, 1.442695
      %v9192 = vpow.pop %v9191
      %v9193 = vmul.f32 %v8806, 1.442695
      %v9194 = vpow.pop %v9193
      %v9195 = vmul.f32 %v8807, 1.442695
      %v9196 = vpow.pop %v9195
      %v9197 = vmul.f32 %v8808, 1.442695
      %v9198 = vpow.pop %v9197
      %v9199 = vmul.f32 %v8809, 1.442695
      %v9200 = vpow.pop %v9199
      %v9201 = vmul.f32 %v8810, 1.442695
      %v9202 = vpow.pop %v9201
      %v9203 = vmul.f32 %v8811, 1.442695
      %v9204 = vpow.pop %v9203
      %v9205 = vmul.f32 %v8812, 1.442695
      %v9206 = vpow.pop %v9205
      %v9207 = vmul.f32 %v8813, 1.442695
      %v9208 = vpow.pop %v9207
      %v9209 = vmul.f32 %v8814, 1.442695
      %v9210 = vpow.pop %v9209
      %v9211 = vmul.f32 %v8815, 1.442695
      %v9212 = vpow.pop %v9211
      %v9213 = vmul.f32 %v8816, 1.442695
      %v9214 = vpow.pop %v9213
      %v9215 = vmul.f32 %v8817, 1.442695
      %v9216 = vpow.pop %v9215
      %v9217 = vmul.f32 %v8818, 1.442695
      %v9218 = vpow.pop %v9217
      %v9219 = vmul.f32 %v8819, 1.442695
      %v9220 = vpow.pop %v9219
      %v9221 = vmul.f32 %v8820, 1.442695
      %v9222 = vpow.pop %v9221
      %v9223 = vmul.f32 %v8821, 1.442695
      %v9224 = vpow.pop %v9223
      %v9225 = vmul.f32 %v8822, 1.442695
      %v9226 = vpow.pop %v9225
      %v9227 = vmul.f32 %v8823, 1.442695
      %v9228 = vpow.pop %v9227
      %v9229 = vmul.f32 %v8824, 1.442695
      %v9230 = vpow.pop %v9229
      %v9231 = vmul.f32 %v8825, 1.442695
      %v9232 = vpow.pop %v9231
      %v9233 = vmul.f32 %v8826, 1.442695
      %v9234 = vpow.pop %v9233
      %v9235 = vmul.f32 %v8827, 1.442695
      %v9236 = vpow.pop %v9235
      %v9237 = vmul.f32 %v8828, 1.442695
      %v9238 = vpow.pop %v9237
      %v9239 = vmul.f32 %v8829, 1.442695
      %v9240 = vpow.pop %v9239
      %v9241 = vmul.f32 %v8830, 1.442695
      %v9242 = vpow.pop %v9241
      %v9243 = vmul.f32 %v8831, 1.442695
      %v9244 = vpow.pop %v9243
      %v9245 = vmul.f32 %v8832, 1.442695
      %v9246 = vpow.pop %v9245
      %v9247 = vmul.f32 %v8833, 1.442695
      %v9248 = vpow.pop %v9247
      %v9249 = vmul.f32 %v8834, 1.442695
      %v9250 = vpow.pop %v9249
      %v9251 = vmul.f32 %v8835, 1.442695
      %v9252 = vpow.pop %v9251
      %v9253 = vmul.f32 %v8836, 1.442695
      %v9254 = vpow.pop %v9253
      %v9255 = vmul.f32 %v8837, 1.442695
      %v9256 = vpow.pop %v9255
      %v9257 = vmul.f32 %v8838, 1.442695
      %v9258 = vpow.pop %v9257
      %v9259 = vmul.f32 %v8839, 1.442695
      %v9260 = vpow.pop %v9259
      %v9261 = vmul.f32 %v8840, 1.442695
      %v9262 = vpow.pop %v9261
      %v9263 = vmul.f32 %v8841, 1.442695
      %v9264 = vpow.pop %v9263
      %v9265 = vmul.f32 %v8842, 1.442695
      %v9266 = vpow.pop %v9265
      %v9267 = vmul.f32 %v8843, 1.442695
      %v9268 = vpow.pop %v9267
      %v9269 = vmul.f32 %v8844, 1.442695
      %v9270 = vpow.pop %v9269
      %v9271 = vmul.f32 %v8845, 1.442695
      %v9272 = vpow.pop %v9271
      %v9273 = vmul.f32 %v8846, 1.442695
      %v9274 = vpow.pop %v9273
      %v9275 = vmul.f32 %v8847, 1.442695
      %v9276 = vpow.pop %v9275
      %v9277 = vmul.f32 %v8848, 1.442695
      %v9278 = vpow.pop %v9277
      %v9279 = vmul.f32 %v8849, 1.442695
      %v9280 = vpow.pop %v9279
      %v9281 = vmul.f32 %v8850, 1.442695
      %v9282 = vpow.pop %v9281
      %v9283 = vmul.f32 %v8851, 1.442695
      %v9284 = vpow.pop %v9283
      %v9285 = vmul.f32 %v8852, 1.442695
      %v9286 = vpow.pop %v9285
      %v9287 = vmul.f32 %v8853, 1.442695
      %v9288 = vpow.pop %v9287
      %v9289 = vmul.f32 %v8854, 1.442695
      %v9290 = vpow.pop %v9289
      %v9291 = vmul.f32 %v8855, 1.442695
      %v9292 = vpow.pop %v9291
      %v9293 = vmul.f32 %v8856, 1.442695
      %v9294 = vpow.pop %v9293
      %v9295 = vmul.f32 %v8857, 1.442695
      %v9296 = vpow.pop %v9295
      %v9297 = vmul.f32 %v8858, 1.442695
      %v9298 = vpow.pop %v9297
      %v9299 = vmul.f32 %v8859, 1.442695
      %v9300 = vpow.pop %v9299
      %v9301 = vmul.f32 %v8860, 1.442695
      %v9302 = vpow.pop %v9301
      %v9303 = vmul.f32 %v8861, 1.442695
      %v9304 = vpow.pop %v9303
      %v9305 = vmul.f32 %v8862, 1.442695
      %v9306 = vpow.pop %v9305
      %v9307 = vmul.f32 %v8863, 1.442695
      %v9308 = vpow.pop %v9307
      %v9309 = vmul.f32 %v8864, 1.442695
      %v9310 = vpow.pop %v9309
      %v9311 = vmul.f32 %v8865, 1.442695
      %v9312 = vpow.pop %v9311
      %v9313 = vmul.f32 %v8866, 1.442695
      %v9314 = vpow.pop %v9313
      %v9315 = vadd.f32 %v8868, 1.0
      %v9316 = vadd.f32 %v8870, 1.0
      %v9317 = vadd.f32 %v8872, 1.0
      %v9318 = vadd.f32 %v8874, 1.0
      %v9319 = vadd.f32 %v8876, 1.0
      %v9320 = vadd.f32 %v8878, 1.0
      %v9321 = vadd.f32 %v8880, 1.0
      %v9322 = vadd.f32 %v8882, 1.0
      %v9323 = vadd.f32 %v8884, 1.0
      %v9324 = vadd.f32 %v8886, 1.0
      %v9325 = vadd.f32 %v8888, 1.0
      %v9326 = vadd.f32 %v8890, 1.0
      %v9327 = vadd.f32 %v8892, 1.0
      %v9328 = vadd.f32 %v8894, 1.0
      %v9329 = vadd.f32 %v8896, 1.0
      %v9330 = vadd.f32 %v8898, 1.0
      %v9331 = vadd.f32 %v8900, 1.0
      %v9332 = vadd.f32 %v8902, 1.0
      %v9333 = vadd.f32 %v8904, 1.0
      %v9334 = vadd.f32 %v8906, 1.0
      %v9335 = vadd.f32 %v8908, 1.0
      %v9336 = vadd.f32 %v8910, 1.0
      %v9337 = vadd.f32 %v8912, 1.0
      %v9338 = vadd.f32 %v8914, 1.0
      %v9339 = vadd.f32 %v8916, 1.0
      %v9340 = vadd.f32 %v8918, 1.0
      %v9341 = vadd.f32 %v8920, 1.0
      %v9342 = vadd.f32 %v8922, 1.0
      %v9343 = vadd.f32 %v8924, 1.0
      %v9344 = vadd.f32 %v8926, 1.0
      %v9345 = vadd.f32 %v8928, 1.0
      %v9346 = vadd.f32 %v8930, 1.0
      %v9347 = vadd.f32 %v8932, 1.0
      %v9348 = vadd.f32 %v8934, 1.0
      %v9349 = vadd.f32 %v8936, 1.0
      %v9350 = vadd.f32 %v8938, 1.0
      %v9351 = vadd.f32 %v8940, 1.0
      %v9352 = vadd.f32 %v8942, 1.0
      %v9353 = vadd.f32 %v8944, 1.0
      %v9354 = vadd.f32 %v8946, 1.0
      %v9355 = vadd.f32 %v8948, 1.0
      %v9356 = vadd.f32 %v8950, 1.0
      %v9357 = vadd.f32 %v8952, 1.0
      %v9358 = vadd.f32 %v8954, 1.0
      %v9359 = vadd.f32 %v8956, 1.0
      %v9360 = vadd.f32 %v8958, 1.0
      %v9361 = vadd.f32 %v8960, 1.0
      %v9362 = vadd.f32 %v8962, 1.0
      %v9363 = vadd.f32 %v8964, 1.0
      %v9364 = vadd.f32 %v8966, 1.0
      %v9365 = vadd.f32 %v8968, 1.0
      %v9366 = vadd.f32 %v8970, 1.0
      %v9367 = vadd.f32 %v8972, 1.0
      %v9368 = vadd.f32 %v8974, 1.0
      %v9369 = vadd.f32 %v8976, 1.0
      %v9370 = vadd.f32 %v8978, 1.0
      %v9371 = vadd.f32 %v8980, 1.0
      %v9372 = vadd.f32 %v8982, 1.0
      %v9373 = vadd.f32 %v8984, 1.0
      %v9374 = vadd.f32 %v8986, 1.0
      %v9375 = vadd.f32 %v8988, 1.0
      %v9376 = vadd.f32 %v8990, 1.0
      %v9377 = vadd.f32 %v8992, 1.0
      %v9378 = vadd.f32 %v8994, 1.0
      %v9379 = vadd.f32 %v8996, 1.0
      %v9380 = vadd.f32 %v8998, 1.0
      %v9381 = vadd.f32 %v9000, 1.0
      %v9382 = vadd.f32 %v9002, 1.0
      %v9383 = vadd.f32 %v9004, 1.0
      %v9384 = vadd.f32 %v9006, 1.0
      %v9385 = vadd.f32 %v9008, 1.0
      %v9386 = vadd.f32 %v9010, 1.0
      %v9387 = vadd.f32 %v9012, 1.0
      %v9388 = vadd.f32 %v9014, 1.0
      %v9389 = vadd.f32 %v9016, 1.0
      %v9390 = vadd.f32 %v9018, 1.0
      %v9391 = vadd.f32 %v9020, 1.0
      %v9392 = vadd.f32 %v9022, 1.0
      %v9393 = vadd.f32 %v9024, 1.0
      %v9394 = vadd.f32 %v9026, 1.0
      %v9395 = vadd.f32 %v9028, 1.0
      %v9396 = vadd.f32 %v9030, 1.0
      %v9397 = vadd.f32 %v9032, 1.0
      %v9398 = vadd.f32 %v9034, 1.0
      %v9399 = vadd.f32 %v9036, 1.0
      %v9400 = vadd.f32 %v9038, 1.0
      %v9401 = vadd.f32 %v9040, 1.0
      %v9402 = vadd.f32 %v9042, 1.0
      %v9403 = vadd.f32 %v9044, 1.0
      %v9404 = vadd.f32 %v9046, 1.0
      %v9405 = vadd.f32 %v9048, 1.0
      %v9406 = vadd.f32 %v9050, 1.0
      %v9407 = vadd.f32 %v9052, 1.0
      %v9408 = vadd.f32 %v9054, 1.0
      %v9409 = vadd.f32 %v9056, 1.0
      %v9410 = vadd.f32 %v9058, 1.0
      %v9411 = vadd.f32 %v9060, 1.0
      %v9412 = vadd.f32 %v9062, 1.0
      %v9413 = vadd.f32 %v9064, 1.0
      %v9414 = vadd.f32 %v9066, 1.0
      %v9415 = vadd.f32 %v9068, 1.0
      %v9416 = vadd.f32 %v9070, 1.0
      %v9417 = vadd.f32 %v9072, 1.0
      %v9418 = vadd.f32 %v9074, 1.0
      %v9419 = vadd.f32 %v9076, 1.0
      %v9420 = vadd.f32 %v9078, 1.0
      %v9421 = vadd.f32 %v9080, 1.0
      %v9422 = vadd.f32 %v9082, 1.0
      %v9423 = vadd.f32 %v9084, 1.0
      %v9424 = vadd.f32 %v9086, 1.0
      %v9425 = vadd.f32 %v9088, 1.0
      %v9426 = vadd.f32 %v9090, 1.0
      %v9427 = vadd.f32 %v9092, 1.0
      %v9428 = vadd.f32 %v9094, 1.0
      %v9429 = vadd.f32 %v9096, 1.0
      %v9430 = vadd.f32 %v9098, 1.0
      %v9431 = vadd.f32 %v9100, 1.0
      %v9432 = vadd.f32 %v9102, 1.0
      %v9433 = vadd.f32 %v9104, 1.0
      %v9434 = vadd.f32 %v9106, 1.0
      %v9435 = vadd.f32 %v9108, 1.0
      %v9436 = vadd.f32 %v9110, 1.0
      %v9437 = vadd.f32 %v9112, 1.0
      %v9438 = vadd.f32 %v9114, 1.0
      %v9439 = vadd.f32 %v9116, 1.0
      %v9440 = vadd.f32 %v9118, 1.0
      %v9441 = vadd.f32 %v9120, 1.0
      %v9442 = vadd.f32 %v9122, 1.0
      %v9443 = vadd.f32 %v9124, 1.0
      %v9444 = vadd.f32 %v9126, 1.0
      %v9445 = vadd.f32 %v9128, 1.0
      %v9446 = vadd.f32 %v9130, 1.0
      %v9447 = vadd.f32 %v9132, 1.0
      %v9448 = vadd.f32 %v9134, 1.0
      %v9449 = vadd.f32 %v9136, 1.0
      %v9450 = vadd.f32 %v9138, 1.0
      %v9451 = vadd.f32 %v9140, 1.0
      %v9452 = vadd.f32 %v9142, 1.0
      %v9453 = vadd.f32 %v9144, 1.0
      %v9454 = vadd.f32 %v9146, 1.0
      %v9455 = vadd.f32 %v9148, 1.0
      %v9456 = vadd.f32 %v9150, 1.0
      %v9457 = vadd.f32 %v9152, 1.0
      %v9458 = vadd.f32 %v9154, 1.0
      %v9459 = vadd.f32 %v9156, 1.0
      %v9460 = vadd.f32 %v9158, 1.0
      %v9461 = vadd.f32 %v9160, 1.0
      %v9462 = vadd.f32 %v9162, 1.0
      %v9463 = vadd.f32 %v9164, 1.0
      %v9464 = vadd.f32 %v9166, 1.0
      %v9465 = vadd.f32 %v9168, 1.0
      %v9466 = vadd.f32 %v9170, 1.0
      %v9467 = vadd.f32 %v9172, 1.0
      %v9468 = vadd.f32 %v9174, 1.0
      %v9469 = vadd.f32 %v9176, 1.0
      %v9470 = vadd.f32 %v9178, 1.0
      %v9471 = vadd.f32 %v9180, 1.0
      %v9472 = vadd.f32 %v9182, 1.0
      %v9473 = vadd.f32 %v9184, 1.0
      %v9474 = vadd.f32 %v9186, 1.0
      %v9475 = vadd.f32 %v9188, 1.0
      %v9476 = vadd.f32 %v9190, 1.0
      %v9477 = vadd.f32 %v9192, 1.0
      %v9478 = vadd.f32 %v9194, 1.0
      %v9479 = vadd.f32 %v9196, 1.0
      %v9480 = vadd.f32 %v9198, 1.0
      %v9481 = vadd.f32 %v9200, 1.0
      %v9482 = vadd.f32 %v9202, 1.0
      %v9483 = vadd.f32 %v9204, 1.0
      %v9484 = vadd.f32 %v9206, 1.0
      %v9485 = vadd.f32 %v9208, 1.0
      %v9486 = vadd.f32 %v9210, 1.0
      %v9487 = vadd.f32 %v9212, 1.0
      %v9488 = vadd.f32 %v9214, 1.0
      %v9489 = vadd.f32 %v9216, 1.0
      %v9490 = vadd.f32 %v9218, 1.0
      %v9491 = vadd.f32 %v9220, 1.0
      %v9492 = vadd.f32 %v9222, 1.0
      %v9493 = vadd.f32 %v9224, 1.0
      %v9494 = vadd.f32 %v9226, 1.0
      %v9495 = vadd.f32 %v9228, 1.0
      %v9496 = vadd.f32 %v9230, 1.0
      %v9497 = vadd.f32 %v9232, 1.0
      %v9498 = vadd.f32 %v9234, 1.0
      %v9499 = vadd.f32 %v9236, 1.0
      %v9500 = vadd.f32 %v9238, 1.0
      %v9501 = vadd.f32 %v9240, 1.0
      %v9502 = vadd.f32 %v9242, 1.0
      %v9503 = vadd.f32 %v9244, 1.0
      %v9504 = vadd.f32 %v9246, 1.0
      %v9505 = vadd.f32 %v9248, 1.0
      %v9506 = vadd.f32 %v9250, 1.0
      %v9507 = vadd.f32 %v9252, 1.0
      %v9508 = vadd.f32 %v9254, 1.0
      %v9509 = vadd.f32 %v9256, 1.0
      %v9510 = vadd.f32 %v9258, 1.0
      %v9511 = vadd.f32 %v9260, 1.0
      %v9512 = vadd.f32 %v9262, 1.0
      %v9513 = vadd.f32 %v9264, 1.0
      %v9514 = vadd.f32 %v9266, 1.0
      %v9515 = vadd.f32 %v9268, 1.0
      %v9516 = vadd.f32 %v9270, 1.0
      %v9517 = vadd.f32 %v9272, 1.0
      %v9518 = vadd.f32 %v9274, 1.0
      %v9519 = vadd.f32 %v9276, 1.0
      %v9520 = vadd.f32 %v9278, 1.0
      %v9521 = vadd.f32 %v9280, 1.0
      %v9522 = vadd.f32 %v9282, 1.0
      %v9523 = vadd.f32 %v9284, 1.0
      %v9524 = vadd.f32 %v9286, 1.0
      %v9525 = vadd.f32 %v9288, 1.0
      %v9526 = vadd.f32 %v9290, 1.0
      %v9527 = vadd.f32 %v9292, 1.0
      %v9528 = vadd.f32 %v9294, 1.0
      %v9529 = vadd.f32 %v9296, 1.0
      %v9530 = vadd.f32 %v9298, 1.0
      %v9531 = vadd.f32 %v9300, 1.0
      %v9532 = vadd.f32 %v9302, 1.0
      %v9533 = vadd.f32 %v9304, 1.0
      %v9534 = vadd.f32 %v9306, 1.0
      %v9535 = vadd.f32 %v9308, 1.0
      %v9536 = vadd.f32 %v9310, 1.0
      %v9537 = vadd.f32 %v9312, 1.0
      %v9538 = vadd.f32 %v9314, 1.0
      %v9539 = vrcp.pop %v9315
      %v9540 = vmul.f32 1.0, %v9539
      %v9541 = vrcp.pop %v9316
      %v9542 = vmul.f32 1.0, %v9541
      %v9543 = vrcp.pop %v9317
      %v9544 = vmul.f32 1.0, %v9543
      %v9545 = vrcp.pop %v9318
      %v9546 = vmul.f32 1.0, %v9545
      %v9547 = vrcp.pop %v9319
      %v9548 = vmul.f32 1.0, %v9547
      %v9549 = vrcp.pop %v9320
      %v9550 = vmul.f32 1.0, %v9549
      %v9551 = vrcp.pop %v9321
      %v9552 = vmul.f32 1.0, %v9551
      %v9553 = vrcp.pop %v9322
      %v9554 = vmul.f32 1.0, %v9553
      %v9555 = vrcp.pop %v9323
      %v9556 = vmul.f32 1.0, %v9555
      %v9557 = vrcp.pop %v9324
      %v9558 = vmul.f32 1.0, %v9557
      %v9559 = vrcp.pop %v9325
      %v9560 = vmul.f32 1.0, %v9559
      %v9561 = vrcp.pop %v9326
      %v9562 = vmul.f32 1.0, %v9561
      %v9563 = vrcp.pop %v9327
      %v9564 = vmul.f32 1.0, %v9563
      %v9565 = vrcp.pop %v9328
      %v9566 = vmul.f32 1.0, %v9565
      %v9567 = vrcp.pop %v9329
      %v9568 = vmul.f32 1.0, %v9567
      %v9569 = vrcp.pop %v9330
      %v9570 = vmul.f32 1.0, %v9569
      %v9571 = vrcp.pop %v9331
      %v9572 = vmul.f32 1.0, %v9571
      %v9573 = vrcp.pop %v9332
      %v9574 = vmul.f32 1.0, %v9573
      %v9575 = vrcp.pop %v9333
      %v9576 = vmul.f32 1.0, %v9575
      %v9577 = vrcp.pop %v9334
      %v9578 = vmul.f32 1.0, %v9577
      %v9579 = vrcp.pop %v9335
      %v9580 = vmul.f32 1.0, %v9579
      %v9581 = vrcp.pop %v9336
      %v9582 = vmul.f32 1.0, %v9581
      %v9583 = vrcp.pop %v9337
      %v9584 = vmul.f32 1.0, %v9583
      %v9585 = vrcp.pop %v9338
      %v9586 = vmul.f32 1.0, %v9585
      %v9587 = vrcp.pop %v9339
      %v9588 = vmul.f32 1.0, %v9587
      %v9589 = vrcp.pop %v9340
      %v9590 = vmul.f32 1.0, %v9589
      %v9591 = vrcp.pop %v9341
      %v9592 = vmul.f32 1.0, %v9591
      %v9593 = vrcp.pop %v9342
      %v9594 = vmul.f32 1.0, %v9593
      %v9595 = vrcp.pop %v9343
      %v9596 = vmul.f32 1.0, %v9595
      %v9597 = vrcp.pop %v9344
      %v9598 = vmul.f32 1.0, %v9597
      %v9599 = vrcp.pop %v9345
      %v9600 = vmul.f32 1.0, %v9599
      %v9601 = vrcp.pop %v9346
      %v9602 = vmul.f32 1.0, %v9601
      %v9603 = vrcp.pop %v9347
      %v9604 = vmul.f32 1.0, %v9603
      %v9605 = vrcp.pop %v9348
      %v9606 = vmul.f32 1.0, %v9605
      %v9607 = vrcp.pop %v9349
      %v9608 = vmul.f32 1.0, %v9607
      %v9609 = vrcp.pop %v9350
      %v9610 = vmul.f32 1.0, %v9609
      %v9611 = vrcp.pop %v9351
      %v9612 = vmul.f32 1.0, %v9611
      %v9613 = vrcp.pop %v9352
      %v9614 = vmul.f32 1.0, %v9613
      %v9615 = vrcp.pop %v9353
      %v9616 = vmul.f32 1.0, %v9615
      %v9617 = vrcp.pop %v9354
      %v9618 = vmul.f32 1.0, %v9617
      %v9619 = vrcp.pop %v9355
      %v9620 = vmul.f32 1.0, %v9619
      %v9621 = vrcp.pop %v9356
      %v9622 = vmul.f32 1.0, %v9621
      %v9623 = vrcp.pop %v9357
      %v9624 = vmul.f32 1.0, %v9623
      %v9625 = vrcp.pop %v9358
      %v9626 = vmul.f32 1.0, %v9625
      %v9627 = vrcp.pop %v9359
      %v9628 = vmul.f32 1.0, %v9627
      %v9629 = vrcp.pop %v9360
      %v9630 = vmul.f32 1.0, %v9629
      %v9631 = vrcp.pop %v9361
      %v9632 = vmul.f32 1.0, %v9631
      %v9633 = vrcp.pop %v9362
      %v9634 = vmul.f32 1.0, %v9633
      %v9635 = vrcp.pop %v9363
      %v9636 = vmul.f32 1.0, %v9635
      %v9637 = vrcp.pop %v9364
      %v9638 = vmul.f32 1.0, %v9637
      %v9639 = vrcp.pop %v9365
      %v9640 = vmul.f32 1.0, %v9639
      %v9641 = vrcp.pop %v9366
      %v9642 = vmul.f32 1.0, %v9641
      %v9643 = vrcp.pop %v9367
      %v9644 = vmul.f32 1.0, %v9643
      %v9645 = vrcp.pop %v9368
      %v9646 = vmul.f32 1.0, %v9645
      %v9647 = vrcp.pop %v9369
      %v9648 = vmul.f32 1.0, %v9647
      %v9649 = vrcp.pop %v9370
      %v9650 = vmul.f32 1.0, %v9649
      %v9651 = vrcp.pop %v9371
      %v9652 = vmul.f32 1.0, %v9651
      %v9653 = vrcp.pop %v9372
      %v9654 = vmul.f32 1.0, %v9653
      %v9655 = vrcp.pop %v9373
      %v9656 = vmul.f32 1.0, %v9655
      %v9657 = vrcp.pop %v9374
      %v9658 = vmul.f32 1.0, %v9657
      %v9659 = vrcp.pop %v9375
      %v9660 = vmul.f32 1.0, %v9659
      %v9661 = vrcp.pop %v9376
      %v9662 = vmul.f32 1.0, %v9661
      %v9663 = vrcp.pop %v9377
      %v9664 = vmul.f32 1.0, %v9663
      %v9665 = vrcp.pop %v9378
      %v9666 = vmul.f32 1.0, %v9665
      %v9667 = vrcp.pop %v9379
      %v9668 = vmul.f32 1.0, %v9667
      %v9669 = vrcp.pop %v9380
      %v9670 = vmul.f32 1.0, %v9669
      %v9671 = vrcp.pop %v9381
      %v9672 = vmul.f32 1.0, %v9671
      %v9673 = vrcp.pop %v9382
      %v9674 = vmul.f32 1.0, %v9673
      %v9675 = vrcp.pop %v9383
      %v9676 = vmul.f32 1.0, %v9675
      %v9677 = vrcp.pop %v9384
      %v9678 = vmul.f32 1.0, %v9677
      %v9679 = vrcp.pop %v9385
      %v9680 = vmul.f32 1.0, %v9679
      %v9681 = vrcp.pop %v9386
      %v9682 = vmul.f32 1.0, %v9681
      %v9683 = vrcp.pop %v9387
      %v9684 = vmul.f32 1.0, %v9683
      %v9685 = vrcp.pop %v9388
      %v9686 = vmul.f32 1.0, %v9685
      %v9687 = vrcp.pop %v9389
      %v9688 = vmul.f32 1.0, %v9687
      %v9689 = vrcp.pop %v9390
      %v9690 = vmul.f32 1.0, %v9689
      %v9691 = vrcp.pop %v9391
      %v9692 = vmul.f32 1.0, %v9691
      %v9693 = vrcp.pop %v9392
      %v9694 = vmul.f32 1.0, %v9693
      %v9695 = vrcp.pop %v9393
      %v9696 = vmul.f32 1.0, %v9695
      %v9697 = vrcp.pop %v9394
      %v9698 = vmul.f32 1.0, %v9697
      %v9699 = vrcp.pop %v9395
      %v9700 = vmul.f32 1.0, %v9699
      %v9701 = vrcp.pop %v9396
      %v9702 = vmul.f32 1.0, %v9701
      %v9703 = vrcp.pop %v9397
      %v9704 = vmul.f32 1.0, %v9703
      %v9705 = vrcp.pop %v9398
      %v9706 = vmul.f32 1.0, %v9705
      %v9707 = vrcp.pop %v9399
      %v9708 = vmul.f32 1.0, %v9707
      %v9709 = vrcp.pop %v9400
      %v9710 = vmul.f32 1.0, %v9709
      %v9711 = vrcp.pop %v9401
      %v9712 = vmul.f32 1.0, %v9711
      %v9713 = vrcp.pop %v9402
      %v9714 = vmul.f32 1.0, %v9713
      %v9715 = vrcp.pop %v9403
      %v9716 = vmul.f32 1.0, %v9715
      %v9717 = vrcp.pop %v9404
      %v9718 = vmul.f32 1.0, %v9717
      %v9719 = vrcp.pop %v9405
      %v9720 = vmul.f32 1.0, %v9719
      %v9721 = vrcp.pop %v9406
      %v9722 = vmul.f32 1.0, %v9721
      %v9723 = vrcp.pop %v9407
      %v9724 = vmul.f32 1.0, %v9723
      %v9725 = vrcp.pop %v9408
      %v9726 = vmul.f32 1.0, %v9725
      %v9727 = vrcp.pop %v9409
      %v9728 = vmul.f32 1.0, %v9727
      %v9729 = vrcp.pop %v9410
      %v9730 = vmul.f32 1.0, %v9729
      %v9731 = vrcp.pop %v9411
      %v9732 = vmul.f32 1.0, %v9731
      %v9733 = vrcp.pop %v9412
      %v9734 = vmul.f32 1.0, %v9733
      %v9735 = vrcp.pop %v9413
      %v9736 = vmul.f32 1.0, %v9735
      %v9737 = vrcp.pop %v9414
      %v9738 = vmul.f32 1.0, %v9737
      %v9739 = vrcp.pop %v9415
      %v9740 = vmul.f32 1.0, %v9739
      %v9741 = vrcp.pop %v9416
      %v9742 = vmul.f32 1.0, %v9741
      %v9743 = vrcp.pop %v9417
      %v9744 = vmul.f32 1.0, %v9743
      %v9745 = vrcp.pop %v9418
      %v9746 = vmul.f32 1.0, %v9745
      %v9747 = vrcp.pop %v9419
      %v9748 = vmul.f32 1.0, %v9747
      %v9749 = vrcp.pop %v9420
      %v9750 = vmul.f32 1.0, %v9749
      %v9751 = vrcp.pop %v9421
      %v9752 = vmul.f32 1.0, %v9751
      %v9753 = vrcp.pop %v9422
      %v9754 = vmul.f32 1.0, %v9753
      %v9755 = vrcp.pop %v9423
      %v9756 = vmul.f32 1.0, %v9755
      %v9757 = vrcp.pop %v9424
      %v9758 = vmul.f32 1.0, %v9757
      %v9759 = vrcp.pop %v9425
      %v9760 = vmul.f32 1.0, %v9759
      %v9761 = vrcp.pop %v9426
      %v9762 = vmul.f32 1.0, %v9761
      %v9763 = vrcp.pop %v9427
      %v9764 = vmul.f32 1.0, %v9763
      %v9765 = vrcp.pop %v9428
      %v9766 = vmul.f32 1.0, %v9765
      %v9767 = vrcp.pop %v9429
      %v9768 = vmul.f32 1.0, %v9767
      %v9769 = vrcp.pop %v9430
      %v9770 = vmul.f32 1.0, %v9769
      %v9771 = vrcp.pop %v9431
      %v9772 = vmul.f32 1.0, %v9771
      %v9773 = vrcp.pop %v9432
      %v9774 = vmul.f32 1.0, %v9773
      %v9775 = vrcp.pop %v9433
      %v9776 = vmul.f32 1.0, %v9775
      %v9777 = vrcp.pop %v9434
      %v9778 = vmul.f32 1.0, %v9777
      %v9779 = vrcp.pop %v9435
      %v9780 = vmul.f32 1.0, %v9779
      %v9781 = vrcp.pop %v9436
      %v9782 = vmul.f32 1.0, %v9781
      %v9783 = vrcp.pop %v9437
      %v9784 = vmul.f32 1.0, %v9783
      %v9785 = vrcp.pop %v9438
      %v9786 = vmul.f32 1.0, %v9785
      %v9787 = vrcp.pop %v9439
      %v9788 = vmul.f32 1.0, %v9787
      %v9789 = vrcp.pop %v9440
      %v9790 = vmul.f32 1.0, %v9789
      %v9791 = vrcp.pop %v9441
      %v9792 = vmul.f32 1.0, %v9791
      %v9793 = vrcp.pop %v9442
      %v9794 = vmul.f32 1.0, %v9793
      %v9795 = vrcp.pop %v9443
      %v9796 = vmul.f32 1.0, %v9795
      %v9797 = vrcp.pop %v9444
      %v9798 = vmul.f32 1.0, %v9797
      %v9799 = vrcp.pop %v9445
      %v9800 = vmul.f32 1.0, %v9799
      %v9801 = vrcp.pop %v9446
      %v9802 = vmul.f32 1.0, %v9801
      %v9803 = vrcp.pop %v9447
      %v9804 = vmul.f32 1.0, %v9803
      %v9805 = vrcp.pop %v9448
      %v9806 = vmul.f32 1.0, %v9805
      %v9807 = vrcp.pop %v9449
      %v9808 = vmul.f32 1.0, %v9807
      %v9809 = vrcp.pop %v9450
      %v9810 = vmul.f32 1.0, %v9809
      %v9811 = vrcp.pop %v9451
      %v9812 = vmul.f32 1.0, %v9811
      %v9813 = vrcp.pop %v9452
      %v9814 = vmul.f32 1.0, %v9813
      %v9815 = vrcp.pop %v9453
      %v9816 = vmul.f32 1.0, %v9815
      %v9817 = vrcp.pop %v9454
      %v9818 = vmul.f32 1.0, %v9817
      %v9819 = vrcp.pop %v9455
      %v9820 = vmul.f32 1.0, %v9819
      %v9821 = vrcp.pop %v9456
      %v9822 = vmul.f32 1.0, %v9821
      %v9823 = vrcp.pop %v9457
      %v9824 = vmul.f32 1.0, %v9823
      %v9825 = vrcp.pop %v9458
      %v9826 = vmul.f32 1.0, %v9825
      %v9827 = vrcp.pop %v9459
      %v9828 = vmul.f32 1.0, %v9827
      %v9829 = vrcp.pop %v9460
      %v9830 = vmul.f32 1.0, %v9829
      %v9831 = vrcp.pop %v9461
      %v9832 = vmul.f32 1.0, %v9831
      %v9833 = vrcp.pop %v9462
      %v9834 = vmul.f32 1.0, %v9833
      %v9835 = vrcp.pop %v9463
      %v9836 = vmul.f32 1.0, %v9835
      %v9837 = vrcp.pop %v9464
      %v9838 = vmul.f32 1.0, %v9837
      %v9839 = vrcp.pop %v9465
      %v9840 = vmul.f32 1.0, %v9839
      %v9841 = vrcp.pop %v9466
      %v9842 = vmul.f32 1.0, %v9841
      %v9843 = vrcp.pop %v9467
      %v9844 = vmul.f32 1.0, %v9843
      %v9845 = vrcp.pop %v9468
      %v9846 = vmul.f32 1.0, %v9845
      %v9847 = vrcp.pop %v9469
      %v9848 = vmul.f32 1.0, %v9847
      %v9849 = vrcp.pop %v9470
      %v9850 = vmul.f32 1.0, %v9849
      %v9851 = vrcp.pop %v9471
      %v9852 = vmul.f32 1.0, %v9851
      %v9853 = vrcp.pop %v9472
      %v9854 = vmul.f32 1.0, %v9853
      %v9855 = vrcp.pop %v9473
      %v9856 = vmul.f32 1.0, %v9855
      %v9857 = vrcp.pop %v9474
      %v9858 = vmul.f32 1.0, %v9857
      %v9859 = vrcp.pop %v9475
      %v9860 = vmul.f32 1.0, %v9859
      %v9861 = vrcp.pop %v9476
      %v9862 = vmul.f32 1.0, %v9861
      %v9863 = vrcp.pop %v9477
      %v9864 = vmul.f32 1.0, %v9863
      %v9865 = vrcp.pop %v9478
      %v9866 = vmul.f32 1.0, %v9865
      %v9867 = vrcp.pop %v9479
      %v9868 = vmul.f32 1.0, %v9867
      %v9869 = vrcp.pop %v9480
      %v9870 = vmul.f32 1.0, %v9869
      %v9871 = vrcp.pop %v9481
      %v9872 = vmul.f32 1.0, %v9871
      %v9873 = vrcp.pop %v9482
      %v9874 = vmul.f32 1.0, %v9873
      %v9875 = vrcp.pop %v9483
      %v9876 = vmul.f32 1.0, %v9875
      %v9877 = vrcp.pop %v9484
      %v9878 = vmul.f32 1.0, %v9877
      %v9879 = vrcp.pop %v9485
      %v9880 = vmul.f32 1.0, %v9879
      %v9881 = vrcp.pop %v9486
      %v9882 = vmul.f32 1.0, %v9881
      %v9883 = vrcp.pop %v9487
      %v9884 = vmul.f32 1.0, %v9883
      %v9885 = vrcp.pop %v9488
      %v9886 = vmul.f32 1.0, %v9885
      %v9887 = vrcp.pop %v9489
      %v9888 = vmul.f32 1.0, %v9887
      %v9889 = vrcp.pop %v9490
      %v9890 = vmul.f32 1.0, %v9889
      %v9891 = vrcp.pop %v9491
      %v9892 = vmul.f32 1.0, %v9891
      %v9893 = vrcp.pop %v9492
      %v9894 = vmul.f32 1.0, %v9893
      %v9895 = vrcp.pop %v9493
      %v9896 = vmul.f32 1.0, %v9895
      %v9897 = vrcp.pop %v9494
      %v9898 = vmul.f32 1.0, %v9897
      %v9899 = vrcp.pop %v9495
      %v9900 = vmul.f32 1.0, %v9899
      %v9901 = vrcp.pop %v9496
      %v9902 = vmul.f32 1.0, %v9901
      %v9903 = vrcp.pop %v9497
      %v9904 = vmul.f32 1.0, %v9903
      %v9905 = vrcp.pop %v9498
      %v9906 = vmul.f32 1.0, %v9905
      %v9907 = vrcp.pop %v9499
      %v9908 = vmul.f32 1.0, %v9907
      %v9909 = vrcp.pop %v9500
      %v9910 = vmul.f32 1.0, %v9909
      %v9911 = vrcp.pop %v9501
      %v9912 = vmul.f32 1.0, %v9911
      %v9913 = vrcp.pop %v9502
      %v9914 = vmul.f32 1.0, %v9913
      %v9915 = vrcp.pop %v9503
      %v9916 = vmul.f32 1.0, %v9915
      %v9917 = vrcp.pop %v9504
      %v9918 = vmul.f32 1.0, %v9917
      %v9919 = vrcp.pop %v9505
      %v9920 = vmul.f32 1.0, %v9919
      %v9921 = vrcp.pop %v9506
      %v9922 = vmul.f32 1.0, %v9921
      %v9923 = vrcp.pop %v9507
      %v9924 = vmul.f32 1.0, %v9923
      %v9925 = vrcp.pop %v9508
      %v9926 = vmul.f32 1.0, %v9925
      %v9927 = vrcp.pop %v9509
      %v9928 = vmul.f32 1.0, %v9927
      %v9929 = vrcp.pop %v9510
      %v9930 = vmul.f32 1.0, %v9929
      %v9931 = vrcp.pop %v9511
      %v9932 = vmul.f32 1.0, %v9931
      %v9933 = vrcp.pop %v9512
      %v9934 = vmul.f32 1.0, %v9933
      %v9935 = vrcp.pop %v9513
      %v9936 = vmul.f32 1.0, %v9935
      %v9937 = vrcp.pop %v9514
      %v9938 = vmul.f32 1.0, %v9937
      %v9939 = vrcp.pop %v9515
      %v9940 = vmul.f32 1.0, %v9939
      %v9941 = vrcp.pop %v9516
      %v9942 = vmul.f32 1.0, %v9941
      %v9943 = vrcp.pop %v9517
      %v9944 = vmul.f32 1.0, %v9943
      %v9945 = vrcp.pop %v9518
      %v9946 = vmul.f32 1.0, %v9945
      %v9947 = vrcp.pop %v9519
      %v9948 = vmul.f32 1.0, %v9947
      %v9949 = vrcp.pop %v9520
      %v9950 = vmul.f32 1.0, %v9949
      %v9951 = vrcp.pop %v9521
      %v9952 = vmul.f32 1.0, %v9951
      %v9953 = vrcp.pop %v9522
      %v9954 = vmul.f32 1.0, %v9953
      %v9955 = vrcp.pop %v9523
      %v9956 = vmul.f32 1.0, %v9955
      %v9957 = vrcp.pop %v9524
      %v9958 = vmul.f32 1.0, %v9957
      %v9959 = vrcp.pop %v9525
      %v9960 = vmul.f32 1.0, %v9959
      %v9961 = vrcp.pop %v9526
      %v9962 = vmul.f32 1.0, %v9961
      %v9963 = vrcp.pop %v9527
      %v9964 = vmul.f32 1.0, %v9963
      %v9965 = vrcp.pop %v9528
      %v9966 = vmul.f32 1.0, %v9965
      %v9967 = vrcp.pop %v9529
      %v9968 = vmul.f32 1.0, %v9967
      %v9969 = vrcp.pop %v9530
      %v9970 = vmul.f32 1.0, %v9969
      %v9971 = vrcp.pop %v9531
      %v9972 = vmul.f32 1.0, %v9971
      %v9973 = vrcp.pop %v9532
      %v9974 = vmul.f32 1.0, %v9973
      %v9975 = vrcp.pop %v9533
      %v9976 = vmul.f32 1.0, %v9975
      %v9977 = vrcp.pop %v9534
      %v9978 = vmul.f32 1.0, %v9977
      %v9979 = vrcp.pop %v9535
      %v9980 = vmul.f32 1.0, %v9979
      %v9981 = vrcp.pop %v9536
      %v9982 = vmul.f32 1.0, %v9981
      %v9983 = vrcp.pop %v9537
      %v9984 = vmul.f32 1.0, %v9983
      %v9985 = vrcp.pop %v9538
      %v9986 = vmul.f32 1.0, %v9985
      %9987 = vst [vmem:[%s424] sm:$0xff] %v9540
      %9988 = vst [vmem:[%s424 + $0x8] sm:$0xff] %v9542
      %9989 = vst [vmem:[%s424 + $0x10] sm:$0xff] %v9544
      %9990 = vst [vmem:[%s424 + $0x18] sm:$0xff] %v9546
      %9991 = vst [vmem:[%s424 + $0x20] sm:$0xff] %v9548
      %9992 = vst [vmem:[%s424 + $0x28] sm:$0xff] %v9550
      %9993 = vst [vmem:[%s424 + $0x30] sm:$0xff] %v9552
      %9994 = vst [vmem:[%s424 + $0x38] sm:$0xff] %v9554
      %9995 = vst [vmem:[%s424 + $0x40] sm:$0xff] %v9556
      %9996 = vst [vmem:[%s424 + $0x48] sm:$0xff] %v9558
      %9997 = vst [vmem:[%s424 + $0x50] sm:$0xff] %v9560
      %9998 = vst [vmem:[%s424 + $0x58] sm:$0xff] %v9562
      %9999 = vst [vmem:[%s424 + $0x60] sm:$0xff] %v9564
      %10000 = vst [vmem:[%s424 + $0x68] sm:$0xff] %v9566
      %10001 = vst [vmem:[%s424 + $0x70] sm:$0xff] %v9568
      %10002 = vst [vmem:[%s424 + $0x78] sm:$0xff] %v9570
      %10003 = vst [vmem:[%s424 + $0x80] sm:$0xff] %v9572
      %10004 = vst [vmem:[%s424 + $0x88] sm:$0xff] %v9574
      %10005 = vst [vmem:[%s424 + $0x90] sm:$0xff] %v9576
      %10006 = vst [vmem:[%s424 + $0x98] sm:$0xff] %v9578
      %10007 = vst [vmem:[%s424 + $0xa0] sm:$0xff] %v9580
      %10008 = vst [vmem:[%s424 + $0xa8] sm:$0xff] %v9582
      %10009 = vst [vmem:[%s424 + $0xb0] sm:$0xff] %v9584
      %10010 = vst [vmem:[%s424 + $0xb8] sm:$0xff] %v9586
      %10011 = vst [vmem:[%s424 + $0xc0] sm:$0xff] %v9588
      %10012 = vst [vmem:[%s424 + $0xc8] sm:$0xff] %v9590
      %10013 = vst [vmem:[%s424 + $0xd0] sm:$0xff] %v9592
      %10014 = vst [vmem:[%s424 + $0xd8] sm:$0xff] %v9594
      %10015 = vst [vmem:[%s424 + $0xe0] sm:$0xff] %v9596
      %10016 = vst [vmem:[%s424 + $0xe8] sm:$0xff] %v9598
      %10017 = vst [vmem:[%s424 + $0xf0] sm:$0xff] %v9600
      %10018 = vst [vmem:[%s424 + $0xf8] sm:$0xff] %v9602
      %10019 = vst [vmem:[%s424 + $0x100] sm:$0xff] %v9604
      %10020 = vst [vmem:[%s424 + $0x108] sm:$0xff] %v9606
      %10021 = vst [vmem:[%s424 + $0x110] sm:$0xff] %v9608
      %10022 = vst [vmem:[%s424 + $0x118] sm:$0xff] %v9610
      %10023 = vst [vmem:[%s424 + $0x120] sm:$0xff] %v9612
      %10024 = vst [vmem:[%s424 + $0x128] sm:$0xff] %v9614
      %10025 = vst [vmem:[%s424 + $0x130] sm:$0xff] %v9616
      %10026 = vst [vmem:[%s424 + $0x138] sm:$0xff] %v9618
      %10027 = vst [vmem:[%s424 + $0x140] sm:$0xff] %v9620
      %10028 = vst [vmem:[%s424 + $0x148] sm:$0xff] %v9622
      %10029 = vst [vmem:[%s424 + $0x150] sm:$0xff] %v9624
      %10030 = vst [vmem:[%s424 + $0x158] sm:$0xff] %v9626
      %10031 = vst [vmem:[%s424 + $0x160] sm:$0xff] %v9628
      %10032 = vst [vmem:[%s424 + $0x168] sm:$0xff] %v9630
      %10033 = vst [vmem:[%s424 + $0x170] sm:$0xff] %v9632
      %10034 = vst [vmem:[%s424 + $0x178] sm:$0xff] %v9634
      %10035 = vst [vmem:[%s424 + $0x180] sm:$0xff] %v9636
      %10036 = vst [vmem:[%s424 + $0x188] sm:$0xff] %v9638
      %10037 = vst [vmem:[%s424 + $0x190] sm:$0xff] %v9640
      %10038 = vst [vmem:[%s424 + $0x198] sm:$0xff] %v9642
      %10039 = vst [vmem:[%s424 + $0x1a0] sm:$0xff] %v9644
      %10040 = vst [vmem:[%s424 + $0x1a8] sm:$0xff] %v9646
      %10041 = vst [vmem:[%s424 + $0x1b0] sm:$0xff] %v9648
      %10042 = vst [vmem:[%s424 + $0x1b8] sm:$0xff] %v9650
      %10043 = vst [vmem:[%s424 + $0x1c0] sm:$0xff] %v9652
      %10044 = vst [vmem:[%s424 + $0x1c8] sm:$0xff] %v9654
      %10045 = vst [vmem:[%s424 + $0x1d0] sm:$0xff] %v9656
      %10046 = vst [vmem:[%s424 + $0x1d8] sm:$0xff] %v9658
      %10047 = vst [vmem:[%s424 + $0x1e0] sm:$0xff] %v9660
      %10048 = vst [vmem:[%s424 + $0x1e8] sm:$0xff] %v9662
      %10049 = vst [vmem:[%s424 + $0x1f0] sm:$0xff] %v9664
      %10050 = vst [vmem:[%s424 + $0x1f8] sm:$0xff] %v9666
      %10051 = vst [vmem:[%s424 + $0x200] sm:$0xff] %v9668
      %10052 = vst [vmem:[%s424 + $0x208] sm:$0xff] %v9670
      %10053 = vst [vmem:[%s424 + $0x210] sm:$0xff] %v9672
      %10054 = vst [vmem:[%s424 + $0x218] sm:$0xff] %v9674
      %10055 = vst [vmem:[%s424 + $0x220] sm:$0xff] %v9676
      %10056 = vst [vmem:[%s424 + $0x228] sm:$0xff] %v9678
      %10057 = vst [vmem:[%s424 + $0x230] sm:$0xff] %v9680
      %10058 = vst [vmem:[%s424 + $0x238] sm:$0xff] %v9682
      %10059 = vst [vmem:[%s424 + $0x240] sm:$0xff] %v9684
      %10060 = vst [vmem:[%s424 + $0x248] sm:$0xff] %v9686
      %10061 = vst [vmem:[%s424 + $0x250] sm:$0xff] %v9688
      %10062 = vst [vmem:[%s424 + $0x258] sm:$0xff] %v9690
      %10063 = vst [vmem:[%s424 + $0x260] sm:$0xff] %v9692
      %10064 = vst [vmem:[%s424 + $0x268] sm:$0xff] %v9694
      %10065 = vst [vmem:[%s424 + $0x270] sm:$0xff] %v9696
      %10066 = vst [vmem:[%s424 + $0x278] sm:$0xff] %v9698
      %10067 = vst [vmem:[%s424 + $0x280] sm:$0xff] %v9700
      %10068 = vst [vmem:[%s424 + $0x288] sm:$0xff] %v9702
      %10069 = vst [vmem:[%s424 + $0x290] sm:$0xff] %v9704
      %10070 = vst [vmem:[%s424 + $0x298] sm:$0xff] %v9706
      %10071 = vst [vmem:[%s424 + $0x2a0] sm:$0xff] %v9708
      %10072 = vst [vmem:[%s424 + $0x2a8] sm:$0xff] %v9710
      %10073 = vst [vmem:[%s424 + $0x2b0] sm:$0xff] %v9712
      %10074 = vst [vmem:[%s424 + $0x2b8] sm:$0xff] %v9714
      %10075 = vst [vmem:[%s424 + $0x2c0] sm:$0xff] %v9716
      %10076 = vst [vmem:[%s424 + $0x2c8] sm:$0xff] %v9718
      %10077 = vst [vmem:[%s424 + $0x2d0] sm:$0xff] %v9720
      %10078 = vst [vmem:[%s424 + $0x2d8] sm:$0xff] %v9722
      %10079 = vst [vmem:[%s424 + $0x2e0] sm:$0xff] %v9724
      %10080 = vst [vmem:[%s424 + $0x2e8] sm:$0xff] %v9726
      %10081 = vst [vmem:[%s424 + $0x2f0] sm:$0xff] %v9728
      %10082 = vst [vmem:[%s424 + $0x2f8] sm:$0xff] %v9730
      %10083 = vst [vmem:[%s424 + $0x300] sm:$0xff] %v9732
      %10084 = vst [vmem:[%s424 + $0x308] sm:$0xff] %v9734
      %10085 = vst [vmem:[%s424 + $0x310] sm:$0xff] %v9736
      %10086 = vst [vmem:[%s424 + $0x318] sm:$0xff] %v9738
      %10087 = vst [vmem:[%s424 + $0x320] sm:$0xff] %v9740
      %10088 = vst [vmem:[%s424 + $0x328] sm:$0xff] %v9742
      %10089 = vst [vmem:[%s424 + $0x330] sm:$0xff] %v9744
      %10090 = vst [vmem:[%s424 + $0x338] sm:$0xff] %v9746
      %10091 = vst [vmem:[%s424 + $0x340] sm:$0xff] %v9748
      %10092 = vst [vmem:[%s424 + $0x348] sm:$0xff] %v9750
      %10093 = vst [vmem:[%s424 + $0x350] sm:$0xff] %v9752
      %10094 = vst [vmem:[%s424 + $0x358] sm:$0xff] %v9754
      %10095 = vst [vmem:[%s424 + $0x360] sm:$0xff] %v9756
      %10096 = vst [vmem:[%s424 + $0x368] sm:$0xff] %v9758
      %10097 = vst [vmem:[%s424 + $0x370] sm:$0xff] %v9760
      %10098 = vst [vmem:[%s424 + $0x378] sm:$0xff] %v9762
      %10099 = vst [vmem:[%s424 + $0x380] sm:$0xff] %v9764
      %10100 = vst [vmem:[%s424 + $0x388] sm:$0xff] %v9766
      %10101 = vst [vmem:[%s424 + $0x390] sm:$0xff] %v9768
      %10102 = vst [vmem:[%s424 + $0x398] sm:$0xff] %v9770
      %10103 = vst [vmem:[%s424 + $0x3a0] sm:$0xff] %v9772
      %10104 = vst [vmem:[%s424 + $0x3a8] sm:$0xff] %v9774
      %10105 = vst [vmem:[%s424 + $0x3b0] sm:$0xff] %v9776
      %10106 = vst [vmem:[%s424 + $0x3b8] sm:$0xff] %v9778
      %10107 = vst [vmem:[%s424 + $0x3c0] sm:$0xff] %v9780
      %10108 = vst [vmem:[%s424 + $0x3c8] sm:$0xff] %v9782
      %10109 = vst [vmem:[%s424 + $0x3d0] sm:$0xff] %v9784
      %10110 = vst [vmem:[%s424 + $0x3d8] sm:$0xff] %v9786
      %10111 = vst [vmem:[%s424 + $0x3e0] sm:$0xff] %v9788
      %10112 = vst [vmem:[%s424 + $0x3e8] sm:$0xff] %v9790
      %10113 = vst [vmem:[%s424 + $0x3f0] sm:$0xff] %v9792
      %10114 = vst [vmem:[%s424 + $0x3f8] sm:$0xff] %v9794
      %10115 = vst [vmem:[%s424 + $0x400] sm:$0xff] %v9796
      %10116 = vst [vmem:[%s424 + $0x408] sm:$0xff] %v9798
      %10117 = vst [vmem:[%s424 + $0x410] sm:$0xff] %v9800
      %10118 = vst [vmem:[%s424 + $0x418] sm:$0xff] %v9802
      %10119 = vst [vmem:[%s424 + $0x420] sm:$0xff] %v9804
      %10120 = vst [vmem:[%s424 + $0x428] sm:$0xff] %v9806
      %10121 = vst [vmem:[%s424 + $0x430] sm:$0xff] %v9808
      %10122 = vst [vmem:[%s424 + $0x438] sm:$0xff] %v9810
      %10123 = vst [vmem:[%s424 + $0x440] sm:$0xff] %v9812
      %10124 = vst [vmem:[%s424 + $0x448] sm:$0xff] %v9814
      %10125 = vst [vmem:[%s424 + $0x450] sm:$0xff] %v9816
      %10126 = vst [vmem:[%s424 + $0x458] sm:$0xff] %v9818
      %10127 = vst [vmem:[%s424 + $0x460] sm:$0xff] %v9820
      %10128 = vst [vmem:[%s424 + $0x468] sm:$0xff] %v9822
      %10129 = vst [vmem:[%s424 + $0x470] sm:$0xff] %v9824
      %10130 = vst [vmem:[%s424 + $0x478] sm:$0xff] %v9826
      %10131 = vst [vmem:[%s424 + $0x480] sm:$0xff] %v9828
      %10132 = vst [vmem:[%s424 + $0x488] sm:$0xff] %v9830
      %10133 = vst [vmem:[%s424 + $0x490] sm:$0xff] %v9832
      %10134 = vst [vmem:[%s424 + $0x498] sm:$0xff] %v9834
      %10135 = vst [vmem:[%s424 + $0x4a0] sm:$0xff] %v9836
      %10136 = vst [vmem:[%s424 + $0x4a8] sm:$0xff] %v9838
      %10137 = vst [vmem:[%s424 + $0x4b0] sm:$0xff] %v9840
      %10138 = vst [vmem:[%s424 + $0x4b8] sm:$0xff] %v9842
      %10139 = vst [vmem:[%s424 + $0x4c0] sm:$0xff] %v9844
      %10140 = vst [vmem:[%s424 + $0x4c8] sm:$0xff] %v9846
      %10141 = vst [vmem:[%s424 + $0x4d0] sm:$0xff] %v9848
      %10142 = vst [vmem:[%s424 + $0x4d8] sm:$0xff] %v9850
      %10143 = vst [vmem:[%s424 + $0x4e0] sm:$0xff] %v9852
      %10144 = vst [vmem:[%s424 + $0x4e8] sm:$0xff] %v9854
      %10145 = vst [vmem:[%s424 + $0x4f0] sm:$0xff] %v9856
      %10146 = vst [vmem:[%s424 + $0x4f8] sm:$0xff] %v9858
      %10147 = vst [vmem:[%s424 + $0x500] sm:$0xff] %v9860
      %10148 = vst [vmem:[%s424 + $0x508] sm:$0xff] %v9862
      %10149 = vst [vmem:[%s424 + $0x510] sm:$0xff] %v9864
      %10150 = vst [vmem:[%s424 + $0x518] sm:$0xff] %v9866
      %10151 = vst [vmem:[%s424 + $0x520] sm:$0xff] %v9868
      %10152 = vst [vmem:[%s424 + $0x528] sm:$0xff] %v9870
      %10153 = vst [vmem:[%s424 + $0x530] sm:$0xff] %v9872
      %10154 = vst [vmem:[%s424 + $0x538] sm:$0xff] %v9874
      %10155 = vst [vmem:[%s424 + $0x540] sm:$0xff] %v9876
      %10156 = vst [vmem:[%s424 + $0x548] sm:$0xff] %v9878
      %10157 = vst [vmem:[%s424 + $0x550] sm:$0xff] %v9880
      %10158 = vst [vmem:[%s424 + $0x558] sm:$0xff] %v9882
      %10159 = vst [vmem:[%s424 + $0x560] sm:$0xff] %v9884
      %10160 = vst [vmem:[%s424 + $0x568] sm:$0xff] %v9886
      %10161 = vst [vmem:[%s424 + $0x570] sm:$0xff] %v9888
      %10162 = vst [vmem:[%s424 + $0x578] sm:$0xff] %v9890
      %10163 = vst [vmem:[%s424 + $0x580] sm:$0xff] %v9892
      %10164 = vst [vmem:[%s424 + $0x588] sm:$0xff] %v9894
      %10165 = vst [vmem:[%s424 + $0x590] sm:$0xff] %v9896
      %10166 = vst [vmem:[%s424 + $0x598] sm:$0xff] %v9898
      %10167 = vst [vmem:[%s424 + $0x5a0] sm:$0xff] %v9900
      %10168 = vst [vmem:[%s424 + $0x5a8] sm:$0xff] %v9902
      %10169 = vst [vmem:[%s424 + $0x5b0] sm:$0xff] %v9904
      %10170 = vst [vmem:[%s424 + $0x5b8] sm:$0xff] %v9906
      %10171 = vst [vmem:[%s424 + $0x5c0] sm:$0xff] %v9908
      %10172 = vst [vmem:[%s424 + $0x5c8] sm:$0xff] %v9910
      %10173 = vst [vmem:[%s424 + $0x5d0] sm:$0xff] %v9912
      %10174 = vst [vmem:[%s424 + $0x5d8] sm:$0xff] %v9914
      %10175 = vst [vmem:[%s424 + $0x5e0] sm:$0xff] %v9916
      %10176 = vst [vmem:[%s424 + $0x5e8] sm:$0xff] %v9918
      %10177 = vst [vmem:[%s424 + $0x5f0] sm:$0xff] %v9920
      %10178 = vst [vmem:[%s424 + $0x5f8] sm:$0xff] %v9922
      %10179 = vst [vmem:[%s424 + $0x600] sm:$0xff] %v9924
      %10180 = vst [vmem:[%s424 + $0x608] sm:$0xff] %v9926
      %10181 = vst [vmem:[%s424 + $0x610] sm:$0xff] %v9928
      %10182 = vst [vmem:[%s424 + $0x618] sm:$0xff] %v9930
      %10183 = vst [vmem:[%s424 + $0x620] sm:$0xff] %v9932
      %10184 = vst [vmem:[%s424 + $0x628] sm:$0xff] %v9934
      %10185 = vst [vmem:[%s424 + $0x630] sm:$0xff] %v9936
      %10186 = vst [vmem:[%s424 + $0x638] sm:$0xff] %v9938
      %10187 = vst [vmem:[%s424 + $0x640] sm:$0xff] %v9940
      %10188 = vst [vmem:[%s424 + $0x648] sm:$0xff] %v9942
      %10189 = vst [vmem:[%s424 + $0x650] sm:$0xff] %v9944
      %10190 = vst [vmem:[%s424 + $0x658] sm:$0xff] %v9946
      %10191 = vst [vmem:[%s424 + $0x660] sm:$0xff] %v9948
      %10192 = vst [vmem:[%s424 + $0x668] sm:$0xff] %v9950
      %10193 = vst [vmem:[%s424 + $0x670] sm:$0xff] %v9952
      %10194 = vst [vmem:[%s424 + $0x678] sm:$0xff] %v9954
      %10195 = vst [vmem:[%s424 + $0x680] sm:$0xff] %v9956
      %10196 = vst [vmem:[%s424 + $0x688] sm:$0xff] %v9958
      %10197 = vst [vmem:[%s424 + $0x690] sm:$0xff] %v9960
      %10198 = vst [vmem:[%s424 + $0x698] sm:$0xff] %v9962
      %10199 = vst [vmem:[%s424 + $0x6a0] sm:$0xff] %v9964
      %10200 = vst [vmem:[%s424 + $0x6a8] sm:$0xff] %v9966
      %10201 = vst [vmem:[%s424 + $0x6b0] sm:$0xff] %v9968
      %10202 = vst [vmem:[%s424 + $0x6b8] sm:$0xff] %v9970
      %10203 = vst [vmem:[%s424 + $0x6c0] sm:$0xff] %v9972
      %10204 = vst [vmem:[%s424 + $0x6c8] sm:$0xff] %v9974
      %10205 = vst [vmem:[%s424 + $0x6d0] sm:$0xff] %v9976
      %10206 = vst [vmem:[%s424 + $0x6d8] sm:$0xff] %v9978
      %10207 = vst [vmem:[%s424 + $0x6e0] sm:$0xff] %v9980
      %10208 = vst [vmem:[%s424 + $0x6e8] sm:$0xff] %v9982
      %10209 = vst [vmem:[%s424 + $0x6f0] sm:$0xff] %v9984
      %10210 = vst [vmem:[%s424 + $0x6f8] sm:$0xff] %v9986
      %s10211 = smul.u32 32, %s23
      %p10212 = scmp.lt.s32.totalorder %s10211, 63
      %s10213 = scalar_select %p10212, %s10211, 63
      %s10214 = smul.addr %s10213, 7
      %s10215 = smul.addr %s10214, 8
      %s10216 = scalar_lea.vmem %s10, %s10215
      %s10217 = smul.u32 32, %s23
      %p10218 = scmp.lt.s32.totalorder %s10217, 63
      %s10219 = scalar_select %p10218, %s10217, 63
      %s10220 = smul.addr %s10219, 2
      %s10221 = smul.addr %s10220, 8
      %s10222 = scalar_lea.vmem %s11, %s10221
      // Predicated region
      $region61: #{vae_forward.1} parent=59 // pred_check
        %p10223 = pneg %p261
      $region62: #{vae_forward.1} parent=59 // pred_check_branch
        %10225 = sbr.rel (%p10223) target = $region64
      $region63: #{vae_forward.1} parent=59 // pred_region
        %s10226 = smul.u32 32, %s23
      $region64: #{vae_forward.1} parent=59 // pred_fallthru
        _
      // Predicated region
      $region65: #{vae_forward.1} parent=59 // pred_check
        %p10227 = pneg %p287
      $region66: #{vae_forward.1} parent=59 // pred_check_branch
        %10229 = sbr.rel (%p10227) target = $region68
      $region67: #{vae_forward.1} parent=59 // pred_region
        %s10230 = smul.u32 32, %s23
      $region68: #{vae_forward.1} parent=59 // pred_fallthru
        _
    $region60: #{vae_forward.1} parent=5 // pred_fallthru
      _
    %p10231 = scmp.le.s32.totalorder 2, %s18
    // Predicated region
    $region69: #{vae_forward.1} parent=5 // pred_check
      %p10232 = pneg %p10231
    $region70: #{vae_forward.1} parent=5 // pred_check_branch
      %10234 = sbr.rel (%p10232) target = $region72
    $region71: #{vae_forward.1} parent=5 // pred_region
      %s10235 = ssub.s32 %s18, 2
      // Predicated region
      $region73: #{vae_forward.1} parent=71 // pred_check
        %p10236 = pneg %p267
      $region74: #{vae_forward.1} parent=71 // pred_check_branch
        %10238 = sbr.rel (%p10236) target = $region76
      $region75: #{vae_forward.1} parent=71 // pred_region
        %s10239 = smul.u32 32, %s24
        %p10240 = scmp.lt.s32.totalorder %s10239, 63
        %s10241 = scalar_select %p10240, %s10239, 63
        %s10242 = smul.addr %s10241, 7
        %s10243 = smul.addr %s10242, 8
        %s10244 = scalar_lea.vmem %s10, %s10243
      $region76: #{vae_forward.1} parent=71 // pred_fallthru
        _
      // Predicated region
      $region77: #{vae_forward.1} parent=71 // pred_check
        %p10245 = pneg %p293
      $region78: #{vae_forward.1} parent=71 // pred_check_branch
        %10247 = sbr.rel (%p10245) target = $region80
      $region79: #{vae_forward.1} parent=71 // pred_region
        %s10248 = smul.u32 32, %s24
        %p10249 = scmp.lt.s32.totalorder %s10248, 63
        %s10250 = scalar_select %p10249, %s10248, 63
        %s10251 = smul.addr %s10250, 2
        %s10252 = smul.addr %s10251, 8
        %s10253 = scalar_lea.vmem %s11, %s10252
      $region80: #{vae_forward.1} parent=71 // pred_fallthru
        _
    $region72: #{vae_forward.1} parent=5 // pred_fallthru
      _
  $region6: #{vae_forward.1} parent=0 // loop_footer
    %s22 = sadd.s32 1, %s18
  $region7: #{vae_forward.1} parent=0 // loop_footer_branch
    %17 = sbr.rel target = $region3
  $region8: #{vae_forward.1} parent=0 // loop_exit
    _

</llo_original>
